<compile_context>
chip_gen: v7x
topology: tpu7x:2x2x1
jax: 0.10.0
libtpu: 0.0.40
codegen_flags: <defaults>
</compile_context>

<pallas_src>
import functools

import jax
import jax.numpy as jnp
from jax.experimental import pallas as pl
from jax.experimental.pallas import tpu as pltpu

EPS = 1e-5
FILTERS = [32, 16, 8]
TAPS = tuple((dy, dx) for dy in (-1, 0, 1) for dx in (-1, 0, 1))


def _fused_fconv_kernel(x1_ref, x2_ref, w3_ref, b5_ref, w6_ref, b6_ref,
                        o_ref, slab_ref, *, H, W, cmax):
    """Whole fconv_in forward in a single kernel invocation.

    Layout: activations are (cmax, N*H*W) f32 -- channels on sublanes,
    pixels of both samples concatenated on lanes (fully lane-dense).

    x1_ref : (N, C1, HW)        f32   input1 (NCHW, HW flattened)
    x2_ref : (N, C2, HW)        f32   input2
    w3_ref : (5, cmax, 9*cmax)  bf16  packed 3x3 weights (zero-padded channels)
    b5_ref : (cmax, 1)          f32   deconv1.0 bias (zero-padded)
    w6_ref : (Cout, cmax)       f32   1x1 weight (zero-padded K)
    b6_ref : (Cout, 1)          f32   1x1 bias
    o_ref  : (N, Cout, HW)      f32   NCHW output (HW flattened, lane-dense)
    slab_ref: VMEM (9*cmax, N*HW) bf16 im2col slab scratch
    """
    N = x1_ref.shape[0]
    HW = H * W
    L = N * HW
    inv_hw = 1.0 / float(HW)

    # ---- assemble act0: (cmax, L), channels on sublanes, pixels on lanes.
    c1, c2 = x1_ref.shape[1], x2_ref.shape[1]
    cols = []
    for n in range(N):
        parts = [x1_ref[n], x2_ref[n]]
        if cmax - c1 - c2 > 0:
            parts.append(jnp.zeros((cmax - c1 - c2, HW), jnp.float32))
        cols.append(jnp.concatenate(parts, axis=0))      # (cmax, HW)
    act = jnp.concatenate(cols, axis=1)                  # (cmax, L)

    # ---- precomputed 'same'-padding masks (also kill cross-sample roll wrap).
    lane = jax.lax.broadcasted_iota(jnp.int32, (1, L), 1)
    pix = jnp.bitwise_and(lane, HW - 1) if (HW & (HW - 1)) == 0 else lane % HW
    ww = jnp.bitwise_and(pix, W - 1) if (W & (W - 1)) == 0 else pix % W
    row_ok = {-1: pix >= W, 0: None, 1: pix < (H - 1) * W}
    col_ok = {-1: ww >= 1, 0: None, 1: ww <= W - 2}

    def build_slab(a):
        """Store the 9 shifted+masked taps of `a` into the bf16 slab."""
        for ti, (dy, dx) in enumerate(TAPS):
            s = dy * W + dx
            # shifted[:, l] = a[:, l + s]  (lane rotation on the XLU slot).
            r = a if s == 0 else pltpu.roll(a, (-s) % L, axis=1)
            ok_r, ok_c = row_ok[dy], col_ok[dx]
            ok = ok_r if ok_c is None else (ok_c if ok_r is None else ok_r & ok_c)
            if ok is not None:
                r = jnp.where(ok, r, 0.0)
            # 32-row aligned, full-lane-width (unmasked) store.
            slab_ref[ti * cmax:(ti + 1) * cmax, :] = r.astype(jnp.bfloat16)

    def instance_norm_relu(res):
        """Per-sample InstanceNorm2d(affine=False) + ReLU on (cmax, L) f32."""
        halves = []
        for n in range(N):
            r = res[:, n * HW:(n + 1) * HW]        # aligned 256-lane slice
            mean = jnp.sum(r, axis=1, keepdims=True) * inv_hw
            ex2 = jnp.sum(r * r, axis=1, keepdims=True) * inv_hw
            var = ex2 - mean * mean                # one-pass (biased) variance
            y = (r - mean) * jax.lax.rsqrt(var + EPS)
            halves.append(jnp.maximum(y, 0.0))
        return jnp.concatenate(halves, axis=1)

    # ---- conv1 (x2) + conv2 (x2): conv3x3 -> InstanceNorm -> ReLU.
    # Conv bias is skipped: InstanceNorm(affine=False) subtracts the per-channel
    # mean, which cancels a constant per-channel bias exactly.
    for layer in range(4):
        build_slab(act)
        res = jnp.dot(w3_ref[layer], slab_ref[...],
                      preferred_element_type=jnp.float32)     # (cmax, L) f32
        act = instance_norm_relu(res)

    # ---- deconv1.0: conv3x3 -> ReLU (bias kept, no IN).
    build_slab(act)
    res = jnp.dot(w3_ref[4], slab_ref[...],
                  preferred_element_type=jnp.float32) + b5_ref[...]
    act = jnp.maximum(res, 0.0)

    # ---- deconv1.2: 1x1 conv (pure channel matmul), lane-dense NCHW store.
    out = jnp.dot(w6_ref[...], act,
                  preferred_element_type=jnp.float32) + b6_ref[...]   # (Cout, L)
    for n in range(N):
        o_ref[n, :, :] = out[:, n * HW:(n + 1) * HW]


def pack_params(params, cmax):
    """Pack HWIO conv params into the kernel's padded, MXU-ready layout.

    Note: real PyTorch weights are OIHW and would need w.transpose(2, 3, 1, 0)
    before this packing.
    """
    # Five 3x3 layers -> one (5, cmax, 9*cmax) bf16 stack; K order = (kh, kw, cin).
    stack = []
    for w, _ in params[:5]:
        kh, kw, ci, co = w.shape
        wp = jnp.pad(w.astype(jnp.float32),
                     ((0, 0), (0, 0), (0, cmax - ci), (0, cmax - co)))
        stack.append(jnp.transpose(wp, (3, 0, 1, 2)).reshape(cmax, 9 * cmax))
    w3 = jnp.stack(stack).astype(jnp.bfloat16)

    # deconv1.0 bias (the only conv bias that survives: IN cancels the others).
    b5_raw = params[4][1].astype(jnp.float32).reshape(-1, 1)
    b5 = jnp.pad(b5_raw, ((0, cmax - b5_raw.shape[0]), (0, 0)))

    # 1x1 conv: (1, 1, cin, cout) -> (cout, cmax) with zero-padded K.
    w6_raw, b6_raw = params[5]
    ci, co = w6_raw.shape[2], w6_raw.shape[3]
    w6 = jnp.pad(jnp.transpose(w6_raw.reshape(ci, co)).astype(jnp.float32),
                 ((0, 0), (0, cmax - ci)))
    b6 = b6_raw.astype(jnp.float32).reshape(co, 1)
    return w3, b5, w6, b6


def fconv_in_forward(packed, input1_nchw, input2_nchw):
    """Forward pass matching fconv_in.forward (NCHW in / NCHW out)."""
    w3, b5, w6, b6 = packed
    N, C1, H, W = input1_nchw.shape
    C2 = input2_nchw.shape[1]
    HW = H * W
    cmax = w3.shape[1]
    outc = w6.shape[0]

    # Wrapper-side glue is reduced to free contiguous reshapes: the channel
    # concat and layout change happen inside the kernel.
    x1 = input1_nchw.reshape(N, C1, HW).astype(jnp.float32)
    x2 = input2_nchw.reshape(N, C2, HW).astype(jnp.float32)

    cin0 = C1 + C2
    f0, f1, f2 = FILTERS
    macs = 9 * (cin0 * f0 + f0 * f0 + f0 * f1 + f1 * f1 + f1 * f2) + f2 * outc
    flops = 2 * N * HW * macs
    transcendentals = N * (2 * f0 + 2 * f1)  # one rsqrt per IN channel
    bytes_accessed = ((x1.size + x2.size + N * HW * outc) * 4
                      + w3.size * 2 + (b5.size + w6.size + b6.size) * 4)

    kernel = functools.partial(_fused_fconv_kernel, H=H, W=W, cmax=cmax)
    out = pl.pallas_call(
        kernel,
        out_shape=jax.ShapeDtypeStruct((N, outc, HW), jnp.float32),
        grid=(1,),
        in_specs=[
            pl.BlockSpec((N, C1, HW), lambda i: (0, 0, 0)),
            pl.BlockSpec((N, C2, HW), lambda i: (0, 0, 0)),
            pl.BlockSpec(w3.shape, lambda i: (0, 0, 0)),
            pl.BlockSpec(b5.shape, lambda i: (0, 0)),
            pl.BlockSpec(w6.shape, lambda i: (0, 0)),
            pl.BlockSpec(b6.shape, lambda i: (0, 0)),
        ],
        out_specs=pl.BlockSpec((N, outc, HW), lambda i: (0, 0, 0)),
        scratch_shapes=[
            pltpu.VMEM((9 * cmax, N * HW), jnp.bfloat16),   # im2col slab
        ],
        compiler_params=pltpu.CompilerParams(
            dimension_semantics=("arbitrary",)),
        cost_estimate=pl.CostEstimate(flops=flops,
                                      transcendentals=transcendentals,
                                      bytes_accessed=bytes_accessed),
    )(x1, x2, w3, b5, w6, b6)

    # (N, Cout, H*W) -> (N, Cout, H, W): free contiguous reshape.
    return out.reshape(N, outc, H, W)


def init_params(key, input_channel1, input_channel2, output_channel):
    """Deterministic synthetic parameters, HWIO layout (KH, KW, Cin, Cout).

    Note: real PyTorch weights are OIHW and would need w.transpose(2, 3, 1, 0).
    """
    cin0 = input_channel1 + input_channel2
    shapes = [
        ((3, 3, cin0, FILTERS[0]), (FILTERS[0],)),        # conv1.0
        ((3, 3, FILTERS[0], FILTERS[0]), (FILTERS[0],)),  # conv1.3
        ((3, 3, FILTERS[0], FILTERS[1]), (FILTERS[1],)),  # conv2.0
        ((3, 3, FILTERS[1], FILTERS[1]), (FILTERS[1],)),  # conv2.3
        ((3, 3, FILTERS[1], FILTERS[2]), (FILTERS[2],)),  # deconv1.0
        ((1, 1, FILTERS[2], output_channel), (output_channel,)),  # deconv1.2
    ]
    params = []
    for ws, bs in shapes:
        key, kw_key, kb_key = jax.random.split(key, 3)
        fan_in = ws[0] * ws[1] * ws[2]
        scale = 1.0 / jnp.sqrt(jnp.float32(fan_in))
        w = jax.random.uniform(kw_key, ws, jnp.float32, -scale, scale)
        b = jax.random.uniform(kb_key, bs, jnp.float32, -scale, scale)
        params.append((w, b))
    return params


if __name__ == "__main__":
    key = jax.random.PRNGKey(0)
    k_in1, k_in2, k_par = jax.random.split(key, 3)

    N, C1, C2, Cout, H, W = 2, 4, 4, 2, 16, 16
    input1 = jax.random.normal(k_in1, (N, C1, H, W), jnp.float32)
    input2 = jax.random.normal(k_in2, (N, C2, H, W), jnp.float32)

    params = init_params(k_par, C1, C2, Cout)
    cmax = max(FILTERS[0], C1 + C2)
    packed = pack_params(params, cmax)

    out = jax.jit(fconv_in_forward)(packed, input1, input2)
    out = jax.block_until_ready(out)
    assert out.shape == (N, Cout, H, W), out.shape
    assert jnp.all(jnp.isfinite(out))
    print("KERNEL_OK")
</pallas_src>

<mosaic_0001>
module attributes {stable_mosaic.version = 11 : i64} {
  func.func @_fused_fconv_kernel(%arg0: i32, %arg1: memref<2x4x256xf32, #tpu.memory_space<vmem>>, %arg2: memref<2x4x256xf32, #tpu.memory_space<vmem>>, %arg3: memref<5x32x288xbf16, #tpu.memory_space<vmem>>, %arg4: memref<32x1xf32, #tpu.memory_space<vmem>>, %arg5: memref<2x32xf32, #tpu.memory_space<vmem>>, %arg6: memref<2x1xf32, #tpu.memory_space<vmem>>, %arg7: memref<2x2x256xf32, #tpu.memory_space<vmem>>, %arg8: memref<288x512xbf16, #tpu.memory_space<vmem>>) attributes {dimension_semantics = [#tpu.dimension_semantics<arbitrary>], iteration_bounds = array<i64: 1>, scalar_prefetch = 0 : i64, scratch_operands = 1 : i64, tpu.core_type = #tpu.core_type<tc>, window_params = [{pipeline_mode = #tpu.pipeline_mode<synchronous>, transform_indices = @transform_0, window_bounds = array<i64: 2, 4, 256>}, {pipeline_mode = #tpu.pipeline_mode<synchronous>, transform_indices = @transform_1, window_bounds = array<i64: 2, 4, 256>}, {pipeline_mode = #tpu.pipeline_mode<synchronous>, transform_indices = @transform_2, window_bounds = array<i64: 5, 32, 288>}, {pipeline_mode = #tpu.pipeline_mode<synchronous>, transform_indices = @transform_3, window_bounds = array<i64: 32, 1>}, {pipeline_mode = #tpu.pipeline_mode<synchronous>, transform_indices = @transform_4, window_bounds = array<i64: 2, 32>}, {pipeline_mode = #tpu.pipeline_mode<synchronous>, transform_indices = @transform_5, window_bounds = array<i64: 2, 1>}, {pipeline_mode = #tpu.pipeline_mode<synchronous>, transform_indices = @transform_6, window_bounds = array<i64: 2, 2, 256>}]} {
    %c0 = arith.constant 0 : index
    %c0_0 = arith.constant 0 : index
    %c0_1 = arith.constant 0 : index
    %0 = vector.load %arg1[%c0, %c0_0, %c0_1] : memref<2x4x256xf32, #tpu.memory_space<vmem>>, vector<1x4x256xf32>
    %1 = vector.shape_cast %0 : vector<1x4x256xf32> to vector<4x256xf32>
    %c0_2 = arith.constant 0 : index
    %c0_3 = arith.constant 0 : index
    %c0_4 = arith.constant 0 : index
    %2 = vector.load %arg2[%c0_2, %c0_3, %c0_4] : memref<2x4x256xf32, #tpu.memory_space<vmem>>, vector<1x4x256xf32>
    %3 = vector.shape_cast %2 : vector<1x4x256xf32> to vector<4x256xf32>
    %cst = arith.constant 0.000000e+00 : f32
    %4 = vector.broadcast %cst : f32 to vector<24x256xf32>
    %5 = tpu.concatenate %1, %3, %4 in 0 : vector<4x256xf32>, vector<4x256xf32>, vector<24x256xf32> -> vector<32x256xf32>
    %c1 = arith.constant 1 : index
    %c0_5 = arith.constant 0 : index
    %c0_6 = arith.constant 0 : index
    %6 = vector.load %arg1[%c1, %c0_5, %c0_6] : memref<2x4x256xf32, #tpu.memory_space<vmem>>, vector<1x4x256xf32>
    %7 = vector.shape_cast %6 : vector<1x4x256xf32> to vector<4x256xf32>
    %c1_7 = arith.constant 1 : index
    %c0_8 = arith.constant 0 : index
    %c0_9 = arith.constant 0 : index
    %8 = vector.load %arg2[%c1_7, %c0_8, %c0_9] : memref<2x4x256xf32, #tpu.memory_space<vmem>>, vector<1x4x256xf32>
    %9 = vector.shape_cast %8 : vector<1x4x256xf32> to vector<4x256xf32>
    %cst_10 = arith.constant 0.000000e+00 : f32
    %10 = vector.broadcast %cst_10 : f32 to vector<24x256xf32>
    %11 = tpu.concatenate %7, %9, %10 in 0 : vector<4x256xf32>, vector<4x256xf32>, vector<24x256xf32> -> vector<32x256xf32>
    %12 = tpu.concatenate %5, %11 in 1 : vector<32x256xf32>, vector<32x256xf32> -> vector<32x512xf32>
    %13 = tpu.iota {dimensions = array<i32: 1>} : vector<1x512xi32>
    %c255_i32 = arith.constant 255 : i32
    %14 = vector.broadcast %c255_i32 : i32 to vector<1x512xi32>
    %15 = arith.andi %13, %14 : vector<1x512xi32>
    %c15_i32 = arith.constant 15 : i32
    %16 = vector.broadcast %c15_i32 : i32 to vector<1x512xi32>
    %17 = arith.andi %15, %16 : vector<1x512xi32>
    %c16_i32 = arith.constant 16 : i32
    %18 = vector.broadcast %c16_i32 : i32 to vector<1x512xi32>
    %19 = arith.cmpi sge, %15, %18 : vector<1x512xi32>
    %c240_i32 = arith.constant 240 : i32
    %20 = vector.broadcast %c240_i32 : i32 to vector<1x512xi32>
    %21 = arith.cmpi slt, %15, %20 : vector<1x512xi32>
    %c1_i32 = arith.constant 1 : i32
    %22 = vector.broadcast %c1_i32 : i32 to vector<1x512xi32>
    %23 = arith.cmpi sge, %17, %22 : vector<1x512xi32>
    %c14_i32 = arith.constant 14 : i32
    %24 = vector.broadcast %c14_i32 : i32 to vector<1x512xi32>
    %25 = arith.cmpi sle, %17, %24 : vector<1x512xi32>
    %c17_i32 = arith.constant 17 : i32
    %26 = tpu.dynamic_rotate %12 by %c17_i32 dim 1 : vector<32x512xf32>, i32 -> vector<32x512xf32>
    %27 = arith.andi %19, %23 : vector<1x512xi1>
    %cst_11 = arith.constant 0.000000e+00 : f32
    %28 = vector.shape_cast %27 : vector<1x512xi1> to vector<1x512xi1>
    %29 = vector.broadcast %28 : vector<1x512xi1> to vector<32x512xi1>
    %30 = vector.broadcast %cst_11 : f32 to vector<32x512xf32>
    %31 = arith.select %29, %26, %30 : vector<32x512xi1>, vector<32x512xf32>
    %32 = arith.truncf %31 : vector<32x512xf32> to vector<32x512xbf16>
    %c0_12 = arith.constant 0 : index
    %c0_13 = arith.constant 0 : index
    %33 = vector.load %arg8[%c0_12, %c0_13] : memref<288x512xbf16, #tpu.memory_space<vmem>>, vector<32x512xbf16>
    tpu.vector_store %arg8[%c0_12, %c0_13], %32 {strides = array<i32>} : memref<288x512xbf16, #tpu.memory_space<vmem>>, vector<32x512xbf16>,
    %c16_i32_14 = arith.constant 16 : i32
    %34 = tpu.dynamic_rotate %12 by %c16_i32_14 dim 1 : vector<32x512xf32>, i32 -> vector<32x512xf32>
    %cst_15 = arith.constant 0.000000e+00 : f32
    %35 = vector.shape_cast %19 : vector<1x512xi1> to vector<1x512xi1>
    %36 = vector.broadcast %35 : vector<1x512xi1> to vector<32x512xi1>
    %37 = vector.broadcast %cst_15 : f32 to vector<32x512xf32>
    %38 = arith.select %36, %34, %37 : vector<32x512xi1>, vector<32x512xf32>
    %39 = arith.truncf %38 : vector<32x512xf32> to vector<32x512xbf16>
    %c32 = arith.constant 32 : index
    %c0_16 = arith.constant 0 : index
    %40 = vector.load %arg8[%c32, %c0_16] : memref<288x512xbf16, #tpu.memory_space<vmem>>, vector<32x512xbf16>
    tpu.vector_store %arg8[%c32, %c0_16], %39 {strides = array<i32>} : memref<288x512xbf16, #tpu.memory_space<vmem>>, vector<32x512xbf16>,
    %c15_i32_17 = arith.constant 15 : i32
    %41 = tpu.dynamic_rotate %12 by %c15_i32_17 dim 1 : vector<32x512xf32>, i32 -> vector<32x512xf32>
    %42 = arith.andi %19, %25 : vector<1x512xi1>
    %cst_18 = arith.constant 0.000000e+00 : f32
    %43 = vector.shape_cast %42 : vector<1x512xi1> to vector<1x512xi1>
    %44 = vector.broadcast %43 : vector<1x512xi1> to vector<32x512xi1>
    %45 = vector.broadcast %cst_18 : f32 to vector<32x512xf32>
    %46 = arith.select %44, %41, %45 : vector<32x512xi1>, vector<32x512xf32>
    %47 = arith.truncf %46 : vector<32x512xf32> to vector<32x512xbf16>
    %c64 = arith.constant 64 : index
    %c0_19 = arith.constant 0 : index
    %48 = vector.load %arg8[%c64, %c0_19] : memref<288x512xbf16, #tpu.memory_space<vmem>>, vector<32x512xbf16>
    tpu.vector_store %arg8[%c64, %c0_19], %47 {strides = array<i32>} : memref<288x512xbf16, #tpu.memory_space<vmem>>, vector<32x512xbf16>,
    %c1_i32_20 = arith.constant 1 : i32
    %49 = tpu.dynamic_rotate %12 by %c1_i32_20 dim 1 : vector<32x512xf32>, i32 -> vector<32x512xf32>
    %cst_21 = arith.constant 0.000000e+00 : f32
    %50 = vector.shape_cast %23 : vector<1x512xi1> to vector<1x512xi1>
    %51 = vector.broadcast %50 : vector<1x512xi1> to vector<32x512xi1>
    %52 = vector.broadcast %cst_21 : f32 to vector<32x512xf32>
    %53 = arith.select %51, %49, %52 : vector<32x512xi1>, vector<32x512xf32>
    %54 = arith.truncf %53 : vector<32x512xf32> to vector<32x512xbf16>
    %c96 = arith.constant 96 : index
    %c0_22 = arith.constant 0 : index
    %55 = vector.load %arg8[%c96, %c0_22] : memref<288x512xbf16, #tpu.memory_space<vmem>>, vector<32x512xbf16>
    tpu.vector_store %arg8[%c96, %c0_22], %54 {strides = array<i32>} : memref<288x512xbf16, #tpu.memory_space<vmem>>, vector<32x512xbf16>,
    %56 = arith.truncf %12 : vector<32x512xf32> to vector<32x512xbf16>
    %c128 = arith.constant 128 : index
    %c0_23 = arith.constant 0 : index
    %57 = vector.load %arg8[%c128, %c0_23] : memref<288x512xbf16, #tpu.memory_space<vmem>>, vector<32x512xbf16>
    tpu.vector_store %arg8[%c128, %c0_23], %56 {strides = array<i32>} : memref<288x512xbf16, #tpu.memory_space<vmem>>, vector<32x512xbf16>,
    %c511_i32 = arith.constant 511 : i32
    %58 = tpu.dynamic_rotate %12 by %c511_i32 dim 1 : vector<32x512xf32>, i32 -> vector<32x512xf32>
    %cst_24 = arith.constant 0.000000e+00 : f32
    %59 = vector.shape_cast %25 : vector<1x512xi1> to vector<1x512xi1>
    %60 = vector.broadcast %59 : vector<1x512xi1> to vector<32x512xi1>
    %61 = vector.broadcast %cst_24 : f32 to vector<32x512xf32>
    %62 = arith.select %60, %58, %61 : vector<32x512xi1>, vector<32x512xf32>
    %63 = arith.truncf %62 : vector<32x512xf32> to vector<32x512xbf16>
    %c160 = arith.constant 160 : index
    %c0_25 = arith.constant 0 : index
    %64 = vector.load %arg8[%c160, %c0_25] : memref<288x512xbf16, #tpu.memory_space<vmem>>, vector<32x512xbf16>
    tpu.vector_store %arg8[%c160, %c0_25], %63 {strides = array<i32>} : memref<288x512xbf16, #tpu.memory_space<vmem>>, vector<32x512xbf16>,
    %c497_i32 = arith.constant 497 : i32
    %65 = tpu.dynamic_rotate %12 by %c497_i32 dim 1 : vector<32x512xf32>, i32 -> vector<32x512xf32>
    %66 = arith.andi %21, %23 : vector<1x512xi1>
    %cst_26 = arith.constant 0.000000e+00 : f32
    %67 = vector.shape_cast %66 : vector<1x512xi1> to vector<1x512xi1>
    %68 = vector.broadcast %67 : vector<1x512xi1> to vector<32x512xi1>
    %69 = vector.broadcast %cst_26 : f32 to vector<32x512xf32>
    %70 = arith.select %68, %65, %69 : vector<32x512xi1>, vector<32x512xf32>
    %71 = arith.truncf %70 : vector<32x512xf32> to vector<32x512xbf16>
    %c192 = arith.constant 192 : index
    %c0_27 = arith.constant 0 : index
    %72 = vector.load %arg8[%c192, %c0_27] : memref<288x512xbf16, #tpu.memory_space<vmem>>, vector<32x512xbf16>
    tpu.vector_store %arg8[%c192, %c0_27], %71 {strides = array<i32>} : memref<288x512xbf16, #tpu.memory_space<vmem>>, vector<32x512xbf16>,
    %c496_i32 = arith.constant 496 : i32
    %73 = tpu.dynamic_rotate %12 by %c496_i32 dim 1 : vector<32x512xf32>, i32 -> vector<32x512xf32>
    %cst_28 = arith.constant 0.000000e+00 : f32
    %74 = vector.shape_cast %21 : vector<1x512xi1> to vector<1x512xi1>
    %75 = vector.broadcast %74 : vector<1x512xi1> to vector<32x512xi1>
    %76 = vector.broadcast %cst_28 : f32 to vector<32x512xf32>
    %77 = arith.select %75, %73, %76 : vector<32x512xi1>, vector<32x512xf32>
    %78 = arith.truncf %77 : vector<32x512xf32> to vector<32x512xbf16>
    %c224 = arith.constant 224 : index
    %c0_29 = arith.constant 0 : index
    %79 = vector.load %arg8[%c224, %c0_29] : memref<288x512xbf16, #tpu.memory_space<vmem>>, vector<32x512xbf16>
    tpu.vector_store %arg8[%c224, %c0_29], %78 {strides = array<i32>} : memref<288x512xbf16, #tpu.memory_space<vmem>>, vector<32x512xbf16>,
    %c495_i32 = arith.constant 495 : i32
    %80 = tpu.dynamic_rotate %12 by %c495_i32 dim 1 : vector<32x512xf32>, i32 -> vector<32x512xf32>
    %81 = arith.andi %21, %25 : vector<1x512xi1>
    %cst_30 = arith.constant 0.000000e+00 : f32
    %82 = vector.shape_cast %81 : vector<1x512xi1> to vector<1x512xi1>
    %83 = vector.broadcast %82 : vector<1x512xi1> to vector<32x512xi1>
    %84 = vector.broadcast %cst_30 : f32 to vector<32x512xf32>
    %85 = arith.select %83, %80, %84 : vector<32x512xi1>, vector<32x512xf32>
    %86 = arith.truncf %85 : vector<32x512xf32> to vector<32x512xbf16>
    %c256 = arith.constant 256 : index
    %c0_31 = arith.constant 0 : index
    %87 = vector.load %arg8[%c256, %c0_31] : memref<288x512xbf16, #tpu.memory_space<vmem>>, vector<32x512xbf16>
    tpu.vector_store %arg8[%c256, %c0_31], %86 {strides = array<i32>} : memref<288x512xbf16, #tpu.memory_space<vmem>>, vector<32x512xbf16>,
    %c0_32 = arith.constant 0 : index
    %c0_33 = arith.constant 0 : index
    %c0_34 = arith.constant 0 : index
    %88 = vector.load %arg3[%c0_32, %c0_33, %c0_34] : memref<5x32x288xbf16, #tpu.memory_space<vmem>>, vector<1x32x288xbf16>
    %89 = vector.shape_cast %88 : vector<1x32x288xbf16> to vector<32x288xbf16>
    %c0_35 = arith.constant 0 : index
    %c0_36 = arith.constant 0 : index
    %90 = vector.load %arg8[%c0_35, %c0_36] : memref<288x512xbf16, #tpu.memory_space<vmem>>, vector<288x512xbf16>
    %cst_37 = arith.constant dense<0.000000e+00> : vector<32x512xf32>
    %91 = tpu.matmul %89, %90, %cst_37 {dimension_numbers = #tpu.dot_dimension_numbers<[1], [0], [0], [1], [0, 0, 1, 1], [], []>} : vector<32x288xbf16>, vector<288x512xbf16>, vector<32x512xf32> -> vector<32x512xf32>
    %92 = vector.extract_strided_slice %91 {offsets = [0, 0], sizes = [32, 256], strides = [1, 1]} : vector<32x512xf32> to vector<32x256xf32>
    %cst_38 = arith.constant dense<0.000000e+00> : vector<32xf32>
    %93 = vector.multi_reduction <add>, %92, %cst_38 [1] : vector<32x256xf32> to vector<32xf32>
    %94 = vector.shape_cast %93 : vector<32xf32> to vector<32x1xf32>
    %cst_39 = arith.constant 3.906250e-03 : f32
    %95 = vector.broadcast %cst_39 : f32 to vector<32x1xf32>
    %96 = arith.mulf %94, %95 : vector<32x1xf32>
    %97 = arith.mulf %92, %92 : vector<32x256xf32>
    %cst_40 = arith.constant dense<0.000000e+00> : vector<32xf32>
    %98 = vector.multi_reduction <add>, %97, %cst_40 [1] : vector<32x256xf32> to vector<32xf32>
    %99 = vector.shape_cast %98 : vector<32xf32> to vector<32x1xf32>
    %cst_41 = arith.constant 3.906250e-03 : f32
    %100 = vector.broadcast %cst_41 : f32 to vector<32x1xf32>
    %101 = arith.mulf %99, %100 : vector<32x1xf32>
    %102 = arith.mulf %96, %96 : vector<32x1xf32>
    %103 = arith.subf %101, %102 : vector<32x1xf32>
    %104 = vector.broadcast %96 : vector<32x1xf32> to vector<32x256xf32>
    %105 = arith.subf %92, %104 : vector<32x256xf32>
    %cst_42 = arith.constant 9.99999974E-6 : f32
    %106 = vector.broadcast %cst_42 : f32 to vector<32x1xf32>
    %107 = arith.addf %103, %106 : vector<32x1xf32>
    %108 = math.rsqrt %107 : vector<32x1xf32>
    %109 = vector.broadcast %108 : vector<32x1xf32> to vector<32x256xf32>
    %110 = arith.mulf %105, %109 : vector<32x256xf32>
    %cst_43 = arith.constant 0.000000e+00 : f32
    %111 = vector.broadcast %cst_43 : f32 to vector<32x256xf32>
    %112 = arith.maximumf %110, %111 : vector<32x256xf32>
    %113 = vector.extract_strided_slice %91 {offsets = [0, 256], sizes = [32, 256], strides = [1, 1]} : vector<32x512xf32> to vector<32x256xf32>
    %cst_44 = arith.constant dense<0.000000e+00> : vector<32xf32>
    %114 = vector.multi_reduction <add>, %113, %cst_44 [1] : vector<32x256xf32> to vector<32xf32>
    %115 = vector.shape_cast %114 : vector<32xf32> to vector<32x1xf32>
    %cst_45 = arith.constant 3.906250e-03 : f32
    %116 = vector.broadcast %cst_45 : f32 to vector<32x1xf32>
    %117 = arith.mulf %115, %116 : vector<32x1xf32>
    %118 = arith.mulf %113, %113 : vector<32x256xf32>
    %cst_46 = arith.constant dense<0.000000e+00> : vector<32xf32>
    %119 = vector.multi_reduction <add>, %118, %cst_46 [1] : vector<32x256xf32> to vector<32xf32>
    %120 = vector.shape_cast %119 : vector<32xf32> to vector<32x1xf32>
    %cst_47 = arith.constant 3.906250e-03 : f32
    %121 = vector.broadcast %cst_47 : f32 to vector<32x1xf32>
    %122 = arith.mulf %120, %121 : vector<32x1xf32>
    %123 = arith.mulf %117, %117 : vector<32x1xf32>
    %124 = arith.subf %122, %123 : vector<32x1xf32>
    %125 = vector.broadcast %117 : vector<32x1xf32> to vector<32x256xf32>
    %126 = arith.subf %113, %125 : vector<32x256xf32>
    %cst_48 = arith.constant 9.99999974E-6 : f32
    %127 = vector.broadcast %cst_48 : f32 to vector<32x1xf32>
    %128 = arith.addf %124, %127 : vector<32x1xf32>
    %129 = math.rsqrt %128 : vector<32x1xf32>
    %130 = vector.broadcast %129 : vector<32x1xf32> to vector<32x256xf32>
    %131 = arith.mulf %126, %130 : vector<32x256xf32>
    %cst_49 = arith.constant 0.000000e+00 : f32
    %132 = vector.broadcast %cst_49 : f32 to vector<32x256xf32>
    %133 = arith.maximumf %131, %132 : vector<32x256xf32>
    %134 = tpu.concatenate %112, %133 in 1 : vector<32x256xf32>, vector<32x256xf32> -> vector<32x512xf32>
    %c17_i32_50 = arith.constant 17 : i32
    %135 = tpu.dynamic_rotate %134 by %c17_i32_50 dim 1 : vector<32x512xf32>, i32 -> vector<32x512xf32>
    %136 = arith.andi %19, %23 : vector<1x512xi1>
    %cst_51 = arith.constant 0.000000e+00 : f32
    %137 = vector.shape_cast %136 : vector<1x512xi1> to vector<1x512xi1>
    %138 = vector.broadcast %137 : vector<1x512xi1> to vector<32x512xi1>
    %139 = vector.broadcast %cst_51 : f32 to vector<32x512xf32>
    %140 = arith.select %138, %135, %139 : vector<32x512xi1>, vector<32x512xf32>
    %141 = arith.truncf %140 : vector<32x512xf32> to vector<32x512xbf16>
    %c0_52 = arith.constant 0 : index
    %c0_53 = arith.constant 0 : index
    %142 = vector.load %arg8[%c0_52, %c0_53] : memref<288x512xbf16, #tpu.memory_space<vmem>>, vector<32x512xbf16>
    tpu.vector_store %arg8[%c0_52, %c0_53], %141 {strides = array<i32>} : memref<288x512xbf16, #tpu.memory_space<vmem>>, vector<32x512xbf16>,
    %c16_i32_54 = arith.constant 16 : i32
    %143 = tpu.dynamic_rotate %134 by %c16_i32_54 dim 1 : vector<32x512xf32>, i32 -> vector<32x512xf32>
    %cst_55 = arith.constant 0.000000e+00 : f32
    %144 = vector.shape_cast %19 : vector<1x512xi1> to vector<1x512xi1>
    %145 = vector.broadcast %144 : vector<1x512xi1> to vector<32x512xi1>
    %146 = vector.broadcast %cst_55 : f32 to vector<32x512xf32>
    %147 = arith.select %145, %143, %146 : vector<32x512xi1>, vector<32x512xf32>
    %148 = arith.truncf %147 : vector<32x512xf32> to vector<32x512xbf16>
    %c32_56 = arith.constant 32 : index
    %c0_57 = arith.constant 0 : index
    %149 = vector.load %arg8[%c32_56, %c0_57] : memref<288x512xbf16, #tpu.memory_space<vmem>>, vector<32x512xbf16>
    tpu.vector_store %arg8[%c32_56, %c0_57], %148 {strides = array<i32>} : memref<288x512xbf16, #tpu.memory_space<vmem>>, vector<32x512xbf16>,
    %c15_i32_58 = arith.constant 15 : i32
    %150 = tpu.dynamic_rotate %134 by %c15_i32_58 dim 1 : vector<32x512xf32>, i32 -> vector<32x512xf32>
    %151 = arith.andi %19, %25 : vector<1x512xi1>
    %cst_59 = arith.constant 0.000000e+00 : f32
    %152 = vector.shape_cast %151 : vector<1x512xi1> to vector<1x512xi1>
    %153 = vector.broadcast %152 : vector<1x512xi1> to vector<32x512xi1>
    %154 = vector.broadcast %cst_59 : f32 to vector<32x512xf32>
    %155 = arith.select %153, %150, %154 : vector<32x512xi1>, vector<32x512xf32>
    %156 = arith.truncf %155 : vector<32x512xf32> to vector<32x512xbf16>
    %c64_60 = arith.constant 64 : index
    %c0_61 = arith.constant 0 : index
    %157 = vector.load %arg8[%c64_60, %c0_61] : memref<288x512xbf16, #tpu.memory_space<vmem>>, vector<32x512xbf16>
    tpu.vector_store %arg8[%c64_60, %c0_61], %156 {strides = array<i32>} : memref<288x512xbf16, #tpu.memory_space<vmem>>, vector<32x512xbf16>,
    %c1_i32_62 = arith.constant 1 : i32
    %158 = tpu.dynamic_rotate %134 by %c1_i32_62 dim 1 : vector<32x512xf32>, i32 -> vector<32x512xf32>
    %cst_63 = arith.constant 0.000000e+00 : f32
    %159 = vector.shape_cast %23 : vector<1x512xi1> to vector<1x512xi1>
    %160 = vector.broadcast %159 : vector<1x512xi1> to vector<32x512xi1>
    %161 = vector.broadcast %cst_63 : f32 to vector<32x512xf32>
    %162 = arith.select %160, %158, %161 : vector<32x512xi1>, vector<32x512xf32>
    %163 = arith.truncf %162 : vector<32x512xf32> to vector<32x512xbf16>
    %c96_64 = arith.constant 96 : index
    %c0_65 = arith.constant 0 : index
    %164 = vector.load %arg8[%c96_64, %c0_65] : memref<288x512xbf16, #tpu.memory_space<vmem>>, vector<32x512xbf16>
    tpu.vector_store %arg8[%c96_64, %c0_65], %163 {strides = array<i32>} : memref<288x512xbf16, #tpu.memory_space<vmem>>, vector<32x512xbf16>,
    %165 = arith.truncf %134 : vector<32x512xf32> to vector<32x512xbf16>
    %c128_66 = arith.constant 128 : index
    %c0_67 = arith.constant 0 : index
    %166 = vector.load %arg8[%c128_66, %c0_67] : memref<288x512xbf16, #tpu.memory_space<vmem>>, vector<32x512xbf16>
    tpu.vector_store %arg8[%c128_66, %c0_67], %165 {strides = array<i32>} : memref<288x512xbf16, #tpu.memory_space<vmem>>, vector<32x512xbf16>,
    %c511_i32_68 = arith.constant 511 : i32
    %167 = tpu.dynamic_rotate %134 by %c511_i32_68 dim 1 : vector<32x512xf32>, i32 -> vector<32x512xf32>
    %cst_69 = arith.constant 0.000000e+00 : f32
    %168 = vector.shape_cast %25 : vector<1x512xi1> to vector<1x512xi1>
    %169 = vector.broadcast %168 : vector<1x512xi1> to vector<32x512xi1>
    %170 = vector.broadcast %cst_69 : f32 to vector<32x512xf32>
    %171 = arith.select %169, %167, %170 : vector<32x512xi1>, vector<32x512xf32>
    %172 = arith.truncf %171 : vector<32x512xf32> to vector<32x512xbf16>
    %c160_70 = arith.constant 160 : index
    %c0_71 = arith.constant 0 : index
    %173 = vector.load %arg8[%c160_70, %c0_71] : memref<288x512xbf16, #tpu.memory_space<vmem>>, vector<32x512xbf16>
    tpu.vector_store %arg8[%c160_70, %c0_71], %172 {strides = array<i32>} : memref<288x512xbf16, #tpu.memory_space<vmem>>, vector<32x512xbf16>,
    %c497_i32_72 = arith.constant 497 : i32
    %174 = tpu.dynamic_rotate %134 by %c497_i32_72 dim 1 : vector<32x512xf32>, i32 -> vector<32x512xf32>
    %175 = arith.andi %21, %23 : vector<1x512xi1>
    %cst_73 = arith.constant 0.000000e+00 : f32
    %176 = vector.shape_cast %175 : vector<1x512xi1> to vector<1x512xi1>
    %177 = vector.broadcast %176 : vector<1x512xi1> to vector<32x512xi1>
    %178 = vector.broadcast %cst_73 : f32 to vector<32x512xf32>
    %179 = arith.select %177, %174, %178 : vector<32x512xi1>, vector<32x512xf32>
    %180 = arith.truncf %179 : vector<32x512xf32> to vector<32x512xbf16>
    %c192_74 = arith.constant 192 : index
    %c0_75 = arith.constant 0 : index
    %181 = vector.load %arg8[%c192_74, %c0_75] : memref<288x512xbf16, #tpu.memory_space<vmem>>, vector<32x512xbf16>
    tpu.vector_store %arg8[%c192_74, %c0_75], %180 {strides = array<i32>} : memref<288x512xbf16, #tpu.memory_space<vmem>>, vector<32x512xbf16>,
    %c496_i32_76 = arith.constant 496 : i32
    %182 = tpu.dynamic_rotate %134 by %c496_i32_76 dim 1 : vector<32x512xf32>, i32 -> vector<32x512xf32>
    %cst_77 = arith.constant 0.000000e+00 : f32
    %183 = vector.shape_cast %21 : vector<1x512xi1> to vector<1x512xi1>
    %184 = vector.broadcast %183 : vector<1x512xi1> to vector<32x512xi1>
    %185 = vector.broadcast %cst_77 : f32 to vector<32x512xf32>
    %186 = arith.select %184, %182, %185 : vector<32x512xi1>, vector<32x512xf32>
    %187 = arith.truncf %186 : vector<32x512xf32> to vector<32x512xbf16>
    %c224_78 = arith.constant 224 : index
    %c0_79 = arith.constant 0 : index
    %188 = vector.load %arg8[%c224_78, %c0_79] : memref<288x512xbf16, #tpu.memory_space<vmem>>, vector<32x512xbf16>
    tpu.vector_store %arg8[%c224_78, %c0_79], %187 {strides = array<i32>} : memref<288x512xbf16, #tpu.memory_space<vmem>>, vector<32x512xbf16>,
    %c495_i32_80 = arith.constant 495 : i32
    %189 = tpu.dynamic_rotate %134 by %c495_i32_80 dim 1 : vector<32x512xf32>, i32 -> vector<32x512xf32>
    %190 = arith.andi %21, %25 : vector<1x512xi1>
    %cst_81 = arith.constant 0.000000e+00 : f32
    %191 = vector.shape_cast %190 : vector<1x512xi1> to vector<1x512xi1>
    %192 = vector.broadcast %191 : vector<1x512xi1> to vector<32x512xi1>
    %193 = vector.broadcast %cst_81 : f32 to vector<32x512xf32>
    %194 = arith.select %192, %189, %193 : vector<32x512xi1>, vector<32x512xf32>
    %195 = arith.truncf %194 : vector<32x512xf32> to vector<32x512xbf16>
    %c256_82 = arith.constant 256 : index
    %c0_83 = arith.constant 0 : index
    %196 = vector.load %arg8[%c256_82, %c0_83] : memref<288x512xbf16, #tpu.memory_space<vmem>>, vector<32x512xbf16>
    tpu.vector_store %arg8[%c256_82, %c0_83], %195 {strides = array<i32>} : memref<288x512xbf16, #tpu.memory_space<vmem>>, vector<32x512xbf16>,
    %c1_84 = arith.constant 1 : index
    %c0_85 = arith.constant 0 : index
    %c0_86 = arith.constant 0 : index
    %197 = vector.load %arg3[%c1_84, %c0_85, %c0_86] : memref<5x32x288xbf16, #tpu.memory_space<vmem>>, vector<1x32x288xbf16>
    %198 = vector.shape_cast %197 : vector<1x32x288xbf16> to vector<32x288xbf16>
    %c0_87 = arith.constant 0 : index
    %c0_88 = arith.constant 0 : index
    %199 = vector.load %arg8[%c0_87, %c0_88] : memref<288x512xbf16, #tpu.memory_space<vmem>>, vector<288x512xbf16>
    %cst_89 = arith.constant dense<0.000000e+00> : vector<32x512xf32>
    %200 = tpu.matmul %198, %199, %cst_89 {dimension_numbers = #tpu.dot_dimension_numbers<[1], [0], [0], [1], [0, 0, 1, 1], [], []>} : vector<32x288xbf16>, vector<288x512xbf16>, vector<32x512xf32> -> vector<32x512xf32>
    %201 = vector.extract_strided_slice %200 {offsets = [0, 0], sizes = [32, 256], strides = [1, 1]} : vector<32x512xf32> to vector<32x256xf32>
    %cst_90 = arith.constant dense<0.000000e+00> : vector<32xf32>
    %202 = vector.multi_reduction <add>, %201, %cst_90 [1] : vector<32x256xf32> to vector<32xf32>
    %203 = vector.shape_cast %202 : vector<32xf32> to vector<32x1xf32>
    %cst_91 = arith.constant 3.906250e-03 : f32
    %204 = vector.broadcast %cst_91 : f32 to vector<32x1xf32>
    %205 = arith.mulf %203, %204 : vector<32x1xf32>
    %206 = arith.mulf %201, %201 : vector<32x256xf32>
    %cst_92 = arith.constant dense<0.000000e+00> : vector<32xf32>
    %207 = vector.multi_reduction <add>, %206, %cst_92 [1] : vector<32x256xf32> to vector<32xf32>
    %208 = vector.shape_cast %207 : vector<32xf32> to vector<32x1xf32>
    %cst_93 = arith.constant 3.906250e-03 : f32
    %209 = vector.broadcast %cst_93 : f32 to vector<32x1xf32>
    %210 = arith.mulf %208, %209 : vector<32x1xf32>
    %211 = arith.mulf %205, %205 : vector<32x1xf32>
    %212 = arith.subf %210, %211 : vector<32x1xf32>
    %213 = vector.broadcast %205 : vector<32x1xf32> to vector<32x256xf32>
    %214 = arith.subf %201, %213 : vector<32x256xf32>
    %cst_94 = arith.constant 9.99999974E-6 : f32
    %215 = vector.broadcast %cst_94 : f32 to vector<32x1xf32>
    %216 = arith.addf %212, %215 : vector<32x1xf32>
    %217 = math.rsqrt %216 : vector<32x1xf32>
    %218 = vector.broadcast %217 : vector<32x1xf32> to vector<32x256xf32>
    %219 = arith.mulf %214, %218 : vector<32x256xf32>
    %cst_95 = arith.constant 0.000000e+00 : f32
    %220 = vector.broadcast %cst_95 : f32 to vector<32x256xf32>
    %221 = arith.maximumf %219, %220 : vector<32x256xf32>
    %222 = vector.extract_strided_slice %200 {offsets = [0, 256], sizes = [32, 256], strides = [1, 1]} : vector<32x512xf32> to vector<32x256xf32>
    %cst_96 = arith.constant dense<0.000000e+00> : vector<32xf32>
    %223 = vector.multi_reduction <add>, %222, %cst_96 [1] : vector<32x256xf32> to vector<32xf32>
    %224 = vector.shape_cast %223 : vector<32xf32> to vector<32x1xf32>
    %cst_97 = arith.constant 3.906250e-03 : f32
    %225 = vector.broadcast %cst_97 : f32 to vector<32x1xf32>
    %226 = arith.mulf %224, %225 : vector<32x1xf32>
    %227 = arith.mulf %222, %222 : vector<32x256xf32>
    %cst_98 = arith.constant dense<0.000000e+00> : vector<32xf32>
    %228 = vector.multi_reduction <add>, %227, %cst_98 [1] : vector<32x256xf32> to vector<32xf32>
    %229 = vector.shape_cast %228 : vector<32xf32> to vector<32x1xf32>
    %cst_99 = arith.constant 3.906250e-03 : f32
    %230 = vector.broadcast %cst_99 : f32 to vector<32x1xf32>
    %231 = arith.mulf %229, %230 : vector<32x1xf32>
    %232 = arith.mulf %226, %226 : vector<32x1xf32>
    %233 = arith.subf %231, %232 : vector<32x1xf32>
    %234 = vector.broadcast %226 : vector<32x1xf32> to vector<32x256xf32>
    %235 = arith.subf %222, %234 : vector<32x256xf32>
    %cst_100 = arith.constant 9.99999974E-6 : f32
    %236 = vector.broadcast %cst_100 : f32 to vector<32x1xf32>
    %237 = arith.addf %233, %236 : vector<32x1xf32>
    %238 = math.rsqrt %237 : vector<32x1xf32>
    %239 = vector.broadcast %238 : vector<32x1xf32> to vector<32x256xf32>
    %240 = arith.mulf %235, %239 : vector<32x256xf32>
    %cst_101 = arith.constant 0.000000e+00 : f32
    %241 = vector.broadcast %cst_101 : f32 to vector<32x256xf32>
    %242 = arith.maximumf %240, %241 : vector<32x256xf32>
    %243 = tpu.concatenate %221, %242 in 1 : vector<32x256xf32>, vector<32x256xf32> -> vector<32x512xf32>
    %c17_i32_102 = arith.constant 17 : i32
    %244 = tpu.dynamic_rotate %243 by %c17_i32_102 dim 1 : vector<32x512xf32>, i32 -> vector<32x512xf32>
    %245 = arith.andi %19, %23 : vector<1x512xi1>
    %cst_103 = arith.constant 0.000000e+00 : f32
    %246 = vector.shape_cast %245 : vector<1x512xi1> to vector<1x512xi1>
    %247 = vector.broadcast %246 : vector<1x512xi1> to vector<32x512xi1>
    %248 = vector.broadcast %cst_103 : f32 to vector<32x512xf32>
    %249 = arith.select %247, %244, %248 : vector<32x512xi1>, vector<32x512xf32>
    %250 = arith.truncf %249 : vector<32x512xf32> to vector<32x512xbf16>
    %c0_104 = arith.constant 0 : index
    %c0_105 = arith.constant 0 : index
    %251 = vector.load %arg8[%c0_104, %c0_105] : memref<288x512xbf16, #tpu.memory_space<vmem>>, vector<32x512xbf16>
    tpu.vector_store %arg8[%c0_104, %c0_105], %250 {strides = array<i32>} : memref<288x512xbf16, #tpu.memory_space<vmem>>, vector<32x512xbf16>,
    %c16_i32_106 = arith.constant 16 : i32
    %252 = tpu.dynamic_rotate %243 by %c16_i32_106 dim 1 : vector<32x512xf32>, i32 -> vector<32x512xf32>
    %cst_107 = arith.constant 0.000000e+00 : f32
    %253 = vector.shape_cast %19 : vector<1x512xi1> to vector<1x512xi1>
    %254 = vector.broadcast %253 : vector<1x512xi1> to vector<32x512xi1>
    %255 = vector.broadcast %cst_107 : f32 to vector<32x512xf32>
    %256 = arith.select %254, %252, %255 : vector<32x512xi1>, vector<32x512xf32>
    %257 = arith.truncf %256 : vector<32x512xf32> to vector<32x512xbf16>
    %c32_108 = arith.constant 32 : index
    %c0_109 = arith.constant 0 : index
    %258 = vector.load %arg8[%c32_108, %c0_109] : memref<288x512xbf16, #tpu.memory_space<vmem>>, vector<32x512xbf16>
    tpu.vector_store %arg8[%c32_108, %c0_109], %257 {strides = array<i32>} : memref<288x512xbf16, #tpu.memory_space<vmem>>, vector<32x512xbf16>,
    %c15_i32_110 = arith.constant 15 : i32
    %259 = tpu.dynamic_rotate %243 by %c15_i32_110 dim 1 : vector<32x512xf32>, i32 -> vector<32x512xf32>
    %260 = arith.andi %19, %25 : vector<1x512xi1>
    %cst_111 = arith.constant 0.000000e+00 : f32
    %261 = vector.shape_cast %260 : vector<1x512xi1> to vector<1x512xi1>
    %262 = vector.broadcast %261 : vector<1x512xi1> to vector<32x512xi1>
    %263 = vector.broadcast %cst_111 : f32 to vector<32x512xf32>
    %264 = arith.select %262, %259, %263 : vector<32x512xi1>, vector<32x512xf32>
    %265 = arith.truncf %264 : vector<32x512xf32> to vector<32x512xbf16>
    %c64_112 = arith.constant 64 : index
    %c0_113 = arith.constant 0 : index
    %266 = vector.load %arg8[%c64_112, %c0_113] : memref<288x512xbf16, #tpu.memory_space<vmem>>, vector<32x512xbf16>
    tpu.vector_store %arg8[%c64_112, %c0_113], %265 {strides = array<i32>} : memref<288x512xbf16, #tpu.memory_space<vmem>>, vector<32x512xbf16>,
    %c1_i32_114 = arith.constant 1 : i32
    %267 = tpu.dynamic_rotate %243 by %c1_i32_114 dim 1 : vector<32x512xf32>, i32 -> vector<32x512xf32>
    %cst_115 = arith.constant 0.000000e+00 : f32
    %268 = vector.shape_cast %23 : vector<1x512xi1> to vector<1x512xi1>
    %269 = vector.broadcast %268 : vector<1x512xi1> to vector<32x512xi1>
    %270 = vector.broadcast %cst_115 : f32 to vector<32x512xf32>
    %271 = arith.select %269, %267, %270 : vector<32x512xi1>, vector<32x512xf32>
    %272 = arith.truncf %271 : vector<32x512xf32> to vector<32x512xbf16>
    %c96_116 = arith.constant 96 : index
    %c0_117 = arith.constant 0 : index
    %273 = vector.load %arg8[%c96_116, %c0_117] : memref<288x512xbf16, #tpu.memory_space<vmem>>, vector<32x512xbf16>
    tpu.vector_store %arg8[%c96_116, %c0_117], %272 {strides = array<i32>} : memref<288x512xbf16, #tpu.memory_space<vmem>>, vector<32x512xbf16>,
    %274 = arith.truncf %243 : vector<32x512xf32> to vector<32x512xbf16>
    %c128_118 = arith.constant 128 : index
    %c0_119 = arith.constant 0 : index
    %275 = vector.load %arg8[%c128_118, %c0_119] : memref<288x512xbf16, #tpu.memory_space<vmem>>, vector<32x512xbf16>
    tpu.vector_store %arg8[%c128_118, %c0_119], %274 {strides = array<i32>} : memref<288x512xbf16, #tpu.memory_space<vmem>>, vector<32x512xbf16>,
    %c511_i32_120 = arith.constant 511 : i32
    %276 = tpu.dynamic_rotate %243 by %c511_i32_120 dim 1 : vector<32x512xf32>, i32 -> vector<32x512xf32>
    %cst_121 = arith.constant 0.000000e+00 : f32
    %277 = vector.shape_cast %25 : vector<1x512xi1> to vector<1x512xi1>
    %278 = vector.broadcast %277 : vector<1x512xi1> to vector<32x512xi1>
    %279 = vector.broadcast %cst_121 : f32 to vector<32x512xf32>
    %280 = arith.select %278, %276, %279 : vector<32x512xi1>, vector<32x512xf32>
    %281 = arith.truncf %280 : vector<32x512xf32> to vector<32x512xbf16>
    %c160_122 = arith.constant 160 : index
    %c0_123 = arith.constant 0 : index
    %282 = vector.load %arg8[%c160_122, %c0_123] : memref<288x512xbf16, #tpu.memory_space<vmem>>, vector<32x512xbf16>
    tpu.vector_store %arg8[%c160_122, %c0_123], %281 {strides = array<i32>} : memref<288x512xbf16, #tpu.memory_space<vmem>>, vector<32x512xbf16>,
    %c497_i32_124 = arith.constant 497 : i32
    %283 = tpu.dynamic_rotate %243 by %c497_i32_124 dim 1 : vector<32x512xf32>, i32 -> vector<32x512xf32>
    %284 = arith.andi %21, %23 : vector<1x512xi1>
    %cst_125 = arith.constant 0.000000e+00 : f32
    %285 = vector.shape_cast %284 : vector<1x512xi1> to vector<1x512xi1>
    %286 = vector.broadcast %285 : vector<1x512xi1> to vector<32x512xi1>
    %287 = vector.broadcast %cst_125 : f32 to vector<32x512xf32>
    %288 = arith.select %286, %283, %287 : vector<32x512xi1>, vector<32x512xf32>
    %289 = arith.truncf %288 : vector<32x512xf32> to vector<32x512xbf16>
    %c192_126 = arith.constant 192 : index
    %c0_127 = arith.constant 0 : index
    %290 = vector.load %arg8[%c192_126, %c0_127] : memref<288x512xbf16, #tpu.memory_space<vmem>>, vector<32x512xbf16>
    tpu.vector_store %arg8[%c192_126, %c0_127], %289 {strides = array<i32>} : memref<288x512xbf16, #tpu.memory_space<vmem>>, vector<32x512xbf16>,
    %c496_i32_128 = arith.constant 496 : i32
    %291 = tpu.dynamic_rotate %243 by %c496_i32_128 dim 1 : vector<32x512xf32>, i32 -> vector<32x512xf32>
    %cst_129 = arith.constant 0.000000e+00 : f32
    %292 = vector.shape_cast %21 : vector<1x512xi1> to vector<1x512xi1>
    %293 = vector.broadcast %292 : vector<1x512xi1> to vector<32x512xi1>
    %294 = vector.broadcast %cst_129 : f32 to vector<32x512xf32>
    %295 = arith.select %293, %291, %294 : vector<32x512xi1>, vector<32x512xf32>
    %296 = arith.truncf %295 : vector<32x512xf32> to vector<32x512xbf16>
    %c224_130 = arith.constant 224 : index
    %c0_131 = arith.constant 0 : index
    %297 = vector.load %arg8[%c224_130, %c0_131] : memref<288x512xbf16, #tpu.memory_space<vmem>>, vector<32x512xbf16>
    tpu.vector_store %arg8[%c224_130, %c0_131], %296 {strides = array<i32>} : memref<288x512xbf16, #tpu.memory_space<vmem>>, vector<32x512xbf16>,
    %c495_i32_132 = arith.constant 495 : i32
    %298 = tpu.dynamic_rotate %243 by %c495_i32_132 dim 1 : vector<32x512xf32>, i32 -> vector<32x512xf32>
    %299 = arith.andi %21, %25 : vector<1x512xi1>
    %cst_133 = arith.constant 0.000000e+00 : f32
    %300 = vector.shape_cast %299 : vector<1x512xi1> to vector<1x512xi1>
    %301 = vector.broadcast %300 : vector<1x512xi1> to vector<32x512xi1>
    %302 = vector.broadcast %cst_133 : f32 to vector<32x512xf32>
    %303 = arith.select %301, %298, %302 : vector<32x512xi1>, vector<32x512xf32>
    %304 = arith.truncf %303 : vector<32x512xf32> to vector<32x512xbf16>
    %c256_134 = arith.constant 256 : index
    %c0_135 = arith.constant 0 : index
    %305 = vector.load %arg8[%c256_134, %c0_135] : memref<288x512xbf16, #tpu.memory_space<vmem>>, vector<32x512xbf16>
    tpu.vector_store %arg8[%c256_134, %c0_135], %304 {strides = array<i32>} : memref<288x512xbf16, #tpu.memory_space<vmem>>, vector<32x512xbf16>,
    %c2 = arith.constant 2 : index
    %c0_136 = arith.constant 0 : index
    %c0_137 = arith.constant 0 : index
    %306 = vector.load %arg3[%c2, %c0_136, %c0_137] : memref<5x32x288xbf16, #tpu.memory_space<vmem>>, vector<1x32x288xbf16>
    %307 = vector.shape_cast %306 : vector<1x32x288xbf16> to vector<32x288xbf16>
    %c0_138 = arith.constant 0 : index
    %c0_139 = arith.constant 0 : index
    %308 = vector.load %arg8[%c0_138, %c0_139] : memref<288x512xbf16, #tpu.memory_space<vmem>>, vector<288x512xbf16>
    %cst_140 = arith.constant dense<0.000000e+00> : vector<32x512xf32>
    %309 = tpu.matmul %307, %308, %cst_140 {dimension_numbers = #tpu.dot_dimension_numbers<[1], [0], [0], [1], [0, 0, 1, 1], [], []>} : vector<32x288xbf16>, vector<288x512xbf16>, vector<32x512xf32> -> vector<32x512xf32>
    %310 = vector.extract_strided_slice %309 {offsets = [0, 0], sizes = [32, 256], strides = [1, 1]} : vector<32x512xf32> to vector<32x256xf32>
    %cst_141 = arith.constant dense<0.000000e+00> : vector<32xf32>
    %311 = vector.multi_reduction <add>, %310, %cst_141 [1] : vector<32x256xf32> to vector<32xf32>
    %312 = vector.shape_cast %311 : vector<32xf32> to vector<32x1xf32>
    %cst_142 = arith.constant 3.906250e-03 : f32
    %313 = vector.broadcast %cst_142 : f32 to vector<32x1xf32>
    %314 = arith.mulf %312, %313 : vector<32x1xf32>
    %315 = arith.mulf %310, %310 : vector<32x256xf32>
    %cst_143 = arith.constant dense<0.000000e+00> : vector<32xf32>
    %316 = vector.multi_reduction <add>, %315, %cst_143 [1] : vector<32x256xf32> to vector<32xf32>
    %317 = vector.shape_cast %316 : vector<32xf32> to vector<32x1xf32>
    %cst_144 = arith.constant 3.906250e-03 : f32
    %318 = vector.broadcast %cst_144 : f32 to vector<32x1xf32>
    %319 = arith.mulf %317, %318 : vector<32x1xf32>
    %320 = arith.mulf %314, %314 : vector<32x1xf32>
    %321 = arith.subf %319, %320 : vector<32x1xf32>
    %322 = vector.broadcast %314 : vector<32x1xf32> to vector<32x256xf32>
    %323 = arith.subf %310, %322 : vector<32x256xf32>
    %cst_145 = arith.constant 9.99999974E-6 : f32
    %324 = vector.broadcast %cst_145 : f32 to vector<32x1xf32>
    %325 = arith.addf %321, %324 : vector<32x1xf32>
    %326 = math.rsqrt %325 : vector<32x1xf32>
    %327 = vector.broadcast %326 : vector<32x1xf32> to vector<32x256xf32>
    %328 = arith.mulf %323, %327 : vector<32x256xf32>
    %cst_146 = arith.constant 0.000000e+00 : f32
    %329 = vector.broadcast %cst_146 : f32 to vector<32x256xf32>
    %330 = arith.maximumf %328, %329 : vector<32x256xf32>
    %331 = vector.extract_strided_slice %309 {offsets = [0, 256], sizes = [32, 256], strides = [1, 1]} : vector<32x512xf32> to vector<32x256xf32>
    %cst_147 = arith.constant dense<0.000000e+00> : vector<32xf32>
    %332 = vector.multi_reduction <add>, %331, %cst_147 [1] : vector<32x256xf32> to vector<32xf32>
    %333 = vector.shape_cast %332 : vector<32xf32> to vector<32x1xf32>
    %cst_148 = arith.constant 3.906250e-03 : f32
    %334 = vector.broadcast %cst_148 : f32 to vector<32x1xf32>
    %335 = arith.mulf %333, %334 : vector<32x1xf32>
    %336 = arith.mulf %331, %331 : vector<32x256xf32>
    %cst_149 = arith.constant dense<0.000000e+00> : vector<32xf32>
    %337 = vector.multi_reduction <add>, %336, %cst_149 [1] : vector<32x256xf32> to vector<32xf32>
    %338 = vector.shape_cast %337 : vector<32xf32> to vector<32x1xf32>
    %cst_150 = arith.constant 3.906250e-03 : f32
    %339 = vector.broadcast %cst_150 : f32 to vector<32x1xf32>
    %340 = arith.mulf %338, %339 : vector<32x1xf32>
    %341 = arith.mulf %335, %335 : vector<32x1xf32>
    %342 = arith.subf %340, %341 : vector<32x1xf32>
    %343 = vector.broadcast %335 : vector<32x1xf32> to vector<32x256xf32>
    %344 = arith.subf %331, %343 : vector<32x256xf32>
    %cst_151 = arith.constant 9.99999974E-6 : f32
    %345 = vector.broadcast %cst_151 : f32 to vector<32x1xf32>
    %346 = arith.addf %342, %345 : vector<32x1xf32>
    %347 = math.rsqrt %346 : vector<32x1xf32>
    %348 = vector.broadcast %347 : vector<32x1xf32> to vector<32x256xf32>
    %349 = arith.mulf %344, %348 : vector<32x256xf32>
    %cst_152 = arith.constant 0.000000e+00 : f32
    %350 = vector.broadcast %cst_152 : f32 to vector<32x256xf32>
    %351 = arith.maximumf %349, %350 : vector<32x256xf32>
    %352 = tpu.concatenate %330, %351 in 1 : vector<32x256xf32>, vector<32x256xf32> -> vector<32x512xf32>
    %c17_i32_153 = arith.constant 17 : i32
    %353 = tpu.dynamic_rotate %352 by %c17_i32_153 dim 1 : vector<32x512xf32>, i32 -> vector<32x512xf32>
    %354 = arith.andi %19, %23 : vector<1x512xi1>
    %cst_154 = arith.constant 0.000000e+00 : f32
    %355 = vector.shape_cast %354 : vector<1x512xi1> to vector<1x512xi1>
    %356 = vector.broadcast %355 : vector<1x512xi1> to vector<32x512xi1>
    %357 = vector.broadcast %cst_154 : f32 to vector<32x512xf32>
    %358 = arith.select %356, %353, %357 : vector<32x512xi1>, vector<32x512xf32>
    %359 = arith.truncf %358 : vector<32x512xf32> to vector<32x512xbf16>
    %c0_155 = arith.constant 0 : index
    %c0_156 = arith.constant 0 : index
    %360 = vector.load %arg8[%c0_155, %c0_156] : memref<288x512xbf16, #tpu.memory_space<vmem>>, vector<32x512xbf16>
    tpu.vector_store %arg8[%c0_155, %c0_156], %359 {strides = array<i32>} : memref<288x512xbf16, #tpu.memory_space<vmem>>, vector<32x512xbf16>,
    %c16_i32_157 = arith.constant 16 : i32
    %361 = tpu.dynamic_rotate %352 by %c16_i32_157 dim 1 : vector<32x512xf32>, i32 -> vector<32x512xf32>
    %cst_158 = arith.constant 0.000000e+00 : f32
    %362 = vector.shape_cast %19 : vector<1x512xi1> to vector<1x512xi1>
    %363 = vector.broadcast %362 : vector<1x512xi1> to vector<32x512xi1>
    %364 = vector.broadcast %cst_158 : f32 to vector<32x512xf32>
    %365 = arith.select %363, %361, %364 : vector<32x512xi1>, vector<32x512xf32>
    %366 = arith.truncf %365 : vector<32x512xf32> to vector<32x512xbf16>
    %c32_159 = arith.constant 32 : index
    %c0_160 = arith.constant 0 : index
    %367 = vector.load %arg8[%c32_159, %c0_160] : memref<288x512xbf16, #tpu.memory_space<vmem>>, vector<32x512xbf16>
    tpu.vector_store %arg8[%c32_159, %c0_160], %366 {strides = array<i32>} : memref<288x512xbf16, #tpu.memory_space<vmem>>, vector<32x512xbf16>,
    %c15_i32_161 = arith.constant 15 : i32
    %368 = tpu.dynamic_rotate %352 by %c15_i32_161 dim 1 : vector<32x512xf32>, i32 -> vector<32x512xf32>
    %369 = arith.andi %19, %25 : vector<1x512xi1>
    %cst_162 = arith.constant 0.000000e+00 : f32
    %370 = vector.shape_cast %369 : vector<1x512xi1> to vector<1x512xi1>
    %371 = vector.broadcast %370 : vector<1x512xi1> to vector<32x512xi1>
    %372 = vector.broadcast %cst_162 : f32 to vector<32x512xf32>
    %373 = arith.select %371, %368, %372 : vector<32x512xi1>, vector<32x512xf32>
    %374 = arith.truncf %373 : vector<32x512xf32> to vector<32x512xbf16>
    %c64_163 = arith.constant 64 : index
    %c0_164 = arith.constant 0 : index
    %375 = vector.load %arg8[%c64_163, %c0_164] : memref<288x512xbf16, #tpu.memory_space<vmem>>, vector<32x512xbf16>
    tpu.vector_store %arg8[%c64_163, %c0_164], %374 {strides = array<i32>} : memref<288x512xbf16, #tpu.memory_space<vmem>>, vector<32x512xbf16>,
    %c1_i32_165 = arith.constant 1 : i32
    %376 = tpu.dynamic_rotate %352 by %c1_i32_165 dim 1 : vector<32x512xf32>, i32 -> vector<32x512xf32>
    %cst_166 = arith.constant 0.000000e+00 : f32
    %377 = vector.shape_cast %23 : vector<1x512xi1> to vector<1x512xi1>
    %378 = vector.broadcast %377 : vector<1x512xi1> to vector<32x512xi1>
    %379 = vector.broadcast %cst_166 : f32 to vector<32x512xf32>
    %380 = arith.select %378, %376, %379 : vector<32x512xi1>, vector<32x512xf32>
    %381 = arith.truncf %380 : vector<32x512xf32> to vector<32x512xbf16>
    %c96_167 = arith.constant 96 : index
    %c0_168 = arith.constant 0 : index
    %382 = vector.load %arg8[%c96_167, %c0_168] : memref<288x512xbf16, #tpu.memory_space<vmem>>, vector<32x512xbf16>
    tpu.vector_store %arg8[%c96_167, %c0_168], %381 {strides = array<i32>} : memref<288x512xbf16, #tpu.memory_space<vmem>>, vector<32x512xbf16>,
    %383 = arith.truncf %352 : vector<32x512xf32> to vector<32x512xbf16>
    %c128_169 = arith.constant 128 : index
    %c0_170 = arith.constant 0 : index
    %384 = vector.load %arg8[%c128_169, %c0_170] : memref<288x512xbf16, #tpu.memory_space<vmem>>, vector<32x512xbf16>
    tpu.vector_store %arg8[%c128_169, %c0_170], %383 {strides = array<i32>} : memref<288x512xbf16, #tpu.memory_space<vmem>>, vector<32x512xbf16>,
    %c511_i32_171 = arith.constant 511 : i32
    %385 = tpu.dynamic_rotate %352 by %c511_i32_171 dim 1 : vector<32x512xf32>, i32 -> vector<32x512xf32>
    %cst_172 = arith.constant 0.000000e+00 : f32
    %386 = vector.shape_cast %25 : vector<1x512xi1> to vector<1x512xi1>
    %387 = vector.broadcast %386 : vector<1x512xi1> to vector<32x512xi1>
    %388 = vector.broadcast %cst_172 : f32 to vector<32x512xf32>
    %389 = arith.select %387, %385, %388 : vector<32x512xi1>, vector<32x512xf32>
    %390 = arith.truncf %389 : vector<32x512xf32> to vector<32x512xbf16>
    %c160_173 = arith.constant 160 : index
    %c0_174 = arith.constant 0 : index
    %391 = vector.load %arg8[%c160_173, %c0_174] : memref<288x512xbf16, #tpu.memory_space<vmem>>, vector<32x512xbf16>
    tpu.vector_store %arg8[%c160_173, %c0_174], %390 {strides = array<i32>} : memref<288x512xbf16, #tpu.memory_space<vmem>>, vector<32x512xbf16>,
    %c497_i32_175 = arith.constant 497 : i32
    %392 = tpu.dynamic_rotate %352 by %c497_i32_175 dim 1 : vector<32x512xf32>, i32 -> vector<32x512xf32>
    %393 = arith.andi %21, %23 : vector<1x512xi1>
    %cst_176 = arith.constant 0.000000e+00 : f32
    %394 = vector.shape_cast %393 : vector<1x512xi1> to vector<1x512xi1>
    %395 = vector.broadcast %394 : vector<1x512xi1> to vector<32x512xi1>
    %396 = vector.broadcast %cst_176 : f32 to vector<32x512xf32>
    %397 = arith.select %395, %392, %396 : vector<32x512xi1>, vector<32x512xf32>
    %398 = arith.truncf %397 : vector<32x512xf32> to vector<32x512xbf16>
    %c192_177 = arith.constant 192 : index
    %c0_178 = arith.constant 0 : index
    %399 = vector.load %arg8[%c192_177, %c0_178] : memref<288x512xbf16, #tpu.memory_space<vmem>>, vector<32x512xbf16>
    tpu.vector_store %arg8[%c192_177, %c0_178], %398 {strides = array<i32>} : memref<288x512xbf16, #tpu.memory_space<vmem>>, vector<32x512xbf16>,
    %c496_i32_179 = arith.constant 496 : i32
    %400 = tpu.dynamic_rotate %352 by %c496_i32_179 dim 1 : vector<32x512xf32>, i32 -> vector<32x512xf32>
    %cst_180 = arith.constant 0.000000e+00 : f32
    %401 = vector.shape_cast %21 : vector<1x512xi1> to vector<1x512xi1>
    %402 = vector.broadcast %401 : vector<1x512xi1> to vector<32x512xi1>
    %403 = vector.broadcast %cst_180 : f32 to vector<32x512xf32>
    %404 = arith.select %402, %400, %403 : vector<32x512xi1>, vector<32x512xf32>
    %405 = arith.truncf %404 : vector<32x512xf32> to vector<32x512xbf16>
    %c224_181 = arith.constant 224 : index
    %c0_182 = arith.constant 0 : index
    %406 = vector.load %arg8[%c224_181, %c0_182] : memref<288x512xbf16, #tpu.memory_space<vmem>>, vector<32x512xbf16>
    tpu.vector_store %arg8[%c224_181, %c0_182], %405 {strides = array<i32>} : memref<288x512xbf16, #tpu.memory_space<vmem>>, vector<32x512xbf16>,
    %c495_i32_183 = arith.constant 495 : i32
    %407 = tpu.dynamic_rotate %352 by %c495_i32_183 dim 1 : vector<32x512xf32>, i32 -> vector<32x512xf32>
    %408 = arith.andi %21, %25 : vector<1x512xi1>
    %cst_184 = arith.constant 0.000000e+00 : f32
    %409 = vector.shape_cast %408 : vector<1x512xi1> to vector<1x512xi1>
    %410 = vector.broadcast %409 : vector<1x512xi1> to vector<32x512xi1>
    %411 = vector.broadcast %cst_184 : f32 to vector<32x512xf32>
    %412 = arith.select %410, %407, %411 : vector<32x512xi1>, vector<32x512xf32>
    %413 = arith.truncf %412 : vector<32x512xf32> to vector<32x512xbf16>
    %c256_185 = arith.constant 256 : index
    %c0_186 = arith.constant 0 : index
    %414 = vector.load %arg8[%c256_185, %c0_186] : memref<288x512xbf16, #tpu.memory_space<vmem>>, vector<32x512xbf16>
    tpu.vector_store %arg8[%c256_185, %c0_186], %413 {strides = array<i32>} : memref<288x512xbf16, #tpu.memory_space<vmem>>, vector<32x512xbf16>,
    %c3 = arith.constant 3 : index
    %c0_187 = arith.constant 0 : index
    %c0_188 = arith.constant 0 : index
    %415 = vector.load %arg3[%c3, %c0_187, %c0_188] : memref<5x32x288xbf16, #tpu.memory_space<vmem>>, vector<1x32x288xbf16>
    %416 = vector.shape_cast %415 : vector<1x32x288xbf16> to vector<32x288xbf16>
    %c0_189 = arith.constant 0 : index
    %c0_190 = arith.constant 0 : index
    %417 = vector.load %arg8[%c0_189, %c0_190] : memref<288x512xbf16, #tpu.memory_space<vmem>>, vector<288x512xbf16>
    %cst_191 = arith.constant dense<0.000000e+00> : vector<32x512xf32>
    %418 = tpu.matmul %416, %417, %cst_191 {dimension_numbers = #tpu.dot_dimension_numbers<[1], [0], [0], [1], [0, 0, 1, 1], [], []>} : vector<32x288xbf16>, vector<288x512xbf16>, vector<32x512xf32> -> vector<32x512xf32>
    %419 = vector.extract_strided_slice %418 {offsets = [0, 0], sizes = [32, 256], strides = [1, 1]} : vector<32x512xf32> to vector<32x256xf32>
    %cst_192 = arith.constant dense<0.000000e+00> : vector<32xf32>
    %420 = vector.multi_reduction <add>, %419, %cst_192 [1] : vector<32x256xf32> to vector<32xf32>
    %421 = vector.shape_cast %420 : vector<32xf32> to vector<32x1xf32>
    %cst_193 = arith.constant 3.906250e-03 : f32
    %422 = vector.broadcast %cst_193 : f32 to vector<32x1xf32>
    %423 = arith.mulf %421, %422 : vector<32x1xf32>
    %424 = arith.mulf %419, %419 : vector<32x256xf32>
    %cst_194 = arith.constant dense<0.000000e+00> : vector<32xf32>
    %425 = vector.multi_reduction <add>, %424, %cst_194 [1] : vector<32x256xf32> to vector<32xf32>
    %426 = vector.shape_cast %425 : vector<32xf32> to vector<32x1xf32>
    %cst_195 = arith.constant 3.906250e-03 : f32
    %427 = vector.broadcast %cst_195 : f32 to vector<32x1xf32>
    %428 = arith.mulf %426, %427 : vector<32x1xf32>
    %429 = arith.mulf %423, %423 : vector<32x1xf32>
    %430 = arith.subf %428, %429 : vector<32x1xf32>
    %431 = vector.broadcast %423 : vector<32x1xf32> to vector<32x256xf32>
    %432 = arith.subf %419, %431 : vector<32x256xf32>
    %cst_196 = arith.constant 9.99999974E-6 : f32
    %433 = vector.broadcast %cst_196 : f32 to vector<32x1xf32>
    %434 = arith.addf %430, %433 : vector<32x1xf32>
    %435 = math.rsqrt %434 : vector<32x1xf32>
    %436 = vector.broadcast %435 : vector<32x1xf32> to vector<32x256xf32>
    %437 = arith.mulf %432, %436 : vector<32x256xf32>
    %cst_197 = arith.constant 0.000000e+00 : f32
    %438 = vector.broadcast %cst_197 : f32 to vector<32x256xf32>
    %439 = arith.maximumf %437, %438 : vector<32x256xf32>
    %440 = vector.extract_strided_slice %418 {offsets = [0, 256], sizes = [32, 256], strides = [1, 1]} : vector<32x512xf32> to vector<32x256xf32>
    %cst_198 = arith.constant dense<0.000000e+00> : vector<32xf32>
    %441 = vector.multi_reduction <add>, %440, %cst_198 [1] : vector<32x256xf32> to vector<32xf32>
    %442 = vector.shape_cast %441 : vector<32xf32> to vector<32x1xf32>
    %cst_199 = arith.constant 3.906250e-03 : f32
    %443 = vector.broadcast %cst_199 : f32 to vector<32x1xf32>
    %444 = arith.mulf %442, %443 : vector<32x1xf32>
    %445 = arith.mulf %440, %440 : vector<32x256xf32>
    %cst_200 = arith.constant dense<0.000000e+00> : vector<32xf32>
    %446 = vector.multi_reduction <add>, %445, %cst_200 [1] : vector<32x256xf32> to vector<32xf32>
    %447 = vector.shape_cast %446 : vector<32xf32> to vector<32x1xf32>
    %cst_201 = arith.constant 3.906250e-03 : f32
    %448 = vector.broadcast %cst_201 : f32 to vector<32x1xf32>
    %449 = arith.mulf %447, %448 : vector<32x1xf32>
    %450 = arith.mulf %444, %444 : vector<32x1xf32>
    %451 = arith.subf %449, %450 : vector<32x1xf32>
    %452 = vector.broadcast %444 : vector<32x1xf32> to vector<32x256xf32>
    %453 = arith.subf %440, %452 : vector<32x256xf32>
    %cst_202 = arith.constant 9.99999974E-6 : f32
    %454 = vector.broadcast %cst_202 : f32 to vector<32x1xf32>
    %455 = arith.addf %451, %454 : vector<32x1xf32>
    %456 = math.rsqrt %455 : vector<32x1xf32>
    %457 = vector.broadcast %456 : vector<32x1xf32> to vector<32x256xf32>
    %458 = arith.mulf %453, %457 : vector<32x256xf32>
    %cst_203 = arith.constant 0.000000e+00 : f32
    %459 = vector.broadcast %cst_203 : f32 to vector<32x256xf32>
    %460 = arith.maximumf %458, %459 : vector<32x256xf32>
    %461 = tpu.concatenate %439, %460 in 1 : vector<32x256xf32>, vector<32x256xf32> -> vector<32x512xf32>
    %c17_i32_204 = arith.constant 17 : i32
    %462 = tpu.dynamic_rotate %461 by %c17_i32_204 dim 1 : vector<32x512xf32>, i32 -> vector<32x512xf32>
    %463 = arith.andi %19, %23 : vector<1x512xi1>
    %cst_205 = arith.constant 0.000000e+00 : f32
    %464 = vector.shape_cast %463 : vector<1x512xi1> to vector<1x512xi1>
    %465 = vector.broadcast %464 : vector<1x512xi1> to vector<32x512xi1>
    %466 = vector.broadcast %cst_205 : f32 to vector<32x512xf32>
    %467 = arith.select %465, %462, %466 : vector<32x512xi1>, vector<32x512xf32>
    %468 = arith.truncf %467 : vector<32x512xf32> to vector<32x512xbf16>
    %c0_206 = arith.constant 0 : index
    %c0_207 = arith.constant 0 : index
    %469 = vector.load %arg8[%c0_206, %c0_207] : memref<288x512xbf16, #tpu.memory_space<vmem>>, vector<32x512xbf16>
    tpu.vector_store %arg8[%c0_206, %c0_207], %468 {strides = array<i32>} : memref<288x512xbf16, #tpu.memory_space<vmem>>, vector<32x512xbf16>,
    %c16_i32_208 = arith.constant 16 : i32
    %470 = tpu.dynamic_rotate %461 by %c16_i32_208 dim 1 : vector<32x512xf32>, i32 -> vector<32x512xf32>
    %cst_209 = arith.constant 0.000000e+00 : f32
    %471 = vector.shape_cast %19 : vector<1x512xi1> to vector<1x512xi1>
    %472 = vector.broadcast %471 : vector<1x512xi1> to vector<32x512xi1>
    %473 = vector.broadcast %cst_209 : f32 to vector<32x512xf32>
    %474 = arith.select %472, %470, %473 : vector<32x512xi1>, vector<32x512xf32>
    %475 = arith.truncf %474 : vector<32x512xf32> to vector<32x512xbf16>
    %c32_210 = arith.constant 32 : index
    %c0_211 = arith.constant 0 : index
    %476 = vector.load %arg8[%c32_210, %c0_211] : memref<288x512xbf16, #tpu.memory_space<vmem>>, vector<32x512xbf16>
    tpu.vector_store %arg8[%c32_210, %c0_211], %475 {strides = array<i32>} : memref<288x512xbf16, #tpu.memory_space<vmem>>, vector<32x512xbf16>,
    %c15_i32_212 = arith.constant 15 : i32
    %477 = tpu.dynamic_rotate %461 by %c15_i32_212 dim 1 : vector<32x512xf32>, i32 -> vector<32x512xf32>
    %478 = arith.andi %19, %25 : vector<1x512xi1>
    %cst_213 = arith.constant 0.000000e+00 : f32
    %479 = vector.shape_cast %478 : vector<1x512xi1> to vector<1x512xi1>
    %480 = vector.broadcast %479 : vector<1x512xi1> to vector<32x512xi1>
    %481 = vector.broadcast %cst_213 : f32 to vector<32x512xf32>
    %482 = arith.select %480, %477, %481 : vector<32x512xi1>, vector<32x512xf32>
    %483 = arith.truncf %482 : vector<32x512xf32> to vector<32x512xbf16>
    %c64_214 = arith.constant 64 : index
    %c0_215 = arith.constant 0 : index
    %484 = vector.load %arg8[%c64_214, %c0_215] : memref<288x512xbf16, #tpu.memory_space<vmem>>, vector<32x512xbf16>
    tpu.vector_store %arg8[%c64_214, %c0_215], %483 {strides = array<i32>} : memref<288x512xbf16, #tpu.memory_space<vmem>>, vector<32x512xbf16>,
    %c1_i32_216 = arith.constant 1 : i32
    %485 = tpu.dynamic_rotate %461 by %c1_i32_216 dim 1 : vector<32x512xf32>, i32 -> vector<32x512xf32>
    %cst_217 = arith.constant 0.000000e+00 : f32
    %486 = vector.shape_cast %23 : vector<1x512xi1> to vector<1x512xi1>
    %487 = vector.broadcast %486 : vector<1x512xi1> to vector<32x512xi1>
    %488 = vector.broadcast %cst_217 : f32 to vector<32x512xf32>
    %489 = arith.select %487, %485, %488 : vector<32x512xi1>, vector<32x512xf32>
    %490 = arith.truncf %489 : vector<32x512xf32> to vector<32x512xbf16>
    %c96_218 = arith.constant 96 : index
    %c0_219 = arith.constant 0 : index
    %491 = vector.load %arg8[%c96_218, %c0_219] : memref<288x512xbf16, #tpu.memory_space<vmem>>, vector<32x512xbf16>
    tpu.vector_store %arg8[%c96_218, %c0_219], %490 {strides = array<i32>} : memref<288x512xbf16, #tpu.memory_space<vmem>>, vector<32x512xbf16>,
    %492 = arith.truncf %461 : vector<32x512xf32> to vector<32x512xbf16>
    %c128_220 = arith.constant 128 : index
    %c0_221 = arith.constant 0 : index
    %493 = vector.load %arg8[%c128_220, %c0_221] : memref<288x512xbf16, #tpu.memory_space<vmem>>, vector<32x512xbf16>
    tpu.vector_store %arg8[%c128_220, %c0_221], %492 {strides = array<i32>} : memref<288x512xbf16, #tpu.memory_space<vmem>>, vector<32x512xbf16>,
    %c511_i32_222 = arith.constant 511 : i32
    %494 = tpu.dynamic_rotate %461 by %c511_i32_222 dim 1 : vector<32x512xf32>, i32 -> vector<32x512xf32>
    %cst_223 = arith.constant 0.000000e+00 : f32
    %495 = vector.shape_cast %25 : vector<1x512xi1> to vector<1x512xi1>
    %496 = vector.broadcast %495 : vector<1x512xi1> to vector<32x512xi1>
    %497 = vector.broadcast %cst_223 : f32 to vector<32x512xf32>
    %498 = arith.select %496, %494, %497 : vector<32x512xi1>, vector<32x512xf32>
    %499 = arith.truncf %498 : vector<32x512xf32> to vector<32x512xbf16>
    %c160_224 = arith.constant 160 : index
    %c0_225 = arith.constant 0 : index
    %500 = vector.load %arg8[%c160_224, %c0_225] : memref<288x512xbf16, #tpu.memory_space<vmem>>, vector<32x512xbf16>
    tpu.vector_store %arg8[%c160_224, %c0_225], %499 {strides = array<i32>} : memref<288x512xbf16, #tpu.memory_space<vmem>>, vector<32x512xbf16>,
    %c497_i32_226 = arith.constant 497 : i32
    %501 = tpu.dynamic_rotate %461 by %c497_i32_226 dim 1 : vector<32x512xf32>, i32 -> vector<32x512xf32>
    %502 = arith.andi %21, %23 : vector<1x512xi1>
    %cst_227 = arith.constant 0.000000e+00 : f32
    %503 = vector.shape_cast %502 : vector<1x512xi1> to vector<1x512xi1>
    %504 = vector.broadcast %503 : vector<1x512xi1> to vector<32x512xi1>
    %505 = vector.broadcast %cst_227 : f32 to vector<32x512xf32>
    %506 = arith.select %504, %501, %505 : vector<32x512xi1>, vector<32x512xf32>
    %507 = arith.truncf %506 : vector<32x512xf32> to vector<32x512xbf16>
    %c192_228 = arith.constant 192 : index
    %c0_229 = arith.constant 0 : index
    %508 = vector.load %arg8[%c192_228, %c0_229] : memref<288x512xbf16, #tpu.memory_space<vmem>>, vector<32x512xbf16>
    tpu.vector_store %arg8[%c192_228, %c0_229], %507 {strides = array<i32>} : memref<288x512xbf16, #tpu.memory_space<vmem>>, vector<32x512xbf16>,
    %c496_i32_230 = arith.constant 496 : i32
    %509 = tpu.dynamic_rotate %461 by %c496_i32_230 dim 1 : vector<32x512xf32>, i32 -> vector<32x512xf32>
    %cst_231 = arith.constant 0.000000e+00 : f32
    %510 = vector.shape_cast %21 : vector<1x512xi1> to vector<1x512xi1>
    %511 = vector.broadcast %510 : vector<1x512xi1> to vector<32x512xi1>
    %512 = vector.broadcast %cst_231 : f32 to vector<32x512xf32>
    %513 = arith.select %511, %509, %512 : vector<32x512xi1>, vector<32x512xf32>
    %514 = arith.truncf %513 : vector<32x512xf32> to vector<32x512xbf16>
    %c224_232 = arith.constant 224 : index
    %c0_233 = arith.constant 0 : index
    %515 = vector.load %arg8[%c224_232, %c0_233] : memref<288x512xbf16, #tpu.memory_space<vmem>>, vector<32x512xbf16>
    tpu.vector_store %arg8[%c224_232, %c0_233], %514 {strides = array<i32>} : memref<288x512xbf16, #tpu.memory_space<vmem>>, vector<32x512xbf16>,
    %c495_i32_234 = arith.constant 495 : i32
    %516 = tpu.dynamic_rotate %461 by %c495_i32_234 dim 1 : vector<32x512xf32>, i32 -> vector<32x512xf32>
    %517 = arith.andi %21, %25 : vector<1x512xi1>
    %cst_235 = arith.constant 0.000000e+00 : f32
    %518 = vector.shape_cast %517 : vector<1x512xi1> to vector<1x512xi1>
    %519 = vector.broadcast %518 : vector<1x512xi1> to vector<32x512xi1>
    %520 = vector.broadcast %cst_235 : f32 to vector<32x512xf32>
    %521 = arith.select %519, %516, %520 : vector<32x512xi1>, vector<32x512xf32>
    %522 = arith.truncf %521 : vector<32x512xf32> to vector<32x512xbf16>
    %c256_236 = arith.constant 256 : index
    %c0_237 = arith.constant 0 : index
    %523 = vector.load %arg8[%c256_236, %c0_237] : memref<288x512xbf16, #tpu.memory_space<vmem>>, vector<32x512xbf16>
    tpu.vector_store %arg8[%c256_236, %c0_237], %522 {strides = array<i32>} : memref<288x512xbf16, #tpu.memory_space<vmem>>, vector<32x512xbf16>,
    %c4 = arith.constant 4 : index
    %c0_238 = arith.constant 0 : index
    %c0_239 = arith.constant 0 : index
    %524 = vector.load %arg3[%c4, %c0_238, %c0_239] : memref<5x32x288xbf16, #tpu.memory_space<vmem>>, vector<1x32x288xbf16>
    %525 = vector.shape_cast %524 : vector<1x32x288xbf16> to vector<32x288xbf16>
    %c0_240 = arith.constant 0 : index
    %c0_241 = arith.constant 0 : index
    %526 = vector.load %arg8[%c0_240, %c0_241] : memref<288x512xbf16, #tpu.memory_space<vmem>>, vector<288x512xbf16>
    %cst_242 = arith.constant dense<0.000000e+00> : vector<32x512xf32>
    %527 = tpu.matmul %525, %526, %cst_242 {dimension_numbers = #tpu.dot_dimension_numbers<[1], [0], [0], [1], [0, 0, 1, 1], [], []>} : vector<32x288xbf16>, vector<288x512xbf16>, vector<32x512xf32> -> vector<32x512xf32>
    %c0_243 = arith.constant 0 : index
    %c0_244 = arith.constant 0 : index
    %528 = vector.load %arg4[%c0_243, %c0_244] : memref<32x1xf32, #tpu.memory_space<vmem>>, vector<32x1xf32>
    %529 = vector.broadcast %528 : vector<32x1xf32> to vector<32x512xf32>
    %530 = arith.addf %527, %529 : vector<32x512xf32>
    %cst_245 = arith.constant 0.000000e+00 : f32
    %531 = vector.broadcast %cst_245 : f32 to vector<32x512xf32>
    %532 = arith.maximumf %530, %531 : vector<32x512xf32>
    %c0_246 = arith.constant 0 : index
    %c0_247 = arith.constant 0 : index
    %533 = vector.load %arg5[%c0_246, %c0_247] : memref<2x32xf32, #tpu.memory_space<vmem>>, vector<2x32xf32>
    %cst_248 = arith.constant dense<0.000000e+00> : vector<2x512xf32>
    %534 = tpu.matmul %533, %532, %cst_248 {dimension_numbers = #tpu.dot_dimension_numbers<[1], [0], [0], [1], [0, 0, 1, 1], [], []>} : vector<2x32xf32>, vector<32x512xf32>, vector<2x512xf32> -> vector<2x512xf32>
    %c0_249 = arith.constant 0 : index
    %c0_250 = arith.constant 0 : index
    %535 = vector.load %arg6[%c0_249, %c0_250] : memref<2x1xf32, #tpu.memory_space<vmem>>, vector<2x1xf32>
    %536 = vector.broadcast %535 : vector<2x1xf32> to vector<2x512xf32>
    %537 = arith.addf %534, %536 : vector<2x512xf32>
    %538 = vector.extract_strided_slice %537 {offsets = [0, 0], sizes = [2, 256], strides = [1, 1]} : vector<2x512xf32> to vector<2x256xf32>
    %c0_251 = arith.constant 0 : index
    %c0_252 = arith.constant 0 : index
    %c0_253 = arith.constant 0 : index
    %539 = vector.load %arg7[%c0_251, %c0_252, %c0_253] : memref<2x2x256xf32, #tpu.memory_space<vmem>>, vector<1x2x256xf32>
    %540 = vector.shape_cast %539 : vector<1x2x256xf32> to vector<2x256xf32>
    %541 = vector.shape_cast %538 : vector<2x256xf32> to vector<1x2x256xf32>
    tpu.vector_store %arg7[%c0_251, %c0_252, %c0_253], %541 {strides = array<i32>} : memref<2x2x256xf32, #tpu.memory_space<vmem>>, vector<1x2x256xf32>,
    %542 = vector.extract_strided_slice %537 {offsets = [0, 256], sizes = [2, 256], strides = [1, 1]} : vector<2x512xf32> to vector<2x256xf32>
    %c1_254 = arith.constant 1 : index
    %c0_255 = arith.constant 0 : index
    %c0_256 = arith.constant 0 : index
    %543 = vector.load %arg7[%c1_254, %c0_255, %c0_256] : memref<2x2x256xf32, #tpu.memory_space<vmem>>, vector<1x2x256xf32>
    %544 = vector.shape_cast %543 : vector<1x2x256xf32> to vector<2x256xf32>
    %545 = vector.shape_cast %542 : vector<2x256xf32> to vector<1x2x256xf32>
    tpu.vector_store %arg7[%c1_254, %c0_255, %c0_256], %545 {strides = array<i32>} : memref<2x2x256xf32, #tpu.memory_space<vmem>>, vector<1x2x256xf32>,
    return
  }
  func.func @transform_0(%arg0: i32) -> (i32, i32, i32) {
    %c0_i32 = arith.constant 0 : i32
    %c0_i32_0 = arith.constant 0 : i32
    %c0_i32_1 = arith.constant 0 : i32
    %c0_i32_2 = arith.constant 0 : i32
    return %c0_i32, %c0_i32_0, %c0_i32_1 : i32, i32, i32
  }
  func.func @transform_1(%arg0: i32) -> (i32, i32, i32) {
    %c0_i32 = arith.constant 0 : i32
    %c0_i32_0 = arith.constant 0 : i32
    %c0_i32_1 = arith.constant 0 : i32
    %c0_i32_2 = arith.constant 0 : i32
    return %c0_i32, %c0_i32_0, %c0_i32_1 : i32, i32, i32
  }
  func.func @transform_2(%arg0: i32) -> (i32, i32, i32) {
    %c0_i32 = arith.constant 0 : i32
    %c0_i32_0 = arith.constant 0 : i32
    %c0_i32_1 = arith.constant 0 : i32
    %c0_i32_2 = arith.constant 0 : i32
    return %c0_i32, %c0_i32_0, %c0_i32_1 : i32, i32, i32
  }
  func.func @transform_3(%arg0: i32) -> (i32, i32) {
    %c0_i32 = arith.constant 0 : i32
    %c0_i32_0 = arith.constant 0 : i32
    %c0_i32_1 = arith.constant 0 : i32
    return %c0_i32, %c0_i32_0 : i32, i32
  }
  func.func @transform_4(%arg0: i32) -> (i32, i32) {
    %c0_i32 = arith.constant 0 : i32
    %c0_i32_0 = arith.constant 0 : i32
    %c0_i32_1 = arith.constant 0 : i32
    return %c0_i32, %c0_i32_0 : i32, i32
  }
  func.func @transform_5(%arg0: i32) -> (i32, i32) {
    %c0_i32 = arith.constant 0 : i32
    %c0_i32_0 = arith.constant 0 : i32
    %c0_i32_1 = arith.constant 0 : i32
    return %c0_i32, %c0_i32_0 : i32, i32
  }
  func.func @transform_6(%arg0: i32) -> (i32, i32, i32) {
    %c0_i32 = arith.constant 0 : i32
    %c0_i32_0 = arith.constant 0 : i32
    %c0_i32_1 = arith.constant 0 : i32
    %c0_i32_2 = arith.constant 0 : i32
    return %c0_i32, %c0_i32_0, %c0_i32_1 : i32, i32, i32
  }
}

</mosaic_0001>

<llo_original>
// kernel: fconv_in_forward.1
$region0: #{fconv_in_forward.1}
  #allocation0 [shape = 'u32[]', space=smem, size = 0x4, offset = 0x4, fixed_abs, tag = 'smem constant byte address 0x4 - core index']
  #allocation1 [shape = 'u32[144,128]{1,0:T(1,128)}', space=vmem, size = 0x12000, scoped, tag = 'internal scratch']
  #allocation2 [shape = 'bf16[288,512]{1,0:T(16,128)(2,1)}', space=vmem, size = 0x48000, scoped, tag = 'scratch operand']
  %s0 = inlined_call_operand.vmem [shape: f32[2,4,256], index: 0, kind: input, shape index: {}]
  %s1 = inlined_call_operand.vmem [shape: f32[2,4,256], index: 1, kind: input, shape index: {}]
  %s2 = inlined_call_operand.vmem [shape: bf16[5,32,288], index: 2, kind: input, shape index: {}]
  %s3 = inlined_call_operand.vmem [shape: f32[32,1], index: 3, kind: input, shape index: {}]
  %s4 = inlined_call_operand.vmem [shape: f32[2,32], index: 4, kind: input, shape index: {}]
  %s5 = inlined_call_operand.vmem [shape: f32[2,1], index: 5, kind: input, shape index: {}]
  %s6 = inlined_call_operand.vmem [shape: f32[2,2,256], index: 6, kind: output, shape index: {}]
  %s7 = sld [smem:[#allocation0]]
  $region34: #{fconv_in_forward.1} parent=0
    _
  %s9 = ssub.s32 1, %s7
  %s10 = scalar_select 0, %s9, %s7
  // Predicated region
  $region2: #{fconv_in_forward.1} parent=0 // pred_check
    _
  $region3: #{fconv_in_forward.1} parent=0 // pred_check_branch
    %12 = sbr.rel (0) target = $region5
  $region4: #{fconv_in_forward.1} parent=0 // pred_region
    _
  $region5: #{fconv_in_forward.1} parent=0 // pred_fallthru
    _
  // Predicated region
  $region6: #{fconv_in_forward.1} parent=0 // pred_check
    _
  $region7: #{fconv_in_forward.1} parent=0 // pred_check_branch
    %14 = sbr.rel (0) target = $region9
  $region8: #{fconv_in_forward.1} parent=0 // pred_region
    _
  $region9: #{fconv_in_forward.1} parent=0 // pred_fallthru
    _
  // Predicated region
  $region10: #{fconv_in_forward.1} parent=0 // pred_check
    _
  $region11: #{fconv_in_forward.1} parent=0 // pred_check_branch
    %16 = sbr.rel (0) target = $region13
  $region12: #{fconv_in_forward.1} parent=0 // pred_region
    _
  $region13: #{fconv_in_forward.1} parent=0 // pred_fallthru
    _
  // Predicated region
  $region14: #{fconv_in_forward.1} parent=0 // pred_check
    _
  $region15: #{fconv_in_forward.1} parent=0 // pred_check_branch
    %18 = sbr.rel (0) target = $region17
  $region16: #{fconv_in_forward.1} parent=0 // pred_region
    _
  $region17: #{fconv_in_forward.1} parent=0 // pred_fallthru
    _
  // Predicated region
  $region18: #{fconv_in_forward.1} parent=0 // pred_check
    _
  $region19: #{fconv_in_forward.1} parent=0 // pred_check_branch
    %20 = sbr.rel (0) target = $region21
  $region20: #{fconv_in_forward.1} parent=0 // pred_region
    _
  $region21: #{fconv_in_forward.1} parent=0 // pred_fallthru
    _
  // Predicated region
  $region22: #{fconv_in_forward.1} parent=0 // pred_check
    _
  $region23: #{fconv_in_forward.1} parent=0 // pred_check_branch
    %22 = sbr.rel (0) target = $region25
  $region24: #{fconv_in_forward.1} parent=0 // pred_region
    _
  $region25: #{fconv_in_forward.1} parent=0 // pred_fallthru
    _
  %v24 = vld [vmem:[%s0] sm:$0xff]
  %v25 = vld [vmem:[%s1] sm:$0xff]
  %v27 = vcombine.high %v24, %v24
  %v30 = vcombine.low %v25, %v25
  %vm32 = vcmask 1043456
  %v33 = vsel %vm32, %v24, %v30
  %v34 = vsel %vm32, %v27, %v25
  %s35 = scalar_lea.vmem %s0, 8
  %v36 = vld [vmem:[%s35] sm:$0xff]
  %s37 = scalar_lea.vmem %s1, 8
  %v38 = vld [vmem:[%s37] sm:$0xff]
  %v40 = vcombine.high %v36, %v36
  %v43 = vcombine.low %v38, %v38
  %v45 = vsel %vm32, %v36, %v43
  %v46 = vsel %vm32, %v40, %v38
  %v47 = vlaneseq
  %v48 = vand.u32 %v47, 127
  %v49 = vadd.s32 %v48, 128
  %v50 = vadd.s32 %v48, 256
  %v51 = vadd.s32 %v48, 384
  %v52 = vand.u32 %v48, 255
  %v53 = vand.u32 %v49, 255
  %v54 = vand.u32 %v50, 255
  %v55 = vand.u32 %v51, 255
  %v56 = vand.u32 %v52, 15
  %v57 = vand.u32 %v53, 15
  %v58 = vand.u32 %v54, 15
  %v59 = vand.u32 %v55, 15
  %vm60 = vcmp.ge.s32.totalorder %v52, 16
  %vm61 = vcmp.ge.s32.totalorder %v53, 16
  %vm62 = vcmp.ge.s32.totalorder %v54, 16
  %vm63 = vcmp.ge.s32.totalorder %v55, 16
  %vm64 = vcmp.lt.s32.totalorder %v52, 240
  %vm65 = vcmp.lt.s32.totalorder %v53, 240
  %vm66 = vcmp.lt.s32.totalorder %v54, 240
  %vm67 = vcmp.lt.s32.totalorder %v55, 240
  %vm68 = vcmp.ge.s32.totalorder %v56, 1
  %vm69 = vcmp.ge.s32.totalorder %v57, 1
  %vm70 = vcmp.ge.s32.totalorder %v58, 1
  %vm71 = vcmp.ge.s32.totalorder %v59, 1
  %vm72 = vcmp.le.s32.totalorder %v56, 14
  %vm73 = vcmp.le.s32.totalorder %v57, 14
  %vm74 = vcmp.le.s32.totalorder %v58, 14
  %vm75 = vcmp.le.s32.totalorder %v59, 14
  %76 = vrot.lane.b32.xlu0 %v33, 17
  %v77 = vpop.permute.xlu0 %76
  %78 = vrot.lane.b32.xlu0 0.0, 17
  %v79 = vpop.permute.xlu0 %78
  %80 = vrot.lane.b32.xlu0 %v34, 17
  %v81 = vpop.permute.xlu0 %80
  %82 = vrot.lane.b32.xlu0 %v45, 17
  %v83 = vpop.permute.xlu0 %82
  %84 = vrot.lane.b32.xlu0 %v46, 17
  %v85 = vpop.permute.xlu0 %84
  %vm86 = vcmp.lt.s32.totalorder %v48, 17
  %v87 = vsel %vm86, %v83, %v85
  %v88 = vsel %vm86, %v81, %v83
  %v89 = vsel %vm86, %v77, %v81
  %v90 = vsel %vm86, %v85, %v77
  %vm91 = vmand %vm60, %vm68
  %vm92 = vmand %vm61, %vm69
  %vm93 = vmand %vm62, %vm70
  %vm94 = vmand %vm63, %vm71
  %v95 = vsel %vm91, 1, 0
  %v96 = vsel %vm92, 1, 0
  %v97 = vsel %vm93, 1, 0
  %v98 = vsel %vm94, 1, 0
  %vm99 = vcmp.eq.s32.totalorder %v95, 1
  %vm100 = vcmp.eq.s32.totalorder %v96, 1
  %vm101 = vcmp.eq.s32.totalorder %v97, 1
  %vm102 = vcmp.eq.s32.totalorder %v98, 1
  %v103 = vsel %vm99, %v90, 0.0
  %v104 = vsel %vm100, %v89, 0.0
  %v105 = vsel %vm101, %v88, 0.0
  %v106 = vsel %vm102, %v87, 0.0
  %v107 = vsel %vm99, %v79, 0.0
  %v108 = vsel %vm100, %v79, 0.0
  %v109 = vsel %vm101, %v79, 0.0
  %v110 = vsel %vm102, %v79, 0.0
  %v111 = vpack.c.bf16 %v107, %v103
  %v112 = vpack.c.bf16 %v108, %v104
  %v113 = vpack.c.bf16 %v109, %v105
  %v114 = vpack.c.bf16 %v110, %v106
  %v115 = vpack.c.bf16 %v107, %v107
  %v116 = vpack.c.bf16 %v108, %v108
  %v117 = vpack.c.bf16 %v109, %v109
  %v118 = vpack.c.bf16 %v110, %v110
  %119 = vst [vmem:[#allocation2] sm:$0xff] %v111
  %120 = vst [vmem:[#allocation2 + $0x8] sm:$0xff] %v112
  %121 = vst [vmem:[#allocation2 + $0x10] sm:$0xff] %v113
  %122 = vst [vmem:[#allocation2 + $0x18] sm:$0xff] %v114
  %123 = vst [vmem:[#allocation2 + $0x20] sm:$0xff] %v115
  %124 = vst [vmem:[#allocation2 + $0x28] sm:$0xff] %v116
  %125 = vst [vmem:[#allocation2 + $0x30] sm:$0xff] %v117
  %126 = vst [vmem:[#allocation2 + $0x38] sm:$0xff] %v118
  %127 = vrot.lane.b32.xlu0 %v33, 16
  %v128 = vpop.permute.xlu0 %127
  %129 = vrot.lane.b32.xlu0 0.0, 16
  %v130 = vpop.permute.xlu0 %129
  %131 = vrot.lane.b32.xlu0 %v34, 16
  %v132 = vpop.permute.xlu0 %131
  %133 = vrot.lane.b32.xlu0 %v45, 16
  %v134 = vpop.permute.xlu0 %133
  %135 = vrot.lane.b32.xlu0 %v46, 16
  %v136 = vpop.permute.xlu0 %135
  %vm137 = vcmp.lt.s32.totalorder %v48, 16
  %v138 = vsel %vm137, %v134, %v136
  %v139 = vsel %vm137, %v132, %v134
  %v140 = vsel %vm137, %v128, %v132
  %v141 = vsel %vm137, %v136, %v128
  %v142 = vsel %vm60, 1, 0
  %v143 = vsel %vm61, 1, 0
  %v144 = vsel %vm62, 1, 0
  %v145 = vsel %vm63, 1, 0
  %vm146 = vcmp.eq.s32.totalorder %v142, 1
  %vm147 = vcmp.eq.s32.totalorder %v143, 1
  %vm148 = vcmp.eq.s32.totalorder %v144, 1
  %vm149 = vcmp.eq.s32.totalorder %v145, 1
  %v150 = vsel %vm146, %v141, 0.0
  %v151 = vsel %vm147, %v140, 0.0
  %v152 = vsel %vm148, %v139, 0.0
  %v153 = vsel %vm149, %v138, 0.0
  %v154 = vsel %vm146, %v130, 0.0
  %v155 = vsel %vm147, %v130, 0.0
  %v156 = vsel %vm148, %v130, 0.0
  %v157 = vsel %vm149, %v130, 0.0
  %v158 = vpack.c.bf16 %v154, %v150
  %v159 = vpack.c.bf16 %v155, %v151
  %v160 = vpack.c.bf16 %v156, %v152
  %v161 = vpack.c.bf16 %v157, %v153
  %v162 = vpack.c.bf16 %v154, %v154
  %v163 = vpack.c.bf16 %v155, %v155
  %v164 = vpack.c.bf16 %v156, %v156
  %v165 = vpack.c.bf16 %v157, %v157
  %166 = vst [vmem:[#allocation2 + $0x40] sm:$0xff] %v158
  %167 = vst [vmem:[#allocation2 + $0x48] sm:$0xff] %v159
  %168 = vst [vmem:[#allocation2 + $0x50] sm:$0xff] %v160
  %169 = vst [vmem:[#allocation2 + $0x58] sm:$0xff] %v161
  %170 = vst [vmem:[#allocation2 + $0x60] sm:$0xff] %v162
  %171 = vst [vmem:[#allocation2 + $0x68] sm:$0xff] %v163
  %172 = vst [vmem:[#allocation2 + $0x70] sm:$0xff] %v164
  %173 = vst [vmem:[#allocation2 + $0x78] sm:$0xff] %v165
  %174 = vrot.lane.b32.xlu0 %v33, 15
  %v175 = vpop.permute.xlu0 %174
  %176 = vrot.lane.b32.xlu0 0.0, 15
  %v177 = vpop.permute.xlu0 %176
  %178 = vrot.lane.b32.xlu0 %v34, 15
  %v179 = vpop.permute.xlu0 %178
  %180 = vrot.lane.b32.xlu0 %v45, 15
  %v181 = vpop.permute.xlu0 %180
  %182 = vrot.lane.b32.xlu0 %v46, 15
  %v183 = vpop.permute.xlu0 %182
  %vm184 = vcmp.lt.s32.totalorder %v48, 15
  %v185 = vsel %vm184, %v181, %v183
  %v186 = vsel %vm184, %v179, %v181
  %v187 = vsel %vm184, %v175, %v179
  %v188 = vsel %vm184, %v183, %v175
  %vm189 = vmand %vm60, %vm72
  %vm190 = vmand %vm61, %vm73
  %vm191 = vmand %vm62, %vm74
  %vm192 = vmand %vm63, %vm75
  %v193 = vsel %vm189, 1, 0
  %v194 = vsel %vm190, 1, 0
  %v195 = vsel %vm191, 1, 0
  %v196 = vsel %vm192, 1, 0
  %vm197 = vcmp.eq.s32.totalorder %v193, 1
  %vm198 = vcmp.eq.s32.totalorder %v194, 1
  %vm199 = vcmp.eq.s32.totalorder %v195, 1
  %vm200 = vcmp.eq.s32.totalorder %v196, 1
  %v201 = vsel %vm197, %v188, 0.0
  %v202 = vsel %vm198, %v187, 0.0
  %v203 = vsel %vm199, %v186, 0.0
  %v204 = vsel %vm200, %v185, 0.0
  %v205 = vsel %vm197, %v177, 0.0
  %v206 = vsel %vm198, %v177, 0.0
  %v207 = vsel %vm199, %v177, 0.0
  %v208 = vsel %vm200, %v177, 0.0
  %v209 = vpack.c.bf16 %v205, %v201
  %v210 = vpack.c.bf16 %v206, %v202
  %v211 = vpack.c.bf16 %v207, %v203
  %v212 = vpack.c.bf16 %v208, %v204
  %v213 = vpack.c.bf16 %v205, %v205
  %v214 = vpack.c.bf16 %v206, %v206
  %v215 = vpack.c.bf16 %v207, %v207
  %v216 = vpack.c.bf16 %v208, %v208
  %217 = vst [vmem:[#allocation2 + $0x80] sm:$0xff] %v209
  %218 = vst [vmem:[#allocation2 + $0x88] sm:$0xff] %v210
  %219 = vst [vmem:[#allocation2 + $0x90] sm:$0xff] %v211
  %220 = vst [vmem:[#allocation2 + $0x98] sm:$0xff] %v212
  %221 = vst [vmem:[#allocation2 + $0xa0] sm:$0xff] %v213
  %222 = vst [vmem:[#allocation2 + $0xa8] sm:$0xff] %v214
  %223 = vst [vmem:[#allocation2 + $0xb0] sm:$0xff] %v215
  %224 = vst [vmem:[#allocation2 + $0xb8] sm:$0xff] %v216
  %225 = vrot.lane.b32.xlu0 %v33, 1
  %v226 = vpop.permute.xlu0 %225
  %227 = vrot.lane.b32.xlu0 0.0, 1
  %v228 = vpop.permute.xlu0 %227
  %229 = vrot.lane.b32.xlu0 %v34, 1
  %v230 = vpop.permute.xlu0 %229
  %231 = vrot.lane.b32.xlu0 %v45, 1
  %v232 = vpop.permute.xlu0 %231
  %233 = vrot.lane.b32.xlu0 %v46, 1
  %v234 = vpop.permute.xlu0 %233
  %vm235 = vcmp.lt.s32.totalorder %v48, 1
  %v236 = vsel %vm235, %v232, %v234
  %v237 = vsel %vm235, %v230, %v232
  %v238 = vsel %vm235, %v226, %v230
  %v239 = vsel %vm235, %v234, %v226
  %v240 = vsel %vm68, 1, 0
  %v241 = vsel %vm69, 1, 0
  %v242 = vsel %vm70, 1, 0
  %v243 = vsel %vm71, 1, 0
  %vm244 = vcmp.eq.s32.totalorder %v240, 1
  %vm245 = vcmp.eq.s32.totalorder %v241, 1
  %vm246 = vcmp.eq.s32.totalorder %v242, 1
  %vm247 = vcmp.eq.s32.totalorder %v243, 1
  %v248 = vsel %vm244, %v239, 0.0
  %v249 = vsel %vm245, %v238, 0.0
  %v250 = vsel %vm246, %v237, 0.0
  %v251 = vsel %vm247, %v236, 0.0
  %v252 = vsel %vm244, %v228, 0.0
  %v253 = vsel %vm245, %v228, 0.0
  %v254 = vsel %vm246, %v228, 0.0
  %v255 = vsel %vm247, %v228, 0.0
  %v256 = vpack.c.bf16 %v252, %v248
  %v257 = vpack.c.bf16 %v253, %v249
  %v258 = vpack.c.bf16 %v254, %v250
  %v259 = vpack.c.bf16 %v255, %v251
  %v260 = vpack.c.bf16 %v252, %v252
  %v261 = vpack.c.bf16 %v253, %v253
  %v262 = vpack.c.bf16 %v254, %v254
  %v263 = vpack.c.bf16 %v255, %v255
  %264 = vst [vmem:[#allocation2 + $0xc0] sm:$0xff] %v256
  %265 = vst [vmem:[#allocation2 + $0xc8] sm:$0xff] %v257
  %266 = vst [vmem:[#allocation2 + $0xd0] sm:$0xff] %v258
  %267 = vst [vmem:[#allocation2 + $0xd8] sm:$0xff] %v259
  %268 = vst [vmem:[#allocation2 + $0xe0] sm:$0xff] %v260
  %269 = vst [vmem:[#allocation2 + $0xe8] sm:$0xff] %v261
  %270 = vst [vmem:[#allocation2 + $0xf0] sm:$0xff] %v262
  %271 = vst [vmem:[#allocation2 + $0xf8] sm:$0xff] %v263
  %v272 = vpack.c.bf16 0.0, %v33
  %v273 = vpack.c.bf16 0.0, %v34
  %v274 = vpack.c.bf16 0.0, %v45
  %v275 = vpack.c.bf16 0.0, %v46
  %v276 = vpack.c.bf16 0.0, 0.0
  %277 = vst [vmem:[#allocation2 + $0x100] sm:$0xff] %v272
  %278 = vst [vmem:[#allocation2 + $0x108] sm:$0xff] %v273
  %279 = vst [vmem:[#allocation2 + $0x110] sm:$0xff] %v274
  %280 = vst [vmem:[#allocation2 + $0x118] sm:$0xff] %v275
  %281 = vst [vmem:[#allocation2 + $0x120] sm:$0xff] %v276
  %282 = vst [vmem:[#allocation2 + $0x128] sm:$0xff] %v276
  %283 = vst [vmem:[#allocation2 + $0x130] sm:$0xff] %v276
  %284 = vst [vmem:[#allocation2 + $0x138] sm:$0xff] %v276
  %285 = vrot.lane.b32.xlu0 %v33, 127
  %v286 = vpop.permute.xlu0 %285
  %287 = vrot.lane.b32.xlu0 0.0, 127
  %v288 = vpop.permute.xlu0 %287
  %289 = vrot.lane.b32.xlu0 %v34, 127
  %v290 = vpop.permute.xlu0 %289
  %291 = vrot.lane.b32.xlu0 %v45, 127
  %v292 = vpop.permute.xlu0 %291
  %293 = vrot.lane.b32.xlu0 %v46, 127
  %v294 = vpop.permute.xlu0 %293
  %vm295 = vcmp.lt.s32.totalorder %v48, 127
  %v296 = vsel %vm295, %v292, %v294
  %v297 = vsel %vm295, %v290, %v292
  %v298 = vsel %vm295, %v286, %v290
  %v299 = vsel %vm295, %v294, %v286
  %v300 = vsel %vm72, 1, 0
  %v301 = vsel %vm73, 1, 0
  %v302 = vsel %vm74, 1, 0
  %v303 = vsel %vm75, 1, 0
  %vm304 = vcmp.eq.s32.totalorder %v300, 1
  %vm305 = vcmp.eq.s32.totalorder %v301, 1
  %vm306 = vcmp.eq.s32.totalorder %v302, 1
  %vm307 = vcmp.eq.s32.totalorder %v303, 1
  %v308 = vsel %vm304, %v298, 0.0
  %v309 = vsel %vm305, %v297, 0.0
  %v310 = vsel %vm306, %v296, 0.0
  %v311 = vsel %vm307, %v299, 0.0
  %v312 = vsel %vm304, %v288, 0.0
  %v313 = vsel %vm305, %v288, 0.0
  %v314 = vsel %vm306, %v288, 0.0
  %v315 = vsel %vm307, %v288, 0.0
  %v316 = vpack.c.bf16 %v312, %v308
  %v317 = vpack.c.bf16 %v313, %v309
  %v318 = vpack.c.bf16 %v314, %v310
  %v319 = vpack.c.bf16 %v315, %v311
  %v320 = vpack.c.bf16 %v312, %v312
  %v321 = vpack.c.bf16 %v313, %v313
  %v322 = vpack.c.bf16 %v314, %v314
  %v323 = vpack.c.bf16 %v315, %v315
  %324 = vst [vmem:[#allocation2 + $0x140] sm:$0xff] %v316
  %325 = vst [vmem:[#allocation2 + $0x148] sm:$0xff] %v317
  %326 = vst [vmem:[#allocation2 + $0x150] sm:$0xff] %v318
  %327 = vst [vmem:[#allocation2 + $0x158] sm:$0xff] %v319
  %328 = vst [vmem:[#allocation2 + $0x160] sm:$0xff] %v320
  %329 = vst [vmem:[#allocation2 + $0x168] sm:$0xff] %v321
  %330 = vst [vmem:[#allocation2 + $0x170] sm:$0xff] %v322
  %331 = vst [vmem:[#allocation2 + $0x178] sm:$0xff] %v323
  %332 = vrot.lane.b32.xlu0 %v33, 113
  %v333 = vpop.permute.xlu0 %332
  %334 = vrot.lane.b32.xlu0 0.0, 113
  %v335 = vpop.permute.xlu0 %334
  %336 = vrot.lane.b32.xlu0 %v34, 113
  %v337 = vpop.permute.xlu0 %336
  %338 = vrot.lane.b32.xlu0 %v45, 113
  %v339 = vpop.permute.xlu0 %338
  %340 = vrot.lane.b32.xlu0 %v46, 113
  %v341 = vpop.permute.xlu0 %340
  %vm342 = vcmp.lt.s32.totalorder %v48, 113
  %v343 = vsel %vm342, %v339, %v341
  %v344 = vsel %vm342, %v337, %v339
  %v345 = vsel %vm342, %v333, %v337
  %v346 = vsel %vm342, %v341, %v333
  %vm347 = vmand %vm64, %vm68
  %vm348 = vmand %vm65, %vm69
  %vm349 = vmand %vm66, %vm70
  %vm350 = vmand %vm67, %vm71
  %v351 = vsel %vm347, 1, 0
  %v352 = vsel %vm348, 1, 0
  %v353 = vsel %vm349, 1, 0
  %v354 = vsel %vm350, 1, 0
  %vm355 = vcmp.eq.s32.totalorder %v351, 1
  %vm356 = vcmp.eq.s32.totalorder %v352, 1
  %vm357 = vcmp.eq.s32.totalorder %v353, 1
  %vm358 = vcmp.eq.s32.totalorder %v354, 1
  %v359 = vsel %vm355, %v345, 0.0
  %v360 = vsel %vm356, %v344, 0.0
  %v361 = vsel %vm357, %v343, 0.0
  %v362 = vsel %vm358, %v346, 0.0
  %v363 = vsel %vm355, %v335, 0.0
  %v364 = vsel %vm356, %v335, 0.0
  %v365 = vsel %vm357, %v335, 0.0
  %v366 = vsel %vm358, %v335, 0.0
  %v367 = vpack.c.bf16 %v363, %v359
  %v368 = vpack.c.bf16 %v364, %v360
  %v369 = vpack.c.bf16 %v365, %v361
  %v370 = vpack.c.bf16 %v366, %v362
  %v371 = vpack.c.bf16 %v363, %v363
  %v372 = vpack.c.bf16 %v364, %v364
  %v373 = vpack.c.bf16 %v365, %v365
  %v374 = vpack.c.bf16 %v366, %v366
  %375 = vst [vmem:[#allocation2 + $0x180] sm:$0xff] %v367
  %376 = vst [vmem:[#allocation2 + $0x188] sm:$0xff] %v368
  %377 = vst [vmem:[#allocation2 + $0x190] sm:$0xff] %v369
  %378 = vst [vmem:[#allocation2 + $0x198] sm:$0xff] %v370
  %379 = vst [vmem:[#allocation2 + $0x1a0] sm:$0xff] %v371
  %380 = vst [vmem:[#allocation2 + $0x1a8] sm:$0xff] %v372
  %381 = vst [vmem:[#allocation2 + $0x1b0] sm:$0xff] %v373
  %382 = vst [vmem:[#allocation2 + $0x1b8] sm:$0xff] %v374
  %383 = vrot.lane.b32.xlu0 %v33, 112
  %v384 = vpop.permute.xlu0 %383
  %385 = vrot.lane.b32.xlu0 0.0, 112
  %v386 = vpop.permute.xlu0 %385
  %387 = vrot.lane.b32.xlu0 %v34, 112
  %v388 = vpop.permute.xlu0 %387
  %389 = vrot.lane.b32.xlu0 %v45, 112
  %v390 = vpop.permute.xlu0 %389
  %391 = vrot.lane.b32.xlu0 %v46, 112
  %v392 = vpop.permute.xlu0 %391
  %vm393 = vcmp.lt.s32.totalorder %v48, 112
  %v394 = vsel %vm393, %v390, %v392
  %v395 = vsel %vm393, %v388, %v390
  %v396 = vsel %vm393, %v384, %v388
  %v397 = vsel %vm393, %v392, %v384
  %v398 = vsel %vm64, 1, 0
  %v399 = vsel %vm65, 1, 0
  %v400 = vsel %vm66, 1, 0
  %v401 = vsel %vm67, 1, 0
  %vm402 = vcmp.eq.s32.totalorder %v398, 1
  %vm403 = vcmp.eq.s32.totalorder %v399, 1
  %vm404 = vcmp.eq.s32.totalorder %v400, 1
  %vm405 = vcmp.eq.s32.totalorder %v401, 1
  %v406 = vsel %vm402, %v396, 0.0
  %v407 = vsel %vm403, %v395, 0.0
  %v408 = vsel %vm404, %v394, 0.0
  %v409 = vsel %vm405, %v397, 0.0
  %v410 = vsel %vm402, %v386, 0.0
  %v411 = vsel %vm403, %v386, 0.0
  %v412 = vsel %vm404, %v386, 0.0
  %v413 = vsel %vm405, %v386, 0.0
  %v414 = vpack.c.bf16 %v410, %v406
  %v415 = vpack.c.bf16 %v411, %v407
  %v416 = vpack.c.bf16 %v412, %v408
  %v417 = vpack.c.bf16 %v413, %v409
  %v418 = vpack.c.bf16 %v410, %v410
  %v419 = vpack.c.bf16 %v411, %v411
  %v420 = vpack.c.bf16 %v412, %v412
  %v421 = vpack.c.bf16 %v413, %v413
  %422 = vst [vmem:[#allocation2 + $0x1c0] sm:$0xff] %v414
  %423 = vst [vmem:[#allocation2 + $0x1c8] sm:$0xff] %v415
  %424 = vst [vmem:[#allocation2 + $0x1d0] sm:$0xff] %v416
  %425 = vst [vmem:[#allocation2 + $0x1d8] sm:$0xff] %v417
  %426 = vst [vmem:[#allocation2 + $0x1e0] sm:$0xff] %v418
  %427 = vst [vmem:[#allocation2 + $0x1e8] sm:$0xff] %v419
  %428 = vst [vmem:[#allocation2 + $0x1f0] sm:$0xff] %v420
  %429 = vst [vmem:[#allocation2 + $0x1f8] sm:$0xff] %v421
  %430 = vrot.lane.b32.xlu0 %v33, 111
  %v431 = vpop.permute.xlu0 %430
  %432 = vrot.lane.b32.xlu0 0.0, 111
  %v433 = vpop.permute.xlu0 %432
  %434 = vrot.lane.b32.xlu0 %v34, 111
  %v435 = vpop.permute.xlu0 %434
  %436 = vrot.lane.b32.xlu0 %v45, 111
  %v437 = vpop.permute.xlu0 %436
  %438 = vrot.lane.b32.xlu0 %v46, 111
  %v439 = vpop.permute.xlu0 %438
  %vm440 = vcmp.lt.s32.totalorder %v48, 111
  %v441 = vsel %vm440, %v437, %v439
  %v442 = vsel %vm440, %v435, %v437
  %v443 = vsel %vm440, %v431, %v435
  %v444 = vsel %vm440, %v439, %v431
  %vm445 = vmand %vm64, %vm72
  %vm446 = vmand %vm65, %vm73
  %vm447 = vmand %vm66, %vm74
  %vm448 = vmand %vm67, %vm75
  %v449 = vsel %vm445, 1, 0
  %v450 = vsel %vm446, 1, 0
  %v451 = vsel %vm447, 1, 0
  %v452 = vsel %vm448, 1, 0
  %vm453 = vcmp.eq.s32.totalorder %v449, 1
  %vm454 = vcmp.eq.s32.totalorder %v450, 1
  %vm455 = vcmp.eq.s32.totalorder %v451, 1
  %vm456 = vcmp.eq.s32.totalorder %v452, 1
  %v457 = vsel %vm453, %v443, 0.0
  %v458 = vsel %vm454, %v442, 0.0
  %v459 = vsel %vm455, %v441, 0.0
  %v460 = vsel %vm456, %v444, 0.0
  %v461 = vsel %vm453, %v433, 0.0
  %v462 = vsel %vm454, %v433, 0.0
  %v463 = vsel %vm455, %v433, 0.0
  %v464 = vsel %vm456, %v433, 0.0
  %v465 = vpack.c.bf16 %v461, %v457
  %v466 = vpack.c.bf16 %v462, %v458
  %v467 = vpack.c.bf16 %v463, %v459
  %v468 = vpack.c.bf16 %v464, %v460
  %v469 = vpack.c.bf16 %v461, %v461
  %v470 = vpack.c.bf16 %v462, %v462
  %v471 = vpack.c.bf16 %v463, %v463
  %v472 = vpack.c.bf16 %v464, %v464
  %473 = vst [vmem:[#allocation2 + $0x200] sm:$0xff] %v465
  %474 = vst [vmem:[#allocation2 + $0x208] sm:$0xff] %v466
  %475 = vst [vmem:[#allocation2 + $0x210] sm:$0xff] %v467
  %476 = vst [vmem:[#allocation2 + $0x218] sm:$0xff] %v468
  %477 = vst [vmem:[#allocation2 + $0x220] sm:$0xff] %v469
  %478 = vst [vmem:[#allocation2 + $0x228] sm:$0xff] %v470
  %479 = vst [vmem:[#allocation2 + $0x230] sm:$0xff] %v471
  %480 = vst [vmem:[#allocation2 + $0x238] sm:$0xff] %v472
  %v481 = vld [vmem:[%s2] sm:$0xff]
  %v482 = vld [vmem:[%s2 + $0x8] sm:$0xf]
  %v483 = vld [vmem:[%s2 + $0xc] sm:$0xff]
  %v484 = vld [vmem:[%s2 + $0x14] sm:$0xf]
  %v485 = vld [vmem:[%s2 + $0x18] sm:$0xff]
  %v486 = vld [vmem:[%s2 + $0x20] sm:$0xf]
  %v487 = vld [vmem:[%s2 + $0x24] sm:$0xff]
  %v488 = vld [vmem:[%s2 + $0x2c] sm:$0xf]
  %v489 = vld [vmem:[#allocation2] sm:$0xff]
  %v490 = vld [vmem:[#allocation2 + $0x8] sm:$0xff]
  %v491 = vld [vmem:[#allocation2 + $0x10] sm:$0xff]
  %v492 = vld [vmem:[#allocation2 + $0x18] sm:$0xff]
  %v493 = vld [vmem:[#allocation2 + $0x20] sm:$0xff]
  %v494 = vld [vmem:[#allocation2 + $0x28] sm:$0xff]
  %v495 = vld [vmem:[#allocation2 + $0x30] sm:$0xff]
  %v496 = vld [vmem:[#allocation2 + $0x38] sm:$0xff]
  %v497 = vld [vmem:[#allocation2 + $0x40] sm:$0xff]
  %v498 = vld [vmem:[#allocation2 + $0x48] sm:$0xff]
  %v499 = vld [vmem:[#allocation2 + $0x50] sm:$0xff]
  %v500 = vld [vmem:[#allocation2 + $0x58] sm:$0xff]
  %v501 = vld [vmem:[#allocation2 + $0x60] sm:$0xff]
  %v502 = vld [vmem:[#allocation2 + $0x68] sm:$0xff]
  %v503 = vld [vmem:[#allocation2 + $0x70] sm:$0xff]
  %v504 = vld [vmem:[#allocation2 + $0x78] sm:$0xff]
  %v505 = vld [vmem:[#allocation2 + $0x80] sm:$0xff]
  %v506 = vld [vmem:[#allocation2 + $0x88] sm:$0xff]
  %v507 = vld [vmem:[#allocation2 + $0x90] sm:$0xff]
  %v508 = vld [vmem:[#allocation2 + $0x98] sm:$0xff]
  %v509 = vld [vmem:[#allocation2 + $0xa0] sm:$0xff]
  %v510 = vld [vmem:[#allocation2 + $0xa8] sm:$0xff]
  %v511 = vld [vmem:[#allocation2 + $0xb0] sm:$0xff]
  %v512 = vld [vmem:[#allocation2 + $0xb8] sm:$0xff]
  %v513 = vld [vmem:[#allocation2 + $0xc0] sm:$0xff]
  %v514 = vld [vmem:[#allocation2 + $0xc8] sm:$0xff]
  %v515 = vld [vmem:[#allocation2 + $0xd0] sm:$0xff]
  %v516 = vld [vmem:[#allocation2 + $0xd8] sm:$0xff]
  %v517 = vld [vmem:[#allocation2 + $0xe0] sm:$0xff]
  %v518 = vld [vmem:[#allocation2 + $0xe8] sm:$0xff]
  %v519 = vld [vmem:[#allocation2 + $0xf0] sm:$0xff]
  %v520 = vld [vmem:[#allocation2 + $0xf8] sm:$0xff]
  %v521 = vld [vmem:[#allocation2 + $0x100] sm:$0xff]
  %v522 = vld [vmem:[#allocation2 + $0x108] sm:$0xff]
  %v523 = vld [vmem:[#allocation2 + $0x110] sm:$0xff]
  %v524 = vld [vmem:[#allocation2 + $0x118] sm:$0xff]
  %v525 = vld [vmem:[#allocation2 + $0x120] sm:$0xff]
  %v526 = vld [vmem:[#allocation2 + $0x128] sm:$0xff]
  %v527 = vld [vmem:[#allocation2 + $0x130] sm:$0xff]
  %v528 = vld [vmem:[#allocation2 + $0x138] sm:$0xff]
  %v529 = vld [vmem:[#allocation2 + $0x140] sm:$0xff]
  %v530 = vld [vmem:[#allocation2 + $0x148] sm:$0xff]
  %v531 = vld [vmem:[#allocation2 + $0x150] sm:$0xff]
  %v532 = vld [vmem:[#allocation2 + $0x158] sm:$0xff]
  %v533 = vld [vmem:[#allocation2 + $0x160] sm:$0xff]
  %v534 = vld [vmem:[#allocation2 + $0x168] sm:$0xff]
  %v535 = vld [vmem:[#allocation2 + $0x170] sm:$0xff]
  %v536 = vld [vmem:[#allocation2 + $0x178] sm:$0xff]
  %v537 = vld [vmem:[#allocation2 + $0x180] sm:$0xff]
  %v538 = vld [vmem:[#allocation2 + $0x188] sm:$0xff]
  %v539 = vld [vmem:[#allocation2 + $0x190] sm:$0xff]
  %v540 = vld [vmem:[#allocation2 + $0x198] sm:$0xff]
  %v541 = vld [vmem:[#allocation2 + $0x1a0] sm:$0xff]
  %v542 = vld [vmem:[#allocation2 + $0x1a8] sm:$0xff]
  %v543 = vld [vmem:[#allocation2 + $0x1b0] sm:$0xff]
  %v544 = vld [vmem:[#allocation2 + $0x1b8] sm:$0xff]
  %v545 = vld [vmem:[#allocation2 + $0x1c0] sm:$0xff]
  %v546 = vld [vmem:[#allocation2 + $0x1c8] sm:$0xff]
  %v547 = vld [vmem:[#allocation2 + $0x1d0] sm:$0xff]
  %v548 = vld [vmem:[#allocation2 + $0x1d8] sm:$0xff]
  %v549 = vld [vmem:[#allocation2 + $0x1e0] sm:$0xff]
  %v550 = vld [vmem:[#allocation2 + $0x1e8] sm:$0xff]
  %v551 = vld [vmem:[#allocation2 + $0x1f0] sm:$0xff]
  %v552 = vld [vmem:[#allocation2 + $0x1f8] sm:$0xff]
  %v553 = vld [vmem:[#allocation2 + $0x200] sm:$0xff]
  %v554 = vld [vmem:[#allocation2 + $0x208] sm:$0xff]
  %v555 = vld [vmem:[#allocation2 + $0x210] sm:$0xff]
  %v556 = vld [vmem:[#allocation2 + $0x218] sm:$0xff]
  %v557 = vld [vmem:[#allocation2 + $0x220] sm:$0xff]
  %v558 = vld [vmem:[#allocation2 + $0x228] sm:$0xff]
  %v559 = vld [vmem:[#allocation2 + $0x230] sm:$0xff]
  %v560 = vld [vmem:[#allocation2 + $0x238] sm:$0xff]
  %v569 = vunpack.c.l.b16 %v481
  %v570 = vunpack.c.h.b16 %v481
  %v571 = vunpack.c.l.b16 %v482
  %v572 = vunpack.c.l.b16 %v483
  %v573 = vunpack.c.h.b16 %v483
  %v574 = vunpack.c.l.b16 %v484
  %v575 = vunpack.c.l.b16 %v485
  %v576 = vunpack.c.h.b16 %v485
  %v577 = vunpack.c.l.b16 %v486
  %v578 = vunpack.c.l.b16 %v487
  %v579 = vunpack.c.h.b16 %v487
  %v580 = vunpack.c.l.b16 %v488
  %v581 = vpack.c.b16 %v572, %v569
  %v582 = vpack.c.b16 %v573, %v570
  %v583 = vpack.c.b16 %v574, %v571
  %v584 = vpack.c.b16 %v578, %v575
  %v585 = vpack.c.b16 %v579, %v576
  %v586 = vpack.c.b16 %v580, %v577
  %vm591 = vcmask 261120
  %v593 = vsel %vm591, %v583, 0
  %v596 = vsel %vm591, %v586, 0
  %598 = vmatprep.subr.bf16.mxu0 %v490
  %599 = vmatpush1.bf16.msra.mxu0 %v489
  %600 = vmatprep.subr.bf16.mxu0 %v494
  %601 = vmatpush1.bf16.msra.mxu0 %v493
  %602 = vmatprep.subr.bf16.mxu0 %v498
  %603 = vmatpush1.bf16.msra.mxu0 %v497
  %604 = vmatprep.subr.bf16.mxu0 %v502
  %605 = vmatpush1.bf16.msra.mxu0 %v501
  %606 = vmatprep.subr.bf16.mxu0 %v506
  %607 = vmatpush1.bf16.msra.mxu0 %v505
  %608 = vmatprep.subr.bf16.mxu0 %v510
  %609 = vmatpush1.bf16.msra.mxu0 %v509
  %610 = vmatprep.subr.bf16.mxu0 %v514
  %611 = vmatpush1.bf16.msra.mxu0 %v513
  %612 = vmatprep.subr.bf16.mxu0 %v518
  %613 = vmatpush1.bf16.msra.mxu0 %v517
  %614 = vmatprep.subr.bf16.mxu0 %v522
  %615 = vmatpush1.bf16.msra.mxu0 %v521
  %616 = vmatprep.subr.bf16.mxu0 %v526
  %617 = vmatpush1.bf16.msra.mxu0 %v525
  %618 = vmatprep.subr.bf16.mxu0 %v530
  %619 = vmatpush1.bf16.msra.mxu0 %v529
  %620 = vmatprep.subr.bf16.mxu0 %v534
  %621 = vmatpush1.bf16.msra.mxu0 %v533
  %622 = vmatprep.subr.bf16.mxu0 %v538
  %623 = vmatpush1.bf16.msra.mxu0 %v537
  %624 = vmatprep.subr.bf16.mxu0 %v542
  %625 = vmatpush1.bf16.msra.mxu0 %v541
  %626 = vmatprep.subr.bf16.mxu0 %v546
  %627 = vmatpush1.bf16.msra.mxu0 %v545
  %628 = vmatprep.subr.bf16.mxu0 %v550
  %629 = vmatpush1.bf16.msra.mxu0 %v549
  %630 = vmatprep.mubr.bf16.mxu0 %v582
  %631 = vmatmul.mubr.bf16.gmra.mrb[0].mxu0 %v581
  %v632 = vpop.f32.mrb[0].mxu0
  %v633 = vadd.f32 0.0, %v632
  %v634 = vpop.f32.mrb[0].mxu0
  %v635 = vadd.f32 0.0, %v634
  %v636 = vpop.f32.mrb[0].mxu0
  %v637 = vadd.f32 0.0, %v636
  %v638 = vpop.f32.mrb[0].mxu0
  %v639 = vadd.f32 0.0, %v638
  %640 = vmatprep.mubr.bf16.mxu0 %v585
  %641 = vmatmul.mubr.bf16.gmra.mrb[0].mxu0 %v584
  %v642 = vpop.f32.mrb[0].mxu0
  %v643 = vadd.f32 0.0, %v642
  %v644 = vpop.f32.mrb[0].mxu0
  %v645 = vadd.f32 0.0, %v644
  %v646 = vpop.f32.mrb[0].mxu0
  %v647 = vadd.f32 0.0, %v646
  %v648 = vpop.f32.mrb[0].mxu0
  %v649 = vadd.f32 0.0, %v648
  %650 = vdwg.mxu0
  %651 = vmatprep.subr.bf16.mxu0 %v554
  %652 = vmatpush1.bf16.msra.mxu0 %v553
  %653 = vmatprep.subr.bf16.mxu0 %v558
  %654 = vmatpush1.bf16.msra.mxu0 %v557
  %655 = vmatprep.subr.bf16.mxu0 0
  %656 = vmatpush1.bf16.msra.mxu0 0
  %657 = vmatprep.subr.bf16.mxu0 0
  %658 = vmatpush1.bf16.msra.mxu0 0
  %659 = vmatprep.subr.bf16.mxu0 0
  %660 = vmatpush1.bf16.msra.mxu0 0
  %661 = vmatprep.subr.bf16.mxu0 0
  %662 = vmatpush1.bf16.msra.mxu0 0
  %663 = vmatprep.subr.bf16.mxu0 0
  %664 = vmatpush1.bf16.msra.mxu0 0
  %665 = vmatprep.subr.bf16.mxu0 0
  %666 = vmatpush1.bf16.msra.mxu0 0
  %667 = vmatprep.subr.bf16.mxu0 0
  %668 = vmatpush1.bf16.msra.mxu0 0
  %669 = vmatprep.subr.bf16.mxu0 0
  %670 = vmatpush1.bf16.msra.mxu0 0
  %671 = vmatprep.subr.bf16.mxu0 0
  %672 = vmatpush1.bf16.msra.mxu0 0
  %673 = vmatprep.subr.bf16.mxu0 0
  %674 = vmatpush1.bf16.msra.mxu0 0
  %675 = vmatprep.subr.bf16.mxu0 0
  %676 = vmatpush1.bf16.msra.mxu0 0
  %677 = vmatprep.subr.bf16.mxu0 0
  %678 = vmatpush1.bf16.msra.mxu0 0
  %679 = vmatprep.subr.bf16.mxu0 0
  %680 = vmatpush1.bf16.msra.mxu0 0
  %681 = vmatprep.subr.bf16.mxu0 0
  %682 = vmatpush1.bf16.msra.mxu0 0
  %683 = vmatprep.mubr.bf16.mxu0 0
  %684 = vmatmul.mubr.bf16.gmra.mrb[0].mxu0 %v593
  %v685 = vpop.f32.mrb[0].mxu0
  %v686 = vadd.f32 %v633, %v685
  %v687 = vpop.f32.mrb[0].mxu0
  %v688 = vadd.f32 %v635, %v687
  %v689 = vpop.f32.mrb[0].mxu0
  %v690 = vadd.f32 %v637, %v689
  %v691 = vpop.f32.mrb[0].mxu0
  %v692 = vadd.f32 %v639, %v691
  %693 = vmatprep.mubr.bf16.mxu0 0
  %694 = vmatmul.mubr.bf16.gmra.mrb[0].mxu0 %v596
  %v695 = vpop.f32.mrb[0].mxu0
  %v696 = vadd.f32 %v643, %v695
  %v697 = vpop.f32.mrb[0].mxu0
  %v698 = vadd.f32 %v645, %v697
  %v699 = vpop.f32.mrb[0].mxu0
  %v700 = vadd.f32 %v647, %v699
  %v701 = vpop.f32.mrb[0].mxu0
  %v702 = vadd.f32 %v649, %v701
  %703 = vdwg.mxu0
  %704 = vmatprep.subr.bf16.mxu0 %v492
  %705 = vmatpush1.bf16.msra.mxu0 %v491
  %706 = vmatprep.subr.bf16.mxu0 %v496
  %707 = vmatpush1.bf16.msra.mxu0 %v495
  %708 = vmatprep.subr.bf16.mxu0 %v500
  %709 = vmatpush1.bf16.msra.mxu0 %v499
  %710 = vmatprep.subr.bf16.mxu0 %v504
  %711 = vmatpush1.bf16.msra.mxu0 %v503
  %712 = vmatprep.subr.bf16.mxu0 %v508
  %713 = vmatpush1.bf16.msra.mxu0 %v507
  %714 = vmatprep.subr.bf16.mxu0 %v512
  %715 = vmatpush1.bf16.msra.mxu0 %v511
  %716 = vmatprep.subr.bf16.mxu0 %v516
  %717 = vmatpush1.bf16.msra.mxu0 %v515
  %718 = vmatprep.subr.bf16.mxu0 %v520
  %719 = vmatpush1.bf16.msra.mxu0 %v519
  %720 = vmatprep.subr.bf16.mxu0 %v524
  %721 = vmatpush1.bf16.msra.mxu0 %v523
  %722 = vmatprep.subr.bf16.mxu0 %v528
  %723 = vmatpush1.bf16.msra.mxu0 %v527
  %724 = vmatprep.subr.bf16.mxu0 %v532
  %725 = vmatpush1.bf16.msra.mxu0 %v531
  %726 = vmatprep.subr.bf16.mxu0 %v536
  %727 = vmatpush1.bf16.msra.mxu0 %v535
  %728 = vmatprep.subr.bf16.mxu0 %v540
  %729 = vmatpush1.bf16.msra.mxu0 %v539
  %730 = vmatprep.subr.bf16.mxu0 %v544
  %731 = vmatpush1.bf16.msra.mxu0 %v543
  %732 = vmatprep.subr.bf16.mxu0 %v548
  %733 = vmatpush1.bf16.msra.mxu0 %v547
  %734 = vmatprep.subr.bf16.mxu0 %v552
  %735 = vmatpush1.bf16.msra.mxu0 %v551
  %736 = vmatprep.mubr.bf16.mxu0 %v582
  %737 = vmatmul.mubr.bf16.gmra.mrb[0].mxu0 %v581
  %v738 = vpop.f32.mrb[0].mxu0
  %v739 = vadd.f32 0.0, %v738
  %v740 = vpop.f32.mrb[0].mxu0
  %v741 = vadd.f32 0.0, %v740
  %v742 = vpop.f32.mrb[0].mxu0
  %v743 = vadd.f32 0.0, %v742
  %v744 = vpop.f32.mrb[0].mxu0
  %v745 = vadd.f32 0.0, %v744
  %746 = vmatprep.mubr.bf16.mxu0 %v585
  %747 = vmatmul.mubr.bf16.gmra.mrb[0].mxu0 %v584
  %v748 = vpop.f32.mrb[0].mxu0
  %v749 = vadd.f32 0.0, %v748
  %v750 = vpop.f32.mrb[0].mxu0
  %v751 = vadd.f32 0.0, %v750
  %v752 = vpop.f32.mrb[0].mxu0
  %v753 = vadd.f32 0.0, %v752
  %v754 = vpop.f32.mrb[0].mxu0
  %v755 = vadd.f32 0.0, %v754
  %756 = vdwg.mxu0
  %757 = vmatprep.subr.bf16.mxu0 %v556
  %758 = vmatpush1.bf16.msra.mxu0 %v555
  %759 = vmatprep.subr.bf16.mxu0 %v560
  %760 = vmatpush1.bf16.msra.mxu0 %v559
  %761 = vmatprep.subr.bf16.mxu0 0
  %762 = vmatpush1.bf16.msra.mxu0 0
  %763 = vmatprep.subr.bf16.mxu0 0
  %764 = vmatpush1.bf16.msra.mxu0 0
  %765 = vmatprep.subr.bf16.mxu0 0
  %766 = vmatpush1.bf16.msra.mxu0 0
  %767 = vmatprep.subr.bf16.mxu0 0
  %768 = vmatpush1.bf16.msra.mxu0 0
  %769 = vmatprep.subr.bf16.mxu0 0
  %770 = vmatpush1.bf16.msra.mxu0 0
  %771 = vmatprep.subr.bf16.mxu0 0
  %772 = vmatpush1.bf16.msra.mxu0 0
  %773 = vmatprep.subr.bf16.mxu0 0
  %774 = vmatpush1.bf16.msra.mxu0 0
  %775 = vmatprep.subr.bf16.mxu0 0
  %776 = vmatpush1.bf16.msra.mxu0 0
  %777 = vmatprep.subr.bf16.mxu0 0
  %778 = vmatpush1.bf16.msra.mxu0 0
  %779 = vmatprep.subr.bf16.mxu0 0
  %780 = vmatpush1.bf16.msra.mxu0 0
  %781 = vmatprep.subr.bf16.mxu0 0
  %782 = vmatpush1.bf16.msra.mxu0 0
  %783 = vmatprep.subr.bf16.mxu0 0
  %784 = vmatpush1.bf16.msra.mxu0 0
  %785 = vmatprep.subr.bf16.mxu0 0
  %786 = vmatpush1.bf16.msra.mxu0 0
  %787 = vmatprep.subr.bf16.mxu0 0
  %788 = vmatpush1.bf16.msra.mxu0 0
  %789 = vmatprep.mubr.bf16.mxu0 0
  %790 = vmatmul.mubr.bf16.gmra.mrb[0].mxu0 %v593
  %v791 = vpop.f32.mrb[0].mxu0
  %v792 = vadd.f32 %v739, %v791
  %v793 = vpop.f32.mrb[0].mxu0
  %v794 = vadd.f32 %v741, %v793
  %v795 = vpop.f32.mrb[0].mxu0
  %v796 = vadd.f32 %v743, %v795
  %v797 = vpop.f32.mrb[0].mxu0
  %v798 = vadd.f32 %v745, %v797
  %799 = vmatprep.mubr.bf16.mxu0 0
  %800 = vmatmul.mubr.bf16.gmra.mrb[0].mxu0 %v596
  %v801 = vpop.f32.mrb[0].mxu0
  %v802 = vadd.f32 %v749, %v801
  %v803 = vpop.f32.mrb[0].mxu0
  %v804 = vadd.f32 %v751, %v803
  %v805 = vpop.f32.mrb[0].mxu0
  %v806 = vadd.f32 %v753, %v805
  %v807 = vpop.f32.mrb[0].mxu0
  %v808 = vadd.f32 %v755, %v807
  %809 = vdwg.mxu0
  %v810 = vadd.f32 %v686, %v688
  %811 = vadd.xlane.f32.xlu0 %v810
  %v812 = vpop.xlane.xlu0 %811
  %v813 = vadd.f32 %v690, %v692
  %814 = vadd.xlane.f32.xlu0 %v813
  %v815 = vpop.xlane.xlu0 %814
  %v816 = vadd.f32 %v696, %v698
  %817 = vadd.xlane.f32.xlu0 %v816
  %v818 = vpop.xlane.xlu0 %817
  %v819 = vadd.f32 %v700, %v702
  %820 = vadd.xlane.f32.xlu0 %v819
  %v821 = vpop.xlane.xlu0 %820
  %v822 = vmul.f32 %v812, 0.00390625
  %v823 = vmul.f32 %v815, 0.00390625
  %v824 = vmul.f32 %v818, 0.00390625
  %v825 = vmul.f32 %v821, 0.00390625
  %v826 = vmul.f32 %v686, %v686
  %v827 = vmul.f32 %v688, %v688
  %v828 = vmul.f32 %v690, %v690
  %v829 = vmul.f32 %v692, %v692
  %v830 = vmul.f32 %v696, %v696
  %v831 = vmul.f32 %v698, %v698
  %v832 = vmul.f32 %v700, %v700
  %v833 = vmul.f32 %v702, %v702
  %v834 = vadd.f32 %v826, %v827
  %835 = vadd.xlane.f32.xlu0 %v834
  %v836 = vpop.xlane.xlu0 %835
  %v837 = vadd.f32 %v828, %v829
  %838 = vadd.xlane.f32.xlu0 %v837
  %v839 = vpop.xlane.xlu0 %838
  %v840 = vadd.f32 %v830, %v831
  %841 = vadd.xlane.f32.xlu0 %v840
  %v842 = vpop.xlane.xlu0 %841
  %v843 = vadd.f32 %v832, %v833
  %844 = vadd.xlane.f32.xlu0 %v843
  %v845 = vpop.xlane.xlu0 %844
  %v846 = vmul.f32 %v836, 0.00390625
  %v847 = vmul.f32 %v839, 0.00390625
  %v848 = vmul.f32 %v842, 0.00390625
  %v849 = vmul.f32 %v845, 0.00390625
  %v850 = vmul.f32 %v822, %v822
  %v851 = vmul.f32 %v823, %v823
  %v852 = vmul.f32 %v824, %v824
  %v853 = vmul.f32 %v825, %v825
  %v854 = vsub.f32 %v846, %v850
  %v855 = vsub.f32 %v847, %v851
  %v856 = vsub.f32 %v848, %v852
  %v857 = vsub.f32 %v849, %v853
  %v858 = vsub.f32 %v686, %v822
  %v859 = vsub.f32 %v688, %v822
  %v860 = vsub.f32 %v690, %v823
  %v861 = vsub.f32 %v692, %v823
  %v862 = vsub.f32 %v696, %v824
  %v863 = vsub.f32 %v698, %v824
  %v864 = vsub.f32 %v700, %v825
  %v865 = vsub.f32 %v702, %v825
  %v866 = vadd.f32 %v854, 1e-05
  %v867 = vadd.f32 %v855, 1e-05
  %v868 = vadd.f32 %v856, 1e-05
  %v869 = vadd.f32 %v857, 1e-05
  %v870 = vrsqrt.pop %v866
  %v871 = vrsqrt.pop %v867
  %v872 = vrsqrt.pop %v868
  %v873 = vrsqrt.pop %v869
  %v874 = vmul.f32 %v858, %v870
  %v875 = vmul.f32 %v859, %v870
  %v876 = vmul.f32 %v860, %v871
  %v877 = vmul.f32 %v861, %v871
  %v878 = vmul.f32 %v862, %v872
  %v879 = vmul.f32 %v863, %v872
  %v880 = vmul.f32 %v864, %v873
  %v881 = vmul.f32 %v865, %v873
  %v882 = vmax.f32 %v874, 0.0
  %v883 = vmax.f32 %v875, 0.0
  %v884 = vmax.f32 %v876, 0.0
  %v885 = vmax.f32 %v877, 0.0
  %v886 = vmax.f32 %v878, 0.0
  %v887 = vmax.f32 %v879, 0.0
  %v888 = vmax.f32 %v880, 0.0
  %v889 = vmax.f32 %v881, 0.0
  %v890 = vadd.f32 %v792, %v794
  %891 = vadd.xlane.f32.xlu0 %v890
  %v892 = vpop.xlane.xlu0 %891
  %v893 = vadd.f32 %v796, %v798
  %894 = vadd.xlane.f32.xlu0 %v893
  %v895 = vpop.xlane.xlu0 %894
  %v896 = vadd.f32 %v802, %v804
  %897 = vadd.xlane.f32.xlu0 %v896
  %v898 = vpop.xlane.xlu0 %897
  %v899 = vadd.f32 %v806, %v808
  %900 = vadd.xlane.f32.xlu0 %v899
  %v901 = vpop.xlane.xlu0 %900
  %v902 = vmul.f32 %v892, 0.00390625
  %v903 = vmul.f32 %v895, 0.00390625
  %v904 = vmul.f32 %v898, 0.00390625
  %v905 = vmul.f32 %v901, 0.00390625
  %v906 = vmul.f32 %v792, %v792
  %v907 = vmul.f32 %v794, %v794
  %v908 = vmul.f32 %v796, %v796
  %v909 = vmul.f32 %v798, %v798
  %v910 = vmul.f32 %v802, %v802
  %v911 = vmul.f32 %v804, %v804
  %v912 = vmul.f32 %v806, %v806
  %v913 = vmul.f32 %v808, %v808
  %v914 = vadd.f32 %v906, %v907
  %915 = vadd.xlane.f32.xlu0 %v914
  %v916 = vpop.xlane.xlu0 %915
  %v917 = vadd.f32 %v908, %v909
  %918 = vadd.xlane.f32.xlu0 %v917
  %v919 = vpop.xlane.xlu0 %918
  %v920 = vadd.f32 %v910, %v911
  %921 = vadd.xlane.f32.xlu0 %v920
  %v922 = vpop.xlane.xlu0 %921
  %v923 = vadd.f32 %v912, %v913
  %924 = vadd.xlane.f32.xlu0 %v923
  %v925 = vpop.xlane.xlu0 %924
  %v926 = vmul.f32 %v916, 0.00390625
  %v927 = vmul.f32 %v919, 0.00390625
  %v928 = vmul.f32 %v922, 0.00390625
  %v929 = vmul.f32 %v925, 0.00390625
  %v930 = vmul.f32 %v902, %v902
  %v931 = vmul.f32 %v903, %v903
  %v932 = vmul.f32 %v904, %v904
  %v933 = vmul.f32 %v905, %v905
  %v934 = vsub.f32 %v926, %v930
  %v935 = vsub.f32 %v927, %v931
  %v936 = vsub.f32 %v928, %v932
  %v937 = vsub.f32 %v929, %v933
  %v938 = vsub.f32 %v792, %v902
  %v939 = vsub.f32 %v794, %v902
  %v940 = vsub.f32 %v796, %v903
  %v941 = vsub.f32 %v798, %v903
  %v942 = vsub.f32 %v802, %v904
  %v943 = vsub.f32 %v804, %v904
  %v944 = vsub.f32 %v806, %v905
  %v945 = vsub.f32 %v808, %v905
  %v946 = vadd.f32 %v934, 1e-05
  %v947 = vadd.f32 %v935, 1e-05
  %v948 = vadd.f32 %v936, 1e-05
  %v949 = vadd.f32 %v937, 1e-05
  %v950 = vrsqrt.pop %v946
  %v951 = vrsqrt.pop %v947
  %v952 = vrsqrt.pop %v948
  %v953 = vrsqrt.pop %v949
  %v954 = vmul.f32 %v938, %v950
  %v955 = vmul.f32 %v939, %v950
  %v956 = vmul.f32 %v940, %v951
  %v957 = vmul.f32 %v941, %v951
  %v958 = vmul.f32 %v942, %v952
  %v959 = vmul.f32 %v943, %v952
  %v960 = vmul.f32 %v944, %v953
  %v961 = vmul.f32 %v945, %v953
  %v962 = vmax.f32 %v954, 0.0
  %v963 = vmax.f32 %v955, 0.0
  %v964 = vmax.f32 %v956, 0.0
  %v965 = vmax.f32 %v957, 0.0
  %v966 = vmax.f32 %v958, 0.0
  %v967 = vmax.f32 %v959, 0.0
  %v968 = vmax.f32 %v960, 0.0
  %v969 = vmax.f32 %v961, 0.0
  %970 = vrot.lane.b32.xlu0 %v882, 17
  %v971 = vpop.permute.xlu0 %970
  %972 = vrot.lane.b32.xlu0 %v884, 17
  %v973 = vpop.permute.xlu0 %972
  %974 = vrot.lane.b32.xlu0 %v886, 17
  %v975 = vpop.permute.xlu0 %974
  %976 = vrot.lane.b32.xlu0 %v888, 17
  %v977 = vpop.permute.xlu0 %976
  %978 = vrot.lane.b32.xlu0 %v883, 17
  %v979 = vpop.permute.xlu0 %978
  %980 = vrot.lane.b32.xlu0 %v885, 17
  %v981 = vpop.permute.xlu0 %980
  %982 = vrot.lane.b32.xlu0 %v887, 17
  %v983 = vpop.permute.xlu0 %982
  %984 = vrot.lane.b32.xlu0 %v889, 17
  %v985 = vpop.permute.xlu0 %984
  %986 = vrot.lane.b32.xlu0 %v962, 17
  %v987 = vpop.permute.xlu0 %986
  %988 = vrot.lane.b32.xlu0 %v964, 17
  %v989 = vpop.permute.xlu0 %988
  %990 = vrot.lane.b32.xlu0 %v966, 17
  %v991 = vpop.permute.xlu0 %990
  %992 = vrot.lane.b32.xlu0 %v968, 17
  %v993 = vpop.permute.xlu0 %992
  %994 = vrot.lane.b32.xlu0 %v963, 17
  %v995 = vpop.permute.xlu0 %994
  %996 = vrot.lane.b32.xlu0 %v965, 17
  %v997 = vpop.permute.xlu0 %996
  %998 = vrot.lane.b32.xlu0 %v967, 17
  %v999 = vpop.permute.xlu0 %998
  %1000 = vrot.lane.b32.xlu0 %v969, 17
  %v1001 = vpop.permute.xlu0 %1000
  %v1002 = vsel %vm86, %v987, %v995
  %v1003 = vsel %vm86, %v989, %v997
  %v1004 = vsel %vm86, %v991, %v999
  %v1005 = vsel %vm86, %v993, %v1001
  %v1006 = vsel %vm86, %v979, %v987
  %v1007 = vsel %vm86, %v981, %v989
  %v1008 = vsel %vm86, %v983, %v991
  %v1009 = vsel %vm86, %v985, %v993
  %v1010 = vsel %vm86, %v971, %v979
  %v1011 = vsel %vm86, %v973, %v981
  %v1012 = vsel %vm86, %v975, %v983
  %v1013 = vsel %vm86, %v977, %v985
  %v1014 = vsel %vm86, %v995, %v971
  %v1015 = vsel %vm86, %v997, %v973
  %v1016 = vsel %vm86, %v999, %v975
  %v1017 = vsel %vm86, %v1001, %v977
  %v1018 = vsel %vm99, %v1014, 0.0
  %v1019 = vsel %vm100, %v1010, 0.0
  %v1020 = vsel %vm101, %v1006, 0.0
  %v1021 = vsel %vm102, %v1002, 0.0
  %v1022 = vsel %vm99, %v1015, 0.0
  %v1023 = vsel %vm100, %v1011, 0.0
  %v1024 = vsel %vm101, %v1007, 0.0
  %v1025 = vsel %vm102, %v1003, 0.0
  %v1026 = vsel %vm99, %v1016, 0.0
  %v1027 = vsel %vm100, %v1012, 0.0
  %v1028 = vsel %vm101, %v1008, 0.0
  %v1029 = vsel %vm102, %v1004, 0.0
  %v1030 = vsel %vm99, %v1017, 0.0
  %v1031 = vsel %vm100, %v1013, 0.0
  %v1032 = vsel %vm101, %v1009, 0.0
  %v1033 = vsel %vm102, %v1005, 0.0
  %v1034 = vpack.c.bf16 %v1022, %v1018
  %v1035 = vpack.c.bf16 %v1023, %v1019
  %v1036 = vpack.c.bf16 %v1024, %v1020
  %v1037 = vpack.c.bf16 %v1025, %v1021
  %v1038 = vpack.c.bf16 %v1030, %v1026
  %v1039 = vpack.c.bf16 %v1031, %v1027
  %v1040 = vpack.c.bf16 %v1032, %v1028
  %v1041 = vpack.c.bf16 %v1033, %v1029
  %1042 = vst [vmem:[#allocation2] sm:$0xff] %v1034
  %1043 = vst [vmem:[#allocation2 + $0x8] sm:$0xff] %v1035
  %1044 = vst [vmem:[#allocation2 + $0x10] sm:$0xff] %v1036
  %1045 = vst [vmem:[#allocation2 + $0x18] sm:$0xff] %v1037
  %1046 = vst [vmem:[#allocation2 + $0x20] sm:$0xff] %v1038
  %1047 = vst [vmem:[#allocation2 + $0x28] sm:$0xff] %v1039
  %1048 = vst [vmem:[#allocation2 + $0x30] sm:$0xff] %v1040
  %1049 = vst [vmem:[#allocation2 + $0x38] sm:$0xff] %v1041
  %1050 = vrot.lane.b32.xlu0 %v882, 16
  %v1051 = vpop.permute.xlu0 %1050
  %1052 = vrot.lane.b32.xlu0 %v884, 16
  %v1053 = vpop.permute.xlu0 %1052
  %1054 = vrot.lane.b32.xlu0 %v886, 16
  %v1055 = vpop.permute.xlu0 %1054
  %1056 = vrot.lane.b32.xlu0 %v888, 16
  %v1057 = vpop.permute.xlu0 %1056
  %1058 = vrot.lane.b32.xlu0 %v883, 16
  %v1059 = vpop.permute.xlu0 %1058
  %1060 = vrot.lane.b32.xlu0 %v885, 16
  %v1061 = vpop.permute.xlu0 %1060
  %1062 = vrot.lane.b32.xlu0 %v887, 16
  %v1063 = vpop.permute.xlu0 %1062
  %1064 = vrot.lane.b32.xlu0 %v889, 16
  %v1065 = vpop.permute.xlu0 %1064
  %1066 = vrot.lane.b32.xlu0 %v962, 16
  %v1067 = vpop.permute.xlu0 %1066
  %1068 = vrot.lane.b32.xlu0 %v964, 16
  %v1069 = vpop.permute.xlu0 %1068
  %1070 = vrot.lane.b32.xlu0 %v966, 16
  %v1071 = vpop.permute.xlu0 %1070
  %1072 = vrot.lane.b32.xlu0 %v968, 16
  %v1073 = vpop.permute.xlu0 %1072
  %1074 = vrot.lane.b32.xlu0 %v963, 16
  %v1075 = vpop.permute.xlu0 %1074
  %1076 = vrot.lane.b32.xlu0 %v965, 16
  %v1077 = vpop.permute.xlu0 %1076
  %1078 = vrot.lane.b32.xlu0 %v967, 16
  %v1079 = vpop.permute.xlu0 %1078
  %1080 = vrot.lane.b32.xlu0 %v969, 16
  %v1081 = vpop.permute.xlu0 %1080
  %v1082 = vsel %vm137, %v1067, %v1075
  %v1083 = vsel %vm137, %v1069, %v1077
  %v1084 = vsel %vm137, %v1071, %v1079
  %v1085 = vsel %vm137, %v1073, %v1081
  %v1086 = vsel %vm137, %v1059, %v1067
  %v1087 = vsel %vm137, %v1061, %v1069
  %v1088 = vsel %vm137, %v1063, %v1071
  %v1089 = vsel %vm137, %v1065, %v1073
  %v1090 = vsel %vm137, %v1051, %v1059
  %v1091 = vsel %vm137, %v1053, %v1061
  %v1092 = vsel %vm137, %v1055, %v1063
  %v1093 = vsel %vm137, %v1057, %v1065
  %v1094 = vsel %vm137, %v1075, %v1051
  %v1095 = vsel %vm137, %v1077, %v1053
  %v1096 = vsel %vm137, %v1079, %v1055
  %v1097 = vsel %vm137, %v1081, %v1057
  %v1098 = vsel %vm146, %v1094, 0.0
  %v1099 = vsel %vm147, %v1090, 0.0
  %v1100 = vsel %vm148, %v1086, 0.0
  %v1101 = vsel %vm149, %v1082, 0.0
  %v1102 = vsel %vm146, %v1095, 0.0
  %v1103 = vsel %vm147, %v1091, 0.0
  %v1104 = vsel %vm148, %v1087, 0.0
  %v1105 = vsel %vm149, %v1083, 0.0
  %v1106 = vsel %vm146, %v1096, 0.0
  %v1107 = vsel %vm147, %v1092, 0.0
  %v1108 = vsel %vm148, %v1088, 0.0
  %v1109 = vsel %vm149, %v1084, 0.0
  %v1110 = vsel %vm146, %v1097, 0.0
  %v1111 = vsel %vm147, %v1093, 0.0
  %v1112 = vsel %vm148, %v1089, 0.0
  %v1113 = vsel %vm149, %v1085, 0.0
  %v1114 = vpack.c.bf16 %v1102, %v1098
  %v1115 = vpack.c.bf16 %v1103, %v1099
  %v1116 = vpack.c.bf16 %v1104, %v1100
  %v1117 = vpack.c.bf16 %v1105, %v1101
  %v1118 = vpack.c.bf16 %v1110, %v1106
  %v1119 = vpack.c.bf16 %v1111, %v1107
  %v1120 = vpack.c.bf16 %v1112, %v1108
  %v1121 = vpack.c.bf16 %v1113, %v1109
  %1122 = vst [vmem:[#allocation2 + $0x40] sm:$0xff] %v1114
  %1123 = vst [vmem:[#allocation2 + $0x48] sm:$0xff] %v1115
  %1124 = vst [vmem:[#allocation2 + $0x50] sm:$0xff] %v1116
  %1125 = vst [vmem:[#allocation2 + $0x58] sm:$0xff] %v1117
  %1126 = vst [vmem:[#allocation2 + $0x60] sm:$0xff] %v1118
  %1127 = vst [vmem:[#allocation2 + $0x68] sm:$0xff] %v1119
  %1128 = vst [vmem:[#allocation2 + $0x70] sm:$0xff] %v1120
  %1129 = vst [vmem:[#allocation2 + $0x78] sm:$0xff] %v1121
  %1130 = vrot.lane.b32.xlu0 %v882, 15
  %v1131 = vpop.permute.xlu0 %1130
  %1132 = vrot.lane.b32.xlu0 %v884, 15
  %v1133 = vpop.permute.xlu0 %1132
  %1134 = vrot.lane.b32.xlu0 %v886, 15
  %v1135 = vpop.permute.xlu0 %1134
  %1136 = vrot.lane.b32.xlu0 %v888, 15
  %v1137 = vpop.permute.xlu0 %1136
  %1138 = vrot.lane.b32.xlu0 %v883, 15
  %v1139 = vpop.permute.xlu0 %1138
  %1140 = vrot.lane.b32.xlu0 %v885, 15
  %v1141 = vpop.permute.xlu0 %1140
  %1142 = vrot.lane.b32.xlu0 %v887, 15
  %v1143 = vpop.permute.xlu0 %1142
  %1144 = vrot.lane.b32.xlu0 %v889, 15
  %v1145 = vpop.permute.xlu0 %1144
  %1146 = vrot.lane.b32.xlu0 %v962, 15
  %v1147 = vpop.permute.xlu0 %1146
  %1148 = vrot.lane.b32.xlu0 %v964, 15
  %v1149 = vpop.permute.xlu0 %1148
  %1150 = vrot.lane.b32.xlu0 %v966, 15
  %v1151 = vpop.permute.xlu0 %1150
  %1152 = vrot.lane.b32.xlu0 %v968, 15
  %v1153 = vpop.permute.xlu0 %1152
  %1154 = vrot.lane.b32.xlu0 %v963, 15
  %v1155 = vpop.permute.xlu0 %1154
  %1156 = vrot.lane.b32.xlu0 %v965, 15
  %v1157 = vpop.permute.xlu0 %1156
  %1158 = vrot.lane.b32.xlu0 %v967, 15
  %v1159 = vpop.permute.xlu0 %1158
  %1160 = vrot.lane.b32.xlu0 %v969, 15
  %v1161 = vpop.permute.xlu0 %1160
  %v1162 = vsel %vm184, %v1147, %v1155
  %v1163 = vsel %vm184, %v1149, %v1157
  %v1164 = vsel %vm184, %v1151, %v1159
  %v1165 = vsel %vm184, %v1153, %v1161
  %v1166 = vsel %vm184, %v1139, %v1147
  %v1167 = vsel %vm184, %v1141, %v1149
  %v1168 = vsel %vm184, %v1143, %v1151
  %v1169 = vsel %vm184, %v1145, %v1153
  %v1170 = vsel %vm184, %v1131, %v1139
  %v1171 = vsel %vm184, %v1133, %v1141
  %v1172 = vsel %vm184, %v1135, %v1143
  %v1173 = vsel %vm184, %v1137, %v1145
  %v1174 = vsel %vm184, %v1155, %v1131
  %v1175 = vsel %vm184, %v1157, %v1133
  %v1176 = vsel %vm184, %v1159, %v1135
  %v1177 = vsel %vm184, %v1161, %v1137
  %v1178 = vsel %vm197, %v1174, 0.0
  %v1179 = vsel %vm198, %v1170, 0.0
  %v1180 = vsel %vm199, %v1166, 0.0
  %v1181 = vsel %vm200, %v1162, 0.0
  %v1182 = vsel %vm197, %v1175, 0.0
  %v1183 = vsel %vm198, %v1171, 0.0
  %v1184 = vsel %vm199, %v1167, 0.0
  %v1185 = vsel %vm200, %v1163, 0.0
  %v1186 = vsel %vm197, %v1176, 0.0
  %v1187 = vsel %vm198, %v1172, 0.0
  %v1188 = vsel %vm199, %v1168, 0.0
  %v1189 = vsel %vm200, %v1164, 0.0
  %v1190 = vsel %vm197, %v1177, 0.0
  %v1191 = vsel %vm198, %v1173, 0.0
  %v1192 = vsel %vm199, %v1169, 0.0
  %v1193 = vsel %vm200, %v1165, 0.0
  %v1194 = vpack.c.bf16 %v1182, %v1178
  %v1195 = vpack.c.bf16 %v1183, %v1179
  %v1196 = vpack.c.bf16 %v1184, %v1180
  %v1197 = vpack.c.bf16 %v1185, %v1181
  %v1198 = vpack.c.bf16 %v1190, %v1186
  %v1199 = vpack.c.bf16 %v1191, %v1187
  %v1200 = vpack.c.bf16 %v1192, %v1188
  %v1201 = vpack.c.bf16 %v1193, %v1189
  %1202 = vst [vmem:[#allocation2 + $0x80] sm:$0xff] %v1194
  %1203 = vst [vmem:[#allocation2 + $0x88] sm:$0xff] %v1195
  %1204 = vst [vmem:[#allocation2 + $0x90] sm:$0xff] %v1196
  %1205 = vst [vmem:[#allocation2 + $0x98] sm:$0xff] %v1197
  %1206 = vst [vmem:[#allocation2 + $0xa0] sm:$0xff] %v1198
  %1207 = vst [vmem:[#allocation2 + $0xa8] sm:$0xff] %v1199
  %1208 = vst [vmem:[#allocation2 + $0xb0] sm:$0xff] %v1200
  %1209 = vst [vmem:[#allocation2 + $0xb8] sm:$0xff] %v1201
  %1210 = vrot.lane.b32.xlu0 %v882, 1
  %v1211 = vpop.permute.xlu0 %1210
  %1212 = vrot.lane.b32.xlu0 %v884, 1
  %v1213 = vpop.permute.xlu0 %1212
  %1214 = vrot.lane.b32.xlu0 %v886, 1
  %v1215 = vpop.permute.xlu0 %1214
  %1216 = vrot.lane.b32.xlu0 %v888, 1
  %v1217 = vpop.permute.xlu0 %1216
  %1218 = vrot.lane.b32.xlu0 %v883, 1
  %v1219 = vpop.permute.xlu0 %1218
  %1220 = vrot.lane.b32.xlu0 %v885, 1
  %v1221 = vpop.permute.xlu0 %1220
  %1222 = vrot.lane.b32.xlu0 %v887, 1
  %v1223 = vpop.permute.xlu0 %1222
  %1224 = vrot.lane.b32.xlu0 %v889, 1
  %v1225 = vpop.permute.xlu0 %1224
  %1226 = vrot.lane.b32.xlu0 %v962, 1
  %v1227 = vpop.permute.xlu0 %1226
  %1228 = vrot.lane.b32.xlu0 %v964, 1
  %v1229 = vpop.permute.xlu0 %1228
  %1230 = vrot.lane.b32.xlu0 %v966, 1
  %v1231 = vpop.permute.xlu0 %1230
  %1232 = vrot.lane.b32.xlu0 %v968, 1
  %v1233 = vpop.permute.xlu0 %1232
  %1234 = vrot.lane.b32.xlu0 %v963, 1
  %v1235 = vpop.permute.xlu0 %1234
  %1236 = vrot.lane.b32.xlu0 %v965, 1
  %v1237 = vpop.permute.xlu0 %1236
  %1238 = vrot.lane.b32.xlu0 %v967, 1
  %v1239 = vpop.permute.xlu0 %1238
  %1240 = vrot.lane.b32.xlu0 %v969, 1
  %v1241 = vpop.permute.xlu0 %1240
  %v1242 = vsel %vm235, %v1227, %v1235
  %v1243 = vsel %vm235, %v1229, %v1237
  %v1244 = vsel %vm235, %v1231, %v1239
  %v1245 = vsel %vm235, %v1233, %v1241
  %v1246 = vsel %vm235, %v1219, %v1227
  %v1247 = vsel %vm235, %v1221, %v1229
  %v1248 = vsel %vm235, %v1223, %v1231
  %v1249 = vsel %vm235, %v1225, %v1233
  %v1250 = vsel %vm235, %v1211, %v1219
  %v1251 = vsel %vm235, %v1213, %v1221
  %v1252 = vsel %vm235, %v1215, %v1223
  %v1253 = vsel %vm235, %v1217, %v1225
  %v1254 = vsel %vm235, %v1235, %v1211
  %v1255 = vsel %vm235, %v1237, %v1213
  %v1256 = vsel %vm235, %v1239, %v1215
  %v1257 = vsel %vm235, %v1241, %v1217
  %v1258 = vsel %vm244, %v1254, 0.0
  %v1259 = vsel %vm245, %v1250, 0.0
  %v1260 = vsel %vm246, %v1246, 0.0
  %v1261 = vsel %vm247, %v1242, 0.0
  %v1262 = vsel %vm244, %v1255, 0.0
  %v1263 = vsel %vm245, %v1251, 0.0
  %v1264 = vsel %vm246, %v1247, 0.0
  %v1265 = vsel %vm247, %v1243, 0.0
  %v1266 = vsel %vm244, %v1256, 0.0
  %v1267 = vsel %vm245, %v1252, 0.0
  %v1268 = vsel %vm246, %v1248, 0.0
  %v1269 = vsel %vm247, %v1244, 0.0
  %v1270 = vsel %vm244, %v1257, 0.0
  %v1271 = vsel %vm245, %v1253, 0.0
  %v1272 = vsel %vm246, %v1249, 0.0
  %v1273 = vsel %vm247, %v1245, 0.0
  %v1274 = vpack.c.bf16 %v1262, %v1258
  %v1275 = vpack.c.bf16 %v1263, %v1259
  %v1276 = vpack.c.bf16 %v1264, %v1260
  %v1277 = vpack.c.bf16 %v1265, %v1261
  %v1278 = vpack.c.bf16 %v1270, %v1266
  %v1279 = vpack.c.bf16 %v1271, %v1267
  %v1280 = vpack.c.bf16 %v1272, %v1268
  %v1281 = vpack.c.bf16 %v1273, %v1269
  %1282 = vst [vmem:[#allocation2 + $0xc0] sm:$0xff] %v1274
  %1283 = vst [vmem:[#allocation2 + $0xc8] sm:$0xff] %v1275
  %1284 = vst [vmem:[#allocation2 + $0xd0] sm:$0xff] %v1276
  %1285 = vst [vmem:[#allocation2 + $0xd8] sm:$0xff] %v1277
  %1286 = vst [vmem:[#allocation2 + $0xe0] sm:$0xff] %v1278
  %1287 = vst [vmem:[#allocation2 + $0xe8] sm:$0xff] %v1279
  %1288 = vst [vmem:[#allocation2 + $0xf0] sm:$0xff] %v1280
  %1289 = vst [vmem:[#allocation2 + $0xf8] sm:$0xff] %v1281
  %v1290 = vpack.c.bf16 %v884, %v882
  %v1291 = vpack.c.bf16 %v885, %v883
  %v1292 = vpack.c.bf16 %v964, %v962
  %v1293 = vpack.c.bf16 %v965, %v963
  %v1294 = vpack.c.bf16 %v888, %v886
  %v1295 = vpack.c.bf16 %v889, %v887
  %v1296 = vpack.c.bf16 %v968, %v966
  %v1297 = vpack.c.bf16 %v969, %v967
  %1298 = vst [vmem:[#allocation2 + $0x100] sm:$0xff] %v1290
  %1299 = vst [vmem:[#allocation2 + $0x108] sm:$0xff] %v1291
  %1300 = vst [vmem:[#allocation2 + $0x110] sm:$0xff] %v1292
  %1301 = vst [vmem:[#allocation2 + $0x118] sm:$0xff] %v1293
  %1302 = vst [vmem:[#allocation2 + $0x120] sm:$0xff] %v1294
  %1303 = vst [vmem:[#allocation2 + $0x128] sm:$0xff] %v1295
  %1304 = vst [vmem:[#allocation2 + $0x130] sm:$0xff] %v1296
  %1305 = vst [vmem:[#allocation2 + $0x138] sm:$0xff] %v1297
  %1306 = vrot.lane.b32.xlu0 %v882, 127
  %v1307 = vpop.permute.xlu0 %1306
  %1308 = vrot.lane.b32.xlu0 %v884, 127
  %v1309 = vpop.permute.xlu0 %1308
  %1310 = vrot.lane.b32.xlu0 %v886, 127
  %v1311 = vpop.permute.xlu0 %1310
  %1312 = vrot.lane.b32.xlu0 %v888, 127
  %v1313 = vpop.permute.xlu0 %1312
  %1314 = vrot.lane.b32.xlu0 %v883, 127
  %v1315 = vpop.permute.xlu0 %1314
  %1316 = vrot.lane.b32.xlu0 %v885, 127
  %v1317 = vpop.permute.xlu0 %1316
  %1318 = vrot.lane.b32.xlu0 %v887, 127
  %v1319 = vpop.permute.xlu0 %1318
  %1320 = vrot.lane.b32.xlu0 %v889, 127
  %v1321 = vpop.permute.xlu0 %1320
  %1322 = vrot.lane.b32.xlu0 %v962, 127
  %v1323 = vpop.permute.xlu0 %1322
  %1324 = vrot.lane.b32.xlu0 %v964, 127
  %v1325 = vpop.permute.xlu0 %1324
  %1326 = vrot.lane.b32.xlu0 %v966, 127
  %v1327 = vpop.permute.xlu0 %1326
  %1328 = vrot.lane.b32.xlu0 %v968, 127
  %v1329 = vpop.permute.xlu0 %1328
  %1330 = vrot.lane.b32.xlu0 %v963, 127
  %v1331 = vpop.permute.xlu0 %1330
  %1332 = vrot.lane.b32.xlu0 %v965, 127
  %v1333 = vpop.permute.xlu0 %1332
  %1334 = vrot.lane.b32.xlu0 %v967, 127
  %v1335 = vpop.permute.xlu0 %1334
  %1336 = vrot.lane.b32.xlu0 %v969, 127
  %v1337 = vpop.permute.xlu0 %1336
  %v1338 = vsel %vm295, %v1323, %v1331
  %v1339 = vsel %vm295, %v1325, %v1333
  %v1340 = vsel %vm295, %v1327, %v1335
  %v1341 = vsel %vm295, %v1329, %v1337
  %v1342 = vsel %vm295, %v1315, %v1323
  %v1343 = vsel %vm295, %v1317, %v1325
  %v1344 = vsel %vm295, %v1319, %v1327
  %v1345 = vsel %vm295, %v1321, %v1329
  %v1346 = vsel %vm295, %v1307, %v1315
  %v1347 = vsel %vm295, %v1309, %v1317
  %v1348 = vsel %vm295, %v1311, %v1319
  %v1349 = vsel %vm295, %v1313, %v1321
  %v1350 = vsel %vm295, %v1331, %v1307
  %v1351 = vsel %vm295, %v1333, %v1309
  %v1352 = vsel %vm295, %v1335, %v1311
  %v1353 = vsel %vm295, %v1337, %v1313
  %v1354 = vsel %vm304, %v1346, 0.0
  %v1355 = vsel %vm305, %v1342, 0.0
  %v1356 = vsel %vm306, %v1338, 0.0
  %v1357 = vsel %vm307, %v1350, 0.0
  %v1358 = vsel %vm304, %v1347, 0.0
  %v1359 = vsel %vm305, %v1343, 0.0
  %v1360 = vsel %vm306, %v1339, 0.0
  %v1361 = vsel %vm307, %v1351, 0.0
  %v1362 = vsel %vm304, %v1348, 0.0
  %v1363 = vsel %vm305, %v1344, 0.0
  %v1364 = vsel %vm306, %v1340, 0.0
  %v1365 = vsel %vm307, %v1352, 0.0
  %v1366 = vsel %vm304, %v1349, 0.0
  %v1367 = vsel %vm305, %v1345, 0.0
  %v1368 = vsel %vm306, %v1341, 0.0
  %v1369 = vsel %vm307, %v1353, 0.0
  %v1370 = vpack.c.bf16 %v1358, %v1354
  %v1371 = vpack.c.bf16 %v1359, %v1355
  %v1372 = vpack.c.bf16 %v1360, %v1356
  %v1373 = vpack.c.bf16 %v1361, %v1357
  %v1374 = vpack.c.bf16 %v1366, %v1362
  %v1375 = vpack.c.bf16 %v1367, %v1363
  %v1376 = vpack.c.bf16 %v1368, %v1364
  %v1377 = vpack.c.bf16 %v1369, %v1365
  %1378 = vst [vmem:[#allocation2 + $0x140] sm:$0xff] %v1370
  %1379 = vst [vmem:[#allocation2 + $0x148] sm:$0xff] %v1371
  %1380 = vst [vmem:[#allocation2 + $0x150] sm:$0xff] %v1372
  %1381 = vst [vmem:[#allocation2 + $0x158] sm:$0xff] %v1373
  %1382 = vst [vmem:[#allocation2 + $0x160] sm:$0xff] %v1374
  %1383 = vst [vmem:[#allocation2 + $0x168] sm:$0xff] %v1375
  %1384 = vst [vmem:[#allocation2 + $0x170] sm:$0xff] %v1376
  %1385 = vst [vmem:[#allocation2 + $0x178] sm:$0xff] %v1377
  %1386 = vrot.lane.b32.xlu0 %v882, 113
  %v1387 = vpop.permute.xlu0 %1386
  %1388 = vrot.lane.b32.xlu0 %v884, 113
  %v1389 = vpop.permute.xlu0 %1388
  %1390 = vrot.lane.b32.xlu0 %v886, 113
  %v1391 = vpop.permute.xlu0 %1390
  %1392 = vrot.lane.b32.xlu0 %v888, 113
  %v1393 = vpop.permute.xlu0 %1392
  %1394 = vrot.lane.b32.xlu0 %v883, 113
  %v1395 = vpop.permute.xlu0 %1394
  %1396 = vrot.lane.b32.xlu0 %v885, 113
  %v1397 = vpop.permute.xlu0 %1396
  %1398 = vrot.lane.b32.xlu0 %v887, 113
  %v1399 = vpop.permute.xlu0 %1398
  %1400 = vrot.lane.b32.xlu0 %v889, 113
  %v1401 = vpop.permute.xlu0 %1400
  %1402 = vrot.lane.b32.xlu0 %v962, 113
  %v1403 = vpop.permute.xlu0 %1402
  %1404 = vrot.lane.b32.xlu0 %v964, 113
  %v1405 = vpop.permute.xlu0 %1404
  %1406 = vrot.lane.b32.xlu0 %v966, 113
  %v1407 = vpop.permute.xlu0 %1406
  %1408 = vrot.lane.b32.xlu0 %v968, 113
  %v1409 = vpop.permute.xlu0 %1408
  %1410 = vrot.lane.b32.xlu0 %v963, 113
  %v1411 = vpop.permute.xlu0 %1410
  %1412 = vrot.lane.b32.xlu0 %v965, 113
  %v1413 = vpop.permute.xlu0 %1412
  %1414 = vrot.lane.b32.xlu0 %v967, 113
  %v1415 = vpop.permute.xlu0 %1414
  %1416 = vrot.lane.b32.xlu0 %v969, 113
  %v1417 = vpop.permute.xlu0 %1416
  %v1418 = vsel %vm342, %v1403, %v1411
  %v1419 = vsel %vm342, %v1405, %v1413
  %v1420 = vsel %vm342, %v1407, %v1415
  %v1421 = vsel %vm342, %v1409, %v1417
  %v1422 = vsel %vm342, %v1395, %v1403
  %v1423 = vsel %vm342, %v1397, %v1405
  %v1424 = vsel %vm342, %v1399, %v1407
  %v1425 = vsel %vm342, %v1401, %v1409
  %v1426 = vsel %vm342, %v1387, %v1395
  %v1427 = vsel %vm342, %v1389, %v1397
  %v1428 = vsel %vm342, %v1391, %v1399
  %v1429 = vsel %vm342, %v1393, %v1401
  %v1430 = vsel %vm342, %v1411, %v1387
  %v1431 = vsel %vm342, %v1413, %v1389
  %v1432 = vsel %vm342, %v1415, %v1391
  %v1433 = vsel %vm342, %v1417, %v1393
  %v1434 = vsel %vm355, %v1426, 0.0
  %v1435 = vsel %vm356, %v1422, 0.0
  %v1436 = vsel %vm357, %v1418, 0.0
  %v1437 = vsel %vm358, %v1430, 0.0
  %v1438 = vsel %vm355, %v1427, 0.0
  %v1439 = vsel %vm356, %v1423, 0.0
  %v1440 = vsel %vm357, %v1419, 0.0
  %v1441 = vsel %vm358, %v1431, 0.0
  %v1442 = vsel %vm355, %v1428, 0.0
  %v1443 = vsel %vm356, %v1424, 0.0
  %v1444 = vsel %vm357, %v1420, 0.0
  %v1445 = vsel %vm358, %v1432, 0.0
  %v1446 = vsel %vm355, %v1429, 0.0
  %v1447 = vsel %vm356, %v1425, 0.0
  %v1448 = vsel %vm357, %v1421, 0.0
  %v1449 = vsel %vm358, %v1433, 0.0
  %v1450 = vpack.c.bf16 %v1438, %v1434
  %v1451 = vpack.c.bf16 %v1439, %v1435
  %v1452 = vpack.c.bf16 %v1440, %v1436
  %v1453 = vpack.c.bf16 %v1441, %v1437
  %v1454 = vpack.c.bf16 %v1446, %v1442
  %v1455 = vpack.c.bf16 %v1447, %v1443
  %v1456 = vpack.c.bf16 %v1448, %v1444
  %v1457 = vpack.c.bf16 %v1449, %v1445
  %1458 = vst [vmem:[#allocation2 + $0x180] sm:$0xff] %v1450
  %1459 = vst [vmem:[#allocation2 + $0x188] sm:$0xff] %v1451
  %1460 = vst [vmem:[#allocation2 + $0x190] sm:$0xff] %v1452
  %1461 = vst [vmem:[#allocation2 + $0x198] sm:$0xff] %v1453
  %1462 = vst [vmem:[#allocation2 + $0x1a0] sm:$0xff] %v1454
  %1463 = vst [vmem:[#allocation2 + $0x1a8] sm:$0xff] %v1455
  %1464 = vst [vmem:[#allocation2 + $0x1b0] sm:$0xff] %v1456
  %1465 = vst [vmem:[#allocation2 + $0x1b8] sm:$0xff] %v1457
  %1466 = vrot.lane.b32.xlu0 %v882, 112
  %v1467 = vpop.permute.xlu0 %1466
  %1468 = vrot.lane.b32.xlu0 %v884, 112
  %v1469 = vpop.permute.xlu0 %1468
  %1470 = vrot.lane.b32.xlu0 %v886, 112
  %v1471 = vpop.permute.xlu0 %1470
  %1472 = vrot.lane.b32.xlu0 %v888, 112
  %v1473 = vpop.permute.xlu0 %1472
  %1474 = vrot.lane.b32.xlu0 %v883, 112
  %v1475 = vpop.permute.xlu0 %1474
  %1476 = vrot.lane.b32.xlu0 %v885, 112
  %v1477 = vpop.permute.xlu0 %1476
  %1478 = vrot.lane.b32.xlu0 %v887, 112
  %v1479 = vpop.permute.xlu0 %1478
  %1480 = vrot.lane.b32.xlu0 %v889, 112
  %v1481 = vpop.permute.xlu0 %1480
  %1482 = vrot.lane.b32.xlu0 %v962, 112
  %v1483 = vpop.permute.xlu0 %1482
  %1484 = vrot.lane.b32.xlu0 %v964, 112
  %v1485 = vpop.permute.xlu0 %1484
  %1486 = vrot.lane.b32.xlu0 %v966, 112
  %v1487 = vpop.permute.xlu0 %1486
  %1488 = vrot.lane.b32.xlu0 %v968, 112
  %v1489 = vpop.permute.xlu0 %1488
  %1490 = vrot.lane.b32.xlu0 %v963, 112
  %v1491 = vpop.permute.xlu0 %1490
  %1492 = vrot.lane.b32.xlu0 %v965, 112
  %v1493 = vpop.permute.xlu0 %1492
  %1494 = vrot.lane.b32.xlu0 %v967, 112
  %v1495 = vpop.permute.xlu0 %1494
  %1496 = vrot.lane.b32.xlu0 %v969, 112
  %v1497 = vpop.permute.xlu0 %1496
  %v1498 = vsel %vm393, %v1483, %v1491
  %v1499 = vsel %vm393, %v1485, %v1493
  %v1500 = vsel %vm393, %v1487, %v1495
  %v1501 = vsel %vm393, %v1489, %v1497
  %v1502 = vsel %vm393, %v1475, %v1483
  %v1503 = vsel %vm393, %v1477, %v1485
  %v1504 = vsel %vm393, %v1479, %v1487
  %v1505 = vsel %vm393, %v1481, %v1489
  %v1506 = vsel %vm393, %v1467, %v1475
  %v1507 = vsel %vm393, %v1469, %v1477
  %v1508 = vsel %vm393, %v1471, %v1479
  %v1509 = vsel %vm393, %v1473, %v1481
  %v1510 = vsel %vm393, %v1491, %v1467
  %v1511 = vsel %vm393, %v1493, %v1469
  %v1512 = vsel %vm393, %v1495, %v1471
  %v1513 = vsel %vm393, %v1497, %v1473
  %v1514 = vsel %vm402, %v1506, 0.0
  %v1515 = vsel %vm403, %v1502, 0.0
  %v1516 = vsel %vm404, %v1498, 0.0
  %v1517 = vsel %vm405, %v1510, 0.0
  %v1518 = vsel %vm402, %v1507, 0.0
  %v1519 = vsel %vm403, %v1503, 0.0
  %v1520 = vsel %vm404, %v1499, 0.0
  %v1521 = vsel %vm405, %v1511, 0.0
  %v1522 = vsel %vm402, %v1508, 0.0
  %v1523 = vsel %vm403, %v1504, 0.0
  %v1524 = vsel %vm404, %v1500, 0.0
  %v1525 = vsel %vm405, %v1512, 0.0
  %v1526 = vsel %vm402, %v1509, 0.0
  %v1527 = vsel %vm403, %v1505, 0.0
  %v1528 = vsel %vm404, %v1501, 0.0
  %v1529 = vsel %vm405, %v1513, 0.0
  %v1530 = vpack.c.bf16 %v1518, %v1514
  %v1531 = vpack.c.bf16 %v1519, %v1515
  %v1532 = vpack.c.bf16 %v1520, %v1516
  %v1533 = vpack.c.bf16 %v1521, %v1517
  %v1534 = vpack.c.bf16 %v1526, %v1522
  %v1535 = vpack.c.bf16 %v1527, %v1523
  %v1536 = vpack.c.bf16 %v1528, %v1524
  %v1537 = vpack.c.bf16 %v1529, %v1525
  %1538 = vst [vmem:[#allocation2 + $0x1c0] sm:$0xff] %v1530
  %1539 = vst [vmem:[#allocation2 + $0x1c8] sm:$0xff] %v1531
  %1540 = vst [vmem:[#allocation2 + $0x1d0] sm:$0xff] %v1532
  %1541 = vst [vmem:[#allocation2 + $0x1d8] sm:$0xff] %v1533
  %1542 = vst [vmem:[#allocation2 + $0x1e0] sm:$0xff] %v1534
  %1543 = vst [vmem:[#allocation2 + $0x1e8] sm:$0xff] %v1535
  %1544 = vst [vmem:[#allocation2 + $0x1f0] sm:$0xff] %v1536
  %1545 = vst [vmem:[#allocation2 + $0x1f8] sm:$0xff] %v1537
  %1546 = vrot.lane.b32.xlu0 %v882, 111
  %v1547 = vpop.permute.xlu0 %1546
  %1548 = vrot.lane.b32.xlu0 %v884, 111
  %v1549 = vpop.permute.xlu0 %1548
  %1550 = vrot.lane.b32.xlu0 %v886, 111
  %v1551 = vpop.permute.xlu0 %1550
  %1552 = vrot.lane.b32.xlu0 %v888, 111
  %v1553 = vpop.permute.xlu0 %1552
  %1554 = vrot.lane.b32.xlu0 %v883, 111
  %v1555 = vpop.permute.xlu0 %1554
  %1556 = vrot.lane.b32.xlu0 %v885, 111
  %v1557 = vpop.permute.xlu0 %1556
  %1558 = vrot.lane.b32.xlu0 %v887, 111
  %v1559 = vpop.permute.xlu0 %1558
  %1560 = vrot.lane.b32.xlu0 %v889, 111
  %v1561 = vpop.permute.xlu0 %1560
  %1562 = vrot.lane.b32.xlu0 %v962, 111
  %v1563 = vpop.permute.xlu0 %1562
  %1564 = vrot.lane.b32.xlu0 %v964, 111
  %v1565 = vpop.permute.xlu0 %1564
  %1566 = vrot.lane.b32.xlu0 %v966, 111
  %v1567 = vpop.permute.xlu0 %1566
  %1568 = vrot.lane.b32.xlu0 %v968, 111
  %v1569 = vpop.permute.xlu0 %1568
  %1570 = vrot.lane.b32.xlu0 %v963, 111
  %v1571 = vpop.permute.xlu0 %1570
  %1572 = vrot.lane.b32.xlu0 %v965, 111
  %v1573 = vpop.permute.xlu0 %1572
  %1574 = vrot.lane.b32.xlu0 %v967, 111
  %v1575 = vpop.permute.xlu0 %1574
  %1576 = vrot.lane.b32.xlu0 %v969, 111
  %v1577 = vpop.permute.xlu0 %1576
  %v1578 = vsel %vm440, %v1563, %v1571
  %v1579 = vsel %vm440, %v1565, %v1573
  %v1580 = vsel %vm440, %v1567, %v1575
  %v1581 = vsel %vm440, %v1569, %v1577
  %v1582 = vsel %vm440, %v1555, %v1563
  %v1583 = vsel %vm440, %v1557, %v1565
  %v1584 = vsel %vm440, %v1559, %v1567
  %v1585 = vsel %vm440, %v1561, %v1569
  %v1586 = vsel %vm440, %v1547, %v1555
  %v1587 = vsel %vm440, %v1549, %v1557
  %v1588 = vsel %vm440, %v1551, %v1559
  %v1589 = vsel %vm440, %v1553, %v1561
  %v1590 = vsel %vm440, %v1571, %v1547
  %v1591 = vsel %vm440, %v1573, %v1549
  %v1592 = vsel %vm440, %v1575, %v1551
  %v1593 = vsel %vm440, %v1577, %v1553
  %v1594 = vsel %vm453, %v1586, 0.0
  %v1595 = vsel %vm454, %v1582, 0.0
  %v1596 = vsel %vm455, %v1578, 0.0
  %v1597 = vsel %vm456, %v1590, 0.0
  %v1598 = vsel %vm453, %v1587, 0.0
  %v1599 = vsel %vm454, %v1583, 0.0
  %v1600 = vsel %vm455, %v1579, 0.0
  %v1601 = vsel %vm456, %v1591, 0.0
  %v1602 = vsel %vm453, %v1588, 0.0
  %v1603 = vsel %vm454, %v1584, 0.0
  %v1604 = vsel %vm455, %v1580, 0.0
  %v1605 = vsel %vm456, %v1592, 0.0
  %v1606 = vsel %vm453, %v1589, 0.0
  %v1607 = vsel %vm454, %v1585, 0.0
  %v1608 = vsel %vm455, %v1581, 0.0
  %v1609 = vsel %vm456, %v1593, 0.0
  %v1610 = vpack.c.bf16 %v1598, %v1594
  %v1611 = vpack.c.bf16 %v1599, %v1595
  %v1612 = vpack.c.bf16 %v1600, %v1596
  %v1613 = vpack.c.bf16 %v1601, %v1597
  %v1614 = vpack.c.bf16 %v1606, %v1602
  %v1615 = vpack.c.bf16 %v1607, %v1603
  %v1616 = vpack.c.bf16 %v1608, %v1604
  %v1617 = vpack.c.bf16 %v1609, %v1605
  %1618 = vst [vmem:[#allocation2 + $0x200] sm:$0xff] %v1610
  %1619 = vst [vmem:[#allocation2 + $0x208] sm:$0xff] %v1611
  %1620 = vst [vmem:[#allocation2 + $0x210] sm:$0xff] %v1612
  %1621 = vst [vmem:[#allocation2 + $0x218] sm:$0xff] %v1613
  %1622 = vst [vmem:[#allocation2 + $0x220] sm:$0xff] %v1614
  %1623 = vst [vmem:[#allocation2 + $0x228] sm:$0xff] %v1615
  %1624 = vst [vmem:[#allocation2 + $0x230] sm:$0xff] %v1616
  %1625 = vst [vmem:[#allocation2 + $0x238] sm:$0xff] %v1617
  %s1626 = scalar_lea.vmem %s2, 48
  %v1627 = vld [vmem:[%s1626] sm:$0xff]
  %v1628 = vld [vmem:[%s1626 + $0x8] sm:$0xf]
  %v1629 = vld [vmem:[%s1626 + $0xc] sm:$0xff]
  %v1630 = vld [vmem:[%s1626 + $0x14] sm:$0xf]
  %v1631 = vld [vmem:[%s1626 + $0x18] sm:$0xff]
  %v1632 = vld [vmem:[%s1626 + $0x20] sm:$0xf]
  %v1633 = vld [vmem:[%s1626 + $0x24] sm:$0xff]
  %v1634 = vld [vmem:[%s1626 + $0x2c] sm:$0xf]
  %v1635 = vld [vmem:[#allocation2] sm:$0xff]
  %v1636 = vld [vmem:[#allocation2 + $0x8] sm:$0xff]
  %v1637 = vld [vmem:[#allocation2 + $0x10] sm:$0xff]
  %v1638 = vld [vmem:[#allocation2 + $0x18] sm:$0xff]
  %v1639 = vld [vmem:[#allocation2 + $0x20] sm:$0xff]
  %v1640 = vld [vmem:[#allocation2 + $0x28] sm:$0xff]
  %v1641 = vld [vmem:[#allocation2 + $0x30] sm:$0xff]
  %v1642 = vld [vmem:[#allocation2 + $0x38] sm:$0xff]
  %v1643 = vld [vmem:[#allocation2 + $0x40] sm:$0xff]
  %v1644 = vld [vmem:[#allocation2 + $0x48] sm:$0xff]
  %v1645 = vld [vmem:[#allocation2 + $0x50] sm:$0xff]
  %v1646 = vld [vmem:[#allocation2 + $0x58] sm:$0xff]
  %v1647 = vld [vmem:[#allocation2 + $0x60] sm:$0xff]
  %v1648 = vld [vmem:[#allocation2 + $0x68] sm:$0xff]
  %v1649 = vld [vmem:[#allocation2 + $0x70] sm:$0xff]
  %v1650 = vld [vmem:[#allocation2 + $0x78] sm:$0xff]
  %v1651 = vld [vmem:[#allocation2 + $0x80] sm:$0xff]
  %v1652 = vld [vmem:[#allocation2 + $0x88] sm:$0xff]
  %v1653 = vld [vmem:[#allocation2 + $0x90] sm:$0xff]
  %v1654 = vld [vmem:[#allocation2 + $0x98] sm:$0xff]
  %v1655 = vld [vmem:[#allocation2 + $0xa0] sm:$0xff]
  %v1656 = vld [vmem:[#allocation2 + $0xa8] sm:$0xff]
  %v1657 = vld [vmem:[#allocation2 + $0xb0] sm:$0xff]
  %v1658 = vld [vmem:[#allocation2 + $0xb8] sm:$0xff]
  %v1659 = vld [vmem:[#allocation2 + $0xc0] sm:$0xff]
  %v1660 = vld [vmem:[#allocation2 + $0xc8] sm:$0xff]
  %v1661 = vld [vmem:[#allocation2 + $0xd0] sm:$0xff]
  %v1662 = vld [vmem:[#allocation2 + $0xd8] sm:$0xff]
  %v1663 = vld [vmem:[#allocation2 + $0xe0] sm:$0xff]
  %v1664 = vld [vmem:[#allocation2 + $0xe8] sm:$0xff]
  %v1665 = vld [vmem:[#allocation2 + $0xf0] sm:$0xff]
  %v1666 = vld [vmem:[#allocation2 + $0xf8] sm:$0xff]
  %v1667 = vld [vmem:[#allocation2 + $0x100] sm:$0xff]
  %v1668 = vld [vmem:[#allocation2 + $0x108] sm:$0xff]
  %v1669 = vld [vmem:[#allocation2 + $0x110] sm:$0xff]
  %v1670 = vld [vmem:[#allocation2 + $0x118] sm:$0xff]
  %v1671 = vld [vmem:[#allocation2 + $0x120] sm:$0xff]
  %v1672 = vld [vmem:[#allocation2 + $0x128] sm:$0xff]
  %v1673 = vld [vmem:[#allocation2 + $0x130] sm:$0xff]
  %v1674 = vld [vmem:[#allocation2 + $0x138] sm:$0xff]
  %v1675 = vld [vmem:[#allocation2 + $0x140] sm:$0xff]
  %v1676 = vld [vmem:[#allocation2 + $0x148] sm:$0xff]
  %v1677 = vld [vmem:[#allocation2 + $0x150] sm:$0xff]
  %v1678 = vld [vmem:[#allocation2 + $0x158] sm:$0xff]
  %v1679 = vld [vmem:[#allocation2 + $0x160] sm:$0xff]
  %v1680 = vld [vmem:[#allocation2 + $0x168] sm:$0xff]
  %v1681 = vld [vmem:[#allocation2 + $0x170] sm:$0xff]
  %v1682 = vld [vmem:[#allocation2 + $0x178] sm:$0xff]
  %v1683 = vld [vmem:[#allocation2 + $0x180] sm:$0xff]
  %v1684 = vld [vmem:[#allocation2 + $0x188] sm:$0xff]
  %v1685 = vld [vmem:[#allocation2 + $0x190] sm:$0xff]
  %v1686 = vld [vmem:[#allocation2 + $0x198] sm:$0xff]
  %v1687 = vld [vmem:[#allocation2 + $0x1a0] sm:$0xff]
  %v1688 = vld [vmem:[#allocation2 + $0x1a8] sm:$0xff]
  %v1689 = vld [vmem:[#allocation2 + $0x1b0] sm:$0xff]
  %v1690 = vld [vmem:[#allocation2 + $0x1b8] sm:$0xff]
  %v1691 = vld [vmem:[#allocation2 + $0x1c0] sm:$0xff]
  %v1692 = vld [vmem:[#allocation2 + $0x1c8] sm:$0xff]
  %v1693 = vld [vmem:[#allocation2 + $0x1d0] sm:$0xff]
  %v1694 = vld [vmem:[#allocation2 + $0x1d8] sm:$0xff]
  %v1695 = vld [vmem:[#allocation2 + $0x1e0] sm:$0xff]
  %v1696 = vld [vmem:[#allocation2 + $0x1e8] sm:$0xff]
  %v1697 = vld [vmem:[#allocation2 + $0x1f0] sm:$0xff]
  %v1698 = vld [vmem:[#allocation2 + $0x1f8] sm:$0xff]
  %v1699 = vld [vmem:[#allocation2 + $0x200] sm:$0xff]
  %v1700 = vld [vmem:[#allocation2 + $0x208] sm:$0xff]
  %v1701 = vld [vmem:[#allocation2 + $0x210] sm:$0xff]
  %v1702 = vld [vmem:[#allocation2 + $0x218] sm:$0xff]
  %v1703 = vld [vmem:[#allocation2 + $0x220] sm:$0xff]
  %v1704 = vld [vmem:[#allocation2 + $0x228] sm:$0xff]
  %v1705 = vld [vmem:[#allocation2 + $0x230] sm:$0xff]
  %v1706 = vld [vmem:[#allocation2 + $0x238] sm:$0xff]
  %v1715 = vunpack.c.l.b16 %v1627
  %v1716 = vunpack.c.h.b16 %v1627
  %v1717 = vunpack.c.l.b16 %v1628
  %v1718 = vunpack.c.l.b16 %v1629
  %v1719 = vunpack.c.h.b16 %v1629
  %v1720 = vunpack.c.l.b16 %v1630
  %v1721 = vunpack.c.l.b16 %v1631
  %v1722 = vunpack.c.h.b16 %v1631
  %v1723 = vunpack.c.l.b16 %v1632
  %v1724 = vunpack.c.l.b16 %v1633
  %v1725 = vunpack.c.h.b16 %v1633
  %v1726 = vunpack.c.l.b16 %v1634
  %v1727 = vpack.c.b16 %v1718, %v1715
  %v1728 = vpack.c.b16 %v1719, %v1716
  %v1729 = vpack.c.b16 %v1720, %v1717
  %v1730 = vpack.c.b16 %v1724, %v1721
  %v1731 = vpack.c.b16 %v1725, %v1722
  %v1732 = vpack.c.b16 %v1726, %v1723
  %v1738 = vsel %vm591, %v1729, 0
  %v1741 = vsel %vm591, %v1732, 0
  %1743 = vmatprep.subr.bf16.mxu0 %v1636
  %1744 = vmatpush1.bf16.msra.mxu0 %v1635
  %1745 = vmatprep.subr.bf16.mxu0 %v1640
  %1746 = vmatpush1.bf16.msra.mxu0 %v1639
  %1747 = vmatprep.subr.bf16.mxu0 %v1644
  %1748 = vmatpush1.bf16.msra.mxu0 %v1643
  %1749 = vmatprep.subr.bf16.mxu0 %v1648
  %1750 = vmatpush1.bf16.msra.mxu0 %v1647
  %1751 = vmatprep.subr.bf16.mxu0 %v1652
  %1752 = vmatpush1.bf16.msra.mxu0 %v1651
  %1753 = vmatprep.subr.bf16.mxu0 %v1656
  %1754 = vmatpush1.bf16.msra.mxu0 %v1655
  %1755 = vmatprep.subr.bf16.mxu0 %v1660
  %1756 = vmatpush1.bf16.msra.mxu0 %v1659
  %1757 = vmatprep.subr.bf16.mxu0 %v1664
  %1758 = vmatpush1.bf16.msra.mxu0 %v1663
  %1759 = vmatprep.subr.bf16.mxu0 %v1668
  %1760 = vmatpush1.bf16.msra.mxu0 %v1667
  %1761 = vmatprep.subr.bf16.mxu0 %v1672
  %1762 = vmatpush1.bf16.msra.mxu0 %v1671
  %1763 = vmatprep.subr.bf16.mxu0 %v1676
  %1764 = vmatpush1.bf16.msra.mxu0 %v1675
  %1765 = vmatprep.subr.bf16.mxu0 %v1680
  %1766 = vmatpush1.bf16.msra.mxu0 %v1679
  %1767 = vmatprep.subr.bf16.mxu0 %v1684
  %1768 = vmatpush1.bf16.msra.mxu0 %v1683
  %1769 = vmatprep.subr.bf16.mxu0 %v1688
  %1770 = vmatpush1.bf16.msra.mxu0 %v1687
  %1771 = vmatprep.subr.bf16.mxu0 %v1692
  %1772 = vmatpush1.bf16.msra.mxu0 %v1691
  %1773 = vmatprep.subr.bf16.mxu0 %v1696
  %1774 = vmatpush1.bf16.msra.mxu0 %v1695
  %1775 = vmatprep.mubr.bf16.mxu0 %v1728
  %1776 = vmatmul.mubr.bf16.gmra.mrb[0].mxu0 %v1727
  %v1777 = vpop.f32.mrb[0].mxu0
  %v1778 = vadd.f32 0.0, %v1777
  %v1779 = vpop.f32.mrb[0].mxu0
  %v1780 = vadd.f32 0.0, %v1779
  %v1781 = vpop.f32.mrb[0].mxu0
  %v1782 = vadd.f32 0.0, %v1781
  %v1783 = vpop.f32.mrb[0].mxu0
  %v1784 = vadd.f32 0.0, %v1783
  %1785 = vmatprep.mubr.bf16.mxu0 %v1731
  %1786 = vmatmul.mubr.bf16.gmra.mrb[0].mxu0 %v1730
  %v1787 = vpop.f32.mrb[0].mxu0
  %v1788 = vadd.f32 0.0, %v1787
  %v1789 = vpop.f32.mrb[0].mxu0
  %v1790 = vadd.f32 0.0, %v1789
  %v1791 = vpop.f32.mrb[0].mxu0
  %v1792 = vadd.f32 0.0, %v1791
  %v1793 = vpop.f32.mrb[0].mxu0
  %v1794 = vadd.f32 0.0, %v1793
  %1795 = vdwg.mxu0
  %1796 = vmatprep.subr.bf16.mxu0 %v1700
  %1797 = vmatpush1.bf16.msra.mxu0 %v1699
  %1798 = vmatprep.subr.bf16.mxu0 %v1704
  %1799 = vmatpush1.bf16.msra.mxu0 %v1703
  %1800 = vmatprep.subr.bf16.mxu0 0
  %1801 = vmatpush1.bf16.msra.mxu0 0
  %1802 = vmatprep.subr.bf16.mxu0 0
  %1803 = vmatpush1.bf16.msra.mxu0 0
  %1804 = vmatprep.subr.bf16.mxu0 0
  %1805 = vmatpush1.bf16.msra.mxu0 0
  %1806 = vmatprep.subr.bf16.mxu0 0
  %1807 = vmatpush1.bf16.msra.mxu0 0
  %1808 = vmatprep.subr.bf16.mxu0 0
  %1809 = vmatpush1.bf16.msra.mxu0 0
  %1810 = vmatprep.subr.bf16.mxu0 0
  %1811 = vmatpush1.bf16.msra.mxu0 0
  %1812 = vmatprep.subr.bf16.mxu0 0
  %1813 = vmatpush1.bf16.msra.mxu0 0
  %1814 = vmatprep.subr.bf16.mxu0 0
  %1815 = vmatpush1.bf16.msra.mxu0 0
  %1816 = vmatprep.subr.bf16.mxu0 0
  %1817 = vmatpush1.bf16.msra.mxu0 0
  %1818 = vmatprep.subr.bf16.mxu0 0
  %1819 = vmatpush1.bf16.msra.mxu0 0
  %1820 = vmatprep.subr.bf16.mxu0 0
  %1821 = vmatpush1.bf16.msra.mxu0 0
  %1822 = vmatprep.subr.bf16.mxu0 0
  %1823 = vmatpush1.bf16.msra.mxu0 0
  %1824 = vmatprep.subr.bf16.mxu0 0
  %1825 = vmatpush1.bf16.msra.mxu0 0
  %1826 = vmatprep.subr.bf16.mxu0 0
  %1827 = vmatpush1.bf16.msra.mxu0 0
  %1828 = vmatprep.mubr.bf16.mxu0 0
  %1829 = vmatmul.mubr.bf16.gmra.mrb[0].mxu0 %v1738
  %v1830 = vpop.f32.mrb[0].mxu0
  %v1831 = vadd.f32 %v1778, %v1830
  %v1832 = vpop.f32.mrb[0].mxu0
  %v1833 = vadd.f32 %v1780, %v1832
  %v1834 = vpop.f32.mrb[0].mxu0
  %v1835 = vadd.f32 %v1782, %v1834
  %v1836 = vpop.f32.mrb[0].mxu0
  %v1837 = vadd.f32 %v1784, %v1836
  %1838 = vmatprep.mubr.bf16.mxu0 0
  %1839 = vmatmul.mubr.bf16.gmra.mrb[0].mxu0 %v1741
  %v1840 = vpop.f32.mrb[0].mxu0
  %v1841 = vadd.f32 %v1788, %v1840
  %v1842 = vpop.f32.mrb[0].mxu0
  %v1843 = vadd.f32 %v1790, %v1842
  %v1844 = vpop.f32.mrb[0].mxu0
  %v1845 = vadd.f32 %v1792, %v1844
  %v1846 = vpop.f32.mrb[0].mxu0
  %v1847 = vadd.f32 %v1794, %v1846
  %1848 = vdwg.mxu0
  %1849 = vmatprep.subr.bf16.mxu0 %v1638
  %1850 = vmatpush1.bf16.msra.mxu0 %v1637
  %1851 = vmatprep.subr.bf16.mxu0 %v1642
  %1852 = vmatpush1.bf16.msra.mxu0 %v1641
  %1853 = vmatprep.subr.bf16.mxu0 %v1646
  %1854 = vmatpush1.bf16.msra.mxu0 %v1645
  %1855 = vmatprep.subr.bf16.mxu0 %v1650
  %1856 = vmatpush1.bf16.msra.mxu0 %v1649
  %1857 = vmatprep.subr.bf16.mxu0 %v1654
  %1858 = vmatpush1.bf16.msra.mxu0 %v1653
  %1859 = vmatprep.subr.bf16.mxu0 %v1658
  %1860 = vmatpush1.bf16.msra.mxu0 %v1657
  %1861 = vmatprep.subr.bf16.mxu0 %v1662
  %1862 = vmatpush1.bf16.msra.mxu0 %v1661
  %1863 = vmatprep.subr.bf16.mxu0 %v1666
  %1864 = vmatpush1.bf16.msra.mxu0 %v1665
  %1865 = vmatprep.subr.bf16.mxu0 %v1670
  %1866 = vmatpush1.bf16.msra.mxu0 %v1669
  %1867 = vmatprep.subr.bf16.mxu0 %v1674
  %1868 = vmatpush1.bf16.msra.mxu0 %v1673
  %1869 = vmatprep.subr.bf16.mxu0 %v1678
  %1870 = vmatpush1.bf16.msra.mxu0 %v1677
  %1871 = vmatprep.subr.bf16.mxu0 %v1682
  %1872 = vmatpush1.bf16.msra.mxu0 %v1681
  %1873 = vmatprep.subr.bf16.mxu0 %v1686
  %1874 = vmatpush1.bf16.msra.mxu0 %v1685
  %1875 = vmatprep.subr.bf16.mxu0 %v1690
  %1876 = vmatpush1.bf16.msra.mxu0 %v1689
  %1877 = vmatprep.subr.bf16.mxu0 %v1694
  %1878 = vmatpush1.bf16.msra.mxu0 %v1693
  %1879 = vmatprep.subr.bf16.mxu0 %v1698
  %1880 = vmatpush1.bf16.msra.mxu0 %v1697
  %1881 = vmatprep.mubr.bf16.mxu0 %v1728
  %1882 = vmatmul.mubr.bf16.gmra.mrb[0].mxu0 %v1727
  %v1883 = vpop.f32.mrb[0].mxu0
  %v1884 = vadd.f32 0.0, %v1883
  %v1885 = vpop.f32.mrb[0].mxu0
  %v1886 = vadd.f32 0.0, %v1885
  %v1887 = vpop.f32.mrb[0].mxu0
  %v1888 = vadd.f32 0.0, %v1887
  %v1889 = vpop.f32.mrb[0].mxu0
  %v1890 = vadd.f32 0.0, %v1889
  %1891 = vmatprep.mubr.bf16.mxu0 %v1731
  %1892 = vmatmul.mubr.bf16.gmra.mrb[0].mxu0 %v1730
  %v1893 = vpop.f32.mrb[0].mxu0
  %v1894 = vadd.f32 0.0, %v1893
  %v1895 = vpop.f32.mrb[0].mxu0
  %v1896 = vadd.f32 0.0, %v1895
  %v1897 = vpop.f32.mrb[0].mxu0
  %v1898 = vadd.f32 0.0, %v1897
  %v1899 = vpop.f32.mrb[0].mxu0
  %v1900 = vadd.f32 0.0, %v1899
  %1901 = vdwg.mxu0
  %1902 = vmatprep.subr.bf16.mxu0 %v1702
  %1903 = vmatpush1.bf16.msra.mxu0 %v1701
  %1904 = vmatprep.subr.bf16.mxu0 %v1706
  %1905 = vmatpush1.bf16.msra.mxu0 %v1705
  %1906 = vmatprep.subr.bf16.mxu0 0
  %1907 = vmatpush1.bf16.msra.mxu0 0
  %1908 = vmatprep.subr.bf16.mxu0 0
  %1909 = vmatpush1.bf16.msra.mxu0 0
  %1910 = vmatprep.subr.bf16.mxu0 0
  %1911 = vmatpush1.bf16.msra.mxu0 0
  %1912 = vmatprep.subr.bf16.mxu0 0
  %1913 = vmatpush1.bf16.msra.mxu0 0
  %1914 = vmatprep.subr.bf16.mxu0 0
  %1915 = vmatpush1.bf16.msra.mxu0 0
  %1916 = vmatprep.subr.bf16.mxu0 0
  %1917 = vmatpush1.bf16.msra.mxu0 0
  %1918 = vmatprep.subr.bf16.mxu0 0
  %1919 = vmatpush1.bf16.msra.mxu0 0
  %1920 = vmatprep.subr.bf16.mxu0 0
  %1921 = vmatpush1.bf16.msra.mxu0 0
  %1922 = vmatprep.subr.bf16.mxu0 0
  %1923 = vmatpush1.bf16.msra.mxu0 0
  %1924 = vmatprep.subr.bf16.mxu0 0
  %1925 = vmatpush1.bf16.msra.mxu0 0
  %1926 = vmatprep.subr.bf16.mxu0 0
  %1927 = vmatpush1.bf16.msra.mxu0 0
  %1928 = vmatprep.subr.bf16.mxu0 0
  %1929 = vmatpush1.bf16.msra.mxu0 0
  %1930 = vmatprep.subr.bf16.mxu0 0
  %1931 = vmatpush1.bf16.msra.mxu0 0
  %1932 = vmatprep.subr.bf16.mxu0 0
  %1933 = vmatpush1.bf16.msra.mxu0 0
  %1934 = vmatprep.mubr.bf16.mxu0 0
  %1935 = vmatmul.mubr.bf16.gmra.mrb[0].mxu0 %v1738
  %v1936 = vpop.f32.mrb[0].mxu0
  %v1937 = vadd.f32 %v1884, %v1936
  %v1938 = vpop.f32.mrb[0].mxu0
  %v1939 = vadd.f32 %v1886, %v1938
  %v1940 = vpop.f32.mrb[0].mxu0
  %v1941 = vadd.f32 %v1888, %v1940
  %v1942 = vpop.f32.mrb[0].mxu0
  %v1943 = vadd.f32 %v1890, %v1942
  %1944 = vmatprep.mubr.bf16.mxu0 0
  %1945 = vmatmul.mubr.bf16.gmra.mrb[0].mxu0 %v1741
  %v1946 = vpop.f32.mrb[0].mxu0
  %v1947 = vadd.f32 %v1894, %v1946
  %v1948 = vpop.f32.mrb[0].mxu0
  %v1949 = vadd.f32 %v1896, %v1948
  %v1950 = vpop.f32.mrb[0].mxu0
  %v1951 = vadd.f32 %v1898, %v1950
  %v1952 = vpop.f32.mrb[0].mxu0
  %v1953 = vadd.f32 %v1900, %v1952
  %1954 = vdwg.mxu0
  %v1955 = vadd.f32 %v1831, %v1833
  %1956 = vadd.xlane.f32.xlu0 %v1955
  %v1957 = vpop.xlane.xlu0 %1956
  %v1958 = vadd.f32 %v1835, %v1837
  %1959 = vadd.xlane.f32.xlu0 %v1958
  %v1960 = vpop.xlane.xlu0 %1959
  %v1961 = vadd.f32 %v1841, %v1843
  %1962 = vadd.xlane.f32.xlu0 %v1961
  %v1963 = vpop.xlane.xlu0 %1962
  %v1964 = vadd.f32 %v1845, %v1847
  %1965 = vadd.xlane.f32.xlu0 %v1964
  %v1966 = vpop.xlane.xlu0 %1965
  %v1967 = vmul.f32 %v1957, 0.00390625
  %v1968 = vmul.f32 %v1960, 0.00390625
  %v1969 = vmul.f32 %v1963, 0.00390625
  %v1970 = vmul.f32 %v1966, 0.00390625
  %v1971 = vmul.f32 %v1831, %v1831
  %v1972 = vmul.f32 %v1833, %v1833
  %v1973 = vmul.f32 %v1835, %v1835
  %v1974 = vmul.f32 %v1837, %v1837
  %v1975 = vmul.f32 %v1841, %v1841
  %v1976 = vmul.f32 %v1843, %v1843
  %v1977 = vmul.f32 %v1845, %v1845
  %v1978 = vmul.f32 %v1847, %v1847
  %v1979 = vadd.f32 %v1971, %v1972
  %1980 = vadd.xlane.f32.xlu0 %v1979
  %v1981 = vpop.xlane.xlu0 %1980
  %v1982 = vadd.f32 %v1973, %v1974
  %1983 = vadd.xlane.f32.xlu0 %v1982
  %v1984 = vpop.xlane.xlu0 %1983
  %v1985 = vadd.f32 %v1975, %v1976
  %1986 = vadd.xlane.f32.xlu0 %v1985
  %v1987 = vpop.xlane.xlu0 %1986
  %v1988 = vadd.f32 %v1977, %v1978
  %1989 = vadd.xlane.f32.xlu0 %v1988
  %v1990 = vpop.xlane.xlu0 %1989
  %v1991 = vmul.f32 %v1981, 0.00390625
  %v1992 = vmul.f32 %v1984, 0.00390625
  %v1993 = vmul.f32 %v1987, 0.00390625
  %v1994 = vmul.f32 %v1990, 0.00390625
  %v1995 = vmul.f32 %v1967, %v1967
  %v1996 = vmul.f32 %v1968, %v1968
  %v1997 = vmul.f32 %v1969, %v1969
  %v1998 = vmul.f32 %v1970, %v1970
  %v1999 = vsub.f32 %v1991, %v1995
  %v2000 = vsub.f32 %v1992, %v1996
  %v2001 = vsub.f32 %v1993, %v1997
  %v2002 = vsub.f32 %v1994, %v1998
  %v2003 = vsub.f32 %v1831, %v1967
  %v2004 = vsub.f32 %v1833, %v1967
  %v2005 = vsub.f32 %v1835, %v1968
  %v2006 = vsub.f32 %v1837, %v1968
  %v2007 = vsub.f32 %v1841, %v1969
  %v2008 = vsub.f32 %v1843, %v1969
  %v2009 = vsub.f32 %v1845, %v1970
  %v2010 = vsub.f32 %v1847, %v1970
  %v2011 = vadd.f32 %v1999, 1e-05
  %v2012 = vadd.f32 %v2000, 1e-05
  %v2013 = vadd.f32 %v2001, 1e-05
  %v2014 = vadd.f32 %v2002, 1e-05
  %v2015 = vrsqrt.pop %v2011
  %v2016 = vrsqrt.pop %v2012
  %v2017 = vrsqrt.pop %v2013
  %v2018 = vrsqrt.pop %v2014
  %v2019 = vmul.f32 %v2003, %v2015
  %v2020 = vmul.f32 %v2004, %v2015
  %v2021 = vmul.f32 %v2005, %v2016
  %v2022 = vmul.f32 %v2006, %v2016
  %v2023 = vmul.f32 %v2007, %v2017
  %v2024 = vmul.f32 %v2008, %v2017
  %v2025 = vmul.f32 %v2009, %v2018
  %v2026 = vmul.f32 %v2010, %v2018
  %v2027 = vmax.f32 %v2019, 0.0
  %v2028 = vmax.f32 %v2020, 0.0
  %v2029 = vmax.f32 %v2021, 0.0
  %v2030 = vmax.f32 %v2022, 0.0
  %v2031 = vmax.f32 %v2023, 0.0
  %v2032 = vmax.f32 %v2024, 0.0
  %v2033 = vmax.f32 %v2025, 0.0
  %v2034 = vmax.f32 %v2026, 0.0
  %v2035 = vadd.f32 %v1937, %v1939
  %2036 = vadd.xlane.f32.xlu0 %v2035
  %v2037 = vpop.xlane.xlu0 %2036
  %v2038 = vadd.f32 %v1941, %v1943
  %2039 = vadd.xlane.f32.xlu0 %v2038
  %v2040 = vpop.xlane.xlu0 %2039
  %v2041 = vadd.f32 %v1947, %v1949
  %2042 = vadd.xlane.f32.xlu0 %v2041
  %v2043 = vpop.xlane.xlu0 %2042
  %v2044 = vadd.f32 %v1951, %v1953
  %2045 = vadd.xlane.f32.xlu0 %v2044
  %v2046 = vpop.xlane.xlu0 %2045
  %v2047 = vmul.f32 %v2037, 0.00390625
  %v2048 = vmul.f32 %v2040, 0.00390625
  %v2049 = vmul.f32 %v2043, 0.00390625
  %v2050 = vmul.f32 %v2046, 0.00390625
  %v2051 = vmul.f32 %v1937, %v1937
  %v2052 = vmul.f32 %v1939, %v1939
  %v2053 = vmul.f32 %v1941, %v1941
  %v2054 = vmul.f32 %v1943, %v1943
  %v2055 = vmul.f32 %v1947, %v1947
  %v2056 = vmul.f32 %v1949, %v1949
  %v2057 = vmul.f32 %v1951, %v1951
  %v2058 = vmul.f32 %v1953, %v1953
  %v2059 = vadd.f32 %v2051, %v2052
  %2060 = vadd.xlane.f32.xlu0 %v2059
  %v2061 = vpop.xlane.xlu0 %2060
  %v2062 = vadd.f32 %v2053, %v2054
  %2063 = vadd.xlane.f32.xlu0 %v2062
  %v2064 = vpop.xlane.xlu0 %2063
  %v2065 = vadd.f32 %v2055, %v2056
  %2066 = vadd.xlane.f32.xlu0 %v2065
  %v2067 = vpop.xlane.xlu0 %2066
  %v2068 = vadd.f32 %v2057, %v2058
  %2069 = vadd.xlane.f32.xlu0 %v2068
  %v2070 = vpop.xlane.xlu0 %2069
  %v2071 = vmul.f32 %v2061, 0.00390625
  %v2072 = vmul.f32 %v2064, 0.00390625
  %v2073 = vmul.f32 %v2067, 0.00390625
  %v2074 = vmul.f32 %v2070, 0.00390625
  %v2075 = vmul.f32 %v2047, %v2047
  %v2076 = vmul.f32 %v2048, %v2048
  %v2077 = vmul.f32 %v2049, %v2049
  %v2078 = vmul.f32 %v2050, %v2050
  %v2079 = vsub.f32 %v2071, %v2075
  %v2080 = vsub.f32 %v2072, %v2076
  %v2081 = vsub.f32 %v2073, %v2077
  %v2082 = vsub.f32 %v2074, %v2078
  %v2083 = vsub.f32 %v1937, %v2047
  %v2084 = vsub.f32 %v1939, %v2047
  %v2085 = vsub.f32 %v1941, %v2048
  %v2086 = vsub.f32 %v1943, %v2048
  %v2087 = vsub.f32 %v1947, %v2049
  %v2088 = vsub.f32 %v1949, %v2049
  %v2089 = vsub.f32 %v1951, %v2050
  %v2090 = vsub.f32 %v1953, %v2050
  %v2091 = vadd.f32 %v2079, 1e-05
  %v2092 = vadd.f32 %v2080, 1e-05
  %v2093 = vadd.f32 %v2081, 1e-05
  %v2094 = vadd.f32 %v2082, 1e-05
  %v2095 = vrsqrt.pop %v2091
  %v2096 = vrsqrt.pop %v2092
  %v2097 = vrsqrt.pop %v2093
  %v2098 = vrsqrt.pop %v2094
  %v2099 = vmul.f32 %v2083, %v2095
  %v2100 = vmul.f32 %v2084, %v2095
  %v2101 = vmul.f32 %v2085, %v2096
  %v2102 = vmul.f32 %v2086, %v2096
  %v2103 = vmul.f32 %v2087, %v2097
  %v2104 = vmul.f32 %v2088, %v2097
  %v2105 = vmul.f32 %v2089, %v2098
  %v2106 = vmul.f32 %v2090, %v2098
  %v2107 = vmax.f32 %v2099, 0.0
  %v2108 = vmax.f32 %v2100, 0.0
  %v2109 = vmax.f32 %v2101, 0.0
  %v2110 = vmax.f32 %v2102, 0.0
  %v2111 = vmax.f32 %v2103, 0.0
  %v2112 = vmax.f32 %v2104, 0.0
  %v2113 = vmax.f32 %v2105, 0.0
  %v2114 = vmax.f32 %v2106, 0.0
  %2115 = vrot.lane.b32.xlu0 %v2027, 17
  %v2116 = vpop.permute.xlu0 %2115
  %2117 = vrot.lane.b32.xlu0 %v2029, 17
  %v2118 = vpop.permute.xlu0 %2117
  %2119 = vrot.lane.b32.xlu0 %v2031, 17
  %v2120 = vpop.permute.xlu0 %2119
  %2121 = vrot.lane.b32.xlu0 %v2033, 17
  %v2122 = vpop.permute.xlu0 %2121
  %2123 = vrot.lane.b32.xlu0 %v2028, 17
  %v2124 = vpop.permute.xlu0 %2123
  %2125 = vrot.lane.b32.xlu0 %v2030, 17
  %v2126 = vpop.permute.xlu0 %2125
  %2127 = vrot.lane.b32.xlu0 %v2032, 17
  %v2128 = vpop.permute.xlu0 %2127
  %2129 = vrot.lane.b32.xlu0 %v2034, 17
  %v2130 = vpop.permute.xlu0 %2129
  %2131 = vrot.lane.b32.xlu0 %v2107, 17
  %v2132 = vpop.permute.xlu0 %2131
  %2133 = vrot.lane.b32.xlu0 %v2109, 17
  %v2134 = vpop.permute.xlu0 %2133
  %2135 = vrot.lane.b32.xlu0 %v2111, 17
  %v2136 = vpop.permute.xlu0 %2135
  %2137 = vrot.lane.b32.xlu0 %v2113, 17
  %v2138 = vpop.permute.xlu0 %2137
  %2139 = vrot.lane.b32.xlu0 %v2108, 17
  %v2140 = vpop.permute.xlu0 %2139
  %2141 = vrot.lane.b32.xlu0 %v2110, 17
  %v2142 = vpop.permute.xlu0 %2141
  %2143 = vrot.lane.b32.xlu0 %v2112, 17
  %v2144 = vpop.permute.xlu0 %2143
  %2145 = vrot.lane.b32.xlu0 %v2114, 17
  %v2146 = vpop.permute.xlu0 %2145
  %v2147 = vsel %vm86, %v2132, %v2140
  %v2148 = vsel %vm86, %v2134, %v2142
  %v2149 = vsel %vm86, %v2136, %v2144
  %v2150 = vsel %vm86, %v2138, %v2146
  %v2151 = vsel %vm86, %v2124, %v2132
  %v2152 = vsel %vm86, %v2126, %v2134
  %v2153 = vsel %vm86, %v2128, %v2136
  %v2154 = vsel %vm86, %v2130, %v2138
  %v2155 = vsel %vm86, %v2116, %v2124
  %v2156 = vsel %vm86, %v2118, %v2126
  %v2157 = vsel %vm86, %v2120, %v2128
  %v2158 = vsel %vm86, %v2122, %v2130
  %v2159 = vsel %vm86, %v2140, %v2116
  %v2160 = vsel %vm86, %v2142, %v2118
  %v2161 = vsel %vm86, %v2144, %v2120
  %v2162 = vsel %vm86, %v2146, %v2122
  %v2163 = vsel %vm99, %v2159, 0.0
  %v2164 = vsel %vm100, %v2155, 0.0
  %v2165 = vsel %vm101, %v2151, 0.0
  %v2166 = vsel %vm102, %v2147, 0.0
  %v2167 = vsel %vm99, %v2160, 0.0
  %v2168 = vsel %vm100, %v2156, 0.0
  %v2169 = vsel %vm101, %v2152, 0.0
  %v2170 = vsel %vm102, %v2148, 0.0
  %v2171 = vsel %vm99, %v2161, 0.0
  %v2172 = vsel %vm100, %v2157, 0.0
  %v2173 = vsel %vm101, %v2153, 0.0
  %v2174 = vsel %vm102, %v2149, 0.0
  %v2175 = vsel %vm99, %v2162, 0.0
  %v2176 = vsel %vm100, %v2158, 0.0
  %v2177 = vsel %vm101, %v2154, 0.0
  %v2178 = vsel %vm102, %v2150, 0.0
  %v2179 = vpack.c.bf16 %v2167, %v2163
  %v2180 = vpack.c.bf16 %v2168, %v2164
  %v2181 = vpack.c.bf16 %v2169, %v2165
  %v2182 = vpack.c.bf16 %v2170, %v2166
  %v2183 = vpack.c.bf16 %v2175, %v2171
  %v2184 = vpack.c.bf16 %v2176, %v2172
  %v2185 = vpack.c.bf16 %v2177, %v2173
  %v2186 = vpack.c.bf16 %v2178, %v2174
  %2187 = vst [vmem:[#allocation2] sm:$0xff] %v2179
  %2188 = vst [vmem:[#allocation2 + $0x8] sm:$0xff] %v2180
  %2189 = vst [vmem:[#allocation2 + $0x10] sm:$0xff] %v2181
  %2190 = vst [vmem:[#allocation2 + $0x18] sm:$0xff] %v2182
  %2191 = vst [vmem:[#allocation2 + $0x20] sm:$0xff] %v2183
  %2192 = vst [vmem:[#allocation2 + $0x28] sm:$0xff] %v2184
  %2193 = vst [vmem:[#allocation2 + $0x30] sm:$0xff] %v2185
  %2194 = vst [vmem:[#allocation2 + $0x38] sm:$0xff] %v2186
  %2195 = vrot.lane.b32.xlu0 %v2027, 16
  %v2196 = vpop.permute.xlu0 %2195
  %2197 = vrot.lane.b32.xlu0 %v2029, 16
  %v2198 = vpop.permute.xlu0 %2197
  %2199 = vrot.lane.b32.xlu0 %v2031, 16
  %v2200 = vpop.permute.xlu0 %2199
  %2201 = vrot.lane.b32.xlu0 %v2033, 16
  %v2202 = vpop.permute.xlu0 %2201
  %2203 = vrot.lane.b32.xlu0 %v2028, 16
  %v2204 = vpop.permute.xlu0 %2203
  %2205 = vrot.lane.b32.xlu0 %v2030, 16
  %v2206 = vpop.permute.xlu0 %2205
  %2207 = vrot.lane.b32.xlu0 %v2032, 16
  %v2208 = vpop.permute.xlu0 %2207
  %2209 = vrot.lane.b32.xlu0 %v2034, 16
  %v2210 = vpop.permute.xlu0 %2209
  %2211 = vrot.lane.b32.xlu0 %v2107, 16
  %v2212 = vpop.permute.xlu0 %2211
  %2213 = vrot.lane.b32.xlu0 %v2109, 16
  %v2214 = vpop.permute.xlu0 %2213
  %2215 = vrot.lane.b32.xlu0 %v2111, 16
  %v2216 = vpop.permute.xlu0 %2215
  %2217 = vrot.lane.b32.xlu0 %v2113, 16
  %v2218 = vpop.permute.xlu0 %2217
  %2219 = vrot.lane.b32.xlu0 %v2108, 16
  %v2220 = vpop.permute.xlu0 %2219
  %2221 = vrot.lane.b32.xlu0 %v2110, 16
  %v2222 = vpop.permute.xlu0 %2221
  %2223 = vrot.lane.b32.xlu0 %v2112, 16
  %v2224 = vpop.permute.xlu0 %2223
  %2225 = vrot.lane.b32.xlu0 %v2114, 16
  %v2226 = vpop.permute.xlu0 %2225
  %v2227 = vsel %vm137, %v2212, %v2220
  %v2228 = vsel %vm137, %v2214, %v2222
  %v2229 = vsel %vm137, %v2216, %v2224
  %v2230 = vsel %vm137, %v2218, %v2226
  %v2231 = vsel %vm137, %v2204, %v2212
  %v2232 = vsel %vm137, %v2206, %v2214
  %v2233 = vsel %vm137, %v2208, %v2216
  %v2234 = vsel %vm137, %v2210, %v2218
  %v2235 = vsel %vm137, %v2196, %v2204
  %v2236 = vsel %vm137, %v2198, %v2206
  %v2237 = vsel %vm137, %v2200, %v2208
  %v2238 = vsel %vm137, %v2202, %v2210
  %v2239 = vsel %vm137, %v2220, %v2196
  %v2240 = vsel %vm137, %v2222, %v2198
  %v2241 = vsel %vm137, %v2224, %v2200
  %v2242 = vsel %vm137, %v2226, %v2202
  %v2243 = vsel %vm146, %v2239, 0.0
  %v2244 = vsel %vm147, %v2235, 0.0
  %v2245 = vsel %vm148, %v2231, 0.0
  %v2246 = vsel %vm149, %v2227, 0.0
  %v2247 = vsel %vm146, %v2240, 0.0
  %v2248 = vsel %vm147, %v2236, 0.0
  %v2249 = vsel %vm148, %v2232, 0.0
  %v2250 = vsel %vm149, %v2228, 0.0
  %v2251 = vsel %vm146, %v2241, 0.0
  %v2252 = vsel %vm147, %v2237, 0.0
  %v2253 = vsel %vm148, %v2233, 0.0
  %v2254 = vsel %vm149, %v2229, 0.0
  %v2255 = vsel %vm146, %v2242, 0.0
  %v2256 = vsel %vm147, %v2238, 0.0
  %v2257 = vsel %vm148, %v2234, 0.0
  %v2258 = vsel %vm149, %v2230, 0.0
  %v2259 = vpack.c.bf16 %v2247, %v2243
  %v2260 = vpack.c.bf16 %v2248, %v2244
  %v2261 = vpack.c.bf16 %v2249, %v2245
  %v2262 = vpack.c.bf16 %v2250, %v2246
  %v2263 = vpack.c.bf16 %v2255, %v2251
  %v2264 = vpack.c.bf16 %v2256, %v2252
  %v2265 = vpack.c.bf16 %v2257, %v2253
  %v2266 = vpack.c.bf16 %v2258, %v2254
  %2267 = vst [vmem:[#allocation2 + $0x40] sm:$0xff] %v2259
  %2268 = vst [vmem:[#allocation2 + $0x48] sm:$0xff] %v2260
  %2269 = vst [vmem:[#allocation2 + $0x50] sm:$0xff] %v2261
  %2270 = vst [vmem:[#allocation2 + $0x58] sm:$0xff] %v2262
  %2271 = vst [vmem:[#allocation2 + $0x60] sm:$0xff] %v2263
  %2272 = vst [vmem:[#allocation2 + $0x68] sm:$0xff] %v2264
  %2273 = vst [vmem:[#allocation2 + $0x70] sm:$0xff] %v2265
  %2274 = vst [vmem:[#allocation2 + $0x78] sm:$0xff] %v2266
  %2275 = vrot.lane.b32.xlu0 %v2027, 15
  %v2276 = vpop.permute.xlu0 %2275
  %2277 = vrot.lane.b32.xlu0 %v2029, 15
  %v2278 = vpop.permute.xlu0 %2277
  %2279 = vrot.lane.b32.xlu0 %v2031, 15
  %v2280 = vpop.permute.xlu0 %2279
  %2281 = vrot.lane.b32.xlu0 %v2033, 15
  %v2282 = vpop.permute.xlu0 %2281
  %2283 = vrot.lane.b32.xlu0 %v2028, 15
  %v2284 = vpop.permute.xlu0 %2283
  %2285 = vrot.lane.b32.xlu0 %v2030, 15
  %v2286 = vpop.permute.xlu0 %2285
  %2287 = vrot.lane.b32.xlu0 %v2032, 15
  %v2288 = vpop.permute.xlu0 %2287
  %2289 = vrot.lane.b32.xlu0 %v2034, 15
  %v2290 = vpop.permute.xlu0 %2289
  %2291 = vrot.lane.b32.xlu0 %v2107, 15
  %v2292 = vpop.permute.xlu0 %2291
  %2293 = vrot.lane.b32.xlu0 %v2109, 15
  %v2294 = vpop.permute.xlu0 %2293
  %2295 = vrot.lane.b32.xlu0 %v2111, 15
  %v2296 = vpop.permute.xlu0 %2295
  %2297 = vrot.lane.b32.xlu0 %v2113, 15
  %v2298 = vpop.permute.xlu0 %2297
  %2299 = vrot.lane.b32.xlu0 %v2108, 15
  %v2300 = vpop.permute.xlu0 %2299
  %2301 = vrot.lane.b32.xlu0 %v2110, 15
  %v2302 = vpop.permute.xlu0 %2301
  %2303 = vrot.lane.b32.xlu0 %v2112, 15
  %v2304 = vpop.permute.xlu0 %2303
  %2305 = vrot.lane.b32.xlu0 %v2114, 15
  %v2306 = vpop.permute.xlu0 %2305
  %v2307 = vsel %vm184, %v2292, %v2300
  %v2308 = vsel %vm184, %v2294, %v2302
  %v2309 = vsel %vm184, %v2296, %v2304
  %v2310 = vsel %vm184, %v2298, %v2306
  %v2311 = vsel %vm184, %v2284, %v2292
  %v2312 = vsel %vm184, %v2286, %v2294
  %v2313 = vsel %vm184, %v2288, %v2296
  %v2314 = vsel %vm184, %v2290, %v2298
  %v2315 = vsel %vm184, %v2276, %v2284
  %v2316 = vsel %vm184, %v2278, %v2286
  %v2317 = vsel %vm184, %v2280, %v2288
  %v2318 = vsel %vm184, %v2282, %v2290
  %v2319 = vsel %vm184, %v2300, %v2276
  %v2320 = vsel %vm184, %v2302, %v2278
  %v2321 = vsel %vm184, %v2304, %v2280
  %v2322 = vsel %vm184, %v2306, %v2282
  %v2323 = vsel %vm197, %v2319, 0.0
  %v2324 = vsel %vm198, %v2315, 0.0
  %v2325 = vsel %vm199, %v2311, 0.0
  %v2326 = vsel %vm200, %v2307, 0.0
  %v2327 = vsel %vm197, %v2320, 0.0
  %v2328 = vsel %vm198, %v2316, 0.0
  %v2329 = vsel %vm199, %v2312, 0.0
  %v2330 = vsel %vm200, %v2308, 0.0
  %v2331 = vsel %vm197, %v2321, 0.0
  %v2332 = vsel %vm198, %v2317, 0.0
  %v2333 = vsel %vm199, %v2313, 0.0
  %v2334 = vsel %vm200, %v2309, 0.0
  %v2335 = vsel %vm197, %v2322, 0.0
  %v2336 = vsel %vm198, %v2318, 0.0
  %v2337 = vsel %vm199, %v2314, 0.0
  %v2338 = vsel %vm200, %v2310, 0.0
  %v2339 = vpack.c.bf16 %v2327, %v2323
  %v2340 = vpack.c.bf16 %v2328, %v2324
  %v2341 = vpack.c.bf16 %v2329, %v2325
  %v2342 = vpack.c.bf16 %v2330, %v2326
  %v2343 = vpack.c.bf16 %v2335, %v2331
  %v2344 = vpack.c.bf16 %v2336, %v2332
  %v2345 = vpack.c.bf16 %v2337, %v2333
  %v2346 = vpack.c.bf16 %v2338, %v2334
  %2347 = vst [vmem:[#allocation2 + $0x80] sm:$0xff] %v2339
  %2348 = vst [vmem:[#allocation2 + $0x88] sm:$0xff] %v2340
  %2349 = vst [vmem:[#allocation2 + $0x90] sm:$0xff] %v2341
  %2350 = vst [vmem:[#allocation2 + $0x98] sm:$0xff] %v2342
  %2351 = vst [vmem:[#allocation2 + $0xa0] sm:$0xff] %v2343
  %2352 = vst [vmem:[#allocation2 + $0xa8] sm:$0xff] %v2344
  %2353 = vst [vmem:[#allocation2 + $0xb0] sm:$0xff] %v2345
  %2354 = vst [vmem:[#allocation2 + $0xb8] sm:$0xff] %v2346
  %2355 = vrot.lane.b32.xlu0 %v2027, 1
  %v2356 = vpop.permute.xlu0 %2355
  %2357 = vrot.lane.b32.xlu0 %v2029, 1
  %v2358 = vpop.permute.xlu0 %2357
  %2359 = vrot.lane.b32.xlu0 %v2031, 1
  %v2360 = vpop.permute.xlu0 %2359
  %2361 = vrot.lane.b32.xlu0 %v2033, 1
  %v2362 = vpop.permute.xlu0 %2361
  %2363 = vrot.lane.b32.xlu0 %v2028, 1
  %v2364 = vpop.permute.xlu0 %2363
  %2365 = vrot.lane.b32.xlu0 %v2030, 1
  %v2366 = vpop.permute.xlu0 %2365
  %2367 = vrot.lane.b32.xlu0 %v2032, 1
  %v2368 = vpop.permute.xlu0 %2367
  %2369 = vrot.lane.b32.xlu0 %v2034, 1
  %v2370 = vpop.permute.xlu0 %2369
  %2371 = vrot.lane.b32.xlu0 %v2107, 1
  %v2372 = vpop.permute.xlu0 %2371
  %2373 = vrot.lane.b32.xlu0 %v2109, 1
  %v2374 = vpop.permute.xlu0 %2373
  %2375 = vrot.lane.b32.xlu0 %v2111, 1
  %v2376 = vpop.permute.xlu0 %2375
  %2377 = vrot.lane.b32.xlu0 %v2113, 1
  %v2378 = vpop.permute.xlu0 %2377
  %2379 = vrot.lane.b32.xlu0 %v2108, 1
  %v2380 = vpop.permute.xlu0 %2379
  %2381 = vrot.lane.b32.xlu0 %v2110, 1
  %v2382 = vpop.permute.xlu0 %2381
  %2383 = vrot.lane.b32.xlu0 %v2112, 1
  %v2384 = vpop.permute.xlu0 %2383
  %2385 = vrot.lane.b32.xlu0 %v2114, 1
  %v2386 = vpop.permute.xlu0 %2385
  %v2387 = vsel %vm235, %v2372, %v2380
  %v2388 = vsel %vm235, %v2374, %v2382
  %v2389 = vsel %vm235, %v2376, %v2384
  %v2390 = vsel %vm235, %v2378, %v2386
  %v2391 = vsel %vm235, %v2364, %v2372
  %v2392 = vsel %vm235, %v2366, %v2374
  %v2393 = vsel %vm235, %v2368, %v2376
  %v2394 = vsel %vm235, %v2370, %v2378
  %v2395 = vsel %vm235, %v2356, %v2364
  %v2396 = vsel %vm235, %v2358, %v2366
  %v2397 = vsel %vm235, %v2360, %v2368
  %v2398 = vsel %vm235, %v2362, %v2370
  %v2399 = vsel %vm235, %v2380, %v2356
  %v2400 = vsel %vm235, %v2382, %v2358
  %v2401 = vsel %vm235, %v2384, %v2360
  %v2402 = vsel %vm235, %v2386, %v2362
  %v2403 = vsel %vm244, %v2399, 0.0
  %v2404 = vsel %vm245, %v2395, 0.0
  %v2405 = vsel %vm246, %v2391, 0.0
  %v2406 = vsel %vm247, %v2387, 0.0
  %v2407 = vsel %vm244, %v2400, 0.0
  %v2408 = vsel %vm245, %v2396, 0.0
  %v2409 = vsel %vm246, %v2392, 0.0
  %v2410 = vsel %vm247, %v2388, 0.0
  %v2411 = vsel %vm244, %v2401, 0.0
  %v2412 = vsel %vm245, %v2397, 0.0
  %v2413 = vsel %vm246, %v2393, 0.0
  %v2414 = vsel %vm247, %v2389, 0.0
  %v2415 = vsel %vm244, %v2402, 0.0
  %v2416 = vsel %vm245, %v2398, 0.0
  %v2417 = vsel %vm246, %v2394, 0.0
  %v2418 = vsel %vm247, %v2390, 0.0
  %v2419 = vpack.c.bf16 %v2407, %v2403
  %v2420 = vpack.c.bf16 %v2408, %v2404
  %v2421 = vpack.c.bf16 %v2409, %v2405
  %v2422 = vpack.c.bf16 %v2410, %v2406
  %v2423 = vpack.c.bf16 %v2415, %v2411
  %v2424 = vpack.c.bf16 %v2416, %v2412
  %v2425 = vpack.c.bf16 %v2417, %v2413
  %v2426 = vpack.c.bf16 %v2418, %v2414
  %2427 = vst [vmem:[#allocation2 + $0xc0] sm:$0xff] %v2419
  %2428 = vst [vmem:[#allocation2 + $0xc8] sm:$0xff] %v2420
  %2429 = vst [vmem:[#allocation2 + $0xd0] sm:$0xff] %v2421
  %2430 = vst [vmem:[#allocation2 + $0xd8] sm:$0xff] %v2422
  %2431 = vst [vmem:[#allocation2 + $0xe0] sm:$0xff] %v2423
  %2432 = vst [vmem:[#allocation2 + $0xe8] sm:$0xff] %v2424
  %2433 = vst [vmem:[#allocation2 + $0xf0] sm:$0xff] %v2425
  %2434 = vst [vmem:[#allocation2 + $0xf8] sm:$0xff] %v2426
  %v2435 = vpack.c.bf16 %v2029, %v2027
  %v2436 = vpack.c.bf16 %v2030, %v2028
  %v2437 = vpack.c.bf16 %v2109, %v2107
  %v2438 = vpack.c.bf16 %v2110, %v2108
  %v2439 = vpack.c.bf16 %v2033, %v2031
  %v2440 = vpack.c.bf16 %v2034, %v2032
  %v2441 = vpack.c.bf16 %v2113, %v2111
  %v2442 = vpack.c.bf16 %v2114, %v2112
  %2443 = vst [vmem:[#allocation2 + $0x100] sm:$0xff] %v2435
  %2444 = vst [vmem:[#allocation2 + $0x108] sm:$0xff] %v2436
  %2445 = vst [vmem:[#allocation2 + $0x110] sm:$0xff] %v2437
  %2446 = vst [vmem:[#allocation2 + $0x118] sm:$0xff] %v2438
  %2447 = vst [vmem:[#allocation2 + $0x120] sm:$0xff] %v2439
  %2448 = vst [vmem:[#allocation2 + $0x128] sm:$0xff] %v2440
  %2449 = vst [vmem:[#allocation2 + $0x130] sm:$0xff] %v2441
  %2450 = vst [vmem:[#allocation2 + $0x138] sm:$0xff] %v2442
  %2451 = vrot.lane.b32.xlu0 %v2027, 127
  %v2452 = vpop.permute.xlu0 %2451
  %2453 = vrot.lane.b32.xlu0 %v2029, 127
  %v2454 = vpop.permute.xlu0 %2453
  %2455 = vrot.lane.b32.xlu0 %v2031, 127
  %v2456 = vpop.permute.xlu0 %2455
  %2457 = vrot.lane.b32.xlu0 %v2033, 127
  %v2458 = vpop.permute.xlu0 %2457
  %2459 = vrot.lane.b32.xlu0 %v2028, 127
  %v2460 = vpop.permute.xlu0 %2459
  %2461 = vrot.lane.b32.xlu0 %v2030, 127
  %v2462 = vpop.permute.xlu0 %2461
  %2463 = vrot.lane.b32.xlu0 %v2032, 127
  %v2464 = vpop.permute.xlu0 %2463
  %2465 = vrot.lane.b32.xlu0 %v2034, 127
  %v2466 = vpop.permute.xlu0 %2465
  %2467 = vrot.lane.b32.xlu0 %v2107, 127
  %v2468 = vpop.permute.xlu0 %2467
  %2469 = vrot.lane.b32.xlu0 %v2109, 127
  %v2470 = vpop.permute.xlu0 %2469
  %2471 = vrot.lane.b32.xlu0 %v2111, 127
  %v2472 = vpop.permute.xlu0 %2471
  %2473 = vrot.lane.b32.xlu0 %v2113, 127
  %v2474 = vpop.permute.xlu0 %2473
  %2475 = vrot.lane.b32.xlu0 %v2108, 127
  %v2476 = vpop.permute.xlu0 %2475
  %2477 = vrot.lane.b32.xlu0 %v2110, 127
  %v2478 = vpop.permute.xlu0 %2477
  %2479 = vrot.lane.b32.xlu0 %v2112, 127
  %v2480 = vpop.permute.xlu0 %2479
  %2481 = vrot.lane.b32.xlu0 %v2114, 127
  %v2482 = vpop.permute.xlu0 %2481
  %v2483 = vsel %vm295, %v2468, %v2476
  %v2484 = vsel %vm295, %v2470, %v2478
  %v2485 = vsel %vm295, %v2472, %v2480
  %v2486 = vsel %vm295, %v2474, %v2482
  %v2487 = vsel %vm295, %v2460, %v2468
  %v2488 = vsel %vm295, %v2462, %v2470
  %v2489 = vsel %vm295, %v2464, %v2472
  %v2490 = vsel %vm295, %v2466, %v2474
  %v2491 = vsel %vm295, %v2452, %v2460
  %v2492 = vsel %vm295, %v2454, %v2462
  %v2493 = vsel %vm295, %v2456, %v2464
  %v2494 = vsel %vm295, %v2458, %v2466
  %v2495 = vsel %vm295, %v2476, %v2452
  %v2496 = vsel %vm295, %v2478, %v2454
  %v2497 = vsel %vm295, %v2480, %v2456
  %v2498 = vsel %vm295, %v2482, %v2458
  %v2499 = vsel %vm304, %v2491, 0.0
  %v2500 = vsel %vm305, %v2487, 0.0
  %v2501 = vsel %vm306, %v2483, 0.0
  %v2502 = vsel %vm307, %v2495, 0.0
  %v2503 = vsel %vm304, %v2492, 0.0
  %v2504 = vsel %vm305, %v2488, 0.0
  %v2505 = vsel %vm306, %v2484, 0.0
  %v2506 = vsel %vm307, %v2496, 0.0
  %v2507 = vsel %vm304, %v2493, 0.0
  %v2508 = vsel %vm305, %v2489, 0.0
  %v2509 = vsel %vm306, %v2485, 0.0
  %v2510 = vsel %vm307, %v2497, 0.0
  %v2511 = vsel %vm304, %v2494, 0.0
  %v2512 = vsel %vm305, %v2490, 0.0
  %v2513 = vsel %vm306, %v2486, 0.0
  %v2514 = vsel %vm307, %v2498, 0.0
  %v2515 = vpack.c.bf16 %v2503, %v2499
  %v2516 = vpack.c.bf16 %v2504, %v2500
  %v2517 = vpack.c.bf16 %v2505, %v2501
  %v2518 = vpack.c.bf16 %v2506, %v2502
  %v2519 = vpack.c.bf16 %v2511, %v2507
  %v2520 = vpack.c.bf16 %v2512, %v2508
  %v2521 = vpack.c.bf16 %v2513, %v2509
  %v2522 = vpack.c.bf16 %v2514, %v2510
  %2523 = vst [vmem:[#allocation2 + $0x140] sm:$0xff] %v2515
  %2524 = vst [vmem:[#allocation2 + $0x148] sm:$0xff] %v2516
  %2525 = vst [vmem:[#allocation2 + $0x150] sm:$0xff] %v2517
  %2526 = vst [vmem:[#allocation2 + $0x158] sm:$0xff] %v2518
  %2527 = vst [vmem:[#allocation2 + $0x160] sm:$0xff] %v2519
  %2528 = vst [vmem:[#allocation2 + $0x168] sm:$0xff] %v2520
  %2529 = vst [vmem:[#allocation2 + $0x170] sm:$0xff] %v2521
  %2530 = vst [vmem:[#allocation2 + $0x178] sm:$0xff] %v2522
  %2531 = vrot.lane.b32.xlu0 %v2027, 113
  %v2532 = vpop.permute.xlu0 %2531
  %2533 = vrot.lane.b32.xlu0 %v2029, 113
  %v2534 = vpop.permute.xlu0 %2533
  %2535 = vrot.lane.b32.xlu0 %v2031, 113
  %v2536 = vpop.permute.xlu0 %2535
  %2537 = vrot.lane.b32.xlu0 %v2033, 113
  %v2538 = vpop.permute.xlu0 %2537
  %2539 = vrot.lane.b32.xlu0 %v2028, 113
  %v2540 = vpop.permute.xlu0 %2539
  %2541 = vrot.lane.b32.xlu0 %v2030, 113
  %v2542 = vpop.permute.xlu0 %2541
  %2543 = vrot.lane.b32.xlu0 %v2032, 113
  %v2544 = vpop.permute.xlu0 %2543
  %2545 = vrot.lane.b32.xlu0 %v2034, 113
  %v2546 = vpop.permute.xlu0 %2545
  %2547 = vrot.lane.b32.xlu0 %v2107, 113
  %v2548 = vpop.permute.xlu0 %2547
  %2549 = vrot.lane.b32.xlu0 %v2109, 113
  %v2550 = vpop.permute.xlu0 %2549
  %2551 = vrot.lane.b32.xlu0 %v2111, 113
  %v2552 = vpop.permute.xlu0 %2551
  %2553 = vrot.lane.b32.xlu0 %v2113, 113
  %v2554 = vpop.permute.xlu0 %2553
  %2555 = vrot.lane.b32.xlu0 %v2108, 113
  %v2556 = vpop.permute.xlu0 %2555
  %2557 = vrot.lane.b32.xlu0 %v2110, 113
  %v2558 = vpop.permute.xlu0 %2557
  %2559 = vrot.lane.b32.xlu0 %v2112, 113
  %v2560 = vpop.permute.xlu0 %2559
  %2561 = vrot.lane.b32.xlu0 %v2114, 113
  %v2562 = vpop.permute.xlu0 %2561
  %v2563 = vsel %vm342, %v2548, %v2556
  %v2564 = vsel %vm342, %v2550, %v2558
  %v2565 = vsel %vm342, %v2552, %v2560
  %v2566 = vsel %vm342, %v2554, %v2562
  %v2567 = vsel %vm342, %v2540, %v2548
  %v2568 = vsel %vm342, %v2542, %v2550
  %v2569 = vsel %vm342, %v2544, %v2552
  %v2570 = vsel %vm342, %v2546, %v2554
  %v2571 = vsel %vm342, %v2532, %v2540
  %v2572 = vsel %vm342, %v2534, %v2542
  %v2573 = vsel %vm342, %v2536, %v2544
  %v2574 = vsel %vm342, %v2538, %v2546
  %v2575 = vsel %vm342, %v2556, %v2532
  %v2576 = vsel %vm342, %v2558, %v2534
  %v2577 = vsel %vm342, %v2560, %v2536
  %v2578 = vsel %vm342, %v2562, %v2538
  %v2579 = vsel %vm355, %v2571, 0.0
  %v2580 = vsel %vm356, %v2567, 0.0
  %v2581 = vsel %vm357, %v2563, 0.0
  %v2582 = vsel %vm358, %v2575, 0.0
  %v2583 = vsel %vm355, %v2572, 0.0
  %v2584 = vsel %vm356, %v2568, 0.0
  %v2585 = vsel %vm357, %v2564, 0.0
  %v2586 = vsel %vm358, %v2576, 0.0
  %v2587 = vsel %vm355, %v2573, 0.0
  %v2588 = vsel %vm356, %v2569, 0.0
  %v2589 = vsel %vm357, %v2565, 0.0
  %v2590 = vsel %vm358, %v2577, 0.0
  %v2591 = vsel %vm355, %v2574, 0.0
  %v2592 = vsel %vm356, %v2570, 0.0
  %v2593 = vsel %vm357, %v2566, 0.0
  %v2594 = vsel %vm358, %v2578, 0.0
  %v2595 = vpack.c.bf16 %v2583, %v2579
  %v2596 = vpack.c.bf16 %v2584, %v2580
  %v2597 = vpack.c.bf16 %v2585, %v2581
  %v2598 = vpack.c.bf16 %v2586, %v2582
  %v2599 = vpack.c.bf16 %v2591, %v2587
  %v2600 = vpack.c.bf16 %v2592, %v2588
  %v2601 = vpack.c.bf16 %v2593, %v2589
  %v2602 = vpack.c.bf16 %v2594, %v2590
  %2603 = vst [vmem:[#allocation2 + $0x180] sm:$0xff] %v2595
  %2604 = vst [vmem:[#allocation2 + $0x188] sm:$0xff] %v2596
  %2605 = vst [vmem:[#allocation2 + $0x190] sm:$0xff] %v2597
  %2606 = vst [vmem:[#allocation2 + $0x198] sm:$0xff] %v2598
  %2607 = vst [vmem:[#allocation2 + $0x1a0] sm:$0xff] %v2599
  %2608 = vst [vmem:[#allocation2 + $0x1a8] sm:$0xff] %v2600
  %2609 = vst [vmem:[#allocation2 + $0x1b0] sm:$0xff] %v2601
  %2610 = vst [vmem:[#allocation2 + $0x1b8] sm:$0xff] %v2602
  %2611 = vrot.lane.b32.xlu0 %v2027, 112
  %v2612 = vpop.permute.xlu0 %2611
  %2613 = vrot.lane.b32.xlu0 %v2029, 112
  %v2614 = vpop.permute.xlu0 %2613
  %2615 = vrot.lane.b32.xlu0 %v2031, 112
  %v2616 = vpop.permute.xlu0 %2615
  %2617 = vrot.lane.b32.xlu0 %v2033, 112
  %v2618 = vpop.permute.xlu0 %2617
  %2619 = vrot.lane.b32.xlu0 %v2028, 112
  %v2620 = vpop.permute.xlu0 %2619
  %2621 = vrot.lane.b32.xlu0 %v2030, 112
  %v2622 = vpop.permute.xlu0 %2621
  %2623 = vrot.lane.b32.xlu0 %v2032, 112
  %v2624 = vpop.permute.xlu0 %2623
  %2625 = vrot.lane.b32.xlu0 %v2034, 112
  %v2626 = vpop.permute.xlu0 %2625
  %2627 = vrot.lane.b32.xlu0 %v2107, 112
  %v2628 = vpop.permute.xlu0 %2627
  %2629 = vrot.lane.b32.xlu0 %v2109, 112
  %v2630 = vpop.permute.xlu0 %2629
  %2631 = vrot.lane.b32.xlu0 %v2111, 112
  %v2632 = vpop.permute.xlu0 %2631
  %2633 = vrot.lane.b32.xlu0 %v2113, 112
  %v2634 = vpop.permute.xlu0 %2633
  %2635 = vrot.lane.b32.xlu0 %v2108, 112
  %v2636 = vpop.permute.xlu0 %2635
  %2637 = vrot.lane.b32.xlu0 %v2110, 112
  %v2638 = vpop.permute.xlu0 %2637
  %2639 = vrot.lane.b32.xlu0 %v2112, 112
  %v2640 = vpop.permute.xlu0 %2639
  %2641 = vrot.lane.b32.xlu0 %v2114, 112
  %v2642 = vpop.permute.xlu0 %2641
  %v2643 = vsel %vm393, %v2628, %v2636
  %v2644 = vsel %vm393, %v2630, %v2638
  %v2645 = vsel %vm393, %v2632, %v2640
  %v2646 = vsel %vm393, %v2634, %v2642
  %v2647 = vsel %vm393, %v2620, %v2628
  %v2648 = vsel %vm393, %v2622, %v2630
  %v2649 = vsel %vm393, %v2624, %v2632
  %v2650 = vsel %vm393, %v2626, %v2634
  %v2651 = vsel %vm393, %v2612, %v2620
  %v2652 = vsel %vm393, %v2614, %v2622
  %v2653 = vsel %vm393, %v2616, %v2624
  %v2654 = vsel %vm393, %v2618, %v2626
  %v2655 = vsel %vm393, %v2636, %v2612
  %v2656 = vsel %vm393, %v2638, %v2614
  %v2657 = vsel %vm393, %v2640, %v2616
  %v2658 = vsel %vm393, %v2642, %v2618
  %v2659 = vsel %vm402, %v2651, 0.0
  %v2660 = vsel %vm403, %v2647, 0.0
  %v2661 = vsel %vm404, %v2643, 0.0
  %v2662 = vsel %vm405, %v2655, 0.0
  %v2663 = vsel %vm402, %v2652, 0.0
  %v2664 = vsel %vm403, %v2648, 0.0
  %v2665 = vsel %vm404, %v2644, 0.0
  %v2666 = vsel %vm405, %v2656, 0.0
  %v2667 = vsel %vm402, %v2653, 0.0
  %v2668 = vsel %vm403, %v2649, 0.0
  %v2669 = vsel %vm404, %v2645, 0.0
  %v2670 = vsel %vm405, %v2657, 0.0
  %v2671 = vsel %vm402, %v2654, 0.0
  %v2672 = vsel %vm403, %v2650, 0.0
  %v2673 = vsel %vm404, %v2646, 0.0
  %v2674 = vsel %vm405, %v2658, 0.0
  %v2675 = vpack.c.bf16 %v2663, %v2659
  %v2676 = vpack.c.bf16 %v2664, %v2660
  %v2677 = vpack.c.bf16 %v2665, %v2661
  %v2678 = vpack.c.bf16 %v2666, %v2662
  %v2679 = vpack.c.bf16 %v2671, %v2667
  %v2680 = vpack.c.bf16 %v2672, %v2668
  %v2681 = vpack.c.bf16 %v2673, %v2669
  %v2682 = vpack.c.bf16 %v2674, %v2670
  %2683 = vst [vmem:[#allocation2 + $0x1c0] sm:$0xff] %v2675
  %2684 = vst [vmem:[#allocation2 + $0x1c8] sm:$0xff] %v2676
  %2685 = vst [vmem:[#allocation2 + $0x1d0] sm:$0xff] %v2677
  %2686 = vst [vmem:[#allocation2 + $0x1d8] sm:$0xff] %v2678
  %2687 = vst [vmem:[#allocation2 + $0x1e0] sm:$0xff] %v2679
  %2688 = vst [vmem:[#allocation2 + $0x1e8] sm:$0xff] %v2680
  %2689 = vst [vmem:[#allocation2 + $0x1f0] sm:$0xff] %v2681
  %2690 = vst [vmem:[#allocation2 + $0x1f8] sm:$0xff] %v2682
  %2691 = vrot.lane.b32.xlu0 %v2027, 111
  %v2692 = vpop.permute.xlu0 %2691
  %2693 = vrot.lane.b32.xlu0 %v2029, 111
  %v2694 = vpop.permute.xlu0 %2693
  %2695 = vrot.lane.b32.xlu0 %v2031, 111
  %v2696 = vpop.permute.xlu0 %2695
  %2697 = vrot.lane.b32.xlu0 %v2033, 111
  %v2698 = vpop.permute.xlu0 %2697
  %2699 = vrot.lane.b32.xlu0 %v2028, 111
  %v2700 = vpop.permute.xlu0 %2699
  %2701 = vrot.lane.b32.xlu0 %v2030, 111
  %v2702 = vpop.permute.xlu0 %2701
  %2703 = vrot.lane.b32.xlu0 %v2032, 111
  %v2704 = vpop.permute.xlu0 %2703
  %2705 = vrot.lane.b32.xlu0 %v2034, 111
  %v2706 = vpop.permute.xlu0 %2705
  %2707 = vrot.lane.b32.xlu0 %v2107, 111
  %v2708 = vpop.permute.xlu0 %2707
  %2709 = vrot.lane.b32.xlu0 %v2109, 111
  %v2710 = vpop.permute.xlu0 %2709
  %2711 = vrot.lane.b32.xlu0 %v2111, 111
  %v2712 = vpop.permute.xlu0 %2711
  %2713 = vrot.lane.b32.xlu0 %v2113, 111
  %v2714 = vpop.permute.xlu0 %2713
  %2715 = vrot.lane.b32.xlu0 %v2108, 111
  %v2716 = vpop.permute.xlu0 %2715
  %2717 = vrot.lane.b32.xlu0 %v2110, 111
  %v2718 = vpop.permute.xlu0 %2717
  %2719 = vrot.lane.b32.xlu0 %v2112, 111
  %v2720 = vpop.permute.xlu0 %2719
  %2721 = vrot.lane.b32.xlu0 %v2114, 111
  %v2722 = vpop.permute.xlu0 %2721
  %v2723 = vsel %vm440, %v2708, %v2716
  %v2724 = vsel %vm440, %v2710, %v2718
  %v2725 = vsel %vm440, %v2712, %v2720
  %v2726 = vsel %vm440, %v2714, %v2722
  %v2727 = vsel %vm440, %v2700, %v2708
  %v2728 = vsel %vm440, %v2702, %v2710
  %v2729 = vsel %vm440, %v2704, %v2712
  %v2730 = vsel %vm440, %v2706, %v2714
  %v2731 = vsel %vm440, %v2692, %v2700
  %v2732 = vsel %vm440, %v2694, %v2702
  %v2733 = vsel %vm440, %v2696, %v2704
  %v2734 = vsel %vm440, %v2698, %v2706
  %v2735 = vsel %vm440, %v2716, %v2692
  %v2736 = vsel %vm440, %v2718, %v2694
  %v2737 = vsel %vm440, %v2720, %v2696
  %v2738 = vsel %vm440, %v2722, %v2698
  %v2739 = vsel %vm453, %v2731, 0.0
  %v2740 = vsel %vm454, %v2727, 0.0
  %v2741 = vsel %vm455, %v2723, 0.0
  %v2742 = vsel %vm456, %v2735, 0.0
  %v2743 = vsel %vm453, %v2732, 0.0
  %v2744 = vsel %vm454, %v2728, 0.0
  %v2745 = vsel %vm455, %v2724, 0.0
  %v2746 = vsel %vm456, %v2736, 0.0
  %v2747 = vsel %vm453, %v2733, 0.0
  %v2748 = vsel %vm454, %v2729, 0.0
  %v2749 = vsel %vm455, %v2725, 0.0
  %v2750 = vsel %vm456, %v2737, 0.0
  %v2751 = vsel %vm453, %v2734, 0.0
  %v2752 = vsel %vm454, %v2730, 0.0
  %v2753 = vsel %vm455, %v2726, 0.0
  %v2754 = vsel %vm456, %v2738, 0.0
  %v2755 = vpack.c.bf16 %v2743, %v2739
  %v2756 = vpack.c.bf16 %v2744, %v2740
  %v2757 = vpack.c.bf16 %v2745, %v2741
  %v2758 = vpack.c.bf16 %v2746, %v2742
  %v2759 = vpack.c.bf16 %v2751, %v2747
  %v2760 = vpack.c.bf16 %v2752, %v2748
  %v2761 = vpack.c.bf16 %v2753, %v2749
  %v2762 = vpack.c.bf16 %v2754, %v2750
  %2763 = vst [vmem:[#allocation2 + $0x200] sm:$0xff] %v2755
  %2764 = vst [vmem:[#allocation2 + $0x208] sm:$0xff] %v2756
  %2765 = vst [vmem:[#allocation2 + $0x210] sm:$0xff] %v2757
  %2766 = vst [vmem:[#allocation2 + $0x218] sm:$0xff] %v2758
  %2767 = vst [vmem:[#allocation2 + $0x220] sm:$0xff] %v2759
  %2768 = vst [vmem:[#allocation2 + $0x228] sm:$0xff] %v2760
  %2769 = vst [vmem:[#allocation2 + $0x230] sm:$0xff] %v2761
  %2770 = vst [vmem:[#allocation2 + $0x238] sm:$0xff] %v2762
  %s2771 = scalar_lea.vmem %s2, 96
  %v2772 = vld [vmem:[%s2771] sm:$0xff]
  %v2773 = vld [vmem:[%s2771 + $0x8] sm:$0xf]
  %v2774 = vld [vmem:[%s2771 + $0xc] sm:$0xff]
  %v2775 = vld [vmem:[%s2771 + $0x14] sm:$0xf]
  %v2776 = vld [vmem:[%s2771 + $0x18] sm:$0xff]
  %v2777 = vld [vmem:[%s2771 + $0x20] sm:$0xf]
  %v2778 = vld [vmem:[%s2771 + $0x24] sm:$0xff]
  %v2779 = vld [vmem:[%s2771 + $0x2c] sm:$0xf]
  %v2780 = vld [vmem:[#allocation2] sm:$0xff]
  %v2781 = vld [vmem:[#allocation2 + $0x8] sm:$0xff]
  %v2782 = vld [vmem:[#allocation2 + $0x10] sm:$0xff]
  %v2783 = vld [vmem:[#allocation2 + $0x18] sm:$0xff]
  %v2784 = vld [vmem:[#allocation2 + $0x20] sm:$0xff]
  %v2785 = vld [vmem:[#allocation2 + $0x28] sm:$0xff]
  %v2786 = vld [vmem:[#allocation2 + $0x30] sm:$0xff]
  %v2787 = vld [vmem:[#allocation2 + $0x38] sm:$0xff]
  %v2788 = vld [vmem:[#allocation2 + $0x40] sm:$0xff]
  %v2789 = vld [vmem:[#allocation2 + $0x48] sm:$0xff]
  %v2790 = vld [vmem:[#allocation2 + $0x50] sm:$0xff]
  %v2791 = vld [vmem:[#allocation2 + $0x58] sm:$0xff]
  %v2792 = vld [vmem:[#allocation2 + $0x60] sm:$0xff]
  %v2793 = vld [vmem:[#allocation2 + $0x68] sm:$0xff]
  %v2794 = vld [vmem:[#allocation2 + $0x70] sm:$0xff]
  %v2795 = vld [vmem:[#allocation2 + $0x78] sm:$0xff]
  %v2796 = vld [vmem:[#allocation2 + $0x80] sm:$0xff]
  %v2797 = vld [vmem:[#allocation2 + $0x88] sm:$0xff]
  %v2798 = vld [vmem:[#allocation2 + $0x90] sm:$0xff]
  %v2799 = vld [vmem:[#allocation2 + $0x98] sm:$0xff]
  %v2800 = vld [vmem:[#allocation2 + $0xa0] sm:$0xff]
  %v2801 = vld [vmem:[#allocation2 + $0xa8] sm:$0xff]
  %v2802 = vld [vmem:[#allocation2 + $0xb0] sm:$0xff]
  %v2803 = vld [vmem:[#allocation2 + $0xb8] sm:$0xff]
  %v2804 = vld [vmem:[#allocation2 + $0xc0] sm:$0xff]
  %v2805 = vld [vmem:[#allocation2 + $0xc8] sm:$0xff]
  %v2806 = vld [vmem:[#allocation2 + $0xd0] sm:$0xff]
  %v2807 = vld [vmem:[#allocation2 + $0xd8] sm:$0xff]
  %v2808 = vld [vmem:[#allocation2 + $0xe0] sm:$0xff]
  %v2809 = vld [vmem:[#allocation2 + $0xe8] sm:$0xff]
  %v2810 = vld [vmem:[#allocation2 + $0xf0] sm:$0xff]
  %v2811 = vld [vmem:[#allocation2 + $0xf8] sm:$0xff]
  %v2812 = vld [vmem:[#allocation2 + $0x100] sm:$0xff]
  %v2813 = vld [vmem:[#allocation2 + $0x108] sm:$0xff]
  %v2814 = vld [vmem:[#allocation2 + $0x110] sm:$0xff]
  %v2815 = vld [vmem:[#allocation2 + $0x118] sm:$0xff]
  %v2816 = vld [vmem:[#allocation2 + $0x120] sm:$0xff]
  %v2817 = vld [vmem:[#allocation2 + $0x128] sm:$0xff]
  %v2818 = vld [vmem:[#allocation2 + $0x130] sm:$0xff]
  %v2819 = vld [vmem:[#allocation2 + $0x138] sm:$0xff]
  %v2820 = vld [vmem:[#allocation2 + $0x140] sm:$0xff]
  %v2821 = vld [vmem:[#allocation2 + $0x148] sm:$0xff]
  %v2822 = vld [vmem:[#allocation2 + $0x150] sm:$0xff]
  %v2823 = vld [vmem:[#allocation2 + $0x158] sm:$0xff]
  %v2824 = vld [vmem:[#allocation2 + $0x160] sm:$0xff]
  %v2825 = vld [vmem:[#allocation2 + $0x168] sm:$0xff]
  %v2826 = vld [vmem:[#allocation2 + $0x170] sm:$0xff]
  %v2827 = vld [vmem:[#allocation2 + $0x178] sm:$0xff]
  %v2828 = vld [vmem:[#allocation2 + $0x180] sm:$0xff]
  %v2829 = vld [vmem:[#allocation2 + $0x188] sm:$0xff]
  %v2830 = vld [vmem:[#allocation2 + $0x190] sm:$0xff]
  %v2831 = vld [vmem:[#allocation2 + $0x198] sm:$0xff]
  %v2832 = vld [vmem:[#allocation2 + $0x1a0] sm:$0xff]
  %v2833 = vld [vmem:[#allocation2 + $0x1a8] sm:$0xff]
  %v2834 = vld [vmem:[#allocation2 + $0x1b0] sm:$0xff]
  %v2835 = vld [vmem:[#allocation2 + $0x1b8] sm:$0xff]
  %v2836 = vld [vmem:[#allocation2 + $0x1c0] sm:$0xff]
  %v2837 = vld [vmem:[#allocation2 + $0x1c8] sm:$0xff]
  %v2838 = vld [vmem:[#allocation2 + $0x1d0] sm:$0xff]
  %v2839 = vld [vmem:[#allocation2 + $0x1d8] sm:$0xff]
  %v2840 = vld [vmem:[#allocation2 + $0x1e0] sm:$0xff]
  %v2841 = vld [vmem:[#allocation2 + $0x1e8] sm:$0xff]
  %v2842 = vld [vmem:[#allocation2 + $0x1f0] sm:$0xff]
  %v2843 = vld [vmem:[#allocation2 + $0x1f8] sm:$0xff]
  %v2844 = vld [vmem:[#allocation2 + $0x200] sm:$0xff]
  %v2845 = vld [vmem:[#allocation2 + $0x208] sm:$0xff]
  %v2846 = vld [vmem:[#allocation2 + $0x210] sm:$0xff]
  %v2847 = vld [vmem:[#allocation2 + $0x218] sm:$0xff]
  %v2848 = vld [vmem:[#allocation2 + $0x220] sm:$0xff]
  %v2849 = vld [vmem:[#allocation2 + $0x228] sm:$0xff]
  %v2850 = vld [vmem:[#allocation2 + $0x230] sm:$0xff]
  %v2851 = vld [vmem:[#allocation2 + $0x238] sm:$0xff]
  %v2860 = vunpack.c.l.b16 %v2772
  %v2861 = vunpack.c.h.b16 %v2772
  %v2862 = vunpack.c.l.b16 %v2773
  %v2863 = vunpack.c.l.b16 %v2774
  %v2864 = vunpack.c.h.b16 %v2774
  %v2865 = vunpack.c.l.b16 %v2775
  %v2866 = vunpack.c.l.b16 %v2776
  %v2867 = vunpack.c.h.b16 %v2776
  %v2868 = vunpack.c.l.b16 %v2777
  %v2869 = vunpack.c.l.b16 %v2778
  %v2870 = vunpack.c.h.b16 %v2778
  %v2871 = vunpack.c.l.b16 %v2779
  %v2872 = vpack.c.b16 %v2863, %v2860
  %v2873 = vpack.c.b16 %v2864, %v2861
  %v2874 = vpack.c.b16 %v2865, %v2862
  %v2875 = vpack.c.b16 %v2869, %v2866
  %v2876 = vpack.c.b16 %v2870, %v2867
  %v2877 = vpack.c.b16 %v2871, %v2868
  %v2883 = vsel %vm591, %v2874, 0
  %v2886 = vsel %vm591, %v2877, 0
  %2888 = vmatprep.subr.bf16.mxu0 %v2781
  %2889 = vmatpush1.bf16.msra.mxu0 %v2780
  %2890 = vmatprep.subr.bf16.mxu0 %v2785
  %2891 = vmatpush1.bf16.msra.mxu0 %v2784
  %2892 = vmatprep.subr.bf16.mxu0 %v2789
  %2893 = vmatpush1.bf16.msra.mxu0 %v2788
  %2894 = vmatprep.subr.bf16.mxu0 %v2793
  %2895 = vmatpush1.bf16.msra.mxu0 %v2792
  %2896 = vmatprep.subr.bf16.mxu0 %v2797
  %2897 = vmatpush1.bf16.msra.mxu0 %v2796
  %2898 = vmatprep.subr.bf16.mxu0 %v2801
  %2899 = vmatpush1.bf16.msra.mxu0 %v2800
  %2900 = vmatprep.subr.bf16.mxu0 %v2805
  %2901 = vmatpush1.bf16.msra.mxu0 %v2804
  %2902 = vmatprep.subr.bf16.mxu0 %v2809
  %2903 = vmatpush1.bf16.msra.mxu0 %v2808
  %2904 = vmatprep.subr.bf16.mxu0 %v2813
  %2905 = vmatpush1.bf16.msra.mxu0 %v2812
  %2906 = vmatprep.subr.bf16.mxu0 %v2817
  %2907 = vmatpush1.bf16.msra.mxu0 %v2816
  %2908 = vmatprep.subr.bf16.mxu0 %v2821
  %2909 = vmatpush1.bf16.msra.mxu0 %v2820
  %2910 = vmatprep.subr.bf16.mxu0 %v2825
  %2911 = vmatpush1.bf16.msra.mxu0 %v2824
  %2912 = vmatprep.subr.bf16.mxu0 %v2829
  %2913 = vmatpush1.bf16.msra.mxu0 %v2828
  %2914 = vmatprep.subr.bf16.mxu0 %v2833
  %2915 = vmatpush1.bf16.msra.mxu0 %v2832
  %2916 = vmatprep.subr.bf16.mxu0 %v2837
  %2917 = vmatpush1.bf16.msra.mxu0 %v2836
  %2918 = vmatprep.subr.bf16.mxu0 %v2841
  %2919 = vmatpush1.bf16.msra.mxu0 %v2840
  %2920 = vmatprep.mubr.bf16.mxu0 %v2873
  %2921 = vmatmul.mubr.bf16.gmra.mrb[0].mxu0 %v2872
  %v2922 = vpop.f32.mrb[0].mxu0
  %v2923 = vadd.f32 0.0, %v2922
  %v2924 = vpop.f32.mrb[0].mxu0
  %v2925 = vadd.f32 0.0, %v2924
  %v2926 = vpop.f32.mrb[0].mxu0
  %v2927 = vadd.f32 0.0, %v2926
  %v2928 = vpop.f32.mrb[0].mxu0
  %v2929 = vadd.f32 0.0, %v2928
  %2930 = vmatprep.mubr.bf16.mxu0 %v2876
  %2931 = vmatmul.mubr.bf16.gmra.mrb[0].mxu0 %v2875
  %v2932 = vpop.f32.mrb[0].mxu0
  %v2933 = vadd.f32 0.0, %v2932
  %v2934 = vpop.f32.mrb[0].mxu0
  %v2935 = vadd.f32 0.0, %v2934
  %v2936 = vpop.f32.mrb[0].mxu0
  %v2937 = vadd.f32 0.0, %v2936
  %v2938 = vpop.f32.mrb[0].mxu0
  %v2939 = vadd.f32 0.0, %v2938
  %2940 = vdwg.mxu0
  %2941 = vmatprep.subr.bf16.mxu0 %v2845
  %2942 = vmatpush1.bf16.msra.mxu0 %v2844
  %2943 = vmatprep.subr.bf16.mxu0 %v2849
  %2944 = vmatpush1.bf16.msra.mxu0 %v2848
  %2945 = vmatprep.subr.bf16.mxu0 0
  %2946 = vmatpush1.bf16.msra.mxu0 0
  %2947 = vmatprep.subr.bf16.mxu0 0
  %2948 = vmatpush1.bf16.msra.mxu0 0
  %2949 = vmatprep.subr.bf16.mxu0 0
  %2950 = vmatpush1.bf16.msra.mxu0 0
  %2951 = vmatprep.subr.bf16.mxu0 0
  %2952 = vmatpush1.bf16.msra.mxu0 0
  %2953 = vmatprep.subr.bf16.mxu0 0
  %2954 = vmatpush1.bf16.msra.mxu0 0
  %2955 = vmatprep.subr.bf16.mxu0 0
  %2956 = vmatpush1.bf16.msra.mxu0 0
  %2957 = vmatprep.subr.bf16.mxu0 0
  %2958 = vmatpush1.bf16.msra.mxu0 0
  %2959 = vmatprep.subr.bf16.mxu0 0
  %2960 = vmatpush1.bf16.msra.mxu0 0
  %2961 = vmatprep.subr.bf16.mxu0 0
  %2962 = vmatpush1.bf16.msra.mxu0 0
  %2963 = vmatprep.subr.bf16.mxu0 0
  %2964 = vmatpush1.bf16.msra.mxu0 0
  %2965 = vmatprep.subr.bf16.mxu0 0
  %2966 = vmatpush1.bf16.msra.mxu0 0
  %2967 = vmatprep.subr.bf16.mxu0 0
  %2968 = vmatpush1.bf16.msra.mxu0 0
  %2969 = vmatprep.subr.bf16.mxu0 0
  %2970 = vmatpush1.bf16.msra.mxu0 0
  %2971 = vmatprep.subr.bf16.mxu0 0
  %2972 = vmatpush1.bf16.msra.mxu0 0
  %2973 = vmatprep.mubr.bf16.mxu0 0
  %2974 = vmatmul.mubr.bf16.gmra.mrb[0].mxu0 %v2883
  %v2975 = vpop.f32.mrb[0].mxu0
  %v2976 = vadd.f32 %v2923, %v2975
  %v2977 = vpop.f32.mrb[0].mxu0
  %v2978 = vadd.f32 %v2925, %v2977
  %v2979 = vpop.f32.mrb[0].mxu0
  %v2980 = vadd.f32 %v2927, %v2979
  %v2981 = vpop.f32.mrb[0].mxu0
  %v2982 = vadd.f32 %v2929, %v2981
  %2983 = vmatprep.mubr.bf16.mxu0 0
  %2984 = vmatmul.mubr.bf16.gmra.mrb[0].mxu0 %v2886
  %v2985 = vpop.f32.mrb[0].mxu0
  %v2986 = vadd.f32 %v2933, %v2985
  %v2987 = vpop.f32.mrb[0].mxu0
  %v2988 = vadd.f32 %v2935, %v2987
  %v2989 = vpop.f32.mrb[0].mxu0
  %v2990 = vadd.f32 %v2937, %v2989
  %v2991 = vpop.f32.mrb[0].mxu0
  %v2992 = vadd.f32 %v2939, %v2991
  %2993 = vdwg.mxu0
  %2994 = vmatprep.subr.bf16.mxu0 %v2783
  %2995 = vmatpush1.bf16.msra.mxu0 %v2782
  %2996 = vmatprep.subr.bf16.mxu0 %v2787
  %2997 = vmatpush1.bf16.msra.mxu0 %v2786
  %2998 = vmatprep.subr.bf16.mxu0 %v2791
  %2999 = vmatpush1.bf16.msra.mxu0 %v2790
  %3000 = vmatprep.subr.bf16.mxu0 %v2795
  %3001 = vmatpush1.bf16.msra.mxu0 %v2794
  %3002 = vmatprep.subr.bf16.mxu0 %v2799
  %3003 = vmatpush1.bf16.msra.mxu0 %v2798
  %3004 = vmatprep.subr.bf16.mxu0 %v2803
  %3005 = vmatpush1.bf16.msra.mxu0 %v2802
  %3006 = vmatprep.subr.bf16.mxu0 %v2807
  %3007 = vmatpush1.bf16.msra.mxu0 %v2806
  %3008 = vmatprep.subr.bf16.mxu0 %v2811
  %3009 = vmatpush1.bf16.msra.mxu0 %v2810
  %3010 = vmatprep.subr.bf16.mxu0 %v2815
  %3011 = vmatpush1.bf16.msra.mxu0 %v2814
  %3012 = vmatprep.subr.bf16.mxu0 %v2819
  %3013 = vmatpush1.bf16.msra.mxu0 %v2818
  %3014 = vmatprep.subr.bf16.mxu0 %v2823
  %3015 = vmatpush1.bf16.msra.mxu0 %v2822
  %3016 = vmatprep.subr.bf16.mxu0 %v2827
  %3017 = vmatpush1.bf16.msra.mxu0 %v2826
  %3018 = vmatprep.subr.bf16.mxu0 %v2831
  %3019 = vmatpush1.bf16.msra.mxu0 %v2830
  %3020 = vmatprep.subr.bf16.mxu0 %v2835
  %3021 = vmatpush1.bf16.msra.mxu0 %v2834
  %3022 = vmatprep.subr.bf16.mxu0 %v2839
  %3023 = vmatpush1.bf16.msra.mxu0 %v2838
  %3024 = vmatprep.subr.bf16.mxu0 %v2843
  %3025 = vmatpush1.bf16.msra.mxu0 %v2842
  %3026 = vmatprep.mubr.bf16.mxu0 %v2873
  %3027 = vmatmul.mubr.bf16.gmra.mrb[0].mxu0 %v2872
  %v3028 = vpop.f32.mrb[0].mxu0
  %v3029 = vadd.f32 0.0, %v3028
  %v3030 = vpop.f32.mrb[0].mxu0
  %v3031 = vadd.f32 0.0, %v3030
  %v3032 = vpop.f32.mrb[0].mxu0
  %v3033 = vadd.f32 0.0, %v3032
  %v3034 = vpop.f32.mrb[0].mxu0
  %v3035 = vadd.f32 0.0, %v3034
  %3036 = vmatprep.mubr.bf16.mxu0 %v2876
  %3037 = vmatmul.mubr.bf16.gmra.mrb[0].mxu0 %v2875
  %v3038 = vpop.f32.mrb[0].mxu0
  %v3039 = vadd.f32 0.0, %v3038
  %v3040 = vpop.f32.mrb[0].mxu0
  %v3041 = vadd.f32 0.0, %v3040
  %v3042 = vpop.f32.mrb[0].mxu0
  %v3043 = vadd.f32 0.0, %v3042
  %v3044 = vpop.f32.mrb[0].mxu0
  %v3045 = vadd.f32 0.0, %v3044
  %3046 = vdwg.mxu0
  %3047 = vmatprep.subr.bf16.mxu0 %v2847
  %3048 = vmatpush1.bf16.msra.mxu0 %v2846
  %3049 = vmatprep.subr.bf16.mxu0 %v2851
  %3050 = vmatpush1.bf16.msra.mxu0 %v2850
  %3051 = vmatprep.subr.bf16.mxu0 0
  %3052 = vmatpush1.bf16.msra.mxu0 0
  %3053 = vmatprep.subr.bf16.mxu0 0
  %3054 = vmatpush1.bf16.msra.mxu0 0
  %3055 = vmatprep.subr.bf16.mxu0 0
  %3056 = vmatpush1.bf16.msra.mxu0 0
  %3057 = vmatprep.subr.bf16.mxu0 0
  %3058 = vmatpush1.bf16.msra.mxu0 0
  %3059 = vmatprep.subr.bf16.mxu0 0
  %3060 = vmatpush1.bf16.msra.mxu0 0
  %3061 = vmatprep.subr.bf16.mxu0 0
  %3062 = vmatpush1.bf16.msra.mxu0 0
  %3063 = vmatprep.subr.bf16.mxu0 0
  %3064 = vmatpush1.bf16.msra.mxu0 0
  %3065 = vmatprep.subr.bf16.mxu0 0
  %3066 = vmatpush1.bf16.msra.mxu0 0
  %3067 = vmatprep.subr.bf16.mxu0 0
  %3068 = vmatpush1.bf16.msra.mxu0 0
  %3069 = vmatprep.subr.bf16.mxu0 0
  %3070 = vmatpush1.bf16.msra.mxu0 0
  %3071 = vmatprep.subr.bf16.mxu0 0
  %3072 = vmatpush1.bf16.msra.mxu0 0
  %3073 = vmatprep.subr.bf16.mxu0 0
  %3074 = vmatpush1.bf16.msra.mxu0 0
  %3075 = vmatprep.subr.bf16.mxu0 0
  %3076 = vmatpush1.bf16.msra.mxu0 0
  %3077 = vmatprep.subr.bf16.mxu0 0
  %3078 = vmatpush1.bf16.msra.mxu0 0
  %3079 = vmatprep.mubr.bf16.mxu0 0
  %3080 = vmatmul.mubr.bf16.gmra.mrb[0].mxu0 %v2883
  %v3081 = vpop.f32.mrb[0].mxu0
  %v3082 = vadd.f32 %v3029, %v3081
  %v3083 = vpop.f32.mrb[0].mxu0
  %v3084 = vadd.f32 %v3031, %v3083
  %v3085 = vpop.f32.mrb[0].mxu0
  %v3086 = vadd.f32 %v3033, %v3085
  %v3087 = vpop.f32.mrb[0].mxu0
  %v3088 = vadd.f32 %v3035, %v3087
  %3089 = vmatprep.mubr.bf16.mxu0 0
  %3090 = vmatmul.mubr.bf16.gmra.mrb[0].mxu0 %v2886
  %v3091 = vpop.f32.mrb[0].mxu0
  %v3092 = vadd.f32 %v3039, %v3091
  %v3093 = vpop.f32.mrb[0].mxu0
  %v3094 = vadd.f32 %v3041, %v3093
  %v3095 = vpop.f32.mrb[0].mxu0
  %v3096 = vadd.f32 %v3043, %v3095
  %v3097 = vpop.f32.mrb[0].mxu0
  %v3098 = vadd.f32 %v3045, %v3097
  %3099 = vdwg.mxu0
  %v3100 = vadd.f32 %v2976, %v2978
  %3101 = vadd.xlane.f32.xlu0 %v3100
  %v3102 = vpop.xlane.xlu0 %3101
  %v3103 = vadd.f32 %v2980, %v2982
  %3104 = vadd.xlane.f32.xlu0 %v3103
  %v3105 = vpop.xlane.xlu0 %3104
  %v3106 = vadd.f32 %v2986, %v2988
  %3107 = vadd.xlane.f32.xlu0 %v3106
  %v3108 = vpop.xlane.xlu0 %3107
  %v3109 = vadd.f32 %v2990, %v2992
  %3110 = vadd.xlane.f32.xlu0 %v3109
  %v3111 = vpop.xlane.xlu0 %3110
  %v3112 = vmul.f32 %v3102, 0.00390625
  %v3113 = vmul.f32 %v3105, 0.00390625
  %v3114 = vmul.f32 %v3108, 0.00390625
  %v3115 = vmul.f32 %v3111, 0.00390625
  %v3116 = vmul.f32 %v2976, %v2976
  %v3117 = vmul.f32 %v2978, %v2978
  %v3118 = vmul.f32 %v2980, %v2980
  %v3119 = vmul.f32 %v2982, %v2982
  %v3120 = vmul.f32 %v2986, %v2986
  %v3121 = vmul.f32 %v2988, %v2988
  %v3122 = vmul.f32 %v2990, %v2990
  %v3123 = vmul.f32 %v2992, %v2992
  %v3124 = vadd.f32 %v3116, %v3117
  %3125 = vadd.xlane.f32.xlu0 %v3124
  %v3126 = vpop.xlane.xlu0 %3125
  %v3127 = vadd.f32 %v3118, %v3119
  %3128 = vadd.xlane.f32.xlu0 %v3127
  %v3129 = vpop.xlane.xlu0 %3128
  %v3130 = vadd.f32 %v3120, %v3121
  %3131 = vadd.xlane.f32.xlu0 %v3130
  %v3132 = vpop.xlane.xlu0 %3131
  %v3133 = vadd.f32 %v3122, %v3123
  %3134 = vadd.xlane.f32.xlu0 %v3133
  %v3135 = vpop.xlane.xlu0 %3134
  %v3136 = vmul.f32 %v3126, 0.00390625
  %v3137 = vmul.f32 %v3129, 0.00390625
  %v3138 = vmul.f32 %v3132, 0.00390625
  %v3139 = vmul.f32 %v3135, 0.00390625
  %v3140 = vmul.f32 %v3112, %v3112
  %v3141 = vmul.f32 %v3113, %v3113
  %v3142 = vmul.f32 %v3114, %v3114
  %v3143 = vmul.f32 %v3115, %v3115
  %v3144 = vsub.f32 %v3136, %v3140
  %v3145 = vsub.f32 %v3137, %v3141
  %v3146 = vsub.f32 %v3138, %v3142
  %v3147 = vsub.f32 %v3139, %v3143
  %v3148 = vsub.f32 %v2976, %v3112
  %v3149 = vsub.f32 %v2978, %v3112
  %v3150 = vsub.f32 %v2980, %v3113
  %v3151 = vsub.f32 %v2982, %v3113
  %v3152 = vsub.f32 %v2986, %v3114
  %v3153 = vsub.f32 %v2988, %v3114
  %v3154 = vsub.f32 %v2990, %v3115
  %v3155 = vsub.f32 %v2992, %v3115
  %v3156 = vadd.f32 %v3144, 1e-05
  %v3157 = vadd.f32 %v3145, 1e-05
  %v3158 = vadd.f32 %v3146, 1e-05
  %v3159 = vadd.f32 %v3147, 1e-05
  %v3160 = vrsqrt.pop %v3156
  %v3161 = vrsqrt.pop %v3157
  %v3162 = vrsqrt.pop %v3158
  %v3163 = vrsqrt.pop %v3159
  %v3164 = vmul.f32 %v3148, %v3160
  %v3165 = vmul.f32 %v3149, %v3160
  %v3166 = vmul.f32 %v3150, %v3161
  %v3167 = vmul.f32 %v3151, %v3161
  %v3168 = vmul.f32 %v3152, %v3162
  %v3169 = vmul.f32 %v3153, %v3162
  %v3170 = vmul.f32 %v3154, %v3163
  %v3171 = vmul.f32 %v3155, %v3163
  %v3172 = vmax.f32 %v3164, 0.0
  %v3173 = vmax.f32 %v3165, 0.0
  %v3174 = vmax.f32 %v3166, 0.0
  %v3175 = vmax.f32 %v3167, 0.0
  %v3176 = vmax.f32 %v3168, 0.0
  %v3177 = vmax.f32 %v3169, 0.0
  %v3178 = vmax.f32 %v3170, 0.0
  %v3179 = vmax.f32 %v3171, 0.0
  %v3180 = vadd.f32 %v3082, %v3084
  %3181 = vadd.xlane.f32.xlu0 %v3180
  %v3182 = vpop.xlane.xlu0 %3181
  %v3183 = vadd.f32 %v3086, %v3088
  %3184 = vadd.xlane.f32.xlu0 %v3183
  %v3185 = vpop.xlane.xlu0 %3184
  %v3186 = vadd.f32 %v3092, %v3094
  %3187 = vadd.xlane.f32.xlu0 %v3186
  %v3188 = vpop.xlane.xlu0 %3187
  %v3189 = vadd.f32 %v3096, %v3098
  %3190 = vadd.xlane.f32.xlu0 %v3189
  %v3191 = vpop.xlane.xlu0 %3190
  %v3192 = vmul.f32 %v3182, 0.00390625
  %v3193 = vmul.f32 %v3185, 0.00390625
  %v3194 = vmul.f32 %v3188, 0.00390625
  %v3195 = vmul.f32 %v3191, 0.00390625
  %v3196 = vmul.f32 %v3082, %v3082
  %v3197 = vmul.f32 %v3084, %v3084
  %v3198 = vmul.f32 %v3086, %v3086
  %v3199 = vmul.f32 %v3088, %v3088
  %v3200 = vmul.f32 %v3092, %v3092
  %v3201 = vmul.f32 %v3094, %v3094
  %v3202 = vmul.f32 %v3096, %v3096
  %v3203 = vmul.f32 %v3098, %v3098
  %v3204 = vadd.f32 %v3196, %v3197
  %3205 = vadd.xlane.f32.xlu0 %v3204
  %v3206 = vpop.xlane.xlu0 %3205
  %v3207 = vadd.f32 %v3198, %v3199
  %3208 = vadd.xlane.f32.xlu0 %v3207
  %v3209 = vpop.xlane.xlu0 %3208
  %v3210 = vadd.f32 %v3200, %v3201
  %3211 = vadd.xlane.f32.xlu0 %v3210
  %v3212 = vpop.xlane.xlu0 %3211
  %v3213 = vadd.f32 %v3202, %v3203
  %3214 = vadd.xlane.f32.xlu0 %v3213
  %v3215 = vpop.xlane.xlu0 %3214
  %v3216 = vmul.f32 %v3206, 0.00390625
  %v3217 = vmul.f32 %v3209, 0.00390625
  %v3218 = vmul.f32 %v3212, 0.00390625
  %v3219 = vmul.f32 %v3215, 0.00390625
  %v3220 = vmul.f32 %v3192, %v3192
  %v3221 = vmul.f32 %v3193, %v3193
  %v3222 = vmul.f32 %v3194, %v3194
  %v3223 = vmul.f32 %v3195, %v3195
  %v3224 = vsub.f32 %v3216, %v3220
  %v3225 = vsub.f32 %v3217, %v3221
  %v3226 = vsub.f32 %v3218, %v3222
  %v3227 = vsub.f32 %v3219, %v3223
  %v3228 = vsub.f32 %v3082, %v3192
  %v3229 = vsub.f32 %v3084, %v3192
  %v3230 = vsub.f32 %v3086, %v3193
  %v3231 = vsub.f32 %v3088, %v3193
  %v3232 = vsub.f32 %v3092, %v3194
  %v3233 = vsub.f32 %v3094, %v3194
  %v3234 = vsub.f32 %v3096, %v3195
  %v3235 = vsub.f32 %v3098, %v3195
  %v3236 = vadd.f32 %v3224, 1e-05
  %v3237 = vadd.f32 %v3225, 1e-05
  %v3238 = vadd.f32 %v3226, 1e-05
  %v3239 = vadd.f32 %v3227, 1e-05
  %v3240 = vrsqrt.pop %v3236
  %v3241 = vrsqrt.pop %v3237
  %v3242 = vrsqrt.pop %v3238
  %v3243 = vrsqrt.pop %v3239
  %v3244 = vmul.f32 %v3228, %v3240
  %v3245 = vmul.f32 %v3229, %v3240
  %v3246 = vmul.f32 %v3230, %v3241
  %v3247 = vmul.f32 %v3231, %v3241
  %v3248 = vmul.f32 %v3232, %v3242
  %v3249 = vmul.f32 %v3233, %v3242
  %v3250 = vmul.f32 %v3234, %v3243
  %v3251 = vmul.f32 %v3235, %v3243
  %v3252 = vmax.f32 %v3244, 0.0
  %v3253 = vmax.f32 %v3245, 0.0
  %v3254 = vmax.f32 %v3246, 0.0
  %v3255 = vmax.f32 %v3247, 0.0
  %v3256 = vmax.f32 %v3248, 0.0
  %v3257 = vmax.f32 %v3249, 0.0
  %v3258 = vmax.f32 %v3250, 0.0
  %v3259 = vmax.f32 %v3251, 0.0
  %3260 = vrot.lane.b32.xlu0 %v3172, 17
  %v3261 = vpop.permute.xlu0 %3260
  %3262 = vrot.lane.b32.xlu0 %v3174, 17
  %v3263 = vpop.permute.xlu0 %3262
  %3264 = vrot.lane.b32.xlu0 %v3176, 17
  %v3265 = vpop.permute.xlu0 %3264
  %3266 = vrot.lane.b32.xlu0 %v3178, 17
  %v3267 = vpop.permute.xlu0 %3266
  %3268 = vrot.lane.b32.xlu0 %v3173, 17
  %v3269 = vpop.permute.xlu0 %3268
  %3270 = vrot.lane.b32.xlu0 %v3175, 17
  %v3271 = vpop.permute.xlu0 %3270
  %3272 = vrot.lane.b32.xlu0 %v3177, 17
  %v3273 = vpop.permute.xlu0 %3272
  %3274 = vrot.lane.b32.xlu0 %v3179, 17
  %v3275 = vpop.permute.xlu0 %3274
  %3276 = vrot.lane.b32.xlu0 %v3252, 17
  %v3277 = vpop.permute.xlu0 %3276
  %3278 = vrot.lane.b32.xlu0 %v3254, 17
  %v3279 = vpop.permute.xlu0 %3278
  %3280 = vrot.lane.b32.xlu0 %v3256, 17
  %v3281 = vpop.permute.xlu0 %3280
  %3282 = vrot.lane.b32.xlu0 %v3258, 17
  %v3283 = vpop.permute.xlu0 %3282
  %3284 = vrot.lane.b32.xlu0 %v3253, 17
  %v3285 = vpop.permute.xlu0 %3284
  %3286 = vrot.lane.b32.xlu0 %v3255, 17
  %v3287 = vpop.permute.xlu0 %3286
  %3288 = vrot.lane.b32.xlu0 %v3257, 17
  %v3289 = vpop.permute.xlu0 %3288
  %3290 = vrot.lane.b32.xlu0 %v3259, 17
  %v3291 = vpop.permute.xlu0 %3290
  %v3292 = vsel %vm86, %v3277, %v3285
  %v3293 = vsel %vm86, %v3279, %v3287
  %v3294 = vsel %vm86, %v3281, %v3289
  %v3295 = vsel %vm86, %v3283, %v3291
  %v3296 = vsel %vm86, %v3269, %v3277
  %v3297 = vsel %vm86, %v3271, %v3279
  %v3298 = vsel %vm86, %v3273, %v3281
  %v3299 = vsel %vm86, %v3275, %v3283
  %v3300 = vsel %vm86, %v3261, %v3269
  %v3301 = vsel %vm86, %v3263, %v3271
  %v3302 = vsel %vm86, %v3265, %v3273
  %v3303 = vsel %vm86, %v3267, %v3275
  %v3304 = vsel %vm86, %v3285, %v3261
  %v3305 = vsel %vm86, %v3287, %v3263
  %v3306 = vsel %vm86, %v3289, %v3265
  %v3307 = vsel %vm86, %v3291, %v3267
  %v3308 = vsel %vm99, %v3304, 0.0
  %v3309 = vsel %vm100, %v3300, 0.0
  %v3310 = vsel %vm101, %v3296, 0.0
  %v3311 = vsel %vm102, %v3292, 0.0
  %v3312 = vsel %vm99, %v3305, 0.0
  %v3313 = vsel %vm100, %v3301, 0.0
  %v3314 = vsel %vm101, %v3297, 0.0
  %v3315 = vsel %vm102, %v3293, 0.0
  %v3316 = vsel %vm99, %v3306, 0.0
  %v3317 = vsel %vm100, %v3302, 0.0
  %v3318 = vsel %vm101, %v3298, 0.0
  %v3319 = vsel %vm102, %v3294, 0.0
  %v3320 = vsel %vm99, %v3307, 0.0
  %v3321 = vsel %vm100, %v3303, 0.0
  %v3322 = vsel %vm101, %v3299, 0.0
  %v3323 = vsel %vm102, %v3295, 0.0
  %v3324 = vpack.c.bf16 %v3312, %v3308
  %v3325 = vpack.c.bf16 %v3313, %v3309
  %v3326 = vpack.c.bf16 %v3314, %v3310
  %v3327 = vpack.c.bf16 %v3315, %v3311
  %v3328 = vpack.c.bf16 %v3320, %v3316
  %v3329 = vpack.c.bf16 %v3321, %v3317
  %v3330 = vpack.c.bf16 %v3322, %v3318
  %v3331 = vpack.c.bf16 %v3323, %v3319
  %3332 = vst [vmem:[#allocation2] sm:$0xff] %v3324
  %3333 = vst [vmem:[#allocation2 + $0x8] sm:$0xff] %v3325
  %3334 = vst [vmem:[#allocation2 + $0x10] sm:$0xff] %v3326
  %3335 = vst [vmem:[#allocation2 + $0x18] sm:$0xff] %v3327
  %3336 = vst [vmem:[#allocation2 + $0x20] sm:$0xff] %v3328
  %3337 = vst [vmem:[#allocation2 + $0x28] sm:$0xff] %v3329
  %3338 = vst [vmem:[#allocation2 + $0x30] sm:$0xff] %v3330
  %3339 = vst [vmem:[#allocation2 + $0x38] sm:$0xff] %v3331
  %3340 = vrot.lane.b32.xlu0 %v3172, 16
  %v3341 = vpop.permute.xlu0 %3340
  %3342 = vrot.lane.b32.xlu0 %v3174, 16
  %v3343 = vpop.permute.xlu0 %3342
  %3344 = vrot.lane.b32.xlu0 %v3176, 16
  %v3345 = vpop.permute.xlu0 %3344
  %3346 = vrot.lane.b32.xlu0 %v3178, 16
  %v3347 = vpop.permute.xlu0 %3346
  %3348 = vrot.lane.b32.xlu0 %v3173, 16
  %v3349 = vpop.permute.xlu0 %3348
  %3350 = vrot.lane.b32.xlu0 %v3175, 16
  %v3351 = vpop.permute.xlu0 %3350
  %3352 = vrot.lane.b32.xlu0 %v3177, 16
  %v3353 = vpop.permute.xlu0 %3352
  %3354 = vrot.lane.b32.xlu0 %v3179, 16
  %v3355 = vpop.permute.xlu0 %3354
  %3356 = vrot.lane.b32.xlu0 %v3252, 16
  %v3357 = vpop.permute.xlu0 %3356
  %3358 = vrot.lane.b32.xlu0 %v3254, 16
  %v3359 = vpop.permute.xlu0 %3358
  %3360 = vrot.lane.b32.xlu0 %v3256, 16
  %v3361 = vpop.permute.xlu0 %3360
  %3362 = vrot.lane.b32.xlu0 %v3258, 16
  %v3363 = vpop.permute.xlu0 %3362
  %3364 = vrot.lane.b32.xlu0 %v3253, 16
  %v3365 = vpop.permute.xlu0 %3364
  %3366 = vrot.lane.b32.xlu0 %v3255, 16
  %v3367 = vpop.permute.xlu0 %3366
  %3368 = vrot.lane.b32.xlu0 %v3257, 16
  %v3369 = vpop.permute.xlu0 %3368
  %3370 = vrot.lane.b32.xlu0 %v3259, 16
  %v3371 = vpop.permute.xlu0 %3370
  %v3372 = vsel %vm137, %v3357, %v3365
  %v3373 = vsel %vm137, %v3359, %v3367
  %v3374 = vsel %vm137, %v3361, %v3369
  %v3375 = vsel %vm137, %v3363, %v3371
  %v3376 = vsel %vm137, %v3349, %v3357
  %v3377 = vsel %vm137, %v3351, %v3359
  %v3378 = vsel %vm137, %v3353, %v3361
  %v3379 = vsel %vm137, %v3355, %v3363
  %v3380 = vsel %vm137, %v3341, %v3349
  %v3381 = vsel %vm137, %v3343, %v3351
  %v3382 = vsel %vm137, %v3345, %v3353
  %v3383 = vsel %vm137, %v3347, %v3355
  %v3384 = vsel %vm137, %v3365, %v3341
  %v3385 = vsel %vm137, %v3367, %v3343
  %v3386 = vsel %vm137, %v3369, %v3345
  %v3387 = vsel %vm137, %v3371, %v3347
  %v3388 = vsel %vm146, %v3384, 0.0
  %v3389 = vsel %vm147, %v3380, 0.0
  %v3390 = vsel %vm148, %v3376, 0.0
  %v3391 = vsel %vm149, %v3372, 0.0
  %v3392 = vsel %vm146, %v3385, 0.0
  %v3393 = vsel %vm147, %v3381, 0.0
  %v3394 = vsel %vm148, %v3377, 0.0
  %v3395 = vsel %vm149, %v3373, 0.0
  %v3396 = vsel %vm146, %v3386, 0.0
  %v3397 = vsel %vm147, %v3382, 0.0
  %v3398 = vsel %vm148, %v3378, 0.0
  %v3399 = vsel %vm149, %v3374, 0.0
  %v3400 = vsel %vm146, %v3387, 0.0
  %v3401 = vsel %vm147, %v3383, 0.0
  %v3402 = vsel %vm148, %v3379, 0.0
  %v3403 = vsel %vm149, %v3375, 0.0
  %v3404 = vpack.c.bf16 %v3392, %v3388
  %v3405 = vpack.c.bf16 %v3393, %v3389
  %v3406 = vpack.c.bf16 %v3394, %v3390
  %v3407 = vpack.c.bf16 %v3395, %v3391
  %v3408 = vpack.c.bf16 %v3400, %v3396
  %v3409 = vpack.c.bf16 %v3401, %v3397
  %v3410 = vpack.c.bf16 %v3402, %v3398
  %v3411 = vpack.c.bf16 %v3403, %v3399
  %3412 = vst [vmem:[#allocation2 + $0x40] sm:$0xff] %v3404
  %3413 = vst [vmem:[#allocation2 + $0x48] sm:$0xff] %v3405
  %3414 = vst [vmem:[#allocation2 + $0x50] sm:$0xff] %v3406
  %3415 = vst [vmem:[#allocation2 + $0x58] sm:$0xff] %v3407
  %3416 = vst [vmem:[#allocation2 + $0x60] sm:$0xff] %v3408
  %3417 = vst [vmem:[#allocation2 + $0x68] sm:$0xff] %v3409
  %3418 = vst [vmem:[#allocation2 + $0x70] sm:$0xff] %v3410
  %3419 = vst [vmem:[#allocation2 + $0x78] sm:$0xff] %v3411
  %3420 = vrot.lane.b32.xlu0 %v3172, 15
  %v3421 = vpop.permute.xlu0 %3420
  %3422 = vrot.lane.b32.xlu0 %v3174, 15
  %v3423 = vpop.permute.xlu0 %3422
  %3424 = vrot.lane.b32.xlu0 %v3176, 15
  %v3425 = vpop.permute.xlu0 %3424
  %3426 = vrot.lane.b32.xlu0 %v3178, 15
  %v3427 = vpop.permute.xlu0 %3426
  %3428 = vrot.lane.b32.xlu0 %v3173, 15
  %v3429 = vpop.permute.xlu0 %3428
  %3430 = vrot.lane.b32.xlu0 %v3175, 15
  %v3431 = vpop.permute.xlu0 %3430
  %3432 = vrot.lane.b32.xlu0 %v3177, 15
  %v3433 = vpop.permute.xlu0 %3432
  %3434 = vrot.lane.b32.xlu0 %v3179, 15
  %v3435 = vpop.permute.xlu0 %3434
  %3436 = vrot.lane.b32.xlu0 %v3252, 15
  %v3437 = vpop.permute.xlu0 %3436
  %3438 = vrot.lane.b32.xlu0 %v3254, 15
  %v3439 = vpop.permute.xlu0 %3438
  %3440 = vrot.lane.b32.xlu0 %v3256, 15
  %v3441 = vpop.permute.xlu0 %3440
  %3442 = vrot.lane.b32.xlu0 %v3258, 15
  %v3443 = vpop.permute.xlu0 %3442
  %3444 = vrot.lane.b32.xlu0 %v3253, 15
  %v3445 = vpop.permute.xlu0 %3444
  %3446 = vrot.lane.b32.xlu0 %v3255, 15
  %v3447 = vpop.permute.xlu0 %3446
  %3448 = vrot.lane.b32.xlu0 %v3257, 15
  %v3449 = vpop.permute.xlu0 %3448
  %3450 = vrot.lane.b32.xlu0 %v3259, 15
  %v3451 = vpop.permute.xlu0 %3450
  %v3452 = vsel %vm184, %v3437, %v3445
  %v3453 = vsel %vm184, %v3439, %v3447
  %v3454 = vsel %vm184, %v3441, %v3449
  %v3455 = vsel %vm184, %v3443, %v3451
  %v3456 = vsel %vm184, %v3429, %v3437
  %v3457 = vsel %vm184, %v3431, %v3439
  %v3458 = vsel %vm184, %v3433, %v3441
  %v3459 = vsel %vm184, %v3435, %v3443
  %v3460 = vsel %vm184, %v3421, %v3429
  %v3461 = vsel %vm184, %v3423, %v3431
  %v3462 = vsel %vm184, %v3425, %v3433
  %v3463 = vsel %vm184, %v3427, %v3435
  %v3464 = vsel %vm184, %v3445, %v3421
  %v3465 = vsel %vm184, %v3447, %v3423
  %v3466 = vsel %vm184, %v3449, %v3425
  %v3467 = vsel %vm184, %v3451, %v3427
  %v3468 = vsel %vm197, %v3464, 0.0
  %v3469 = vsel %vm198, %v3460, 0.0
  %v3470 = vsel %vm199, %v3456, 0.0
  %v3471 = vsel %vm200, %v3452, 0.0
  %v3472 = vsel %vm197, %v3465, 0.0
  %v3473 = vsel %vm198, %v3461, 0.0
  %v3474 = vsel %vm199, %v3457, 0.0
  %v3475 = vsel %vm200, %v3453, 0.0
  %v3476 = vsel %vm197, %v3466, 0.0
  %v3477 = vsel %vm198, %v3462, 0.0
  %v3478 = vsel %vm199, %v3458, 0.0
  %v3479 = vsel %vm200, %v3454, 0.0
  %v3480 = vsel %vm197, %v3467, 0.0
  %v3481 = vsel %vm198, %v3463, 0.0
  %v3482 = vsel %vm199, %v3459, 0.0
  %v3483 = vsel %vm200, %v3455, 0.0
  %v3484 = vpack.c.bf16 %v3472, %v3468
  %v3485 = vpack.c.bf16 %v3473, %v3469
  %v3486 = vpack.c.bf16 %v3474, %v3470
  %v3487 = vpack.c.bf16 %v3475, %v3471
  %v3488 = vpack.c.bf16 %v3480, %v3476
  %v3489 = vpack.c.bf16 %v3481, %v3477
  %v3490 = vpack.c.bf16 %v3482, %v3478
  %v3491 = vpack.c.bf16 %v3483, %v3479
  %3492 = vst [vmem:[#allocation2 + $0x80] sm:$0xff] %v3484
  %3493 = vst [vmem:[#allocation2 + $0x88] sm:$0xff] %v3485
  %3494 = vst [vmem:[#allocation2 + $0x90] sm:$0xff] %v3486
  %3495 = vst [vmem:[#allocation2 + $0x98] sm:$0xff] %v3487
  %3496 = vst [vmem:[#allocation2 + $0xa0] sm:$0xff] %v3488
  %3497 = vst [vmem:[#allocation2 + $0xa8] sm:$0xff] %v3489
  %3498 = vst [vmem:[#allocation2 + $0xb0] sm:$0xff] %v3490
  %3499 = vst [vmem:[#allocation2 + $0xb8] sm:$0xff] %v3491
  %3500 = vrot.lane.b32.xlu0 %v3172, 1
  %v3501 = vpop.permute.xlu0 %3500
  %3502 = vrot.lane.b32.xlu0 %v3174, 1
  %v3503 = vpop.permute.xlu0 %3502
  %3504 = vrot.lane.b32.xlu0 %v3176, 1
  %v3505 = vpop.permute.xlu0 %3504
  %3506 = vrot.lane.b32.xlu0 %v3178, 1
  %v3507 = vpop.permute.xlu0 %3506
  %3508 = vrot.lane.b32.xlu0 %v3173, 1
  %v3509 = vpop.permute.xlu0 %3508
  %3510 = vrot.lane.b32.xlu0 %v3175, 1
  %v3511 = vpop.permute.xlu0 %3510
  %3512 = vrot.lane.b32.xlu0 %v3177, 1
  %v3513 = vpop.permute.xlu0 %3512
  %3514 = vrot.lane.b32.xlu0 %v3179, 1
  %v3515 = vpop.permute.xlu0 %3514
  %3516 = vrot.lane.b32.xlu0 %v3252, 1
  %v3517 = vpop.permute.xlu0 %3516
  %3518 = vrot.lane.b32.xlu0 %v3254, 1
  %v3519 = vpop.permute.xlu0 %3518
  %3520 = vrot.lane.b32.xlu0 %v3256, 1
  %v3521 = vpop.permute.xlu0 %3520
  %3522 = vrot.lane.b32.xlu0 %v3258, 1
  %v3523 = vpop.permute.xlu0 %3522
  %3524 = vrot.lane.b32.xlu0 %v3253, 1
  %v3525 = vpop.permute.xlu0 %3524
  %3526 = vrot.lane.b32.xlu0 %v3255, 1
  %v3527 = vpop.permute.xlu0 %3526
  %3528 = vrot.lane.b32.xlu0 %v3257, 1
  %v3529 = vpop.permute.xlu0 %3528
  %3530 = vrot.lane.b32.xlu0 %v3259, 1
  %v3531 = vpop.permute.xlu0 %3530
  %v3532 = vsel %vm235, %v3517, %v3525
  %v3533 = vsel %vm235, %v3519, %v3527
  %v3534 = vsel %vm235, %v3521, %v3529
  %v3535 = vsel %vm235, %v3523, %v3531
  %v3536 = vsel %vm235, %v3509, %v3517
  %v3537 = vsel %vm235, %v3511, %v3519
  %v3538 = vsel %vm235, %v3513, %v3521
  %v3539 = vsel %vm235, %v3515, %v3523
  %v3540 = vsel %vm235, %v3501, %v3509
  %v3541 = vsel %vm235, %v3503, %v3511
  %v3542 = vsel %vm235, %v3505, %v3513
  %v3543 = vsel %vm235, %v3507, %v3515
  %v3544 = vsel %vm235, %v3525, %v3501
  %v3545 = vsel %vm235, %v3527, %v3503
  %v3546 = vsel %vm235, %v3529, %v3505
  %v3547 = vsel %vm235, %v3531, %v3507
  %v3548 = vsel %vm244, %v3544, 0.0
  %v3549 = vsel %vm245, %v3540, 0.0
  %v3550 = vsel %vm246, %v3536, 0.0
  %v3551 = vsel %vm247, %v3532, 0.0
  %v3552 = vsel %vm244, %v3545, 0.0
  %v3553 = vsel %vm245, %v3541, 0.0
  %v3554 = vsel %vm246, %v3537, 0.0
  %v3555 = vsel %vm247, %v3533, 0.0
  %v3556 = vsel %vm244, %v3546, 0.0
  %v3557 = vsel %vm245, %v3542, 0.0
  %v3558 = vsel %vm246, %v3538, 0.0
  %v3559 = vsel %vm247, %v3534, 0.0
  %v3560 = vsel %vm244, %v3547, 0.0
  %v3561 = vsel %vm245, %v3543, 0.0
  %v3562 = vsel %vm246, %v3539, 0.0
  %v3563 = vsel %vm247, %v3535, 0.0
  %v3564 = vpack.c.bf16 %v3552, %v3548
  %v3565 = vpack.c.bf16 %v3553, %v3549
  %v3566 = vpack.c.bf16 %v3554, %v3550
  %v3567 = vpack.c.bf16 %v3555, %v3551
  %v3568 = vpack.c.bf16 %v3560, %v3556
  %v3569 = vpack.c.bf16 %v3561, %v3557
  %v3570 = vpack.c.bf16 %v3562, %v3558
  %v3571 = vpack.c.bf16 %v3563, %v3559
  %3572 = vst [vmem:[#allocation2 + $0xc0] sm:$0xff] %v3564
  %3573 = vst [vmem:[#allocation2 + $0xc8] sm:$0xff] %v3565
  %3574 = vst [vmem:[#allocation2 + $0xd0] sm:$0xff] %v3566
  %3575 = vst [vmem:[#allocation2 + $0xd8] sm:$0xff] %v3567
  %3576 = vst [vmem:[#allocation2 + $0xe0] sm:$0xff] %v3568
  %3577 = vst [vmem:[#allocation2 + $0xe8] sm:$0xff] %v3569
  %3578 = vst [vmem:[#allocation2 + $0xf0] sm:$0xff] %v3570
  %3579 = vst [vmem:[#allocation2 + $0xf8] sm:$0xff] %v3571
  %v3580 = vpack.c.bf16 %v3174, %v3172
  %v3581 = vpack.c.bf16 %v3175, %v3173
  %v3582 = vpack.c.bf16 %v3254, %v3252
  %v3583 = vpack.c.bf16 %v3255, %v3253
  %v3584 = vpack.c.bf16 %v3178, %v3176
  %v3585 = vpack.c.bf16 %v3179, %v3177
  %v3586 = vpack.c.bf16 %v3258, %v3256
  %v3587 = vpack.c.bf16 %v3259, %v3257
  %3588 = vst [vmem:[#allocation2 + $0x100] sm:$0xff] %v3580
  %3589 = vst [vmem:[#allocation2 + $0x108] sm:$0xff] %v3581
  %3590 = vst [vmem:[#allocation2 + $0x110] sm:$0xff] %v3582
  %3591 = vst [vmem:[#allocation2 + $0x118] sm:$0xff] %v3583
  %3592 = vst [vmem:[#allocation2 + $0x120] sm:$0xff] %v3584
  %3593 = vst [vmem:[#allocation2 + $0x128] sm:$0xff] %v3585
  %3594 = vst [vmem:[#allocation2 + $0x130] sm:$0xff] %v3586
  %3595 = vst [vmem:[#allocation2 + $0x138] sm:$0xff] %v3587
  %3596 = vrot.lane.b32.xlu0 %v3172, 127
  %v3597 = vpop.permute.xlu0 %3596
  %3598 = vrot.lane.b32.xlu0 %v3174, 127
  %v3599 = vpop.permute.xlu0 %3598
  %3600 = vrot.lane.b32.xlu0 %v3176, 127
  %v3601 = vpop.permute.xlu0 %3600
  %3602 = vrot.lane.b32.xlu0 %v3178, 127
  %v3603 = vpop.permute.xlu0 %3602
  %3604 = vrot.lane.b32.xlu0 %v3173, 127
  %v3605 = vpop.permute.xlu0 %3604
  %3606 = vrot.lane.b32.xlu0 %v3175, 127
  %v3607 = vpop.permute.xlu0 %3606
  %3608 = vrot.lane.b32.xlu0 %v3177, 127
  %v3609 = vpop.permute.xlu0 %3608
  %3610 = vrot.lane.b32.xlu0 %v3179, 127
  %v3611 = vpop.permute.xlu0 %3610
  %3612 = vrot.lane.b32.xlu0 %v3252, 127
  %v3613 = vpop.permute.xlu0 %3612
  %3614 = vrot.lane.b32.xlu0 %v3254, 127
  %v3615 = vpop.permute.xlu0 %3614
  %3616 = vrot.lane.b32.xlu0 %v3256, 127
  %v3617 = vpop.permute.xlu0 %3616
  %3618 = vrot.lane.b32.xlu0 %v3258, 127
  %v3619 = vpop.permute.xlu0 %3618
  %3620 = vrot.lane.b32.xlu0 %v3253, 127
  %v3621 = vpop.permute.xlu0 %3620
  %3622 = vrot.lane.b32.xlu0 %v3255, 127
  %v3623 = vpop.permute.xlu0 %3622
  %3624 = vrot.lane.b32.xlu0 %v3257, 127
  %v3625 = vpop.permute.xlu0 %3624
  %3626 = vrot.lane.b32.xlu0 %v3259, 127
  %v3627 = vpop.permute.xlu0 %3626
  %v3628 = vsel %vm295, %v3613, %v3621
  %v3629 = vsel %vm295, %v3615, %v3623
  %v3630 = vsel %vm295, %v3617, %v3625
  %v3631 = vsel %vm295, %v3619, %v3627
  %v3632 = vsel %vm295, %v3605, %v3613
  %v3633 = vsel %vm295, %v3607, %v3615
  %v3634 = vsel %vm295, %v3609, %v3617
  %v3635 = vsel %vm295, %v3611, %v3619
  %v3636 = vsel %vm295, %v3597, %v3605
  %v3637 = vsel %vm295, %v3599, %v3607
  %v3638 = vsel %vm295, %v3601, %v3609
  %v3639 = vsel %vm295, %v3603, %v3611
  %v3640 = vsel %vm295, %v3621, %v3597
  %v3641 = vsel %vm295, %v3623, %v3599
  %v3642 = vsel %vm295, %v3625, %v3601
  %v3643 = vsel %vm295, %v3627, %v3603
  %v3644 = vsel %vm304, %v3636, 0.0
  %v3645 = vsel %vm305, %v3632, 0.0
  %v3646 = vsel %vm306, %v3628, 0.0
  %v3647 = vsel %vm307, %v3640, 0.0
  %v3648 = vsel %vm304, %v3637, 0.0
  %v3649 = vsel %vm305, %v3633, 0.0
  %v3650 = vsel %vm306, %v3629, 0.0
  %v3651 = vsel %vm307, %v3641, 0.0
  %v3652 = vsel %vm304, %v3638, 0.0
  %v3653 = vsel %vm305, %v3634, 0.0
  %v3654 = vsel %vm306, %v3630, 0.0
  %v3655 = vsel %vm307, %v3642, 0.0
  %v3656 = vsel %vm304, %v3639, 0.0
  %v3657 = vsel %vm305, %v3635, 0.0
  %v3658 = vsel %vm306, %v3631, 0.0
  %v3659 = vsel %vm307, %v3643, 0.0
  %v3660 = vpack.c.bf16 %v3648, %v3644
  %v3661 = vpack.c.bf16 %v3649, %v3645
  %v3662 = vpack.c.bf16 %v3650, %v3646
  %v3663 = vpack.c.bf16 %v3651, %v3647
  %v3664 = vpack.c.bf16 %v3656, %v3652
  %v3665 = vpack.c.bf16 %v3657, %v3653
  %v3666 = vpack.c.bf16 %v3658, %v3654
  %v3667 = vpack.c.bf16 %v3659, %v3655
  %3668 = vst [vmem:[#allocation2 + $0x140] sm:$0xff] %v3660
  %3669 = vst [vmem:[#allocation2 + $0x148] sm:$0xff] %v3661
  %3670 = vst [vmem:[#allocation2 + $0x150] sm:$0xff] %v3662
  %3671 = vst [vmem:[#allocation2 + $0x158] sm:$0xff] %v3663
  %3672 = vst [vmem:[#allocation2 + $0x160] sm:$0xff] %v3664
  %3673 = vst [vmem:[#allocation2 + $0x168] sm:$0xff] %v3665
  %3674 = vst [vmem:[#allocation2 + $0x170] sm:$0xff] %v3666
  %3675 = vst [vmem:[#allocation2 + $0x178] sm:$0xff] %v3667
  %3676 = vrot.lane.b32.xlu0 %v3172, 113
  %v3677 = vpop.permute.xlu0 %3676
  %3678 = vrot.lane.b32.xlu0 %v3174, 113
  %v3679 = vpop.permute.xlu0 %3678
  %3680 = vrot.lane.b32.xlu0 %v3176, 113
  %v3681 = vpop.permute.xlu0 %3680
  %3682 = vrot.lane.b32.xlu0 %v3178, 113
  %v3683 = vpop.permute.xlu0 %3682
  %3684 = vrot.lane.b32.xlu0 %v3173, 113
  %v3685 = vpop.permute.xlu0 %3684
  %3686 = vrot.lane.b32.xlu0 %v3175, 113
  %v3687 = vpop.permute.xlu0 %3686
  %3688 = vrot.lane.b32.xlu0 %v3177, 113
  %v3689 = vpop.permute.xlu0 %3688
  %3690 = vrot.lane.b32.xlu0 %v3179, 113
  %v3691 = vpop.permute.xlu0 %3690
  %3692 = vrot.lane.b32.xlu0 %v3252, 113
  %v3693 = vpop.permute.xlu0 %3692
  %3694 = vrot.lane.b32.xlu0 %v3254, 113
  %v3695 = vpop.permute.xlu0 %3694
  %3696 = vrot.lane.b32.xlu0 %v3256, 113
  %v3697 = vpop.permute.xlu0 %3696
  %3698 = vrot.lane.b32.xlu0 %v3258, 113
  %v3699 = vpop.permute.xlu0 %3698
  %3700 = vrot.lane.b32.xlu0 %v3253, 113
  %v3701 = vpop.permute.xlu0 %3700
  %3702 = vrot.lane.b32.xlu0 %v3255, 113
  %v3703 = vpop.permute.xlu0 %3702
  %3704 = vrot.lane.b32.xlu0 %v3257, 113
  %v3705 = vpop.permute.xlu0 %3704
  %3706 = vrot.lane.b32.xlu0 %v3259, 113
  %v3707 = vpop.permute.xlu0 %3706
  %v3708 = vsel %vm342, %v3693, %v3701
  %v3709 = vsel %vm342, %v3695, %v3703
  %v3710 = vsel %vm342, %v3697, %v3705
  %v3711 = vsel %vm342, %v3699, %v3707
  %v3712 = vsel %vm342, %v3685, %v3693
  %v3713 = vsel %vm342, %v3687, %v3695
  %v3714 = vsel %vm342, %v3689, %v3697
  %v3715 = vsel %vm342, %v3691, %v3699
  %v3716 = vsel %vm342, %v3677, %v3685
  %v3717 = vsel %vm342, %v3679, %v3687
  %v3718 = vsel %vm342, %v3681, %v3689
  %v3719 = vsel %vm342, %v3683, %v3691
  %v3720 = vsel %vm342, %v3701, %v3677
  %v3721 = vsel %vm342, %v3703, %v3679
  %v3722 = vsel %vm342, %v3705, %v3681
  %v3723 = vsel %vm342, %v3707, %v3683
  %v3724 = vsel %vm355, %v3716, 0.0
  %v3725 = vsel %vm356, %v3712, 0.0
  %v3726 = vsel %vm357, %v3708, 0.0
  %v3727 = vsel %vm358, %v3720, 0.0
  %v3728 = vsel %vm355, %v3717, 0.0
  %v3729 = vsel %vm356, %v3713, 0.0
  %v3730 = vsel %vm357, %v3709, 0.0
  %v3731 = vsel %vm358, %v3721, 0.0
  %v3732 = vsel %vm355, %v3718, 0.0
  %v3733 = vsel %vm356, %v3714, 0.0
  %v3734 = vsel %vm357, %v3710, 0.0
  %v3735 = vsel %vm358, %v3722, 0.0
  %v3736 = vsel %vm355, %v3719, 0.0
  %v3737 = vsel %vm356, %v3715, 0.0
  %v3738 = vsel %vm357, %v3711, 0.0
  %v3739 = vsel %vm358, %v3723, 0.0
  %v3740 = vpack.c.bf16 %v3728, %v3724
  %v3741 = vpack.c.bf16 %v3729, %v3725
  %v3742 = vpack.c.bf16 %v3730, %v3726
  %v3743 = vpack.c.bf16 %v3731, %v3727
  %v3744 = vpack.c.bf16 %v3736, %v3732
  %v3745 = vpack.c.bf16 %v3737, %v3733
  %v3746 = vpack.c.bf16 %v3738, %v3734
  %v3747 = vpack.c.bf16 %v3739, %v3735
  %3748 = vst [vmem:[#allocation2 + $0x180] sm:$0xff] %v3740
  %3749 = vst [vmem:[#allocation2 + $0x188] sm:$0xff] %v3741
  %3750 = vst [vmem:[#allocation2 + $0x190] sm:$0xff] %v3742
  %3751 = vst [vmem:[#allocation2 + $0x198] sm:$0xff] %v3743
  %3752 = vst [vmem:[#allocation2 + $0x1a0] sm:$0xff] %v3744
  %3753 = vst [vmem:[#allocation2 + $0x1a8] sm:$0xff] %v3745
  %3754 = vst [vmem:[#allocation2 + $0x1b0] sm:$0xff] %v3746
  %3755 = vst [vmem:[#allocation2 + $0x1b8] sm:$0xff] %v3747
  %3756 = vrot.lane.b32.xlu0 %v3172, 112
  %v3757 = vpop.permute.xlu0 %3756
  %3758 = vrot.lane.b32.xlu0 %v3174, 112
  %v3759 = vpop.permute.xlu0 %3758
  %3760 = vrot.lane.b32.xlu0 %v3176, 112
  %v3761 = vpop.permute.xlu0 %3760
  %3762 = vrot.lane.b32.xlu0 %v3178, 112
  %v3763 = vpop.permute.xlu0 %3762
  %3764 = vrot.lane.b32.xlu0 %v3173, 112
  %v3765 = vpop.permute.xlu0 %3764
  %3766 = vrot.lane.b32.xlu0 %v3175, 112
  %v3767 = vpop.permute.xlu0 %3766
  %3768 = vrot.lane.b32.xlu0 %v3177, 112
  %v3769 = vpop.permute.xlu0 %3768
  %3770 = vrot.lane.b32.xlu0 %v3179, 112
  %v3771 = vpop.permute.xlu0 %3770
  %3772 = vrot.lane.b32.xlu0 %v3252, 112
  %v3773 = vpop.permute.xlu0 %3772
  %3774 = vrot.lane.b32.xlu0 %v3254, 112
  %v3775 = vpop.permute.xlu0 %3774
  %3776 = vrot.lane.b32.xlu0 %v3256, 112
  %v3777 = vpop.permute.xlu0 %3776
  %3778 = vrot.lane.b32.xlu0 %v3258, 112
  %v3779 = vpop.permute.xlu0 %3778
  %3780 = vrot.lane.b32.xlu0 %v3253, 112
  %v3781 = vpop.permute.xlu0 %3780
  %3782 = vrot.lane.b32.xlu0 %v3255, 112
  %v3783 = vpop.permute.xlu0 %3782
  %3784 = vrot.lane.b32.xlu0 %v3257, 112
  %v3785 = vpop.permute.xlu0 %3784
  %3786 = vrot.lane.b32.xlu0 %v3259, 112
  %v3787 = vpop.permute.xlu0 %3786
  %v3788 = vsel %vm393, %v3773, %v3781
  %v3789 = vsel %vm393, %v3775, %v3783
  %v3790 = vsel %vm393, %v3777, %v3785
  %v3791 = vsel %vm393, %v3779, %v3787
  %v3792 = vsel %vm393, %v3765, %v3773
  %v3793 = vsel %vm393, %v3767, %v3775
  %v3794 = vsel %vm393, %v3769, %v3777
  %v3795 = vsel %vm393, %v3771, %v3779
  %v3796 = vsel %vm393, %v3757, %v3765
  %v3797 = vsel %vm393, %v3759, %v3767
  %v3798 = vsel %vm393, %v3761, %v3769
  %v3799 = vsel %vm393, %v3763, %v3771
  %v3800 = vsel %vm393, %v3781, %v3757
  %v3801 = vsel %vm393, %v3783, %v3759
  %v3802 = vsel %vm393, %v3785, %v3761
  %v3803 = vsel %vm393, %v3787, %v3763
  %v3804 = vsel %vm402, %v3796, 0.0
  %v3805 = vsel %vm403, %v3792, 0.0
  %v3806 = vsel %vm404, %v3788, 0.0
  %v3807 = vsel %vm405, %v3800, 0.0
  %v3808 = vsel %vm402, %v3797, 0.0
  %v3809 = vsel %vm403, %v3793, 0.0
  %v3810 = vsel %vm404, %v3789, 0.0
  %v3811 = vsel %vm405, %v3801, 0.0
  %v3812 = vsel %vm402, %v3798, 0.0
  %v3813 = vsel %vm403, %v3794, 0.0
  %v3814 = vsel %vm404, %v3790, 0.0
  %v3815 = vsel %vm405, %v3802, 0.0
  %v3816 = vsel %vm402, %v3799, 0.0
  %v3817 = vsel %vm403, %v3795, 0.0
  %v3818 = vsel %vm404, %v3791, 0.0
  %v3819 = vsel %vm405, %v3803, 0.0
  %v3820 = vpack.c.bf16 %v3808, %v3804
  %v3821 = vpack.c.bf16 %v3809, %v3805
  %v3822 = vpack.c.bf16 %v3810, %v3806
  %v3823 = vpack.c.bf16 %v3811, %v3807
  %v3824 = vpack.c.bf16 %v3816, %v3812
  %v3825 = vpack.c.bf16 %v3817, %v3813
  %v3826 = vpack.c.bf16 %v3818, %v3814
  %v3827 = vpack.c.bf16 %v3819, %v3815
  %3828 = vst [vmem:[#allocation2 + $0x1c0] sm:$0xff] %v3820
  %3829 = vst [vmem:[#allocation2 + $0x1c8] sm:$0xff] %v3821
  %3830 = vst [vmem:[#allocation2 + $0x1d0] sm:$0xff] %v3822
  %3831 = vst [vmem:[#allocation2 + $0x1d8] sm:$0xff] %v3823
  %3832 = vst [vmem:[#allocation2 + $0x1e0] sm:$0xff] %v3824
  %3833 = vst [vmem:[#allocation2 + $0x1e8] sm:$0xff] %v3825
  %3834 = vst [vmem:[#allocation2 + $0x1f0] sm:$0xff] %v3826
  %3835 = vst [vmem:[#allocation2 + $0x1f8] sm:$0xff] %v3827
  %3836 = vrot.lane.b32.xlu0 %v3172, 111
  %v3837 = vpop.permute.xlu0 %3836
  %3838 = vrot.lane.b32.xlu0 %v3174, 111
  %v3839 = vpop.permute.xlu0 %3838
  %3840 = vrot.lane.b32.xlu0 %v3176, 111
  %v3841 = vpop.permute.xlu0 %3840
  %3842 = vrot.lane.b32.xlu0 %v3178, 111
  %v3843 = vpop.permute.xlu0 %3842
  %3844 = vrot.lane.b32.xlu0 %v3173, 111
  %v3845 = vpop.permute.xlu0 %3844
  %3846 = vrot.lane.b32.xlu0 %v3175, 111
  %v3847 = vpop.permute.xlu0 %3846
  %3848 = vrot.lane.b32.xlu0 %v3177, 111
  %v3849 = vpop.permute.xlu0 %3848
  %3850 = vrot.lane.b32.xlu0 %v3179, 111
  %v3851 = vpop.permute.xlu0 %3850
  %3852 = vrot.lane.b32.xlu0 %v3252, 111
  %v3853 = vpop.permute.xlu0 %3852
  %3854 = vrot.lane.b32.xlu0 %v3254, 111
  %v3855 = vpop.permute.xlu0 %3854
  %3856 = vrot.lane.b32.xlu0 %v3256, 111
  %v3857 = vpop.permute.xlu0 %3856
  %3858 = vrot.lane.b32.xlu0 %v3258, 111
  %v3859 = vpop.permute.xlu0 %3858
  %3860 = vrot.lane.b32.xlu0 %v3253, 111
  %v3861 = vpop.permute.xlu0 %3860
  %3862 = vrot.lane.b32.xlu0 %v3255, 111
  %v3863 = vpop.permute.xlu0 %3862
  %3864 = vrot.lane.b32.xlu0 %v3257, 111
  %v3865 = vpop.permute.xlu0 %3864
  %3866 = vrot.lane.b32.xlu0 %v3259, 111
  %v3867 = vpop.permute.xlu0 %3866
  %v3868 = vsel %vm440, %v3853, %v3861
  %v3869 = vsel %vm440, %v3855, %v3863
  %v3870 = vsel %vm440, %v3857, %v3865
  %v3871 = vsel %vm440, %v3859, %v3867
  %v3872 = vsel %vm440, %v3845, %v3853
  %v3873 = vsel %vm440, %v3847, %v3855
  %v3874 = vsel %vm440, %v3849, %v3857
  %v3875 = vsel %vm440, %v3851, %v3859
  %v3876 = vsel %vm440, %v3837, %v3845
  %v3877 = vsel %vm440, %v3839, %v3847
  %v3878 = vsel %vm440, %v3841, %v3849
  %v3879 = vsel %vm440, %v3843, %v3851
  %v3880 = vsel %vm440, %v3861, %v3837
  %v3881 = vsel %vm440, %v3863, %v3839
  %v3882 = vsel %vm440, %v3865, %v3841
  %v3883 = vsel %vm440, %v3867, %v3843
  %v3884 = vsel %vm453, %v3876, 0.0
  %v3885 = vsel %vm454, %v3872, 0.0
  %v3886 = vsel %vm455, %v3868, 0.0
  %v3887 = vsel %vm456, %v3880, 0.0
  %v3888 = vsel %vm453, %v3877, 0.0
  %v3889 = vsel %vm454, %v3873, 0.0
  %v3890 = vsel %vm455, %v3869, 0.0
  %v3891 = vsel %vm456, %v3881, 0.0
  %v3892 = vsel %vm453, %v3878, 0.0
  %v3893 = vsel %vm454, %v3874, 0.0
  %v3894 = vsel %vm455, %v3870, 0.0
  %v3895 = vsel %vm456, %v3882, 0.0
  %v3896 = vsel %vm453, %v3879, 0.0
  %v3897 = vsel %vm454, %v3875, 0.0
  %v3898 = vsel %vm455, %v3871, 0.0
  %v3899 = vsel %vm456, %v3883, 0.0
  %v3900 = vpack.c.bf16 %v3888, %v3884
  %v3901 = vpack.c.bf16 %v3889, %v3885
  %v3902 = vpack.c.bf16 %v3890, %v3886
  %v3903 = vpack.c.bf16 %v3891, %v3887
  %v3904 = vpack.c.bf16 %v3896, %v3892
  %v3905 = vpack.c.bf16 %v3897, %v3893
  %v3906 = vpack.c.bf16 %v3898, %v3894
  %v3907 = vpack.c.bf16 %v3899, %v3895
  %3908 = vst [vmem:[#allocation2 + $0x200] sm:$0xff] %v3900
  %3909 = vst [vmem:[#allocation2 + $0x208] sm:$0xff] %v3901
  %3910 = vst [vmem:[#allocation2 + $0x210] sm:$0xff] %v3902
  %3911 = vst [vmem:[#allocation2 + $0x218] sm:$0xff] %v3903
  %3912 = vst [vmem:[#allocation2 + $0x220] sm:$0xff] %v3904
  %3913 = vst [vmem:[#allocation2 + $0x228] sm:$0xff] %v3905
  %3914 = vst [vmem:[#allocation2 + $0x230] sm:$0xff] %v3906
  %3915 = vst [vmem:[#allocation2 + $0x238] sm:$0xff] %v3907
  %s3916 = scalar_lea.vmem %s2, 144
  %v3917 = vld [vmem:[%s3916] sm:$0xff]
  %v3918 = vld [vmem:[%s3916 + $0x8] sm:$0xf]
  %v3919 = vld [vmem:[%s3916 + $0xc] sm:$0xff]
  %v3920 = vld [vmem:[%s3916 + $0x14] sm:$0xf]
  %v3921 = vld [vmem:[%s3916 + $0x18] sm:$0xff]
  %v3922 = vld [vmem:[%s3916 + $0x20] sm:$0xf]
  %v3923 = vld [vmem:[%s3916 + $0x24] sm:$0xff]
  %v3924 = vld [vmem:[%s3916 + $0x2c] sm:$0xf]
  %v3925 = vld [vmem:[#allocation2] sm:$0xff]
  %v3926 = vld [vmem:[#allocation2 + $0x8] sm:$0xff]
  %v3927 = vld [vmem:[#allocation2 + $0x10] sm:$0xff]
  %v3928 = vld [vmem:[#allocation2 + $0x18] sm:$0xff]
  %v3929 = vld [vmem:[#allocation2 + $0x20] sm:$0xff]
  %v3930 = vld [vmem:[#allocation2 + $0x28] sm:$0xff]
  %v3931 = vld [vmem:[#allocation2 + $0x30] sm:$0xff]
  %v3932 = vld [vmem:[#allocation2 + $0x38] sm:$0xff]
  %v3933 = vld [vmem:[#allocation2 + $0x40] sm:$0xff]
  %v3934 = vld [vmem:[#allocation2 + $0x48] sm:$0xff]
  %v3935 = vld [vmem:[#allocation2 + $0x50] sm:$0xff]
  %v3936 = vld [vmem:[#allocation2 + $0x58] sm:$0xff]
  %v3937 = vld [vmem:[#allocation2 + $0x60] sm:$0xff]
  %v3938 = vld [vmem:[#allocation2 + $0x68] sm:$0xff]
  %v3939 = vld [vmem:[#allocation2 + $0x70] sm:$0xff]
  %v3940 = vld [vmem:[#allocation2 + $0x78] sm:$0xff]
  %v3941 = vld [vmem:[#allocation2 + $0x80] sm:$0xff]
  %v3942 = vld [vmem:[#allocation2 + $0x88] sm:$0xff]
  %v3943 = vld [vmem:[#allocation2 + $0x90] sm:$0xff]
  %v3944 = vld [vmem:[#allocation2 + $0x98] sm:$0xff]
  %v3945 = vld [vmem:[#allocation2 + $0xa0] sm:$0xff]
  %v3946 = vld [vmem:[#allocation2 + $0xa8] sm:$0xff]
  %v3947 = vld [vmem:[#allocation2 + $0xb0] sm:$0xff]
  %v3948 = vld [vmem:[#allocation2 + $0xb8] sm:$0xff]
  %v3949 = vld [vmem:[#allocation2 + $0xc0] sm:$0xff]
  %v3950 = vld [vmem:[#allocation2 + $0xc8] sm:$0xff]
  %v3951 = vld [vmem:[#allocation2 + $0xd0] sm:$0xff]
  %v3952 = vld [vmem:[#allocation2 + $0xd8] sm:$0xff]
  %v3953 = vld [vmem:[#allocation2 + $0xe0] sm:$0xff]
  %v3954 = vld [vmem:[#allocation2 + $0xe8] sm:$0xff]
  %v3955 = vld [vmem:[#allocation2 + $0xf0] sm:$0xff]
  %v3956 = vld [vmem:[#allocation2 + $0xf8] sm:$0xff]
  %v3957 = vld [vmem:[#allocation2 + $0x100] sm:$0xff]
  %v3958 = vld [vmem:[#allocation2 + $0x108] sm:$0xff]
  %v3959 = vld [vmem:[#allocation2 + $0x110] sm:$0xff]
  %v3960 = vld [vmem:[#allocation2 + $0x118] sm:$0xff]
  %v3961 = vld [vmem:[#allocation2 + $0x120] sm:$0xff]
  %v3962 = vld [vmem:[#allocation2 + $0x128] sm:$0xff]
  %v3963 = vld [vmem:[#allocation2 + $0x130] sm:$0xff]
  %v3964 = vld [vmem:[#allocation2 + $0x138] sm:$0xff]
  %v3965 = vld [vmem:[#allocation2 + $0x140] sm:$0xff]
  %v3966 = vld [vmem:[#allocation2 + $0x148] sm:$0xff]
  %v3967 = vld [vmem:[#allocation2 + $0x150] sm:$0xff]
  %v3968 = vld [vmem:[#allocation2 + $0x158] sm:$0xff]
  %v3969 = vld [vmem:[#allocation2 + $0x160] sm:$0xff]
  %v3970 = vld [vmem:[#allocation2 + $0x168] sm:$0xff]
  %v3971 = vld [vmem:[#allocation2 + $0x170] sm:$0xff]
  %v3972 = vld [vmem:[#allocation2 + $0x178] sm:$0xff]
  %v3973 = vld [vmem:[#allocation2 + $0x180] sm:$0xff]
  %v3974 = vld [vmem:[#allocation2 + $0x188] sm:$0xff]
  %v3975 = vld [vmem:[#allocation2 + $0x190] sm:$0xff]
  %v3976 = vld [vmem:[#allocation2 + $0x198] sm:$0xff]
  %v3977 = vld [vmem:[#allocation2 + $0x1a0] sm:$0xff]
  %v3978 = vld [vmem:[#allocation2 + $0x1a8] sm:$0xff]
  %v3979 = vld [vmem:[#allocation2 + $0x1b0] sm:$0xff]
  %v3980 = vld [vmem:[#allocation2 + $0x1b8] sm:$0xff]
  %v3981 = vld [vmem:[#allocation2 + $0x1c0] sm:$0xff]
  %v3982 = vld [vmem:[#allocation2 + $0x1c8] sm:$0xff]
  %v3983 = vld [vmem:[#allocation2 + $0x1d0] sm:$0xff]
  %v3984 = vld [vmem:[#allocation2 + $0x1d8] sm:$0xff]
  %v3985 = vld [vmem:[#allocation2 + $0x1e0] sm:$0xff]
  %v3986 = vld [vmem:[#allocation2 + $0x1e8] sm:$0xff]
  %v3987 = vld [vmem:[#allocation2 + $0x1f0] sm:$0xff]
  %v3988 = vld [vmem:[#allocation2 + $0x1f8] sm:$0xff]
  %v3989 = vld [vmem:[#allocation2 + $0x200] sm:$0xff]
  %v3990 = vld [vmem:[#allocation2 + $0x208] sm:$0xff]
  %v3991 = vld [vmem:[#allocation2 + $0x210] sm:$0xff]
  %v3992 = vld [vmem:[#allocation2 + $0x218] sm:$0xff]
  %v3993 = vld [vmem:[#allocation2 + $0x220] sm:$0xff]
  %v3994 = vld [vmem:[#allocation2 + $0x228] sm:$0xff]
  %v3995 = vld [vmem:[#allocation2 + $0x230] sm:$0xff]
  %v3996 = vld [vmem:[#allocation2 + $0x238] sm:$0xff]
  %v4005 = vunpack.c.l.b16 %v3917
  %v4006 = vunpack.c.h.b16 %v3917
  %v4007 = vunpack.c.l.b16 %v3918
  %v4008 = vunpack.c.l.b16 %v3919
  %v4009 = vunpack.c.h.b16 %v3919
  %v4010 = vunpack.c.l.b16 %v3920
  %v4011 = vunpack.c.l.b16 %v3921
  %v4012 = vunpack.c.h.b16 %v3921
  %v4013 = vunpack.c.l.b16 %v3922
  %v4014 = vunpack.c.l.b16 %v3923
  %v4015 = vunpack.c.h.b16 %v3923
  %v4016 = vunpack.c.l.b16 %v3924
  %v4017 = vpack.c.b16 %v4008, %v4005
  %v4018 = vpack.c.b16 %v4009, %v4006
  %v4019 = vpack.c.b16 %v4010, %v4007
  %v4020 = vpack.c.b16 %v4014, %v4011
  %v4021 = vpack.c.b16 %v4015, %v4012
  %v4022 = vpack.c.b16 %v4016, %v4013
  %v4028 = vsel %vm591, %v4019, 0
  %v4031 = vsel %vm591, %v4022, 0
  %4033 = vmatprep.subr.bf16.mxu0 %v3926
  %4034 = vmatpush1.bf16.msra.mxu0 %v3925
  %4035 = vmatprep.subr.bf16.mxu0 %v3930
  %4036 = vmatpush1.bf16.msra.mxu0 %v3929
  %4037 = vmatprep.subr.bf16.mxu0 %v3934
  %4038 = vmatpush1.bf16.msra.mxu0 %v3933
  %4039 = vmatprep.subr.bf16.mxu0 %v3938
  %4040 = vmatpush1.bf16.msra.mxu0 %v3937
  %4041 = vmatprep.subr.bf16.mxu0 %v3942
  %4042 = vmatpush1.bf16.msra.mxu0 %v3941
  %4043 = vmatprep.subr.bf16.mxu0 %v3946
  %4044 = vmatpush1.bf16.msra.mxu0 %v3945
  %4045 = vmatprep.subr.bf16.mxu0 %v3950
  %4046 = vmatpush1.bf16.msra.mxu0 %v3949
  %4047 = vmatprep.subr.bf16.mxu0 %v3954
  %4048 = vmatpush1.bf16.msra.mxu0 %v3953
  %4049 = vmatprep.subr.bf16.mxu0 %v3958
  %4050 = vmatpush1.bf16.msra.mxu0 %v3957
  %4051 = vmatprep.subr.bf16.mxu0 %v3962
  %4052 = vmatpush1.bf16.msra.mxu0 %v3961
  %4053 = vmatprep.subr.bf16.mxu0 %v3966
  %4054 = vmatpush1.bf16.msra.mxu0 %v3965
  %4055 = vmatprep.subr.bf16.mxu0 %v3970
  %4056 = vmatpush1.bf16.msra.mxu0 %v3969
  %4057 = vmatprep.subr.bf16.mxu0 %v3974
  %4058 = vmatpush1.bf16.msra.mxu0 %v3973
  %4059 = vmatprep.subr.bf16.mxu0 %v3978
  %4060 = vmatpush1.bf16.msra.mxu0 %v3977
  %4061 = vmatprep.subr.bf16.mxu0 %v3982
  %4062 = vmatpush1.bf16.msra.mxu0 %v3981
  %4063 = vmatprep.subr.bf16.mxu0 %v3986
  %4064 = vmatpush1.bf16.msra.mxu0 %v3985
  %4065 = vmatprep.mubr.bf16.mxu0 %v4018
  %4066 = vmatmul.mubr.bf16.gmra.mrb[0].mxu0 %v4017
  %v4067 = vpop.f32.mrb[0].mxu0
  %v4068 = vadd.f32 0.0, %v4067
  %v4069 = vpop.f32.mrb[0].mxu0
  %v4070 = vadd.f32 0.0, %v4069
  %v4071 = vpop.f32.mrb[0].mxu0
  %v4072 = vadd.f32 0.0, %v4071
  %v4073 = vpop.f32.mrb[0].mxu0
  %v4074 = vadd.f32 0.0, %v4073
  %4075 = vmatprep.mubr.bf16.mxu0 %v4021
  %4076 = vmatmul.mubr.bf16.gmra.mrb[0].mxu0 %v4020
  %v4077 = vpop.f32.mrb[0].mxu0
  %v4078 = vadd.f32 0.0, %v4077
  %v4079 = vpop.f32.mrb[0].mxu0
  %v4080 = vadd.f32 0.0, %v4079
  %v4081 = vpop.f32.mrb[0].mxu0
  %v4082 = vadd.f32 0.0, %v4081
  %v4083 = vpop.f32.mrb[0].mxu0
  %v4084 = vadd.f32 0.0, %v4083
  %4085 = vdwg.mxu0
  %4086 = vmatprep.subr.bf16.mxu0 %v3990
  %4087 = vmatpush1.bf16.msra.mxu0 %v3989
  %4088 = vmatprep.subr.bf16.mxu0 %v3994
  %4089 = vmatpush1.bf16.msra.mxu0 %v3993
  %4090 = vmatprep.subr.bf16.mxu0 0
  %4091 = vmatpush1.bf16.msra.mxu0 0
  %4092 = vmatprep.subr.bf16.mxu0 0
  %4093 = vmatpush1.bf16.msra.mxu0 0
  %4094 = vmatprep.subr.bf16.mxu0 0
  %4095 = vmatpush1.bf16.msra.mxu0 0
  %4096 = vmatprep.subr.bf16.mxu0 0
  %4097 = vmatpush1.bf16.msra.mxu0 0
  %4098 = vmatprep.subr.bf16.mxu0 0
  %4099 = vmatpush1.bf16.msra.mxu0 0
  %4100 = vmatprep.subr.bf16.mxu0 0
  %4101 = vmatpush1.bf16.msra.mxu0 0
  %4102 = vmatprep.subr.bf16.mxu0 0
  %4103 = vmatpush1.bf16.msra.mxu0 0
  %4104 = vmatprep.subr.bf16.mxu0 0
  %4105 = vmatpush1.bf16.msra.mxu0 0
  %4106 = vmatprep.subr.bf16.mxu0 0
  %4107 = vmatpush1.bf16.msra.mxu0 0
  %4108 = vmatprep.subr.bf16.mxu0 0
  %4109 = vmatpush1.bf16.msra.mxu0 0
  %4110 = vmatprep.subr.bf16.mxu0 0
  %4111 = vmatpush1.bf16.msra.mxu0 0
  %4112 = vmatprep.subr.bf16.mxu0 0
  %4113 = vmatpush1.bf16.msra.mxu0 0
  %4114 = vmatprep.subr.bf16.mxu0 0
  %4115 = vmatpush1.bf16.msra.mxu0 0
  %4116 = vmatprep.subr.bf16.mxu0 0
  %4117 = vmatpush1.bf16.msra.mxu0 0
  %4118 = vmatprep.mubr.bf16.mxu0 0
  %4119 = vmatmul.mubr.bf16.gmra.mrb[0].mxu0 %v4028
  %v4120 = vpop.f32.mrb[0].mxu0
  %v4121 = vadd.f32 %v4068, %v4120
  %v4122 = vpop.f32.mrb[0].mxu0
  %v4123 = vadd.f32 %v4070, %v4122
  %v4124 = vpop.f32.mrb[0].mxu0
  %v4125 = vadd.f32 %v4072, %v4124
  %v4126 = vpop.f32.mrb[0].mxu0
  %v4127 = vadd.f32 %v4074, %v4126
  %4128 = vmatprep.mubr.bf16.mxu0 0
  %4129 = vmatmul.mubr.bf16.gmra.mrb[0].mxu0 %v4031
  %v4130 = vpop.f32.mrb[0].mxu0
  %v4131 = vadd.f32 %v4078, %v4130
  %v4132 = vpop.f32.mrb[0].mxu0
  %v4133 = vadd.f32 %v4080, %v4132
  %v4134 = vpop.f32.mrb[0].mxu0
  %v4135 = vadd.f32 %v4082, %v4134
  %v4136 = vpop.f32.mrb[0].mxu0
  %v4137 = vadd.f32 %v4084, %v4136
  %4138 = vdwg.mxu0
  %4139 = vmatprep.subr.bf16.mxu0 %v3928
  %4140 = vmatpush1.bf16.msra.mxu0 %v3927
  %4141 = vmatprep.subr.bf16.mxu0 %v3932
  %4142 = vmatpush1.bf16.msra.mxu0 %v3931
  %4143 = vmatprep.subr.bf16.mxu0 %v3936
  %4144 = vmatpush1.bf16.msra.mxu0 %v3935
  %4145 = vmatprep.subr.bf16.mxu0 %v3940
  %4146 = vmatpush1.bf16.msra.mxu0 %v3939
  %4147 = vmatprep.subr.bf16.mxu0 %v3944
  %4148 = vmatpush1.bf16.msra.mxu0 %v3943
  %4149 = vmatprep.subr.bf16.mxu0 %v3948
  %4150 = vmatpush1.bf16.msra.mxu0 %v3947
  %4151 = vmatprep.subr.bf16.mxu0 %v3952
  %4152 = vmatpush1.bf16.msra.mxu0 %v3951
  %4153 = vmatprep.subr.bf16.mxu0 %v3956
  %4154 = vmatpush1.bf16.msra.mxu0 %v3955
  %4155 = vmatprep.subr.bf16.mxu0 %v3960
  %4156 = vmatpush1.bf16.msra.mxu0 %v3959
  %4157 = vmatprep.subr.bf16.mxu0 %v3964
  %4158 = vmatpush1.bf16.msra.mxu0 %v3963
  %4159 = vmatprep.subr.bf16.mxu0 %v3968
  %4160 = vmatpush1.bf16.msra.mxu0 %v3967
  %4161 = vmatprep.subr.bf16.mxu0 %v3972
  %4162 = vmatpush1.bf16.msra.mxu0 %v3971
  %4163 = vmatprep.subr.bf16.mxu0 %v3976
  %4164 = vmatpush1.bf16.msra.mxu0 %v3975
  %4165 = vmatprep.subr.bf16.mxu0 %v3980
  %4166 = vmatpush1.bf16.msra.mxu0 %v3979
  %4167 = vmatprep.subr.bf16.mxu0 %v3984
  %4168 = vmatpush1.bf16.msra.mxu0 %v3983
  %4169 = vmatprep.subr.bf16.mxu0 %v3988
  %4170 = vmatpush1.bf16.msra.mxu0 %v3987
  %4171 = vmatprep.mubr.bf16.mxu0 %v4018
  %4172 = vmatmul.mubr.bf16.gmra.mrb[0].mxu0 %v4017
  %v4173 = vpop.f32.mrb[0].mxu0
  %v4174 = vadd.f32 0.0, %v4173
  %v4175 = vpop.f32.mrb[0].mxu0
  %v4176 = vadd.f32 0.0, %v4175
  %v4177 = vpop.f32.mrb[0].mxu0
  %v4178 = vadd.f32 0.0, %v4177
  %v4179 = vpop.f32.mrb[0].mxu0
  %v4180 = vadd.f32 0.0, %v4179
  %4181 = vmatprep.mubr.bf16.mxu0 %v4021
  %4182 = vmatmul.mubr.bf16.gmra.mrb[0].mxu0 %v4020
  %v4183 = vpop.f32.mrb[0].mxu0
  %v4184 = vadd.f32 0.0, %v4183
  %v4185 = vpop.f32.mrb[0].mxu0
  %v4186 = vadd.f32 0.0, %v4185
  %v4187 = vpop.f32.mrb[0].mxu0
  %v4188 = vadd.f32 0.0, %v4187
  %v4189 = vpop.f32.mrb[0].mxu0
  %v4190 = vadd.f32 0.0, %v4189
  %4191 = vdwg.mxu0
  %4192 = vmatprep.subr.bf16.mxu0 %v3992
  %4193 = vmatpush1.bf16.msra.mxu0 %v3991
  %4194 = vmatprep.subr.bf16.mxu0 %v3996
  %4195 = vmatpush1.bf16.msra.mxu0 %v3995
  %4196 = vmatprep.subr.bf16.mxu0 0
  %4197 = vmatpush1.bf16.msra.mxu0 0
  %4198 = vmatprep.subr.bf16.mxu0 0
  %4199 = vmatpush1.bf16.msra.mxu0 0
  %4200 = vmatprep.subr.bf16.mxu0 0
  %4201 = vmatpush1.bf16.msra.mxu0 0
  %4202 = vmatprep.subr.bf16.mxu0 0
  %4203 = vmatpush1.bf16.msra.mxu0 0
  %4204 = vmatprep.subr.bf16.mxu0 0
  %4205 = vmatpush1.bf16.msra.mxu0 0
  %4206 = vmatprep.subr.bf16.mxu0 0
  %4207 = vmatpush1.bf16.msra.mxu0 0
  %4208 = vmatprep.subr.bf16.mxu0 0
  %4209 = vmatpush1.bf16.msra.mxu0 0
  %4210 = vmatprep.subr.bf16.mxu0 0
  %4211 = vmatpush1.bf16.msra.mxu0 0
  %4212 = vmatprep.subr.bf16.mxu0 0
  %4213 = vmatpush1.bf16.msra.mxu0 0
  %4214 = vmatprep.subr.bf16.mxu0 0
  %4215 = vmatpush1.bf16.msra.mxu0 0
  %4216 = vmatprep.subr.bf16.mxu0 0
  %4217 = vmatpush1.bf16.msra.mxu0 0
  %4218 = vmatprep.subr.bf16.mxu0 0
  %4219 = vmatpush1.bf16.msra.mxu0 0
  %4220 = vmatprep.subr.bf16.mxu0 0
  %4221 = vmatpush1.bf16.msra.mxu0 0
  %4222 = vmatprep.subr.bf16.mxu0 0
  %4223 = vmatpush1.bf16.msra.mxu0 0
  %4224 = vmatprep.mubr.bf16.mxu0 0
  %4225 = vmatmul.mubr.bf16.gmra.mrb[0].mxu0 %v4028
  %v4226 = vpop.f32.mrb[0].mxu0
  %v4227 = vadd.f32 %v4174, %v4226
  %v4228 = vpop.f32.mrb[0].mxu0
  %v4229 = vadd.f32 %v4176, %v4228
  %v4230 = vpop.f32.mrb[0].mxu0
  %v4231 = vadd.f32 %v4178, %v4230
  %v4232 = vpop.f32.mrb[0].mxu0
  %v4233 = vadd.f32 %v4180, %v4232
  %4234 = vmatprep.mubr.bf16.mxu0 0
  %4235 = vmatmul.mubr.bf16.gmra.mrb[0].mxu0 %v4031
  %v4236 = vpop.f32.mrb[0].mxu0
  %v4237 = vadd.f32 %v4184, %v4236
  %v4238 = vpop.f32.mrb[0].mxu0
  %v4239 = vadd.f32 %v4186, %v4238
  %v4240 = vpop.f32.mrb[0].mxu0
  %v4241 = vadd.f32 %v4188, %v4240
  %v4242 = vpop.f32.mrb[0].mxu0
  %v4243 = vadd.f32 %v4190, %v4242
  %4244 = vdwg.mxu0
  %v4245 = vadd.f32 %v4121, %v4123
  %4246 = vadd.xlane.f32.xlu0 %v4245
  %v4247 = vpop.xlane.xlu0 %4246
  %v4248 = vadd.f32 %v4125, %v4127
  %4249 = vadd.xlane.f32.xlu0 %v4248
  %v4250 = vpop.xlane.xlu0 %4249
  %v4251 = vadd.f32 %v4131, %v4133
  %4252 = vadd.xlane.f32.xlu0 %v4251
  %v4253 = vpop.xlane.xlu0 %4252
  %v4254 = vadd.f32 %v4135, %v4137
  %4255 = vadd.xlane.f32.xlu0 %v4254
  %v4256 = vpop.xlane.xlu0 %4255
  %v4257 = vmul.f32 %v4247, 0.00390625
  %v4258 = vmul.f32 %v4250, 0.00390625
  %v4259 = vmul.f32 %v4253, 0.00390625
  %v4260 = vmul.f32 %v4256, 0.00390625
  %v4261 = vmul.f32 %v4121, %v4121
  %v4262 = vmul.f32 %v4123, %v4123
  %v4263 = vmul.f32 %v4125, %v4125
  %v4264 = vmul.f32 %v4127, %v4127
  %v4265 = vmul.f32 %v4131, %v4131
  %v4266 = vmul.f32 %v4133, %v4133
  %v4267 = vmul.f32 %v4135, %v4135
  %v4268 = vmul.f32 %v4137, %v4137
  %v4269 = vadd.f32 %v4261, %v4262
  %4270 = vadd.xlane.f32.xlu0 %v4269
  %v4271 = vpop.xlane.xlu0 %4270
  %v4272 = vadd.f32 %v4263, %v4264
  %4273 = vadd.xlane.f32.xlu0 %v4272
  %v4274 = vpop.xlane.xlu0 %4273
  %v4275 = vadd.f32 %v4265, %v4266
  %4276 = vadd.xlane.f32.xlu0 %v4275
  %v4277 = vpop.xlane.xlu0 %4276
  %v4278 = vadd.f32 %v4267, %v4268
  %4279 = vadd.xlane.f32.xlu0 %v4278
  %v4280 = vpop.xlane.xlu0 %4279
  %v4281 = vmul.f32 %v4271, 0.00390625
  %v4282 = vmul.f32 %v4274, 0.00390625
  %v4283 = vmul.f32 %v4277, 0.00390625
  %v4284 = vmul.f32 %v4280, 0.00390625
  %v4285 = vmul.f32 %v4257, %v4257
  %v4286 = vmul.f32 %v4258, %v4258
  %v4287 = vmul.f32 %v4259, %v4259
  %v4288 = vmul.f32 %v4260, %v4260
  %v4289 = vsub.f32 %v4281, %v4285
  %v4290 = vsub.f32 %v4282, %v4286
  %v4291 = vsub.f32 %v4283, %v4287
  %v4292 = vsub.f32 %v4284, %v4288
  %v4293 = vsub.f32 %v4121, %v4257
  %v4294 = vsub.f32 %v4123, %v4257
  %v4295 = vsub.f32 %v4125, %v4258
  %v4296 = vsub.f32 %v4127, %v4258
  %v4297 = vsub.f32 %v4131, %v4259
  %v4298 = vsub.f32 %v4133, %v4259
  %v4299 = vsub.f32 %v4135, %v4260
  %v4300 = vsub.f32 %v4137, %v4260
  %v4301 = vadd.f32 %v4289, 1e-05
  %v4302 = vadd.f32 %v4290, 1e-05
  %v4303 = vadd.f32 %v4291, 1e-05
  %v4304 = vadd.f32 %v4292, 1e-05
  %v4305 = vrsqrt.pop %v4301
  %v4306 = vrsqrt.pop %v4302
  %v4307 = vrsqrt.pop %v4303
  %v4308 = vrsqrt.pop %v4304
  %v4309 = vmul.f32 %v4293, %v4305
  %v4310 = vmul.f32 %v4294, %v4305
  %v4311 = vmul.f32 %v4295, %v4306
  %v4312 = vmul.f32 %v4296, %v4306
  %v4313 = vmul.f32 %v4297, %v4307
  %v4314 = vmul.f32 %v4298, %v4307
  %v4315 = vmul.f32 %v4299, %v4308
  %v4316 = vmul.f32 %v4300, %v4308
  %v4317 = vmax.f32 %v4309, 0.0
  %v4318 = vmax.f32 %v4310, 0.0
  %v4319 = vmax.f32 %v4311, 0.0
  %v4320 = vmax.f32 %v4312, 0.0
  %v4321 = vmax.f32 %v4313, 0.0
  %v4322 = vmax.f32 %v4314, 0.0
  %v4323 = vmax.f32 %v4315, 0.0
  %v4324 = vmax.f32 %v4316, 0.0
  %v4325 = vadd.f32 %v4227, %v4229
  %4326 = vadd.xlane.f32.xlu0 %v4325
  %v4327 = vpop.xlane.xlu0 %4326
  %v4328 = vadd.f32 %v4231, %v4233
  %4329 = vadd.xlane.f32.xlu0 %v4328
  %v4330 = vpop.xlane.xlu0 %4329
  %v4331 = vadd.f32 %v4237, %v4239
  %4332 = vadd.xlane.f32.xlu0 %v4331
  %v4333 = vpop.xlane.xlu0 %4332
  %v4334 = vadd.f32 %v4241, %v4243
  %4335 = vadd.xlane.f32.xlu0 %v4334
  %v4336 = vpop.xlane.xlu0 %4335
  %v4337 = vmul.f32 %v4327, 0.00390625
  %v4338 = vmul.f32 %v4330, 0.00390625
  %v4339 = vmul.f32 %v4333, 0.00390625
  %v4340 = vmul.f32 %v4336, 0.00390625
  %v4341 = vmul.f32 %v4227, %v4227
  %v4342 = vmul.f32 %v4229, %v4229
  %v4343 = vmul.f32 %v4231, %v4231
  %v4344 = vmul.f32 %v4233, %v4233
  %v4345 = vmul.f32 %v4237, %v4237
  %v4346 = vmul.f32 %v4239, %v4239
  %v4347 = vmul.f32 %v4241, %v4241
  %v4348 = vmul.f32 %v4243, %v4243
  %v4349 = vadd.f32 %v4341, %v4342
  %4350 = vadd.xlane.f32.xlu0 %v4349
  %v4351 = vpop.xlane.xlu0 %4350
  %v4352 = vadd.f32 %v4343, %v4344
  %4353 = vadd.xlane.f32.xlu0 %v4352
  %v4354 = vpop.xlane.xlu0 %4353
  %v4355 = vadd.f32 %v4345, %v4346
  %4356 = vadd.xlane.f32.xlu0 %v4355
  %v4357 = vpop.xlane.xlu0 %4356
  %v4358 = vadd.f32 %v4347, %v4348
  %4359 = vadd.xlane.f32.xlu0 %v4358
  %v4360 = vpop.xlane.xlu0 %4359
  %v4361 = vmul.f32 %v4351, 0.00390625
  %v4362 = vmul.f32 %v4354, 0.00390625
  %v4363 = vmul.f32 %v4357, 0.00390625
  %v4364 = vmul.f32 %v4360, 0.00390625
  %v4365 = vmul.f32 %v4337, %v4337
  %v4366 = vmul.f32 %v4338, %v4338
  %v4367 = vmul.f32 %v4339, %v4339
  %v4368 = vmul.f32 %v4340, %v4340
  %v4369 = vsub.f32 %v4361, %v4365
  %v4370 = vsub.f32 %v4362, %v4366
  %v4371 = vsub.f32 %v4363, %v4367
  %v4372 = vsub.f32 %v4364, %v4368
  %v4373 = vsub.f32 %v4227, %v4337
  %v4374 = vsub.f32 %v4229, %v4337
  %v4375 = vsub.f32 %v4231, %v4338
  %v4376 = vsub.f32 %v4233, %v4338
  %v4377 = vsub.f32 %v4237, %v4339
  %v4378 = vsub.f32 %v4239, %v4339
  %v4379 = vsub.f32 %v4241, %v4340
  %v4380 = vsub.f32 %v4243, %v4340
  %v4381 = vadd.f32 %v4369, 1e-05
  %v4382 = vadd.f32 %v4370, 1e-05
  %v4383 = vadd.f32 %v4371, 1e-05
  %v4384 = vadd.f32 %v4372, 1e-05
  %v4385 = vrsqrt.pop %v4381
  %v4386 = vrsqrt.pop %v4382
  %v4387 = vrsqrt.pop %v4383
  %v4388 = vrsqrt.pop %v4384
  %v4389 = vmul.f32 %v4373, %v4385
  %v4390 = vmul.f32 %v4374, %v4385
  %v4391 = vmul.f32 %v4375, %v4386
  %v4392 = vmul.f32 %v4376, %v4386
  %v4393 = vmul.f32 %v4377, %v4387
  %v4394 = vmul.f32 %v4378, %v4387
  %v4395 = vmul.f32 %v4379, %v4388
  %v4396 = vmul.f32 %v4380, %v4388
  %v4397 = vmax.f32 %v4389, 0.0
  %v4398 = vmax.f32 %v4390, 0.0
  %v4399 = vmax.f32 %v4391, 0.0
  %v4400 = vmax.f32 %v4392, 0.0
  %v4401 = vmax.f32 %v4393, 0.0
  %v4402 = vmax.f32 %v4394, 0.0
  %v4403 = vmax.f32 %v4395, 0.0
  %v4404 = vmax.f32 %v4396, 0.0
  %4405 = vrot.lane.b32.xlu0 %v4317, 17
  %v4406 = vpop.permute.xlu0 %4405
  %4407 = vrot.lane.b32.xlu0 %v4319, 17
  %v4408 = vpop.permute.xlu0 %4407
  %4409 = vrot.lane.b32.xlu0 %v4321, 17
  %v4410 = vpop.permute.xlu0 %4409
  %4411 = vrot.lane.b32.xlu0 %v4323, 17
  %v4412 = vpop.permute.xlu0 %4411
  %4413 = vrot.lane.b32.xlu0 %v4318, 17
  %v4414 = vpop.permute.xlu0 %4413
  %4415 = vrot.lane.b32.xlu0 %v4320, 17
  %v4416 = vpop.permute.xlu0 %4415
  %4417 = vrot.lane.b32.xlu0 %v4322, 17
  %v4418 = vpop.permute.xlu0 %4417
  %4419 = vrot.lane.b32.xlu0 %v4324, 17
  %v4420 = vpop.permute.xlu0 %4419
  %4421 = vrot.lane.b32.xlu0 %v4397, 17
  %v4422 = vpop.permute.xlu0 %4421
  %4423 = vrot.lane.b32.xlu0 %v4399, 17
  %v4424 = vpop.permute.xlu0 %4423
  %4425 = vrot.lane.b32.xlu0 %v4401, 17
  %v4426 = vpop.permute.xlu0 %4425
  %4427 = vrot.lane.b32.xlu0 %v4403, 17
  %v4428 = vpop.permute.xlu0 %4427
  %4429 = vrot.lane.b32.xlu0 %v4398, 17
  %v4430 = vpop.permute.xlu0 %4429
  %4431 = vrot.lane.b32.xlu0 %v4400, 17
  %v4432 = vpop.permute.xlu0 %4431
  %4433 = vrot.lane.b32.xlu0 %v4402, 17
  %v4434 = vpop.permute.xlu0 %4433
  %4435 = vrot.lane.b32.xlu0 %v4404, 17
  %v4436 = vpop.permute.xlu0 %4435
  %v4437 = vsel %vm86, %v4422, %v4430
  %v4438 = vsel %vm86, %v4424, %v4432
  %v4439 = vsel %vm86, %v4426, %v4434
  %v4440 = vsel %vm86, %v4428, %v4436
  %v4441 = vsel %vm86, %v4414, %v4422
  %v4442 = vsel %vm86, %v4416, %v4424
  %v4443 = vsel %vm86, %v4418, %v4426
  %v4444 = vsel %vm86, %v4420, %v4428
  %v4445 = vsel %vm86, %v4406, %v4414
  %v4446 = vsel %vm86, %v4408, %v4416
  %v4447 = vsel %vm86, %v4410, %v4418
  %v4448 = vsel %vm86, %v4412, %v4420
  %v4449 = vsel %vm86, %v4430, %v4406
  %v4450 = vsel %vm86, %v4432, %v4408
  %v4451 = vsel %vm86, %v4434, %v4410
  %v4452 = vsel %vm86, %v4436, %v4412
  %v4453 = vsel %vm99, %v4449, 0.0
  %v4454 = vsel %vm100, %v4445, 0.0
  %v4455 = vsel %vm101, %v4441, 0.0
  %v4456 = vsel %vm102, %v4437, 0.0
  %v4457 = vsel %vm99, %v4450, 0.0
  %v4458 = vsel %vm100, %v4446, 0.0
  %v4459 = vsel %vm101, %v4442, 0.0
  %v4460 = vsel %vm102, %v4438, 0.0
  %v4461 = vsel %vm99, %v4451, 0.0
  %v4462 = vsel %vm100, %v4447, 0.0
  %v4463 = vsel %vm101, %v4443, 0.0
  %v4464 = vsel %vm102, %v4439, 0.0
  %v4465 = vsel %vm99, %v4452, 0.0
  %v4466 = vsel %vm100, %v4448, 0.0
  %v4467 = vsel %vm101, %v4444, 0.0
  %v4468 = vsel %vm102, %v4440, 0.0
  %v4469 = vpack.c.bf16 %v4457, %v4453
  %v4470 = vpack.c.bf16 %v4458, %v4454
  %v4471 = vpack.c.bf16 %v4459, %v4455
  %v4472 = vpack.c.bf16 %v4460, %v4456
  %v4473 = vpack.c.bf16 %v4465, %v4461
  %v4474 = vpack.c.bf16 %v4466, %v4462
  %v4475 = vpack.c.bf16 %v4467, %v4463
  %v4476 = vpack.c.bf16 %v4468, %v4464
  %4477 = vst [vmem:[#allocation2] sm:$0xff] %v4469
  %4478 = vst [vmem:[#allocation2 + $0x8] sm:$0xff] %v4470
  %4479 = vst [vmem:[#allocation2 + $0x10] sm:$0xff] %v4471
  %4480 = vst [vmem:[#allocation2 + $0x18] sm:$0xff] %v4472
  %4481 = vst [vmem:[#allocation2 + $0x20] sm:$0xff] %v4473
  %4482 = vst [vmem:[#allocation2 + $0x28] sm:$0xff] %v4474
  %4483 = vst [vmem:[#allocation2 + $0x30] sm:$0xff] %v4475
  %4484 = vst [vmem:[#allocation2 + $0x38] sm:$0xff] %v4476
  %4485 = vrot.lane.b32.xlu0 %v4317, 16
  %v4486 = vpop.permute.xlu0 %4485
  %4487 = vrot.lane.b32.xlu0 %v4319, 16
  %v4488 = vpop.permute.xlu0 %4487
  %4489 = vrot.lane.b32.xlu0 %v4321, 16
  %v4490 = vpop.permute.xlu0 %4489
  %4491 = vrot.lane.b32.xlu0 %v4323, 16
  %v4492 = vpop.permute.xlu0 %4491
  %4493 = vrot.lane.b32.xlu0 %v4318, 16
  %v4494 = vpop.permute.xlu0 %4493
  %4495 = vrot.lane.b32.xlu0 %v4320, 16
  %v4496 = vpop.permute.xlu0 %4495
  %4497 = vrot.lane.b32.xlu0 %v4322, 16
  %v4498 = vpop.permute.xlu0 %4497
  %4499 = vrot.lane.b32.xlu0 %v4324, 16
  %v4500 = vpop.permute.xlu0 %4499
  %4501 = vrot.lane.b32.xlu0 %v4397, 16
  %v4502 = vpop.permute.xlu0 %4501
  %4503 = vrot.lane.b32.xlu0 %v4399, 16
  %v4504 = vpop.permute.xlu0 %4503
  %4505 = vrot.lane.b32.xlu0 %v4401, 16
  %v4506 = vpop.permute.xlu0 %4505
  %4507 = vrot.lane.b32.xlu0 %v4403, 16
  %v4508 = vpop.permute.xlu0 %4507
  %4509 = vrot.lane.b32.xlu0 %v4398, 16
  %v4510 = vpop.permute.xlu0 %4509
  %4511 = vrot.lane.b32.xlu0 %v4400, 16
  %v4512 = vpop.permute.xlu0 %4511
  %4513 = vrot.lane.b32.xlu0 %v4402, 16
  %v4514 = vpop.permute.xlu0 %4513
  %4515 = vrot.lane.b32.xlu0 %v4404, 16
  %v4516 = vpop.permute.xlu0 %4515
  %v4517 = vsel %vm137, %v4502, %v4510
  %v4518 = vsel %vm137, %v4504, %v4512
  %v4519 = vsel %vm137, %v4506, %v4514
  %v4520 = vsel %vm137, %v4508, %v4516
  %v4521 = vsel %vm137, %v4494, %v4502
  %v4522 = vsel %vm137, %v4496, %v4504
  %v4523 = vsel %vm137, %v4498, %v4506
  %v4524 = vsel %vm137, %v4500, %v4508
  %v4525 = vsel %vm137, %v4486, %v4494
  %v4526 = vsel %vm137, %v4488, %v4496
  %v4527 = vsel %vm137, %v4490, %v4498
  %v4528 = vsel %vm137, %v4492, %v4500
  %v4529 = vsel %vm137, %v4510, %v4486
  %v4530 = vsel %vm137, %v4512, %v4488
  %v4531 = vsel %vm137, %v4514, %v4490
  %v4532 = vsel %vm137, %v4516, %v4492
  %v4533 = vsel %vm146, %v4529, 0.0
  %v4534 = vsel %vm147, %v4525, 0.0
  %v4535 = vsel %vm148, %v4521, 0.0
  %v4536 = vsel %vm149, %v4517, 0.0
  %v4537 = vsel %vm146, %v4530, 0.0
  %v4538 = vsel %vm147, %v4526, 0.0
  %v4539 = vsel %vm148, %v4522, 0.0
  %v4540 = vsel %vm149, %v4518, 0.0
  %v4541 = vsel %vm146, %v4531, 0.0
  %v4542 = vsel %vm147, %v4527, 0.0
  %v4543 = vsel %vm148, %v4523, 0.0
  %v4544 = vsel %vm149, %v4519, 0.0
  %v4545 = vsel %vm146, %v4532, 0.0
  %v4546 = vsel %vm147, %v4528, 0.0
  %v4547 = vsel %vm148, %v4524, 0.0
  %v4548 = vsel %vm149, %v4520, 0.0
  %v4549 = vpack.c.bf16 %v4537, %v4533
  %v4550 = vpack.c.bf16 %v4538, %v4534
  %v4551 = vpack.c.bf16 %v4539, %v4535
  %v4552 = vpack.c.bf16 %v4540, %v4536
  %v4553 = vpack.c.bf16 %v4545, %v4541
  %v4554 = vpack.c.bf16 %v4546, %v4542
  %v4555 = vpack.c.bf16 %v4547, %v4543
  %v4556 = vpack.c.bf16 %v4548, %v4544
  %4557 = vst [vmem:[#allocation2 + $0x40] sm:$0xff] %v4549
  %4558 = vst [vmem:[#allocation2 + $0x48] sm:$0xff] %v4550
  %4559 = vst [vmem:[#allocation2 + $0x50] sm:$0xff] %v4551
  %4560 = vst [vmem:[#allocation2 + $0x58] sm:$0xff] %v4552
  %4561 = vst [vmem:[#allocation2 + $0x60] sm:$0xff] %v4553
  %4562 = vst [vmem:[#allocation2 + $0x68] sm:$0xff] %v4554
  %4563 = vst [vmem:[#allocation2 + $0x70] sm:$0xff] %v4555
  %4564 = vst [vmem:[#allocation2 + $0x78] sm:$0xff] %v4556
  %4565 = vrot.lane.b32.xlu0 %v4317, 15
  %v4566 = vpop.permute.xlu0 %4565
  %4567 = vrot.lane.b32.xlu0 %v4319, 15
  %v4568 = vpop.permute.xlu0 %4567
  %4569 = vrot.lane.b32.xlu0 %v4321, 15
  %v4570 = vpop.permute.xlu0 %4569
  %4571 = vrot.lane.b32.xlu0 %v4323, 15
  %v4572 = vpop.permute.xlu0 %4571
  %4573 = vrot.lane.b32.xlu0 %v4318, 15
  %v4574 = vpop.permute.xlu0 %4573
  %4575 = vrot.lane.b32.xlu0 %v4320, 15
  %v4576 = vpop.permute.xlu0 %4575
  %4577 = vrot.lane.b32.xlu0 %v4322, 15
  %v4578 = vpop.permute.xlu0 %4577
  %4579 = vrot.lane.b32.xlu0 %v4324, 15
  %v4580 = vpop.permute.xlu0 %4579
  %4581 = vrot.lane.b32.xlu0 %v4397, 15
  %v4582 = vpop.permute.xlu0 %4581
  %4583 = vrot.lane.b32.xlu0 %v4399, 15
  %v4584 = vpop.permute.xlu0 %4583
  %4585 = vrot.lane.b32.xlu0 %v4401, 15
  %v4586 = vpop.permute.xlu0 %4585
  %4587 = vrot.lane.b32.xlu0 %v4403, 15
  %v4588 = vpop.permute.xlu0 %4587
  %4589 = vrot.lane.b32.xlu0 %v4398, 15
  %v4590 = vpop.permute.xlu0 %4589
  %4591 = vrot.lane.b32.xlu0 %v4400, 15
  %v4592 = vpop.permute.xlu0 %4591
  %4593 = vrot.lane.b32.xlu0 %v4402, 15
  %v4594 = vpop.permute.xlu0 %4593
  %4595 = vrot.lane.b32.xlu0 %v4404, 15
  %v4596 = vpop.permute.xlu0 %4595
  %v4597 = vsel %vm184, %v4582, %v4590
  %v4598 = vsel %vm184, %v4584, %v4592
  %v4599 = vsel %vm184, %v4586, %v4594
  %v4600 = vsel %vm184, %v4588, %v4596
  %v4601 = vsel %vm184, %v4574, %v4582
  %v4602 = vsel %vm184, %v4576, %v4584
  %v4603 = vsel %vm184, %v4578, %v4586
  %v4604 = vsel %vm184, %v4580, %v4588
  %v4605 = vsel %vm184, %v4566, %v4574
  %v4606 = vsel %vm184, %v4568, %v4576
  %v4607 = vsel %vm184, %v4570, %v4578
  %v4608 = vsel %vm184, %v4572, %v4580
  %v4609 = vsel %vm184, %v4590, %v4566
  %v4610 = vsel %vm184, %v4592, %v4568
  %v4611 = vsel %vm184, %v4594, %v4570
  %v4612 = vsel %vm184, %v4596, %v4572
  %v4613 = vsel %vm197, %v4609, 0.0
  %v4614 = vsel %vm198, %v4605, 0.0
  %v4615 = vsel %vm199, %v4601, 0.0
  %v4616 = vsel %vm200, %v4597, 0.0
  %v4617 = vsel %vm197, %v4610, 0.0
  %v4618 = vsel %vm198, %v4606, 0.0
  %v4619 = vsel %vm199, %v4602, 0.0
  %v4620 = vsel %vm200, %v4598, 0.0
  %v4621 = vsel %vm197, %v4611, 0.0
  %v4622 = vsel %vm198, %v4607, 0.0
  %v4623 = vsel %vm199, %v4603, 0.0
  %v4624 = vsel %vm200, %v4599, 0.0
  %v4625 = vsel %vm197, %v4612, 0.0
  %v4626 = vsel %vm198, %v4608, 0.0
  %v4627 = vsel %vm199, %v4604, 0.0
  %v4628 = vsel %vm200, %v4600, 0.0
  %v4629 = vpack.c.bf16 %v4617, %v4613
  %v4630 = vpack.c.bf16 %v4618, %v4614
  %v4631 = vpack.c.bf16 %v4619, %v4615
  %v4632 = vpack.c.bf16 %v4620, %v4616
  %v4633 = vpack.c.bf16 %v4625, %v4621
  %v4634 = vpack.c.bf16 %v4626, %v4622
  %v4635 = vpack.c.bf16 %v4627, %v4623
  %v4636 = vpack.c.bf16 %v4628, %v4624
  %4637 = vst [vmem:[#allocation2 + $0x80] sm:$0xff] %v4629
  %4638 = vst [vmem:[#allocation2 + $0x88] sm:$0xff] %v4630
  %4639 = vst [vmem:[#allocation2 + $0x90] sm:$0xff] %v4631
  %4640 = vst [vmem:[#allocation2 + $0x98] sm:$0xff] %v4632
  %4641 = vst [vmem:[#allocation2 + $0xa0] sm:$0xff] %v4633
  %4642 = vst [vmem:[#allocation2 + $0xa8] sm:$0xff] %v4634
  %4643 = vst [vmem:[#allocation2 + $0xb0] sm:$0xff] %v4635
  %4644 = vst [vmem:[#allocation2 + $0xb8] sm:$0xff] %v4636
  %4645 = vrot.lane.b32.xlu0 %v4317, 1
  %v4646 = vpop.permute.xlu0 %4645
  %4647 = vrot.lane.b32.xlu0 %v4319, 1
  %v4648 = vpop.permute.xlu0 %4647
  %4649 = vrot.lane.b32.xlu0 %v4321, 1
  %v4650 = vpop.permute.xlu0 %4649
  %4651 = vrot.lane.b32.xlu0 %v4323, 1
  %v4652 = vpop.permute.xlu0 %4651
  %4653 = vrot.lane.b32.xlu0 %v4318, 1
  %v4654 = vpop.permute.xlu0 %4653
  %4655 = vrot.lane.b32.xlu0 %v4320, 1
  %v4656 = vpop.permute.xlu0 %4655
  %4657 = vrot.lane.b32.xlu0 %v4322, 1
  %v4658 = vpop.permute.xlu0 %4657
  %4659 = vrot.lane.b32.xlu0 %v4324, 1
  %v4660 = vpop.permute.xlu0 %4659
  %4661 = vrot.lane.b32.xlu0 %v4397, 1
  %v4662 = vpop.permute.xlu0 %4661
  %4663 = vrot.lane.b32.xlu0 %v4399, 1
  %v4664 = vpop.permute.xlu0 %4663
  %4665 = vrot.lane.b32.xlu0 %v4401, 1
  %v4666 = vpop.permute.xlu0 %4665
  %4667 = vrot.lane.b32.xlu0 %v4403, 1
  %v4668 = vpop.permute.xlu0 %4667
  %4669 = vrot.lane.b32.xlu0 %v4398, 1
  %v4670 = vpop.permute.xlu0 %4669
  %4671 = vrot.lane.b32.xlu0 %v4400, 1
  %v4672 = vpop.permute.xlu0 %4671
  %4673 = vrot.lane.b32.xlu0 %v4402, 1
  %v4674 = vpop.permute.xlu0 %4673
  %4675 = vrot.lane.b32.xlu0 %v4404, 1
  %v4676 = vpop.permute.xlu0 %4675
  %v4677 = vsel %vm235, %v4662, %v4670
  %v4678 = vsel %vm235, %v4664, %v4672
  %v4679 = vsel %vm235, %v4666, %v4674
  %v4680 = vsel %vm235, %v4668, %v4676
  %v4681 = vsel %vm235, %v4654, %v4662
  %v4682 = vsel %vm235, %v4656, %v4664
  %v4683 = vsel %vm235, %v4658, %v4666
  %v4684 = vsel %vm235, %v4660, %v4668
  %v4685 = vsel %vm235, %v4646, %v4654
  %v4686 = vsel %vm235, %v4648, %v4656
  %v4687 = vsel %vm235, %v4650, %v4658
  %v4688 = vsel %vm235, %v4652, %v4660
  %v4689 = vsel %vm235, %v4670, %v4646
  %v4690 = vsel %vm235, %v4672, %v4648
  %v4691 = vsel %vm235, %v4674, %v4650
  %v4692 = vsel %vm235, %v4676, %v4652
  %v4693 = vsel %vm244, %v4689, 0.0
  %v4694 = vsel %vm245, %v4685, 0.0
  %v4695 = vsel %vm246, %v4681, 0.0
  %v4696 = vsel %vm247, %v4677, 0.0
  %v4697 = vsel %vm244, %v4690, 0.0
  %v4698 = vsel %vm245, %v4686, 0.0
  %v4699 = vsel %vm246, %v4682, 0.0
  %v4700 = vsel %vm247, %v4678, 0.0
  %v4701 = vsel %vm244, %v4691, 0.0
  %v4702 = vsel %vm245, %v4687, 0.0
  %v4703 = vsel %vm246, %v4683, 0.0
  %v4704 = vsel %vm247, %v4679, 0.0
  %v4705 = vsel %vm244, %v4692, 0.0
  %v4706 = vsel %vm245, %v4688, 0.0
  %v4707 = vsel %vm246, %v4684, 0.0
  %v4708 = vsel %vm247, %v4680, 0.0
  %v4709 = vpack.c.bf16 %v4697, %v4693
  %v4710 = vpack.c.bf16 %v4698, %v4694
  %v4711 = vpack.c.bf16 %v4699, %v4695
  %v4712 = vpack.c.bf16 %v4700, %v4696
  %v4713 = vpack.c.bf16 %v4705, %v4701
  %v4714 = vpack.c.bf16 %v4706, %v4702
  %v4715 = vpack.c.bf16 %v4707, %v4703
  %v4716 = vpack.c.bf16 %v4708, %v4704
  %4717 = vst [vmem:[#allocation2 + $0xc0] sm:$0xff] %v4709
  %4718 = vst [vmem:[#allocation2 + $0xc8] sm:$0xff] %v4710
  %4719 = vst [vmem:[#allocation2 + $0xd0] sm:$0xff] %v4711
  %4720 = vst [vmem:[#allocation2 + $0xd8] sm:$0xff] %v4712
  %4721 = vst [vmem:[#allocation2 + $0xe0] sm:$0xff] %v4713
  %4722 = vst [vmem:[#allocation2 + $0xe8] sm:$0xff] %v4714
  %4723 = vst [vmem:[#allocation2 + $0xf0] sm:$0xff] %v4715
  %4724 = vst [vmem:[#allocation2 + $0xf8] sm:$0xff] %v4716
  %v4725 = vpack.c.bf16 %v4319, %v4317
  %v4726 = vpack.c.bf16 %v4320, %v4318
  %v4727 = vpack.c.bf16 %v4399, %v4397
  %v4728 = vpack.c.bf16 %v4400, %v4398
  %v4729 = vpack.c.bf16 %v4323, %v4321
  %v4730 = vpack.c.bf16 %v4324, %v4322
  %v4731 = vpack.c.bf16 %v4403, %v4401
  %v4732 = vpack.c.bf16 %v4404, %v4402
  %4733 = vst [vmem:[#allocation2 + $0x100] sm:$0xff] %v4725
  %4734 = vst [vmem:[#allocation2 + $0x108] sm:$0xff] %v4726
  %4735 = vst [vmem:[#allocation2 + $0x110] sm:$0xff] %v4727
  %4736 = vst [vmem:[#allocation2 + $0x118] sm:$0xff] %v4728
  %4737 = vst [vmem:[#allocation2 + $0x120] sm:$0xff] %v4729
  %4738 = vst [vmem:[#allocation2 + $0x128] sm:$0xff] %v4730
  %4739 = vst [vmem:[#allocation2 + $0x130] sm:$0xff] %v4731
  %4740 = vst [vmem:[#allocation2 + $0x138] sm:$0xff] %v4732
  %4741 = vrot.lane.b32.xlu0 %v4317, 127
  %v4742 = vpop.permute.xlu0 %4741
  %4743 = vrot.lane.b32.xlu0 %v4319, 127
  %v4744 = vpop.permute.xlu0 %4743
  %4745 = vrot.lane.b32.xlu0 %v4321, 127
  %v4746 = vpop.permute.xlu0 %4745
  %4747 = vrot.lane.b32.xlu0 %v4323, 127
  %v4748 = vpop.permute.xlu0 %4747
  %4749 = vrot.lane.b32.xlu0 %v4318, 127
  %v4750 = vpop.permute.xlu0 %4749
  %4751 = vrot.lane.b32.xlu0 %v4320, 127
  %v4752 = vpop.permute.xlu0 %4751
  %4753 = vrot.lane.b32.xlu0 %v4322, 127
  %v4754 = vpop.permute.xlu0 %4753
  %4755 = vrot.lane.b32.xlu0 %v4324, 127
  %v4756 = vpop.permute.xlu0 %4755
  %4757 = vrot.lane.b32.xlu0 %v4397, 127
  %v4758 = vpop.permute.xlu0 %4757
  %4759 = vrot.lane.b32.xlu0 %v4399, 127
  %v4760 = vpop.permute.xlu0 %4759
  %4761 = vrot.lane.b32.xlu0 %v4401, 127
  %v4762 = vpop.permute.xlu0 %4761
  %4763 = vrot.lane.b32.xlu0 %v4403, 127
  %v4764 = vpop.permute.xlu0 %4763
  %4765 = vrot.lane.b32.xlu0 %v4398, 127
  %v4766 = vpop.permute.xlu0 %4765
  %4767 = vrot.lane.b32.xlu0 %v4400, 127
  %v4768 = vpop.permute.xlu0 %4767
  %4769 = vrot.lane.b32.xlu0 %v4402, 127
  %v4770 = vpop.permute.xlu0 %4769
  %4771 = vrot.lane.b32.xlu0 %v4404, 127
  %v4772 = vpop.permute.xlu0 %4771
  %v4773 = vsel %vm295, %v4758, %v4766
  %v4774 = vsel %vm295, %v4760, %v4768
  %v4775 = vsel %vm295, %v4762, %v4770
  %v4776 = vsel %vm295, %v4764, %v4772
  %v4777 = vsel %vm295, %v4750, %v4758
  %v4778 = vsel %vm295, %v4752, %v4760
  %v4779 = vsel %vm295, %v4754, %v4762
  %v4780 = vsel %vm295, %v4756, %v4764
  %v4781 = vsel %vm295, %v4742, %v4750
  %v4782 = vsel %vm295, %v4744, %v4752
  %v4783 = vsel %vm295, %v4746, %v4754
  %v4784 = vsel %vm295, %v4748, %v4756
  %v4785 = vsel %vm295, %v4766, %v4742
  %v4786 = vsel %vm295, %v4768, %v4744
  %v4787 = vsel %vm295, %v4770, %v4746
  %v4788 = vsel %vm295, %v4772, %v4748
  %v4789 = vsel %vm304, %v4781, 0.0
  %v4790 = vsel %vm305, %v4777, 0.0
  %v4791 = vsel %vm306, %v4773, 0.0
  %v4792 = vsel %vm307, %v4785, 0.0
  %v4793 = vsel %vm304, %v4782, 0.0
  %v4794 = vsel %vm305, %v4778, 0.0
  %v4795 = vsel %vm306, %v4774, 0.0
  %v4796 = vsel %vm307, %v4786, 0.0
  %v4797 = vsel %vm304, %v4783, 0.0
  %v4798 = vsel %vm305, %v4779, 0.0
  %v4799 = vsel %vm306, %v4775, 0.0
  %v4800 = vsel %vm307, %v4787, 0.0
  %v4801 = vsel %vm304, %v4784, 0.0
  %v4802 = vsel %vm305, %v4780, 0.0
  %v4803 = vsel %vm306, %v4776, 0.0
  %v4804 = vsel %vm307, %v4788, 0.0
  %v4805 = vpack.c.bf16 %v4793, %v4789
  %v4806 = vpack.c.bf16 %v4794, %v4790
  %v4807 = vpack.c.bf16 %v4795, %v4791
  %v4808 = vpack.c.bf16 %v4796, %v4792
  %v4809 = vpack.c.bf16 %v4801, %v4797
  %v4810 = vpack.c.bf16 %v4802, %v4798
  %v4811 = vpack.c.bf16 %v4803, %v4799
  %v4812 = vpack.c.bf16 %v4804, %v4800
  %4813 = vst [vmem:[#allocation2 + $0x140] sm:$0xff] %v4805
  %4814 = vst [vmem:[#allocation2 + $0x148] sm:$0xff] %v4806
  %4815 = vst [vmem:[#allocation2 + $0x150] sm:$0xff] %v4807
  %4816 = vst [vmem:[#allocation2 + $0x158] sm:$0xff] %v4808
  %4817 = vst [vmem:[#allocation2 + $0x160] sm:$0xff] %v4809
  %4818 = vst [vmem:[#allocation2 + $0x168] sm:$0xff] %v4810
  %4819 = vst [vmem:[#allocation2 + $0x170] sm:$0xff] %v4811
  %4820 = vst [vmem:[#allocation2 + $0x178] sm:$0xff] %v4812
  %4821 = vrot.lane.b32.xlu0 %v4317, 113
  %v4822 = vpop.permute.xlu0 %4821
  %4823 = vrot.lane.b32.xlu0 %v4319, 113
  %v4824 = vpop.permute.xlu0 %4823
  %4825 = vrot.lane.b32.xlu0 %v4321, 113
  %v4826 = vpop.permute.xlu0 %4825
  %4827 = vrot.lane.b32.xlu0 %v4323, 113
  %v4828 = vpop.permute.xlu0 %4827
  %4829 = vrot.lane.b32.xlu0 %v4318, 113
  %v4830 = vpop.permute.xlu0 %4829
  %4831 = vrot.lane.b32.xlu0 %v4320, 113
  %v4832 = vpop.permute.xlu0 %4831
  %4833 = vrot.lane.b32.xlu0 %v4322, 113
  %v4834 = vpop.permute.xlu0 %4833
  %4835 = vrot.lane.b32.xlu0 %v4324, 113
  %v4836 = vpop.permute.xlu0 %4835
  %4837 = vrot.lane.b32.xlu0 %v4397, 113
  %v4838 = vpop.permute.xlu0 %4837
  %4839 = vrot.lane.b32.xlu0 %v4399, 113
  %v4840 = vpop.permute.xlu0 %4839
  %4841 = vrot.lane.b32.xlu0 %v4401, 113
  %v4842 = vpop.permute.xlu0 %4841
  %4843 = vrot.lane.b32.xlu0 %v4403, 113
  %v4844 = vpop.permute.xlu0 %4843
  %4845 = vrot.lane.b32.xlu0 %v4398, 113
  %v4846 = vpop.permute.xlu0 %4845
  %4847 = vrot.lane.b32.xlu0 %v4400, 113
  %v4848 = vpop.permute.xlu0 %4847
  %4849 = vrot.lane.b32.xlu0 %v4402, 113
  %v4850 = vpop.permute.xlu0 %4849
  %4851 = vrot.lane.b32.xlu0 %v4404, 113
  %v4852 = vpop.permute.xlu0 %4851
  %v4853 = vsel %vm342, %v4838, %v4846
  %v4854 = vsel %vm342, %v4840, %v4848
  %v4855 = vsel %vm342, %v4842, %v4850
  %v4856 = vsel %vm342, %v4844, %v4852
  %v4857 = vsel %vm342, %v4830, %v4838
  %v4858 = vsel %vm342, %v4832, %v4840
  %v4859 = vsel %vm342, %v4834, %v4842
  %v4860 = vsel %vm342, %v4836, %v4844
  %v4861 = vsel %vm342, %v4822, %v4830
  %v4862 = vsel %vm342, %v4824, %v4832
  %v4863 = vsel %vm342, %v4826, %v4834
  %v4864 = vsel %vm342, %v4828, %v4836
  %v4865 = vsel %vm342, %v4846, %v4822
  %v4866 = vsel %vm342, %v4848, %v4824
  %v4867 = vsel %vm342, %v4850, %v4826
  %v4868 = vsel %vm342, %v4852, %v4828
  %v4869 = vsel %vm355, %v4861, 0.0
  %v4870 = vsel %vm356, %v4857, 0.0
  %v4871 = vsel %vm357, %v4853, 0.0
  %v4872 = vsel %vm358, %v4865, 0.0
  %v4873 = vsel %vm355, %v4862, 0.0
  %v4874 = vsel %vm356, %v4858, 0.0
  %v4875 = vsel %vm357, %v4854, 0.0
  %v4876 = vsel %vm358, %v4866, 0.0
  %v4877 = vsel %vm355, %v4863, 0.0
  %v4878 = vsel %vm356, %v4859, 0.0
  %v4879 = vsel %vm357, %v4855, 0.0
  %v4880 = vsel %vm358, %v4867, 0.0
  %v4881 = vsel %vm355, %v4864, 0.0
  %v4882 = vsel %vm356, %v4860, 0.0
  %v4883 = vsel %vm357, %v4856, 0.0
  %v4884 = vsel %vm358, %v4868, 0.0
  %v4885 = vpack.c.bf16 %v4873, %v4869
  %v4886 = vpack.c.bf16 %v4874, %v4870
  %v4887 = vpack.c.bf16 %v4875, %v4871
  %v4888 = vpack.c.bf16 %v4876, %v4872
  %v4889 = vpack.c.bf16 %v4881, %v4877
  %v4890 = vpack.c.bf16 %v4882, %v4878
  %v4891 = vpack.c.bf16 %v4883, %v4879
  %v4892 = vpack.c.bf16 %v4884, %v4880
  %4893 = vst [vmem:[#allocation2 + $0x180] sm:$0xff] %v4885
  %4894 = vst [vmem:[#allocation2 + $0x188] sm:$0xff] %v4886
  %4895 = vst [vmem:[#allocation2 + $0x190] sm:$0xff] %v4887
  %4896 = vst [vmem:[#allocation2 + $0x198] sm:$0xff] %v4888
  %4897 = vst [vmem:[#allocation2 + $0x1a0] sm:$0xff] %v4889
  %4898 = vst [vmem:[#allocation2 + $0x1a8] sm:$0xff] %v4890
  %4899 = vst [vmem:[#allocation2 + $0x1b0] sm:$0xff] %v4891
  %4900 = vst [vmem:[#allocation2 + $0x1b8] sm:$0xff] %v4892
  %4901 = vrot.lane.b32.xlu0 %v4317, 112
  %v4902 = vpop.permute.xlu0 %4901
  %4903 = vrot.lane.b32.xlu0 %v4319, 112
  %v4904 = vpop.permute.xlu0 %4903
  %4905 = vrot.lane.b32.xlu0 %v4321, 112
  %v4906 = vpop.permute.xlu0 %4905
  %4907 = vrot.lane.b32.xlu0 %v4323, 112
  %v4908 = vpop.permute.xlu0 %4907
  %4909 = vrot.lane.b32.xlu0 %v4318, 112
  %v4910 = vpop.permute.xlu0 %4909
  %4911 = vrot.lane.b32.xlu0 %v4320, 112
  %v4912 = vpop.permute.xlu0 %4911
  %4913 = vrot.lane.b32.xlu0 %v4322, 112
  %v4914 = vpop.permute.xlu0 %4913
  %4915 = vrot.lane.b32.xlu0 %v4324, 112
  %v4916 = vpop.permute.xlu0 %4915
  %4917 = vrot.lane.b32.xlu0 %v4397, 112
  %v4918 = vpop.permute.xlu0 %4917
  %4919 = vrot.lane.b32.xlu0 %v4399, 112
  %v4920 = vpop.permute.xlu0 %4919
  %4921 = vrot.lane.b32.xlu0 %v4401, 112
  %v4922 = vpop.permute.xlu0 %4921
  %4923 = vrot.lane.b32.xlu0 %v4403, 112
  %v4924 = vpop.permute.xlu0 %4923
  %4925 = vrot.lane.b32.xlu0 %v4398, 112
  %v4926 = vpop.permute.xlu0 %4925
  %4927 = vrot.lane.b32.xlu0 %v4400, 112
  %v4928 = vpop.permute.xlu0 %4927
  %4929 = vrot.lane.b32.xlu0 %v4402, 112
  %v4930 = vpop.permute.xlu0 %4929
  %4931 = vrot.lane.b32.xlu0 %v4404, 112
  %v4932 = vpop.permute.xlu0 %4931
  %v4933 = vsel %vm393, %v4918, %v4926
  %v4934 = vsel %vm393, %v4920, %v4928
  %v4935 = vsel %vm393, %v4922, %v4930
  %v4936 = vsel %vm393, %v4924, %v4932
  %v4937 = vsel %vm393, %v4910, %v4918
  %v4938 = vsel %vm393, %v4912, %v4920
  %v4939 = vsel %vm393, %v4914, %v4922
  %v4940 = vsel %vm393, %v4916, %v4924
  %v4941 = vsel %vm393, %v4902, %v4910
  %v4942 = vsel %vm393, %v4904, %v4912
  %v4943 = vsel %vm393, %v4906, %v4914
  %v4944 = vsel %vm393, %v4908, %v4916
  %v4945 = vsel %vm393, %v4926, %v4902
  %v4946 = vsel %vm393, %v4928, %v4904
  %v4947 = vsel %vm393, %v4930, %v4906
  %v4948 = vsel %vm393, %v4932, %v4908
  %v4949 = vsel %vm402, %v4941, 0.0
  %v4950 = vsel %vm403, %v4937, 0.0
  %v4951 = vsel %vm404, %v4933, 0.0
  %v4952 = vsel %vm405, %v4945, 0.0
  %v4953 = vsel %vm402, %v4942, 0.0
  %v4954 = vsel %vm403, %v4938, 0.0
  %v4955 = vsel %vm404, %v4934, 0.0
  %v4956 = vsel %vm405, %v4946, 0.0
  %v4957 = vsel %vm402, %v4943, 0.0
  %v4958 = vsel %vm403, %v4939, 0.0
  %v4959 = vsel %vm404, %v4935, 0.0
  %v4960 = vsel %vm405, %v4947, 0.0
  %v4961 = vsel %vm402, %v4944, 0.0
  %v4962 = vsel %vm403, %v4940, 0.0
  %v4963 = vsel %vm404, %v4936, 0.0
  %v4964 = vsel %vm405, %v4948, 0.0
  %v4965 = vpack.c.bf16 %v4953, %v4949
  %v4966 = vpack.c.bf16 %v4954, %v4950
  %v4967 = vpack.c.bf16 %v4955, %v4951
  %v4968 = vpack.c.bf16 %v4956, %v4952
  %v4969 = vpack.c.bf16 %v4961, %v4957
  %v4970 = vpack.c.bf16 %v4962, %v4958
  %v4971 = vpack.c.bf16 %v4963, %v4959
  %v4972 = vpack.c.bf16 %v4964, %v4960
  %4973 = vst [vmem:[#allocation2 + $0x1c0] sm:$0xff] %v4965
  %4974 = vst [vmem:[#allocation2 + $0x1c8] sm:$0xff] %v4966
  %4975 = vst [vmem:[#allocation2 + $0x1d0] sm:$0xff] %v4967
  %4976 = vst [vmem:[#allocation2 + $0x1d8] sm:$0xff] %v4968
  %4977 = vst [vmem:[#allocation2 + $0x1e0] sm:$0xff] %v4969
  %4978 = vst [vmem:[#allocation2 + $0x1e8] sm:$0xff] %v4970
  %4979 = vst [vmem:[#allocation2 + $0x1f0] sm:$0xff] %v4971
  %4980 = vst [vmem:[#allocation2 + $0x1f8] sm:$0xff] %v4972
  %4981 = vrot.lane.b32.xlu0 %v4317, 111
  %v4982 = vpop.permute.xlu0 %4981
  %4983 = vrot.lane.b32.xlu0 %v4319, 111
  %v4984 = vpop.permute.xlu0 %4983
  %4985 = vrot.lane.b32.xlu0 %v4321, 111
  %v4986 = vpop.permute.xlu0 %4985
  %4987 = vrot.lane.b32.xlu0 %v4323, 111
  %v4988 = vpop.permute.xlu0 %4987
  %4989 = vrot.lane.b32.xlu0 %v4318, 111
  %v4990 = vpop.permute.xlu0 %4989
  %4991 = vrot.lane.b32.xlu0 %v4320, 111
  %v4992 = vpop.permute.xlu0 %4991
  %4993 = vrot.lane.b32.xlu0 %v4322, 111
  %v4994 = vpop.permute.xlu0 %4993
  %4995 = vrot.lane.b32.xlu0 %v4324, 111
  %v4996 = vpop.permute.xlu0 %4995
  %4997 = vrot.lane.b32.xlu0 %v4397, 111
  %v4998 = vpop.permute.xlu0 %4997
  %4999 = vrot.lane.b32.xlu0 %v4399, 111
  %v5000 = vpop.permute.xlu0 %4999
  %5001 = vrot.lane.b32.xlu0 %v4401, 111
  %v5002 = vpop.permute.xlu0 %5001
  %5003 = vrot.lane.b32.xlu0 %v4403, 111
  %v5004 = vpop.permute.xlu0 %5003
  %5005 = vrot.lane.b32.xlu0 %v4398, 111
  %v5006 = vpop.permute.xlu0 %5005
  %5007 = vrot.lane.b32.xlu0 %v4400, 111
  %v5008 = vpop.permute.xlu0 %5007
  %5009 = vrot.lane.b32.xlu0 %v4402, 111
  %v5010 = vpop.permute.xlu0 %5009
  %5011 = vrot.lane.b32.xlu0 %v4404, 111
  %v5012 = vpop.permute.xlu0 %5011
  %v5013 = vsel %vm440, %v4998, %v5006
  %v5014 = vsel %vm440, %v5000, %v5008
  %v5015 = vsel %vm440, %v5002, %v5010
  %v5016 = vsel %vm440, %v5004, %v5012
  %v5017 = vsel %vm440, %v4990, %v4998
  %v5018 = vsel %vm440, %v4992, %v5000
  %v5019 = vsel %vm440, %v4994, %v5002
  %v5020 = vsel %vm440, %v4996, %v5004
  %v5021 = vsel %vm440, %v4982, %v4990
  %v5022 = vsel %vm440, %v4984, %v4992
  %v5023 = vsel %vm440, %v4986, %v4994
  %v5024 = vsel %vm440, %v4988, %v4996
  %v5025 = vsel %vm440, %v5006, %v4982
  %v5026 = vsel %vm440, %v5008, %v4984
  %v5027 = vsel %vm440, %v5010, %v4986
  %v5028 = vsel %vm440, %v5012, %v4988
  %v5029 = vsel %vm453, %v5021, 0.0
  %v5030 = vsel %vm454, %v5017, 0.0
  %v5031 = vsel %vm455, %v5013, 0.0
  %v5032 = vsel %vm456, %v5025, 0.0
  %v5033 = vsel %vm453, %v5022, 0.0
  %v5034 = vsel %vm454, %v5018, 0.0
  %v5035 = vsel %vm455, %v5014, 0.0
  %v5036 = vsel %vm456, %v5026, 0.0
  %v5037 = vsel %vm453, %v5023, 0.0
  %v5038 = vsel %vm454, %v5019, 0.0
  %v5039 = vsel %vm455, %v5015, 0.0
  %v5040 = vsel %vm456, %v5027, 0.0
  %v5041 = vsel %vm453, %v5024, 0.0
  %v5042 = vsel %vm454, %v5020, 0.0
  %v5043 = vsel %vm455, %v5016, 0.0
  %v5044 = vsel %vm456, %v5028, 0.0
  %v5045 = vpack.c.bf16 %v5033, %v5029
  %v5046 = vpack.c.bf16 %v5034, %v5030
  %v5047 = vpack.c.bf16 %v5035, %v5031
  %v5048 = vpack.c.bf16 %v5036, %v5032
  %v5049 = vpack.c.bf16 %v5041, %v5037
  %v5050 = vpack.c.bf16 %v5042, %v5038
  %v5051 = vpack.c.bf16 %v5043, %v5039
  %v5052 = vpack.c.bf16 %v5044, %v5040
  %5053 = vst [vmem:[#allocation2 + $0x200] sm:$0xff] %v5045
  %5054 = vst [vmem:[#allocation2 + $0x208] sm:$0xff] %v5046
  %5055 = vst [vmem:[#allocation2 + $0x210] sm:$0xff] %v5047
  %5056 = vst [vmem:[#allocation2 + $0x218] sm:$0xff] %v5048
  %5057 = vst [vmem:[#allocation2 + $0x220] sm:$0xff] %v5049
  %5058 = vst [vmem:[#allocation2 + $0x228] sm:$0xff] %v5050
  %5059 = vst [vmem:[#allocation2 + $0x230] sm:$0xff] %v5051
  %5060 = vst [vmem:[#allocation2 + $0x238] sm:$0xff] %v5052
  %s5061 = scalar_lea.vmem %s2, 192
  %v5062 = vld [vmem:[%s5061] sm:$0xff]
  %v5063 = vld [vmem:[%s5061 + $0x8] sm:$0xf]
  %v5064 = vld [vmem:[%s5061 + $0xc] sm:$0xff]
  %v5065 = vld [vmem:[%s5061 + $0x14] sm:$0xf]
  %v5066 = vld [vmem:[%s5061 + $0x18] sm:$0xff]
  %v5067 = vld [vmem:[%s5061 + $0x20] sm:$0xf]
  %v5068 = vld [vmem:[%s5061 + $0x24] sm:$0xff]
  %v5069 = vld [vmem:[%s5061 + $0x2c] sm:$0xf]
  %v5070 = vld [vmem:[#allocation2] sm:$0xff]
  %v5071 = vld [vmem:[#allocation2 + $0x8] sm:$0xff]
  %v5072 = vld [vmem:[#allocation2 + $0x10] sm:$0xff]
  %v5073 = vld [vmem:[#allocation2 + $0x18] sm:$0xff]
  %v5074 = vld [vmem:[#allocation2 + $0x20] sm:$0xff]
  %v5075 = vld [vmem:[#allocation2 + $0x28] sm:$0xff]
  %v5076 = vld [vmem:[#allocation2 + $0x30] sm:$0xff]
  %v5077 = vld [vmem:[#allocation2 + $0x38] sm:$0xff]
  %v5078 = vld [vmem:[#allocation2 + $0x40] sm:$0xff]
  %v5079 = vld [vmem:[#allocation2 + $0x48] sm:$0xff]
  %v5080 = vld [vmem:[#allocation2 + $0x50] sm:$0xff]
  %v5081 = vld [vmem:[#allocation2 + $0x58] sm:$0xff]
  %v5082 = vld [vmem:[#allocation2 + $0x60] sm:$0xff]
  %v5083 = vld [vmem:[#allocation2 + $0x68] sm:$0xff]
  %v5084 = vld [vmem:[#allocation2 + $0x70] sm:$0xff]
  %v5085 = vld [vmem:[#allocation2 + $0x78] sm:$0xff]
  %v5086 = vld [vmem:[#allocation2 + $0x80] sm:$0xff]
  %v5087 = vld [vmem:[#allocation2 + $0x88] sm:$0xff]
  %v5088 = vld [vmem:[#allocation2 + $0x90] sm:$0xff]
  %v5089 = vld [vmem:[#allocation2 + $0x98] sm:$0xff]
  %v5090 = vld [vmem:[#allocation2 + $0xa0] sm:$0xff]
  %v5091 = vld [vmem:[#allocation2 + $0xa8] sm:$0xff]
  %v5092 = vld [vmem:[#allocation2 + $0xb0] sm:$0xff]
  %v5093 = vld [vmem:[#allocation2 + $0xb8] sm:$0xff]
  %v5094 = vld [vmem:[#allocation2 + $0xc0] sm:$0xff]
  %v5095 = vld [vmem:[#allocation2 + $0xc8] sm:$0xff]
  %v5096 = vld [vmem:[#allocation2 + $0xd0] sm:$0xff]
  %v5097 = vld [vmem:[#allocation2 + $0xd8] sm:$0xff]
  %v5098 = vld [vmem:[#allocation2 + $0xe0] sm:$0xff]
  %v5099 = vld [vmem:[#allocation2 + $0xe8] sm:$0xff]
  %v5100 = vld [vmem:[#allocation2 + $0xf0] sm:$0xff]
  %v5101 = vld [vmem:[#allocation2 + $0xf8] sm:$0xff]
  %v5102 = vld [vmem:[#allocation2 + $0x100] sm:$0xff]
  %v5103 = vld [vmem:[#allocation2 + $0x108] sm:$0xff]
  %v5104 = vld [vmem:[#allocation2 + $0x110] sm:$0xff]
  %v5105 = vld [vmem:[#allocation2 + $0x118] sm:$0xff]
  %v5106 = vld [vmem:[#allocation2 + $0x120] sm:$0xff]
  %v5107 = vld [vmem:[#allocation2 + $0x128] sm:$0xff]
  %v5108 = vld [vmem:[#allocation2 + $0x130] sm:$0xff]
  %v5109 = vld [vmem:[#allocation2 + $0x138] sm:$0xff]
  %v5110 = vld [vmem:[#allocation2 + $0x140] sm:$0xff]
  %v5111 = vld [vmem:[#allocation2 + $0x148] sm:$0xff]
  %v5112 = vld [vmem:[#allocation2 + $0x150] sm:$0xff]
  %v5113 = vld [vmem:[#allocation2 + $0x158] sm:$0xff]
  %v5114 = vld [vmem:[#allocation2 + $0x160] sm:$0xff]
  %v5115 = vld [vmem:[#allocation2 + $0x168] sm:$0xff]
  %v5116 = vld [vmem:[#allocation2 + $0x170] sm:$0xff]
  %v5117 = vld [vmem:[#allocation2 + $0x178] sm:$0xff]
  %v5118 = vld [vmem:[#allocation2 + $0x180] sm:$0xff]
  %v5119 = vld [vmem:[#allocation2 + $0x188] sm:$0xff]
  %v5120 = vld [vmem:[#allocation2 + $0x190] sm:$0xff]
  %v5121 = vld [vmem:[#allocation2 + $0x198] sm:$0xff]
  %v5122 = vld [vmem:[#allocation2 + $0x1a0] sm:$0xff]
  %v5123 = vld [vmem:[#allocation2 + $0x1a8] sm:$0xff]
  %v5124 = vld [vmem:[#allocation2 + $0x1b0] sm:$0xff]
  %v5125 = vld [vmem:[#allocation2 + $0x1b8] sm:$0xff]
  %v5126 = vld [vmem:[#allocation2 + $0x1c0] sm:$0xff]
  %v5127 = vld [vmem:[#allocation2 + $0x1c8] sm:$0xff]
  %v5128 = vld [vmem:[#allocation2 + $0x1d0] sm:$0xff]
  %v5129 = vld [vmem:[#allocation2 + $0x1d8] sm:$0xff]
  %v5130 = vld [vmem:[#allocation2 + $0x1e0] sm:$0xff]
  %v5131 = vld [vmem:[#allocation2 + $0x1e8] sm:$0xff]
  %v5132 = vld [vmem:[#allocation2 + $0x1f0] sm:$0xff]
  %v5133 = vld [vmem:[#allocation2 + $0x1f8] sm:$0xff]
  %v5134 = vld [vmem:[#allocation2 + $0x200] sm:$0xff]
  %v5135 = vld [vmem:[#allocation2 + $0x208] sm:$0xff]
  %v5136 = vld [vmem:[#allocation2 + $0x210] sm:$0xff]
  %v5137 = vld [vmem:[#allocation2 + $0x218] sm:$0xff]
  %v5138 = vld [vmem:[#allocation2 + $0x220] sm:$0xff]
  %v5139 = vld [vmem:[#allocation2 + $0x228] sm:$0xff]
  %v5140 = vld [vmem:[#allocation2 + $0x230] sm:$0xff]
  %v5141 = vld [vmem:[#allocation2 + $0x238] sm:$0xff]
  %v5142 = vld [vmem:[%s3] sm:$0xff]
  %v5143 = vld [vmem:[%s3 + $0x8] sm:$0xff]
  %v5144 = vld [vmem:[%s3 + $0x10] sm:$0xff]
  %v5145 = vld [vmem:[%s3 + $0x18] sm:$0xff]
  %5147 = vset.pattern.permute.xlu0 0
  %5148 = vperm.xlu0 %5147, %v5142
  %v5149 = vpop.permute.xlu0 %5148
  %5152 = vset.pattern.permute.xlu0 0
  %5153 = vperm.xlu0 %5152, %v5143
  %v5154 = vpop.permute.xlu0 %5153
  %5157 = vset.pattern.permute.xlu0 0
  %5158 = vperm.xlu0 %5157, %v5144
  %v5159 = vpop.permute.xlu0 %5158
  %5162 = vset.pattern.permute.xlu0 0
  %5163 = vperm.xlu0 %5162, %v5145
  %v5164 = vpop.permute.xlu0 %5163
  %v5174 = vunpack.c.l.b16 %v5062
  %v5175 = vunpack.c.h.b16 %v5062
  %v5176 = vunpack.c.l.b16 %v5063
  %v5177 = vunpack.c.l.b16 %v5064
  %v5178 = vunpack.c.h.b16 %v5064
  %v5179 = vunpack.c.l.b16 %v5065
  %v5180 = vunpack.c.l.b16 %v5066
  %v5181 = vunpack.c.h.b16 %v5066
  %v5182 = vunpack.c.l.b16 %v5067
  %v5183 = vunpack.c.l.b16 %v5068
  %v5184 = vunpack.c.h.b16 %v5068
  %v5185 = vunpack.c.l.b16 %v5069
  %v5186 = vpack.c.b16 %v5177, %v5174
  %v5187 = vpack.c.b16 %v5178, %v5175
  %v5188 = vpack.c.b16 %v5179, %v5176
  %v5189 = vpack.c.b16 %v5183, %v5180
  %v5190 = vpack.c.b16 %v5184, %v5181
  %v5191 = vpack.c.b16 %v5185, %v5182
  %v5197 = vsel %vm591, %v5188, 0
  %v5200 = vsel %vm591, %v5191, 0
  %5202 = vmatprep.subr.bf16.mxu0 %v5071
  %5203 = vmatpush1.bf16.msra.mxu0 %v5070
  %5204 = vmatprep.subr.bf16.mxu0 %v5075
  %5205 = vmatpush1.bf16.msra.mxu0 %v5074
  %5206 = vmatprep.subr.bf16.mxu0 %v5079
  %5207 = vmatpush1.bf16.msra.mxu0 %v5078
  %5208 = vmatprep.subr.bf16.mxu0 %v5083
  %5209 = vmatpush1.bf16.msra.mxu0 %v5082
  %5210 = vmatprep.subr.bf16.mxu0 %v5087
  %5211 = vmatpush1.bf16.msra.mxu0 %v5086
  %5212 = vmatprep.subr.bf16.mxu0 %v5091
  %5213 = vmatpush1.bf16.msra.mxu0 %v5090
  %5214 = vmatprep.subr.bf16.mxu0 %v5095
  %5215 = vmatpush1.bf16.msra.mxu0 %v5094
  %5216 = vmatprep.subr.bf16.mxu0 %v5099
  %5217 = vmatpush1.bf16.msra.mxu0 %v5098
  %5218 = vmatprep.subr.bf16.mxu0 %v5103
  %5219 = vmatpush1.bf16.msra.mxu0 %v5102
  %5220 = vmatprep.subr.bf16.mxu0 %v5107
  %5221 = vmatpush1.bf16.msra.mxu0 %v5106
  %5222 = vmatprep.subr.bf16.mxu0 %v5111
  %5223 = vmatpush1.bf16.msra.mxu0 %v5110
  %5224 = vmatprep.subr.bf16.mxu0 %v5115
  %5225 = vmatpush1.bf16.msra.mxu0 %v5114
  %5226 = vmatprep.subr.bf16.mxu0 %v5119
  %5227 = vmatpush1.bf16.msra.mxu0 %v5118
  %5228 = vmatprep.subr.bf16.mxu0 %v5123
  %5229 = vmatpush1.bf16.msra.mxu0 %v5122
  %5230 = vmatprep.subr.bf16.mxu0 %v5127
  %5231 = vmatpush1.bf16.msra.mxu0 %v5126
  %5232 = vmatprep.subr.bf16.mxu0 %v5131
  %5233 = vmatpush1.bf16.msra.mxu0 %v5130
  %5234 = vmatprep.mubr.bf16.mxu0 %v5187
  %5235 = vmatmul.mubr.bf16.gmra.mrb[0].mxu0 %v5186
  %v5236 = vpop.f32.mrb[0].mxu0
  %v5237 = vadd.f32 %v5149, %v5236
  %v5238 = vpop.f32.mrb[0].mxu0
  %v5239 = vadd.f32 %v5149, %v5238
  %v5240 = vpop.f32.mrb[0].mxu0
  %v5241 = vadd.f32 %v5154, %v5240
  %v5242 = vpop.f32.mrb[0].mxu0
  %v5243 = vadd.f32 %v5154, %v5242
  %5244 = vmatprep.mubr.bf16.mxu0 %v5190
  %5245 = vmatmul.mubr.bf16.gmra.mrb[0].mxu0 %v5189
  %v5246 = vpop.f32.mrb[0].mxu0
  %v5247 = vadd.f32 %v5159, %v5246
  %v5248 = vpop.f32.mrb[0].mxu0
  %v5249 = vadd.f32 %v5159, %v5248
  %v5250 = vpop.f32.mrb[0].mxu0
  %v5251 = vadd.f32 %v5164, %v5250
  %v5252 = vpop.f32.mrb[0].mxu0
  %v5253 = vadd.f32 %v5164, %v5252
  %5254 = vdwg.mxu0
  %5255 = vmatprep.subr.bf16.mxu0 %v5135
  %5256 = vmatpush1.bf16.msra.mxu0 %v5134
  %5257 = vmatprep.subr.bf16.mxu0 %v5139
  %5258 = vmatpush1.bf16.msra.mxu0 %v5138
  %5259 = vmatprep.subr.bf16.mxu0 0
  %5260 = vmatpush1.bf16.msra.mxu0 0
  %5261 = vmatprep.subr.bf16.mxu0 0
  %5262 = vmatpush1.bf16.msra.mxu0 0
  %5263 = vmatprep.subr.bf16.mxu0 0
  %5264 = vmatpush1.bf16.msra.mxu0 0
  %5265 = vmatprep.subr.bf16.mxu0 0
  %5266 = vmatpush1.bf16.msra.mxu0 0
  %5267 = vmatprep.subr.bf16.mxu0 0
  %5268 = vmatpush1.bf16.msra.mxu0 0
  %5269 = vmatprep.subr.bf16.mxu0 0
  %5270 = vmatpush1.bf16.msra.mxu0 0
  %5271 = vmatprep.subr.bf16.mxu0 0
  %5272 = vmatpush1.bf16.msra.mxu0 0
  %5273 = vmatprep.subr.bf16.mxu0 0
  %5274 = vmatpush1.bf16.msra.mxu0 0
  %5275 = vmatprep.subr.bf16.mxu0 0
  %5276 = vmatpush1.bf16.msra.mxu0 0
  %5277 = vmatprep.subr.bf16.mxu0 0
  %5278 = vmatpush1.bf16.msra.mxu0 0
  %5279 = vmatprep.subr.bf16.mxu0 0
  %5280 = vmatpush1.bf16.msra.mxu0 0
  %5281 = vmatprep.subr.bf16.mxu0 0
  %5282 = vmatpush1.bf16.msra.mxu0 0
  %5283 = vmatprep.subr.bf16.mxu0 0
  %5284 = vmatpush1.bf16.msra.mxu0 0
  %5285 = vmatprep.subr.bf16.mxu0 0
  %5286 = vmatpush1.bf16.msra.mxu0 0
  %5287 = vmatprep.mubr.bf16.mxu0 0
  %5288 = vmatmul.mubr.bf16.gmra.mrb[0].mxu0 %v5197
  %v5289 = vpop.f32.mrb[0].mxu0
  %v5290 = vadd.f32 %v5237, %v5289
  %v5291 = vpop.f32.mrb[0].mxu0
  %v5292 = vadd.f32 %v5239, %v5291
  %v5293 = vpop.f32.mrb[0].mxu0
  %v5294 = vadd.f32 %v5241, %v5293
  %v5295 = vpop.f32.mrb[0].mxu0
  %v5296 = vadd.f32 %v5243, %v5295
  %5297 = vmatprep.mubr.bf16.mxu0 0
  %5298 = vmatmul.mubr.bf16.gmra.mrb[0].mxu0 %v5200
  %v5299 = vpop.f32.mrb[0].mxu0
  %v5300 = vadd.f32 %v5247, %v5299
  %v5301 = vpop.f32.mrb[0].mxu0
  %v5302 = vadd.f32 %v5249, %v5301
  %v5303 = vpop.f32.mrb[0].mxu0
  %v5304 = vadd.f32 %v5251, %v5303
  %v5305 = vpop.f32.mrb[0].mxu0
  %v5306 = vadd.f32 %v5253, %v5305
  %5307 = vdwg.mxu0
  %5308 = vmatprep.subr.bf16.mxu0 %v5073
  %5309 = vmatpush1.bf16.msra.mxu0 %v5072
  %5310 = vmatprep.subr.bf16.mxu0 %v5077
  %5311 = vmatpush1.bf16.msra.mxu0 %v5076
  %5312 = vmatprep.subr.bf16.mxu0 %v5081
  %5313 = vmatpush1.bf16.msra.mxu0 %v5080
  %5314 = vmatprep.subr.bf16.mxu0 %v5085
  %5315 = vmatpush1.bf16.msra.mxu0 %v5084
  %5316 = vmatprep.subr.bf16.mxu0 %v5089
  %5317 = vmatpush1.bf16.msra.mxu0 %v5088
  %5318 = vmatprep.subr.bf16.mxu0 %v5093
  %5319 = vmatpush1.bf16.msra.mxu0 %v5092
  %5320 = vmatprep.subr.bf16.mxu0 %v5097
  %5321 = vmatpush1.bf16.msra.mxu0 %v5096
  %5322 = vmatprep.subr.bf16.mxu0 %v5101
  %5323 = vmatpush1.bf16.msra.mxu0 %v5100
  %5324 = vmatprep.subr.bf16.mxu0 %v5105
  %5325 = vmatpush1.bf16.msra.mxu0 %v5104
  %5326 = vmatprep.subr.bf16.mxu0 %v5109
  %5327 = vmatpush1.bf16.msra.mxu0 %v5108
  %5328 = vmatprep.subr.bf16.mxu0 %v5113
  %5329 = vmatpush1.bf16.msra.mxu0 %v5112
  %5330 = vmatprep.subr.bf16.mxu0 %v5117
  %5331 = vmatpush1.bf16.msra.mxu0 %v5116
  %5332 = vmatprep.subr.bf16.mxu0 %v5121
  %5333 = vmatpush1.bf16.msra.mxu0 %v5120
  %5334 = vmatprep.subr.bf16.mxu0 %v5125
  %5335 = vmatpush1.bf16.msra.mxu0 %v5124
  %5336 = vmatprep.subr.bf16.mxu0 %v5129
  %5337 = vmatpush1.bf16.msra.mxu0 %v5128
  %5338 = vmatprep.subr.bf16.mxu0 %v5133
  %5339 = vmatpush1.bf16.msra.mxu0 %v5132
  %5340 = vmatprep.mubr.bf16.mxu0 %v5187
  %5341 = vmatmul.mubr.bf16.gmra.mrb[0].mxu0 %v5186
  %v5342 = vpop.f32.mrb[0].mxu0
  %v5343 = vadd.f32 %v5149, %v5342
  %v5344 = vpop.f32.mrb[0].mxu0
  %v5345 = vadd.f32 %v5149, %v5344
  %v5346 = vpop.f32.mrb[0].mxu0
  %v5347 = vadd.f32 %v5154, %v5346
  %v5348 = vpop.f32.mrb[0].mxu0
  %v5349 = vadd.f32 %v5154, %v5348
  %5350 = vmatprep.mubr.bf16.mxu0 %v5190
  %5351 = vmatmul.mubr.bf16.gmra.mrb[0].mxu0 %v5189
  %v5352 = vpop.f32.mrb[0].mxu0
  %v5353 = vadd.f32 %v5159, %v5352
  %v5354 = vpop.f32.mrb[0].mxu0
  %v5355 = vadd.f32 %v5159, %v5354
  %v5356 = vpop.f32.mrb[0].mxu0
  %v5357 = vadd.f32 %v5164, %v5356
  %v5358 = vpop.f32.mrb[0].mxu0
  %v5359 = vadd.f32 %v5164, %v5358
  %5360 = vdwg.mxu0
  %5361 = vmatprep.subr.bf16.mxu0 %v5137
  %5362 = vmatpush1.bf16.msra.mxu0 %v5136
  %5363 = vmatprep.subr.bf16.mxu0 %v5141
  %5364 = vmatpush1.bf16.msra.mxu0 %v5140
  %5365 = vmatprep.subr.bf16.mxu0 0
  %5366 = vmatpush1.bf16.msra.mxu0 0
  %5367 = vmatprep.subr.bf16.mxu0 0
  %5368 = vmatpush1.bf16.msra.mxu0 0
  %5369 = vmatprep.subr.bf16.mxu0 0
  %5370 = vmatpush1.bf16.msra.mxu0 0
  %5371 = vmatprep.subr.bf16.mxu0 0
  %5372 = vmatpush1.bf16.msra.mxu0 0
  %5373 = vmatprep.subr.bf16.mxu0 0
  %5374 = vmatpush1.bf16.msra.mxu0 0
  %5375 = vmatprep.subr.bf16.mxu0 0
  %5376 = vmatpush1.bf16.msra.mxu0 0
  %5377 = vmatprep.subr.bf16.mxu0 0
  %5378 = vmatpush1.bf16.msra.mxu0 0
  %5379 = vmatprep.subr.bf16.mxu0 0
  %5380 = vmatpush1.bf16.msra.mxu0 0
  %5381 = vmatprep.subr.bf16.mxu0 0
  %5382 = vmatpush1.bf16.msra.mxu0 0
  %5383 = vmatprep.subr.bf16.mxu0 0
  %5384 = vmatpush1.bf16.msra.mxu0 0
  %5385 = vmatprep.subr.bf16.mxu0 0
  %5386 = vmatpush1.bf16.msra.mxu0 0
  %5387 = vmatprep.subr.bf16.mxu0 0
  %5388 = vmatpush1.bf16.msra.mxu0 0
  %5389 = vmatprep.subr.bf16.mxu0 0
  %5390 = vmatpush1.bf16.msra.mxu0 0
  %5391 = vmatprep.subr.bf16.mxu0 0
  %5392 = vmatpush1.bf16.msra.mxu0 0
  %5393 = vmatprep.mubr.bf16.mxu0 0
  %5394 = vmatmul.mubr.bf16.gmra.mrb[0].mxu0 %v5197
  %v5395 = vpop.f32.mrb[0].mxu0
  %v5396 = vadd.f32 %v5343, %v5395
  %v5397 = vpop.f32.mrb[0].mxu0
  %v5398 = vadd.f32 %v5345, %v5397
  %v5399 = vpop.f32.mrb[0].mxu0
  %v5400 = vadd.f32 %v5347, %v5399
  %v5401 = vpop.f32.mrb[0].mxu0
  %v5402 = vadd.f32 %v5349, %v5401
  %5403 = vmatprep.mubr.bf16.mxu0 0
  %5404 = vmatmul.mubr.bf16.gmra.mrb[0].mxu0 %v5200
  %v5405 = vpop.f32.mrb[0].mxu0
  %v5406 = vadd.f32 %v5353, %v5405
  %v5407 = vpop.f32.mrb[0].mxu0
  %v5408 = vadd.f32 %v5355, %v5407
  %v5409 = vpop.f32.mrb[0].mxu0
  %v5410 = vadd.f32 %v5357, %v5409
  %v5411 = vpop.f32.mrb[0].mxu0
  %v5412 = vadd.f32 %v5359, %v5411
  %5413 = vdwg.mxu0
  %v5414 = vmax.f32 %v5290, 0.0
  %v5415 = vmax.f32 %v5292, 0.0
  %v5416 = vmax.f32 %v5396, 0.0
  %v5417 = vmax.f32 %v5398, 0.0
  %v5418 = vmax.f32 %v5294, 0.0
  %v5419 = vmax.f32 %v5296, 0.0
  %v5420 = vmax.f32 %v5400, 0.0
  %v5421 = vmax.f32 %v5402, 0.0
  %v5422 = vmax.f32 %v5300, 0.0
  %v5423 = vmax.f32 %v5302, 0.0
  %v5424 = vmax.f32 %v5406, 0.0
  %v5425 = vmax.f32 %v5408, 0.0
  %v5426 = vmax.f32 %v5304, 0.0
  %v5427 = vmax.f32 %v5306, 0.0
  %v5428 = vmax.f32 %v5410, 0.0
  %v5429 = vmax.f32 %v5412, 0.0
  %v5430 = vld [vmem:[%s4] sm:$0x3]
  %v5431 = vld [vmem:[%s5] sm:$0x3]
  %5433 = vset.pattern.permute.xlu0 0
  %5434 = vperm.xlu0 %5433, %v5431
  %v5435 = vpop.permute.xlu0 %5434
  %v5438 = vsel %vm591, %v5430, 0
  %5440 = vmatprep.subr.mxu0 %v5415
  %5441 = vmatpush1.msra.mxu0 %v5414
  %5442 = vmatprep.subr.mxu0 %v5419
  %5443 = vmatpush1.msra.mxu0 %v5418
  %5444 = vmatprep.subr.mxu0 %v5423
  %5445 = vmatpush1.msra.mxu0 %v5422
  %5446 = vmatprep.subr.mxu0 %v5427
  %5447 = vmatpush1.msra.mxu0 %v5426
  %5448 = vmatprep.subr.mxu0 0.0
  %5449 = vmatpush1.msra.mxu0 0.0
  %5450 = vmatprep.subr.mxu0 0.0
  %5451 = vmatpush1.msra.mxu0 0.0
  %5452 = vmatprep.subr.mxu0 0.0
  %5453 = vmatpush1.msra.mxu0 0.0
  %5454 = vmatprep.subr.mxu0 0.0
  %5455 = vmatpush1.msra.mxu0 0.0
  %5456 = vmatprep.subr.mxu0 0.0
  %5457 = vmatpush1.msra.mxu0 0.0
  %5458 = vmatprep.subr.mxu0 0.0
  %5459 = vmatpush1.msra.mxu0 0.0
  %5460 = vmatprep.subr.mxu0 0.0
  %5461 = vmatpush1.msra.mxu0 0.0
  %5462 = vmatprep.subr.mxu0 0.0
  %5463 = vmatpush1.msra.mxu0 0.0
  %5464 = vmatprep.subr.mxu0 0.0
  %5465 = vmatpush1.msra.mxu0 0.0
  %5466 = vmatprep.subr.mxu0 0.0
  %5467 = vmatpush1.msra.mxu0 0.0
  %5468 = vmatprep.subr.mxu0 0.0
  %5469 = vmatpush1.msra.mxu0 0.0
  %5470 = vmatprep.subr.mxu0 0.0
  %5471 = vmatpush1.msra.mxu0 0.0
  %5472 = vmatprep.subr.mxu0 0.0
  %5473 = vmatpush1.msra.mxu0 0.0
  %5474 = vmatprep.subr.mxu0 0.0
  %5475 = vmatpush1.msra.mxu0 0.0
  %5476 = vmatprep.subr.mxu0 0.0
  %5477 = vmatpush1.msra.mxu0 0.0
  %5478 = vmatprep.subr.mxu0 0.0
  %5479 = vmatpush1.msra.mxu0 0.0
  %5480 = vmatprep.subr.mxu0 0.0
  %5481 = vmatpush1.msra.mxu0 0.0
  %5482 = vmatprep.subr.mxu0 0.0
  %5483 = vmatpush1.msra.mxu0 0.0
  %5484 = vmatprep.subr.mxu0 0.0
  %5485 = vmatpush1.msra.mxu0 0.0
  %5486 = vmatprep.subr.mxu0 0.0
  %5487 = vmatpush1.msra.mxu0 0.0
  %5488 = vmatprep.subr.mxu0 0.0
  %5489 = vmatpush1.msra.mxu0 0.0
  %5490 = vmatprep.subr.mxu0 0.0
  %5491 = vmatpush1.msra.mxu0 0.0
  %5492 = vmatprep.subr.mxu0 0.0
  %5493 = vmatpush1.msra.mxu0 0.0
  %5494 = vmatprep.subr.mxu0 0.0
  %5495 = vmatpush1.msra.mxu0 0.0
  %5496 = vmatprep.subr.mxu0 0.0
  %5497 = vmatpush1.msra.mxu0 0.0
  %5498 = vmatprep.subr.mxu0 0.0
  %5499 = vmatpush1.msra.mxu0 0.0
  %5500 = vmatprep.subr.mxu0 0.0
  %5501 = vmatpush1.msra.mxu0 0.0
  %5502 = vmatprep.subr.mxu0 0.0
  %5503 = vmatpush1.msra.mxu0 0.0
  %5504 = vmatprep.mubr.f32.mxu0 0.0
  %5505 = vmatmul.mubr.f32.gmra.mrb[0].mxu0 %v5438
  %v5506 = vpop.f32.mrb[0].mxu0
  %v5507 = vadd.f32 %v5435, %v5506
  %v5508 = vpop.f32.mrb[0].mxu0
  %v5509 = vadd.f32 %v5435, %v5508
  %5510 = vdwg.mxu0
  %5511 = vmatprep.subr.mxu0 %v5417
  %5512 = vmatpush1.msra.mxu0 %v5416
  %5513 = vmatprep.subr.mxu0 %v5421
  %5514 = vmatpush1.msra.mxu0 %v5420
  %5515 = vmatprep.subr.mxu0 %v5425
  %5516 = vmatpush1.msra.mxu0 %v5424
  %5517 = vmatprep.subr.mxu0 %v5429
  %5518 = vmatpush1.msra.mxu0 %v5428
  %5519 = vmatprep.subr.mxu0 0.0
  %5520 = vmatpush1.msra.mxu0 0.0
  %5521 = vmatprep.subr.mxu0 0.0
  %5522 = vmatpush1.msra.mxu0 0.0
  %5523 = vmatprep.subr.mxu0 0.0
  %5524 = vmatpush1.msra.mxu0 0.0
  %5525 = vmatprep.subr.mxu0 0.0
  %5526 = vmatpush1.msra.mxu0 0.0
  %5527 = vmatprep.subr.mxu0 0.0
  %5528 = vmatpush1.msra.mxu0 0.0
  %5529 = vmatprep.subr.mxu0 0.0
  %5530 = vmatpush1.msra.mxu0 0.0
  %5531 = vmatprep.subr.mxu0 0.0
  %5532 = vmatpush1.msra.mxu0 0.0
  %5533 = vmatprep.subr.mxu0 0.0
  %5534 = vmatpush1.msra.mxu0 0.0
  %5535 = vmatprep.subr.mxu0 0.0
  %5536 = vmatpush1.msra.mxu0 0.0
  %5537 = vmatprep.subr.mxu0 0.0
  %5538 = vmatpush1.msra.mxu0 0.0
  %5539 = vmatprep.subr.mxu0 0.0
  %5540 = vmatpush1.msra.mxu0 0.0
  %5541 = vmatprep.subr.mxu0 0.0
  %5542 = vmatpush1.msra.mxu0 0.0
  %5543 = vmatprep.subr.mxu0 0.0
  %5544 = vmatpush1.msra.mxu0 0.0
  %5545 = vmatprep.subr.mxu0 0.0
  %5546 = vmatpush1.msra.mxu0 0.0
  %5547 = vmatprep.subr.mxu0 0.0
  %5548 = vmatpush1.msra.mxu0 0.0
  %5549 = vmatprep.subr.mxu0 0.0
  %5550 = vmatpush1.msra.mxu0 0.0
  %5551 = vmatprep.subr.mxu0 0.0
  %5552 = vmatpush1.msra.mxu0 0.0
  %5553 = vmatprep.subr.mxu0 0.0
  %5554 = vmatpush1.msra.mxu0 0.0
  %5555 = vmatprep.subr.mxu0 0.0
  %5556 = vmatpush1.msra.mxu0 0.0
  %5557 = vmatprep.subr.mxu0 0.0
  %5558 = vmatpush1.msra.mxu0 0.0
  %5559 = vmatprep.subr.mxu0 0.0
  %5560 = vmatpush1.msra.mxu0 0.0
  %5561 = vmatprep.subr.mxu0 0.0
  %5562 = vmatpush1.msra.mxu0 0.0
  %5563 = vmatprep.subr.mxu0 0.0
  %5564 = vmatpush1.msra.mxu0 0.0
  %5565 = vmatprep.subr.mxu0 0.0
  %5566 = vmatpush1.msra.mxu0 0.0
  %5567 = vmatprep.subr.mxu0 0.0
  %5568 = vmatpush1.msra.mxu0 0.0
  %5569 = vmatprep.subr.mxu0 0.0
  %5570 = vmatpush1.msra.mxu0 0.0
  %5571 = vmatprep.subr.mxu0 0.0
  %5572 = vmatpush1.msra.mxu0 0.0
  %5573 = vmatprep.subr.mxu0 0.0
  %5574 = vmatpush1.msra.mxu0 0.0
  %5575 = vmatprep.mubr.f32.mxu0 0.0
  %5576 = vmatmul.mubr.f32.gmra.mrb[0].mxu0 %v5438
  %v5577 = vpop.f32.mrb[0].mxu0
  %v5578 = vadd.f32 %v5435, %v5577
  %v5579 = vpop.f32.mrb[0].mxu0
  %v5580 = vadd.f32 %v5435, %v5579
  %5581 = vdwg.mxu0
  %v5584 = vcombine.low %v5507, %v5509
  %v5586 = vunpack.c.l.s4 1983009808
  %v5587 = vunpack.c.0.s8 %v5586
  %v5588 = vlaneseq
  %v5589 = vshrl.u32 %v5588, 7
  %v5590 = vsub.s32 %v5587, %v5589
  %v5591 = vrot.slane %v5584, %v5590
  %5593 = vst [vmem:[%s6] sm:$0xf] %v5591
  %v5596 = vcombine.low %v5578, %v5580
  %v5598 = vunpack.c.l.s4 1983009808
  %v5599 = vunpack.c.0.s8 %v5598
  %v5600 = vlaneseq
  %v5601 = vshrl.u32 %v5600, 7
  %v5602 = vsub.s32 %v5599, %v5601
  %v5603 = vrot.slane %v5596, %v5602
  %s5605 = scalar_lea.vmem %s6, 4
  %5606 = vst [vmem:[%s5605] sm:$0xf] %v5603
  // Predicated region
  $region26: #{fconv_in_forward.1} parent=0 // pred_check
    _
  $region27: #{fconv_in_forward.1} parent=0 // pred_check_branch
    %5608 = sbr.rel (0) target = $region29
  $region28: #{fconv_in_forward.1} parent=0 // pred_region
    _
  $region29: #{fconv_in_forward.1} parent=0 // pred_fallthru
    _
  // Predicated region
  $region30: #{fconv_in_forward.1} parent=0 // pred_check
    _
  $region31: #{fconv_in_forward.1} parent=0 // pred_check_branch
    %5610 = sbr.rel (0) target = $region33
  $region32: #{fconv_in_forward.1} parent=0 // pred_region
    _
  $region33: #{fconv_in_forward.1} parent=0 // pred_fallthru
    _

</llo_original>
